<compile_context>
chip_gen: v7x
topology: tpu7x:2x2x1
jax: 0.10.0
libtpu: 0.0.40
codegen_flags: <defaults>
</compile_context>

<pallas_src>
import jax
import jax.numpy as jnp
import numpy as np
from jax.experimental import pallas as pl
from jax.experimental.pallas import tpu as pltpu


# ---------------------------------------------------------------------------
# in-kernel helpers
# ---------------------------------------------------------------------------
def _fill_reflect_border(xp_ref, h, w):
    """Fill the 1-px ReflectionPad2d border of xp_ref (bt,H+2,W+2,C) from its interior."""
    # rows (original row r lives at padded row r+1)
    xp_ref[:, 0:1, 1:w + 1, :] = xp_ref[:, 2:3, 1:w + 1, :]              # top    <- row 1
    xp_ref[:, h + 1:h + 2, 1:w + 1, :] = xp_ref[:, h - 1:h, 1:w + 1, :]  # bottom <- row H-2
    # columns over the full padded height -> corners come out reflected in both dims
    xp_ref[:, :, 0:1, :] = xp_ref[:, :, 2:3, :]                          # left   <- col 1
    xp_ref[:, :, w + 1:w + 2, :] = xp_ref[:, :, w - 1:w, :]              # right  <- col W-2


def _conv3x3(xp_ref, w_ref, *, bt, h, w):
    """3x3 'VALID' conv over the reflect-padded tile as 3 row-grouped MXU dots.

    xp_ref : (bt, H+2, W+2, Cp) bf16 scratch (reflect-padded activations)
    w_ref  : (3, 3*Cp, Cp)      bf16, BN scale pre-folded; K index = dx*Cp + ci
    returns (bt*H*W, Cp) float32 (f32 accumulation on the MXU).
    """
    cp = w_ref.shape[-1]
    m = bt * h * w
    acc = None
    for dy in range(3):
        # Group the 3 dx taps of one kernel row -> K = 3*Cp per dot (>=384),
        # which keeps the 256-wide MXU on v6e/v7x fed even when Cp == 128.
        row = jnp.concatenate(
            [xp_ref[:, dy:dy + h, dx:dx + w, :].reshape(m, cp) for dx in range(3)],
            axis=-1)                                              # (m, 3*Cp) bf16
        part = jnp.dot(row, w_ref[dy], preferred_element_type=jnp.float32)
        acc = part if acc is None else acc + part
    return acc


def _resnet_block_kernel(x_ref, w1_ref, b1_ref, w2_ref, b2_ref, o_ref,
                         xp1_ref, xp2_ref):
    bt, h, w, cp = x_ref.shape

    # ---- stage 1: ReflectionPad -> Conv1 (BN1 scale folded) -> +b1 -> ReLU
    xp1_ref[:, 1:h + 1, 1:w + 1, :] = x_ref[...].astype(xp1_ref.dtype)
    _fill_reflect_border(xp1_ref, h, w)
    y1 = _conv3x3(xp1_ref, w1_ref, bt=bt, h=h, w=w)
    y1 = jnp.maximum(y1 + b1_ref[...].astype(jnp.float32), 0.0)          # f32 epilogue

    # ---- stage 2: write y1 straight into the interior of the 2nd padded scratch
    #      (no y1 materialize-then-copy), then ReflectionPad -> Conv2 -> +b2
    xp2_ref[:, 1:h + 1, 1:w + 1, :] = y1.reshape(bt, h, w, cp).astype(xp2_ref.dtype)
    _fill_reflect_border(xp2_ref, h, w)
    y2 = _conv3x3(xp2_ref, w2_ref, bt=bt, h=h, w=w)
    y2 = y2 + b2_ref[...].astype(jnp.float32)

    # ---- residual add: re-read the already-resident x block (no extra HBM traffic)
    o_ref[...] = (x_ref[...].astype(jnp.float32)
                  + y2.reshape(bt, h, w, cp)).astype(o_ref.dtype)


# ---------------------------------------------------------------------------
# wrapper: VMEM budgeting, batch tiling, pallas_call
# ---------------------------------------------------------------------------
def _vmem_budget_bytes():
    """Scoped-VMEM limit derived from physical VMEM: ~48 MiB on v7x (64 MiB),
    ~96 MiB on v5e/v6e (128 MiB). Conservative fallback if the query fails."""
    try:
        cap = int(pltpu.get_tpu_info().vmem_capacity_bytes)
    except Exception:
        cap = 0
    if cap <= 0:
        cap = 64 * 1024 * 1024                      # assume the smallest (v7x per-TC)
    return max(min(int(cap * 0.75), cap - (16 << 20)), 16 << 20)


def _pick_batch_tile(n, h, w, cp, io_itemsize, vmem_budget):
    """Largest divisor of n whose per-step VMEM footprint fits the budget while
    keeping >= min(4, n) grid steps (pipelining + megacore sharding on v7x)."""
    def footprint(bt):
        blk = bt * h * w * cp                       # elements in one activation block
        pad = bt * (h + 2) * (w + 2) * cp
        f = 2 * blk * io_itemsize                   # x block, double buffered
        f += 2 * blk * io_itemsize                  # out block, double buffered
        f += 2 * pad * 2                            # two bf16 padded scratch buffers
        f += blk * 4                                # f32 accumulator
        f += blk * 3 * 2                            # bf16 row-grouped patch temporary
        f += blk * 4                                # slack for other live temporaries
        return f

    weights = 2 * 2 * (9 * cp * cp * 2) + 2 * 2 * (cp * 4)   # dbl-buffered bf16 W + f32 b
    budget = max(vmem_budget - weights, 1)
    min_steps = min(4, n)
    bt = 1
    for d in range(1, n + 1):
        if n % d == 0 and n // d >= min_steps and footprint(d) <= budget:
            bt = max(bt, d)
    return bt


def resnet_block_forward(x_nchw, packed):
    """out = x + conv_block(x); x is NCHW (PyTorch convention)."""
    x = jnp.transpose(x_nchw, (0, 2, 3, 1))         # NCHW -> NHWC (lane-dense channels)
    n, h, w, c = x.shape
    assert h >= 2 and w >= 2, "ReflectionPad2d(1) needs H, W >= 2"
    cp = packed["w1p"].shape[-1]                    # channels padded to multiple of 128
    if cp != c:
        x = jnp.pad(x, ((0, 0), (0, 0), (0, 0), (0, cp - c)))

    vmem_budget = _vmem_budget_bytes()
    bt = _pick_batch_tile(n, h, w, cp, x.dtype.itemsize, int(vmem_budget * 0.85))
    grid = (n // bt,)

    out = pl.pallas_call(
        _resnet_block_kernel,
        out_shape=jax.ShapeDtypeStruct((n, h, w, cp), x.dtype),
        grid=grid,
        in_specs=[
            pl.BlockSpec((bt, h, w, cp), lambda i: (i, 0, 0, 0)),
            # grid-invariant packed weights / folded biases (constant index_map)
            pl.BlockSpec((3, 3 * cp, cp), lambda i: (0, 0, 0)),
            pl.BlockSpec((1, cp), lambda i: (0, 0)),
            pl.BlockSpec((3, 3 * cp, cp), lambda i: (0, 0, 0)),
            pl.BlockSpec((1, cp), lambda i: (0, 0)),
        ],
        out_specs=pl.BlockSpec((bt, h, w, cp), lambda i: (i, 0, 0, 0)),
        scratch_shapes=[
            pltpu.VMEM((bt, h + 2, w + 2, cp), jnp.bfloat16),   # padded stage-1 input
            pltpu.VMEM((bt, h + 2, w + 2, cp), jnp.bfloat16),   # padded stage-1 output
        ],
        compiler_params=pltpu.CompilerParams(
            dimension_semantics=("parallel",),
            vmem_limit_bytes=vmem_budget),
    )(x, packed["w1p"], packed["b1p"], packed["w2p"], packed["b2p"])

    if cp != c:
        out = out[..., :c]
    return jnp.transpose(out, (0, 3, 1, 2))         # NHWC -> NCHW


# ---------------------------------------------------------------------------
# parameters
# ---------------------------------------------------------------------------
def init_params(key, dim, eps=1e-5):
    """PyTorch-layout params: Conv2d OIHW weights + BatchNorm2d (eval) stats."""
    ks = jax.random.split(key, 10)
    w1 = 0.1 * jax.random.normal(ks[0], (dim, dim, 3, 3), jnp.float32)   # OIHW
    w2 = 0.1 * jax.random.normal(ks[1], (dim, dim, 3, 3), jnp.float32)
    g1 = 1.0 + 0.1 * jax.random.normal(ks[2], (dim,), jnp.float32)
    b1 = 0.1 * jax.random.normal(ks[3], (dim,), jnp.float32)
    m1 = 0.1 * jax.random.normal(ks[4], (dim,), jnp.float32)
    v1 = jax.random.uniform(ks[5], (dim,), jnp.float32, 0.5, 1.5)
    g2 = 1.0 + 0.1 * jax.random.normal(ks[6], (dim,), jnp.float32)
    b2 = 0.1 * jax.random.normal(ks[7], (dim,), jnp.float32)
    m2 = 0.1 * jax.random.normal(ks[8], (dim,), jnp.float32)
    v2 = jax.random.uniform(ks[9], (dim,), jnp.float32, 0.5, 1.5)
    return dict(w1=w1, g1=g1, b1=b1, m1=m1, v1=v1,
                w2=w2, g2=g2, b2=b2, m2=m2, v2=v2, eps=eps)


def pack_params(params):
    """Ahead-of-time: fold BN scale into conv weights, pad channels to a
    multiple of 128, pack taps row-grouped as (3, 3*Cp, Cp) in bf16."""
    eps = params["eps"]
    c = params["w1"].shape[0]
    cp = -(-c // 128) * 128

    def fold(w_oihw, g, b, m, v):
        s = g / jnp.sqrt(v + eps)                             # per out-channel BN scale
        bias = b - m * s
        w_hwio = jnp.transpose(w_oihw, (2, 3, 1, 0)) * s      # fold scale into weights
        w_pad = jnp.zeros((3, 3, cp, cp), jnp.float32).at[:, :, :c, :c].set(w_hwio)
        w_packed = w_pad.reshape(3, 3 * cp, cp).astype(jnp.bfloat16)  # K = dx*Cp + ci
        b_pad = jnp.zeros((1, cp), jnp.float32).at[0, :c].set(bias)   # epilogue stays f32
        return w_packed, b_pad

    w1p, b1p = fold(params["w1"], params["g1"], params["b1"], params["m1"], params["v1"])
    w2p, b2p = fold(params["w2"], params["g2"], params["b2"], params["m2"], params["v2"])
    return dict(w1p=w1p, b1p=b1p, w2p=w2p, b2p=b2p)


# ---------------------------------------------------------------------------
# pure-JAX reference (XLA conv, unfolded BN, f32) for correctness check
# ---------------------------------------------------------------------------
def _reference_forward(x_nchw, params):
    eps = params["eps"]
    x = jnp.transpose(x_nchw, (0, 2, 3, 1))

    def stage(inp, w_oihw, g, b, m, v, relu):
        w_hwio = jnp.transpose(w_oihw, (2, 3, 1, 0))
        xp = jnp.pad(inp, ((0, 0), (1, 1), (1, 1), (0, 0)), mode="reflect")
        y = jax.lax.conv_general_dilated(
            xp, w_hwio, (1, 1), "VALID",
            dimension_numbers=("NHWC", "HWIO", "NHWC"))
        s = g / jnp.sqrt(v + eps)
        y = y * s + (b - m * s)
        return jnp.maximum(y, 0.0) if relu else y

    y1 = stage(x, params["w1"], params["g1"], params["b1"], params["m1"], params["v1"], True)
    y2 = stage(y1, params["w2"], params["g2"], params["b2"], params["m2"], params["v2"], False)
    return jnp.transpose(x + y2, (0, 3, 1, 2))


if __name__ == "__main__":
    key = jax.random.PRNGKey(0)
    k_x, k_p = jax.random.split(key)

    N, C, H, W = 2, 4, 16, 16            # dim = 4
    x = jax.random.normal(k_x, (N, C, H, W), jnp.float32)
    params = init_params(k_p, C)
    packed = pack_params(params)

    out = jax.block_until_ready(jax.jit(resnet_block_forward)(x, packed))

    ref = jax.block_until_ready(_reference_forward(x, params))
    # bf16 MXU operands (f32 accumulation) -> slightly looser tolerance than f32.
    np.testing.assert_allclose(np.asarray(out), np.asarray(ref),
                               rtol=2e-2, atol=2e-2)
    assert out.shape == (N, C, H, W) and out.dtype == jnp.float32

    print("KERNEL_OK")
</pallas_src>

<mosaic_0001>
module attributes {stable_mosaic.version = 11 : i64} {
  func.func @_resnet_block_kernel(%arg0: i32, %arg1: memref<1x16x16x128xf32, #tpu.memory_space<vmem>>, %arg2: memref<3x384x128xbf16, #tpu.memory_space<vmem>>, %arg3: memref<1x128xf32, #tpu.memory_space<vmem>>, %arg4: memref<3x384x128xbf16, #tpu.memory_space<vmem>>, %arg5: memref<1x128xf32, #tpu.memory_space<vmem>>, %arg6: memref<1x16x16x128xf32, #tpu.memory_space<vmem>>, %arg7: memref<1x18x18x128xbf16, #tpu.memory_space<vmem>>, %arg8: memref<1x18x18x128xbf16, #tpu.memory_space<vmem>>) attributes {dimension_semantics = [#tpu.dimension_semantics<parallel>], iteration_bounds = array<i64: 2>, scalar_prefetch = 0 : i64, scratch_operands = 2 : i64, tpu.core_type = #tpu.core_type<tc>, window_params = [{transform_indices = @transform_0, window_bounds = array<i64: 1, 16, 16, 128>}, {pipeline_mode = #tpu.pipeline_mode<synchronous>, transform_indices = @transform_1, window_bounds = array<i64: 3, 384, 128>}, {pipeline_mode = #tpu.pipeline_mode<synchronous>, transform_indices = @transform_2, window_bounds = array<i64: 1, 128>}, {pipeline_mode = #tpu.pipeline_mode<synchronous>, transform_indices = @transform_3, window_bounds = array<i64: 3, 384, 128>}, {pipeline_mode = #tpu.pipeline_mode<synchronous>, transform_indices = @transform_4, window_bounds = array<i64: 1, 128>}, {transform_indices = @transform_5, window_bounds = array<i64: 1, 16, 16, 128>}]} {
    %c0 = arith.constant 0 : index
    %c0_0 = arith.constant 0 : index
    %c0_1 = arith.constant 0 : index
    %c0_2 = arith.constant 0 : index
    %0 = vector.load %arg1[%c0, %c0_0, %c0_1, %c0_2] : memref<1x16x16x128xf32, #tpu.memory_space<vmem>>, vector<1x16x16x128xf32>
    %1 = arith.truncf %0 : vector<1x16x16x128xf32> to vector<1x16x16x128xbf16>
    %c0_3 = arith.constant 0 : index
    %c1 = arith.constant 1 : index
    %c1_4 = arith.constant 1 : index
    %c0_5 = arith.constant 0 : index
    %2 = vector.load %arg7[%c0_3, %c1, %c1_4, %c0_5] : memref<1x18x18x128xbf16, #tpu.memory_space<vmem>>, vector<1x16x16x128xbf16>
    tpu.vector_store %arg7[%c0_3, %c1, %c1_4, %c0_5], %1 {strides = array<i32>} : memref<1x18x18x128xbf16, #tpu.memory_space<vmem>>, vector<1x16x16x128xbf16>,
    %c0_6 = arith.constant 0 : index
    %c2 = arith.constant 2 : index
    %c1_7 = arith.constant 1 : index
    %c0_8 = arith.constant 0 : index
    %3 = vector.load %arg7[%c0_6, %c2, %c1_7, %c0_8] : memref<1x18x18x128xbf16, #tpu.memory_space<vmem>>, vector<1x1x16x128xbf16>
    %c0_9 = arith.constant 0 : index
    %c0_10 = arith.constant 0 : index
    %c1_11 = arith.constant 1 : index
    %c0_12 = arith.constant 0 : index
    %4 = vector.load %arg7[%c0_9, %c0_10, %c1_11, %c0_12] : memref<1x18x18x128xbf16, #tpu.memory_space<vmem>>, vector<1x1x16x128xbf16>
    tpu.vector_store %arg7[%c0_9, %c0_10, %c1_11, %c0_12], %3 {strides = array<i32>} : memref<1x18x18x128xbf16, #tpu.memory_space<vmem>>, vector<1x1x16x128xbf16>,
    %c0_13 = arith.constant 0 : index
    %c15 = arith.constant 15 : index
    %c1_14 = arith.constant 1 : index
    %c0_15 = arith.constant 0 : index
    %5 = vector.load %arg7[%c0_13, %c15, %c1_14, %c0_15] : memref<1x18x18x128xbf16, #tpu.memory_space<vmem>>, vector<1x1x16x128xbf16>
    %c0_16 = arith.constant 0 : index
    %c17 = arith.constant 17 : index
    %c1_17 = arith.constant 1 : index
    %c0_18 = arith.constant 0 : index
    %6 = vector.load %arg7[%c0_16, %c17, %c1_17, %c0_18] : memref<1x18x18x128xbf16, #tpu.memory_space<vmem>>, vector<1x1x16x128xbf16>
    tpu.vector_store %arg7[%c0_16, %c17, %c1_17, %c0_18], %5 {strides = array<i32>} : memref<1x18x18x128xbf16, #tpu.memory_space<vmem>>, vector<1x1x16x128xbf16>,
    %c0_19 = arith.constant 0 : index
    %c0_20 = arith.constant 0 : index
    %c2_21 = arith.constant 2 : index
    %c0_22 = arith.constant 0 : index
    %7 = vector.load %arg7[%c0_19, %c0_20, %c2_21, %c0_22] : memref<1x18x18x128xbf16, #tpu.memory_space<vmem>>, vector<1x18x1x128xbf16>
    %c0_23 = arith.constant 0 : index
    %c0_24 = arith.constant 0 : index
    %c0_25 = arith.constant 0 : index
    %c0_26 = arith.constant 0 : index
    %8 = vector.load %arg7[%c0_23, %c0_24, %c0_25, %c0_26] : memref<1x18x18x128xbf16, #tpu.memory_space<vmem>>, vector<1x18x1x128xbf16>
    tpu.vector_store %arg7[%c0_23, %c0_24, %c0_25, %c0_26], %7 {strides = array<i32>} : memref<1x18x18x128xbf16, #tpu.memory_space<vmem>>, vector<1x18x1x128xbf16>,
    %c0_27 = arith.constant 0 : index
    %c0_28 = arith.constant 0 : index
    %c15_29 = arith.constant 15 : index
    %c0_30 = arith.constant 0 : index
    %9 = vector.load %arg7[%c0_27, %c0_28, %c15_29, %c0_30] : memref<1x18x18x128xbf16, #tpu.memory_space<vmem>>, vector<1x18x1x128xbf16>
    %c0_31 = arith.constant 0 : index
    %c0_32 = arith.constant 0 : index
    %c17_33 = arith.constant 17 : index
    %c0_34 = arith.constant 0 : index
    %10 = vector.load %arg7[%c0_31, %c0_32, %c17_33, %c0_34] : memref<1x18x18x128xbf16, #tpu.memory_space<vmem>>, vector<1x18x1x128xbf16>
    tpu.vector_store %arg7[%c0_31, %c0_32, %c17_33, %c0_34], %9 {strides = array<i32>} : memref<1x18x18x128xbf16, #tpu.memory_space<vmem>>, vector<1x18x1x128xbf16>,
    %c0_35 = arith.constant 0 : index
    %c0_36 = arith.constant 0 : index
    %c0_37 = arith.constant 0 : index
    %c0_38 = arith.constant 0 : index
    %11 = vector.load %arg7[%c0_35, %c0_36, %c0_37, %c0_38] : memref<1x18x18x128xbf16, #tpu.memory_space<vmem>>, vector<1x16x16x128xbf16>
    %12 = vector.shape_cast %11 : vector<1x16x16x128xbf16> to vector<256x128xbf16>
    %c0_39 = arith.constant 0 : index
    %c0_40 = arith.constant 0 : index
    %c1_41 = arith.constant 1 : index
    %c0_42 = arith.constant 0 : index
    %13 = vector.load %arg7[%c0_39, %c0_40, %c1_41, %c0_42] : memref<1x18x18x128xbf16, #tpu.memory_space<vmem>>, vector<1x16x16x128xbf16>
    %14 = vector.shape_cast %13 : vector<1x16x16x128xbf16> to vector<256x128xbf16>
    %c0_43 = arith.constant 0 : index
    %c0_44 = arith.constant 0 : index
    %c2_45 = arith.constant 2 : index
    %c0_46 = arith.constant 0 : index
    %15 = vector.load %arg7[%c0_43, %c0_44, %c2_45, %c0_46] : memref<1x18x18x128xbf16, #tpu.memory_space<vmem>>, vector<1x16x16x128xbf16>
    %16 = vector.shape_cast %15 : vector<1x16x16x128xbf16> to vector<256x128xbf16>
    %17 = tpu.concatenate %12, %14, %16 in 1 : vector<256x128xbf16>, vector<256x128xbf16>, vector<256x128xbf16> -> vector<256x384xbf16>
    %c0_47 = arith.constant 0 : index
    %c0_48 = arith.constant 0 : index
    %c0_49 = arith.constant 0 : index
    %18 = vector.load %arg2[%c0_47, %c0_48, %c0_49] : memref<3x384x128xbf16, #tpu.memory_space<vmem>>, vector<1x384x128xbf16>
    %19 = vector.shape_cast %18 : vector<1x384x128xbf16> to vector<384x128xbf16>
    %cst = arith.constant dense<0.000000e+00> : vector<256x128xf32>
    %20 = tpu.matmul %17, %19, %cst {dimension_numbers = #tpu.dot_dimension_numbers<[1], [0], [0], [1], [0, 0, 1, 1], [], []>} : vector<256x384xbf16>, vector<384x128xbf16>, vector<256x128xf32> -> vector<256x128xf32>
    %c0_50 = arith.constant 0 : index
    %c1_51 = arith.constant 1 : index
    %c0_52 = arith.constant 0 : index
    %c0_53 = arith.constant 0 : index
    %21 = vector.load %arg7[%c0_50, %c1_51, %c0_52, %c0_53] : memref<1x18x18x128xbf16, #tpu.memory_space<vmem>>, vector<1x16x16x128xbf16>
    %22 = vector.shape_cast %21 : vector<1x16x16x128xbf16> to vector<256x128xbf16>
    %c0_54 = arith.constant 0 : index
    %c1_55 = arith.constant 1 : index
    %c1_56 = arith.constant 1 : index
    %c0_57 = arith.constant 0 : index
    %23 = vector.load %arg7[%c0_54, %c1_55, %c1_56, %c0_57] : memref<1x18x18x128xbf16, #tpu.memory_space<vmem>>, vector<1x16x16x128xbf16>
    %24 = vector.shape_cast %23 : vector<1x16x16x128xbf16> to vector<256x128xbf16>
    %c0_58 = arith.constant 0 : index
    %c1_59 = arith.constant 1 : index
    %c2_60 = arith.constant 2 : index
    %c0_61 = arith.constant 0 : index
    %25 = vector.load %arg7[%c0_58, %c1_59, %c2_60, %c0_61] : memref<1x18x18x128xbf16, #tpu.memory_space<vmem>>, vector<1x16x16x128xbf16>
    %26 = vector.shape_cast %25 : vector<1x16x16x128xbf16> to vector<256x128xbf16>
    %27 = tpu.concatenate %22, %24, %26 in 1 : vector<256x128xbf16>, vector<256x128xbf16>, vector<256x128xbf16> -> vector<256x384xbf16>
    %c1_62 = arith.constant 1 : index
    %c0_63 = arith.constant 0 : index
    %c0_64 = arith.constant 0 : index
    %28 = vector.load %arg2[%c1_62, %c0_63, %c0_64] : memref<3x384x128xbf16, #tpu.memory_space<vmem>>, vector<1x384x128xbf16>
    %29 = vector.shape_cast %28 : vector<1x384x128xbf16> to vector<384x128xbf16>
    %cst_65 = arith.constant dense<0.000000e+00> : vector<256x128xf32>
    %30 = tpu.matmul %27, %29, %cst_65 {dimension_numbers = #tpu.dot_dimension_numbers<[1], [0], [0], [1], [0, 0, 1, 1], [], []>} : vector<256x384xbf16>, vector<384x128xbf16>, vector<256x128xf32> -> vector<256x128xf32>
    %31 = arith.addf %20, %30 : vector<256x128xf32>
    %c0_66 = arith.constant 0 : index
    %c2_67 = arith.constant 2 : index
    %c0_68 = arith.constant 0 : index
    %c0_69 = arith.constant 0 : index
    %32 = vector.load %arg7[%c0_66, %c2_67, %c0_68, %c0_69] : memref<1x18x18x128xbf16, #tpu.memory_space<vmem>>, vector<1x16x16x128xbf16>
    %33 = vector.shape_cast %32 : vector<1x16x16x128xbf16> to vector<256x128xbf16>
    %c0_70 = arith.constant 0 : index
    %c2_71 = arith.constant 2 : index
    %c1_72 = arith.constant 1 : index
    %c0_73 = arith.constant 0 : index
    %34 = vector.load %arg7[%c0_70, %c2_71, %c1_72, %c0_73] : memref<1x18x18x128xbf16, #tpu.memory_space<vmem>>, vector<1x16x16x128xbf16>
    %35 = vector.shape_cast %34 : vector<1x16x16x128xbf16> to vector<256x128xbf16>
    %c0_74 = arith.constant 0 : index
    %c2_75 = arith.constant 2 : index
    %c2_76 = arith.constant 2 : index
    %c0_77 = arith.constant 0 : index
    %36 = vector.load %arg7[%c0_74, %c2_75, %c2_76, %c0_77] : memref<1x18x18x128xbf16, #tpu.memory_space<vmem>>, vector<1x16x16x128xbf16>
    %37 = vector.shape_cast %36 : vector<1x16x16x128xbf16> to vector<256x128xbf16>
    %38 = tpu.concatenate %33, %35, %37 in 1 : vector<256x128xbf16>, vector<256x128xbf16>, vector<256x128xbf16> -> vector<256x384xbf16>
    %c2_78 = arith.constant 2 : index
    %c0_79 = arith.constant 0 : index
    %c0_80 = arith.constant 0 : index
    %39 = vector.load %arg2[%c2_78, %c0_79, %c0_80] : memref<3x384x128xbf16, #tpu.memory_space<vmem>>, vector<1x384x128xbf16>
    %40 = vector.shape_cast %39 : vector<1x384x128xbf16> to vector<384x128xbf16>
    %cst_81 = arith.constant dense<0.000000e+00> : vector<256x128xf32>
    %41 = tpu.matmul %38, %40, %cst_81 {dimension_numbers = #tpu.dot_dimension_numbers<[1], [0], [0], [1], [0, 0, 1, 1], [], []>} : vector<256x384xbf16>, vector<384x128xbf16>, vector<256x128xf32> -> vector<256x128xf32>
    %42 = arith.addf %31, %41 : vector<256x128xf32>
    %c0_82 = arith.constant 0 : index
    %c0_83 = arith.constant 0 : index
    %43 = vector.load %arg3[%c0_82, %c0_83] : memref<1x128xf32, #tpu.memory_space<vmem>>, vector<1x128xf32>
    %44 = vector.broadcast %43 : vector<1x128xf32> to vector<256x128xf32>
    %45 = arith.addf %42, %44 : vector<256x128xf32>
    %cst_84 = arith.constant 0.000000e+00 : f32
    %46 = vector.broadcast %cst_84 : f32 to vector<256x128xf32>
    %47 = arith.maximumf %45, %46 : vector<256x128xf32>
    %48 = vector.shape_cast %47 : vector<256x128xf32> to vector<1x16x16x128xf32>
    %49 = arith.truncf %48 : vector<1x16x16x128xf32> to vector<1x16x16x128xbf16>
    %c0_85 = arith.constant 0 : index
    %c1_86 = arith.constant 1 : index
    %c1_87 = arith.constant 1 : index
    %c0_88 = arith.constant 0 : index
    %50 = vector.load %arg8[%c0_85, %c1_86, %c1_87, %c0_88] : memref<1x18x18x128xbf16, #tpu.memory_space<vmem>>, vector<1x16x16x128xbf16>
    tpu.vector_store %arg8[%c0_85, %c1_86, %c1_87, %c0_88], %49 {strides = array<i32>} : memref<1x18x18x128xbf16, #tpu.memory_space<vmem>>, vector<1x16x16x128xbf16>,
    %c0_89 = arith.constant 0 : index
    %c2_90 = arith.constant 2 : index
    %c1_91 = arith.constant 1 : index
    %c0_92 = arith.constant 0 : index
    %51 = vector.load %arg8[%c0_89, %c2_90, %c1_91, %c0_92] : memref<1x18x18x128xbf16, #tpu.memory_space<vmem>>, vector<1x1x16x128xbf16>
    %c0_93 = arith.constant 0 : index
    %c0_94 = arith.constant 0 : index
    %c1_95 = arith.constant 1 : index
    %c0_96 = arith.constant 0 : index
    %52 = vector.load %arg8[%c0_93, %c0_94, %c1_95, %c0_96] : memref<1x18x18x128xbf16, #tpu.memory_space<vmem>>, vector<1x1x16x128xbf16>
    tpu.vector_store %arg8[%c0_93, %c0_94, %c1_95, %c0_96], %51 {strides = array<i32>} : memref<1x18x18x128xbf16, #tpu.memory_space<vmem>>, vector<1x1x16x128xbf16>,
    %c0_97 = arith.constant 0 : index
    %c15_98 = arith.constant 15 : index
    %c1_99 = arith.constant 1 : index
    %c0_100 = arith.constant 0 : index
    %53 = vector.load %arg8[%c0_97, %c15_98, %c1_99, %c0_100] : memref<1x18x18x128xbf16, #tpu.memory_space<vmem>>, vector<1x1x16x128xbf16>
    %c0_101 = arith.constant 0 : index
    %c17_102 = arith.constant 17 : index
    %c1_103 = arith.constant 1 : index
    %c0_104 = arith.constant 0 : index
    %54 = vector.load %arg8[%c0_101, %c17_102, %c1_103, %c0_104] : memref<1x18x18x128xbf16, #tpu.memory_space<vmem>>, vector<1x1x16x128xbf16>
    tpu.vector_store %arg8[%c0_101, %c17_102, %c1_103, %c0_104], %53 {strides = array<i32>} : memref<1x18x18x128xbf16, #tpu.memory_space<vmem>>, vector<1x1x16x128xbf16>,
    %c0_105 = arith.constant 0 : index
    %c0_106 = arith.constant 0 : index
    %c2_107 = arith.constant 2 : index
    %c0_108 = arith.constant 0 : index
    %55 = vector.load %arg8[%c0_105, %c0_106, %c2_107, %c0_108] : memref<1x18x18x128xbf16, #tpu.memory_space<vmem>>, vector<1x18x1x128xbf16>
    %c0_109 = arith.constant 0 : index
    %c0_110 = arith.constant 0 : index
    %c0_111 = arith.constant 0 : index
    %c0_112 = arith.constant 0 : index
    %56 = vector.load %arg8[%c0_109, %c0_110, %c0_111, %c0_112] : memref<1x18x18x128xbf16, #tpu.memory_space<vmem>>, vector<1x18x1x128xbf16>
    tpu.vector_store %arg8[%c0_109, %c0_110, %c0_111, %c0_112], %55 {strides = array<i32>} : memref<1x18x18x128xbf16, #tpu.memory_space<vmem>>, vector<1x18x1x128xbf16>,
    %c0_113 = arith.constant 0 : index
    %c0_114 = arith.constant 0 : index
    %c15_115 = arith.constant 15 : index
    %c0_116 = arith.constant 0 : index
    %57 = vector.load %arg8[%c0_113, %c0_114, %c15_115, %c0_116] : memref<1x18x18x128xbf16, #tpu.memory_space<vmem>>, vector<1x18x1x128xbf16>
    %c0_117 = arith.constant 0 : index
    %c0_118 = arith.constant 0 : index
    %c17_119 = arith.constant 17 : index
    %c0_120 = arith.constant 0 : index
    %58 = vector.load %arg8[%c0_117, %c0_118, %c17_119, %c0_120] : memref<1x18x18x128xbf16, #tpu.memory_space<vmem>>, vector<1x18x1x128xbf16>
    tpu.vector_store %arg8[%c0_117, %c0_118, %c17_119, %c0_120], %57 {strides = array<i32>} : memref<1x18x18x128xbf16, #tpu.memory_space<vmem>>, vector<1x18x1x128xbf16>,
    %c0_121 = arith.constant 0 : index
    %c0_122 = arith.constant 0 : index
    %c0_123 = arith.constant 0 : index
    %c0_124 = arith.constant 0 : index
    %59 = vector.load %arg8[%c0_121, %c0_122, %c0_123, %c0_124] : memref<1x18x18x128xbf16, #tpu.memory_space<vmem>>, vector<1x16x16x128xbf16>
    %60 = vector.shape_cast %59 : vector<1x16x16x128xbf16> to vector<256x128xbf16>
    %c0_125 = arith.constant 0 : index
    %c0_126 = arith.constant 0 : index
    %c1_127 = arith.constant 1 : index
    %c0_128 = arith.constant 0 : index
    %61 = vector.load %arg8[%c0_125, %c0_126, %c1_127, %c0_128] : memref<1x18x18x128xbf16, #tpu.memory_space<vmem>>, vector<1x16x16x128xbf16>
    %62 = vector.shape_cast %61 : vector<1x16x16x128xbf16> to vector<256x128xbf16>
    %c0_129 = arith.constant 0 : index
    %c0_130 = arith.constant 0 : index
    %c2_131 = arith.constant 2 : index
    %c0_132 = arith.constant 0 : index
    %63 = vector.load %arg8[%c0_129, %c0_130, %c2_131, %c0_132] : memref<1x18x18x128xbf16, #tpu.memory_space<vmem>>, vector<1x16x16x128xbf16>
    %64 = vector.shape_cast %63 : vector<1x16x16x128xbf16> to vector<256x128xbf16>
    %65 = tpu.concatenate %60, %62, %64 in 1 : vector<256x128xbf16>, vector<256x128xbf16>, vector<256x128xbf16> -> vector<256x384xbf16>
    %c0_133 = arith.constant 0 : index
    %c0_134 = arith.constant 0 : index
    %c0_135 = arith.constant 0 : index
    %66 = vector.load %arg4[%c0_133, %c0_134, %c0_135] : memref<3x384x128xbf16, #tpu.memory_space<vmem>>, vector<1x384x128xbf16>
    %67 = vector.shape_cast %66 : vector<1x384x128xbf16> to vector<384x128xbf16>
    %cst_136 = arith.constant dense<0.000000e+00> : vector<256x128xf32>
    %68 = tpu.matmul %65, %67, %cst_136 {dimension_numbers = #tpu.dot_dimension_numbers<[1], [0], [0], [1], [0, 0, 1, 1], [], []>} : vector<256x384xbf16>, vector<384x128xbf16>, vector<256x128xf32> -> vector<256x128xf32>
    %c0_137 = arith.constant 0 : index
    %c1_138 = arith.constant 1 : index
    %c0_139 = arith.constant 0 : index
    %c0_140 = arith.constant 0 : index
    %69 = vector.load %arg8[%c0_137, %c1_138, %c0_139, %c0_140] : memref<1x18x18x128xbf16, #tpu.memory_space<vmem>>, vector<1x16x16x128xbf16>
    %70 = vector.shape_cast %69 : vector<1x16x16x128xbf16> to vector<256x128xbf16>
    %c0_141 = arith.constant 0 : index
    %c1_142 = arith.constant 1 : index
    %c1_143 = arith.constant 1 : index
    %c0_144 = arith.constant 0 : index
    %71 = vector.load %arg8[%c0_141, %c1_142, %c1_143, %c0_144] : memref<1x18x18x128xbf16, #tpu.memory_space<vmem>>, vector<1x16x16x128xbf16>
    %72 = vector.shape_cast %71 : vector<1x16x16x128xbf16> to vector<256x128xbf16>
    %c0_145 = arith.constant 0 : index
    %c1_146 = arith.constant 1 : index
    %c2_147 = arith.constant 2 : index
    %c0_148 = arith.constant 0 : index
    %73 = vector.load %arg8[%c0_145, %c1_146, %c2_147, %c0_148] : memref<1x18x18x128xbf16, #tpu.memory_space<vmem>>, vector<1x16x16x128xbf16>
    %74 = vector.shape_cast %73 : vector<1x16x16x128xbf16> to vector<256x128xbf16>
    %75 = tpu.concatenate %70, %72, %74 in 1 : vector<256x128xbf16>, vector<256x128xbf16>, vector<256x128xbf16> -> vector<256x384xbf16>
    %c1_149 = arith.constant 1 : index
    %c0_150 = arith.constant 0 : index
    %c0_151 = arith.constant 0 : index
    %76 = vector.load %arg4[%c1_149, %c0_150, %c0_151] : memref<3x384x128xbf16, #tpu.memory_space<vmem>>, vector<1x384x128xbf16>
    %77 = vector.shape_cast %76 : vector<1x384x128xbf16> to vector<384x128xbf16>
    %cst_152 = arith.constant dense<0.000000e+00> : vector<256x128xf32>
    %78 = tpu.matmul %75, %77, %cst_152 {dimension_numbers = #tpu.dot_dimension_numbers<[1], [0], [0], [1], [0, 0, 1, 1], [], []>} : vector<256x384xbf16>, vector<384x128xbf16>, vector<256x128xf32> -> vector<256x128xf32>
    %79 = arith.addf %68, %78 : vector<256x128xf32>
    %c0_153 = arith.constant 0 : index
    %c2_154 = arith.constant 2 : index
    %c0_155 = arith.constant 0 : index
    %c0_156 = arith.constant 0 : index
    %80 = vector.load %arg8[%c0_153, %c2_154, %c0_155, %c0_156] : memref<1x18x18x128xbf16, #tpu.memory_space<vmem>>, vector<1x16x16x128xbf16>
    %81 = vector.shape_cast %80 : vector<1x16x16x128xbf16> to vector<256x128xbf16>
    %c0_157 = arith.constant 0 : index
    %c2_158 = arith.constant 2 : index
    %c1_159 = arith.constant 1 : index
    %c0_160 = arith.constant 0 : index
    %82 = vector.load %arg8[%c0_157, %c2_158, %c1_159, %c0_160] : memref<1x18x18x128xbf16, #tpu.memory_space<vmem>>, vector<1x16x16x128xbf16>
    %83 = vector.shape_cast %82 : vector<1x16x16x128xbf16> to vector<256x128xbf16>
    %c0_161 = arith.constant 0 : index
    %c2_162 = arith.constant 2 : index
    %c2_163 = arith.constant 2 : index
    %c0_164 = arith.constant 0 : index
    %84 = vector.load %arg8[%c0_161, %c2_162, %c2_163, %c0_164] : memref<1x18x18x128xbf16, #tpu.memory_space<vmem>>, vector<1x16x16x128xbf16>
    %85 = vector.shape_cast %84 : vector<1x16x16x128xbf16> to vector<256x128xbf16>
    %86 = tpu.concatenate %81, %83, %85 in 1 : vector<256x128xbf16>, vector<256x128xbf16>, vector<256x128xbf16> -> vector<256x384xbf16>
    %c2_165 = arith.constant 2 : index
    %c0_166 = arith.constant 0 : index
    %c0_167 = arith.constant 0 : index
    %87 = vector.load %arg4[%c2_165, %c0_166, %c0_167] : memref<3x384x128xbf16, #tpu.memory_space<vmem>>, vector<1x384x128xbf16>
    %88 = vector.shape_cast %87 : vector<1x384x128xbf16> to vector<384x128xbf16>
    %cst_168 = arith.constant dense<0.000000e+00> : vector<256x128xf32>
    %89 = tpu.matmul %86, %88, %cst_168 {dimension_numbers = #tpu.dot_dimension_numbers<[1], [0], [0], [1], [0, 0, 1, 1], [], []>} : vector<256x384xbf16>, vector<384x128xbf16>, vector<256x128xf32> -> vector<256x128xf32>
    %90 = arith.addf %79, %89 : vector<256x128xf32>
    %c0_169 = arith.constant 0 : index
    %c0_170 = arith.constant 0 : index
    %91 = vector.load %arg5[%c0_169, %c0_170] : memref<1x128xf32, #tpu.memory_space<vmem>>, vector<1x128xf32>
    %92 = vector.broadcast %91 : vector<1x128xf32> to vector<256x128xf32>
    %93 = arith.addf %90, %92 : vector<256x128xf32>
    %c0_171 = arith.constant 0 : index
    %c0_172 = arith.constant 0 : index
    %c0_173 = arith.constant 0 : index
    %c0_174 = arith.constant 0 : index
    %94 = vector.load %arg1[%c0_171, %c0_172, %c0_173, %c0_174] : memref<1x16x16x128xf32, #tpu.memory_space<vmem>>, vector<1x16x16x128xf32>
    %95 = vector.shape_cast %93 : vector<256x128xf32> to vector<1x16x16x128xf32>
    %96 = arith.addf %94, %95 : vector<1x16x16x128xf32>
    %c0_175 = arith.constant 0 : index
    %c0_176 = arith.constant 0 : index
    %c0_177 = arith.constant 0 : index
    %c0_178 = arith.constant 0 : index
    %97 = vector.load %arg6[%c0_175, %c0_176, %c0_177, %c0_178] : memref<1x16x16x128xf32, #tpu.memory_space<vmem>>, vector<1x16x16x128xf32>
    tpu.vector_store %arg6[%c0_175, %c0_176, %c0_177, %c0_178], %96 {strides = array<i32>} : memref<1x16x16x128xf32, #tpu.memory_space<vmem>>, vector<1x16x16x128xf32>,
    return
  }
  func.func @transform_0(%arg0: i32) -> (i32, i32, i32, i32) {
    %c0_i32 = arith.constant 0 : i32
    %c0_i32_0 = arith.constant 0 : i32
    %c0_i32_1 = arith.constant 0 : i32
    %c0_i32_2 = arith.constant 0 : i32
    return %arg0, %c0_i32, %c0_i32_0, %c0_i32_1 : i32, i32, i32, i32
  }
  func.func @transform_1(%arg0: i32) -> (i32, i32, i32) {
    %c0_i32 = arith.constant 0 : i32
    %c0_i32_0 = arith.constant 0 : i32
    %c0_i32_1 = arith.constant 0 : i32
    %c0_i32_2 = arith.constant 0 : i32
    return %c0_i32, %c0_i32_0, %c0_i32_1 : i32, i32, i32
  }
  func.func @transform_2(%arg0: i32) -> (i32, i32) {
    %c0_i32 = arith.constant 0 : i32
    %c0_i32_0 = arith.constant 0 : i32
    %c0_i32_1 = arith.constant 0 : i32
    return %c0_i32, %c0_i32_0 : i32, i32
  }
  func.func @transform_3(%arg0: i32) -> (i32, i32, i32) {
    %c0_i32 = arith.constant 0 : i32
    %c0_i32_0 = arith.constant 0 : i32
    %c0_i32_1 = arith.constant 0 : i32
    %c0_i32_2 = arith.constant 0 : i32
    return %c0_i32, %c0_i32_0, %c0_i32_1 : i32, i32, i32
  }
  func.func @transform_4(%arg0: i32) -> (i32, i32) {
    %c0_i32 = arith.constant 0 : i32
    %c0_i32_0 = arith.constant 0 : i32
    %c0_i32_1 = arith.constant 0 : i32
    return %c0_i32, %c0_i32_0 : i32, i32
  }
  func.func @transform_5(%arg0: i32) -> (i32, i32, i32, i32) {
    %c0_i32 = arith.constant 0 : i32
    %c0_i32_0 = arith.constant 0 : i32
    %c0_i32_1 = arith.constant 0 : i32
    %c0_i32_2 = arith.constant 0 : i32
    return %arg0, %c0_i32, %c0_i32_0, %c0_i32_1 : i32, i32, i32, i32
  }
}

</mosaic_0001>

<llo_original>
// kernel: resnet_block_forward.1
$region0: #{resnet_block_forward.1}
  #allocation0 [shape = 'u32[]', space=smem, size = 0x4, offset = 0x4, fixed_abs, tag = 'smem constant byte address 0x4 - core index']
  #allocation1 [shape = 'u32[144,128]{1,0:T(1,128)}', space=vmem, size = 0x12000, scoped, tag = 'internal scratch']
  #allocation2 [shape = 'bf16[1,18,18,128]{3,2,1,0:T(8,128)(2,1)}', space=vmem, size = 0x1b000, scoped, tag = 'scratch operand']
  #allocation3 [shape = 'bf16[1,18,18,128]{3,2,1,0:T(8,128)(2,1)}', space=vmem, size = 0x1b000, scoped, tag = 'scratch operand']
  %s0 = inlined_call_operand.vmem [shape: f32[2,16,16,128], index: 0, kind: input, shape index: {}]
  %s1 = inlined_call_operand.vmem [shape: bf16[3,384,128], index: 1, kind: input, shape index: {}]
  %s2 = inlined_call_operand.vmem [shape: f32[1,128], index: 2, kind: input, shape index: {}]
  %s3 = inlined_call_operand.vmem [shape: bf16[3,384,128], index: 3, kind: input, shape index: {}]
  %s4 = inlined_call_operand.vmem [shape: f32[1,128], index: 4, kind: input, shape index: {}]
  %s5 = inlined_call_operand.vmem [shape: f32[2,16,16,128], index: 5, kind: output, shape index: {}]
  %s6 = sld [smem:[#allocation0]]
  $region53: #{resnet_block_forward.1} parent=0
    _
  %s8 = ssub.s32 1, %s6
  %s9 = scalar_select 0, %s8, %s6
  loop: start=0, step=1, limit=4
  $region2: #{resnet_block_forward.1} parent=0 // loop_pre_header
    _
  $region3: #{resnet_block_forward.1} parent=0 // loop_header
    %s11 = sphi 0, %s15
    %p12 = scmp.ge.s32.totalorder %s11, 4
    %s21 = sphi 0, %s23
    %s24 = sphi 0, %s21
    %s25 = sphi 0, %s24
    %s41 = sphi 0, %s25
    %s45 = sphi 0, %s45
    %s47 = sphi 0, %s45
    %s48 = sphi 0, %s47
    %s62 = sphi 0, %s48
    %s66 = sphi 0, %s66
    %s68 = sphi 0, %s66
    %s69 = sphi 0, %s68
    %s83 = sphi 0, %s69
    %s87 = sphi 0, %s87
    %s89 = sphi 0, %s87
    %s90 = sphi 0, %s89
    %s104 = sphi 0, %s90
    %s108 = sphi 0, %s108
    %s110 = sphi 0, %s108
    %s111 = sphi 0, %s110
    %s125 = sphi 0, %s111
    %s131 = sphi 0, %s133
    %s134 = sphi 0, %s131
    %s135 = sphi 0, %s134
    %s151 = sphi 0, %s135
  $region4: #{resnet_block_forward.1} parent=0 // loop_header_branch
    %14 = sbr.rel (%p12) target = $region8
  $region5: #{resnet_block_forward.1} parent=0 // loop_body
    %s16 = ssub.s32 %s11, 1
    %s17 = ssub.s32 %s11, 2
    %s18 = sadd.s32 %s11, 1
    %s19 = ssub.s32 %s11, %s18
    %p20 = scmp.eq.s32.totalorder %s19, 0
    %s22 = sadd.s32 %s21, 1
    %s23 = scalar_select %p20, %s21, %s22
    %p26 = pneg %p20
    %p27 = scmp.eq.s32.totalorder %s11, 1
    %p28 = por %p26, %p27
    %p29 = scmp.ne.s32.totalorder %s21, %s24
    %p30 = scmp.eq.s32.totalorder %s11, 0
    %p31 = por %p29, %p30
    %p32 = scmp.ne.s32.totalorder %s21, %s24
    %p33 = scmp.eq.s32.totalorder %s16, 1
    %p34 = por %p32, %p33
    %p35 = scmp.ne.s32.totalorder %s24, %s25
    %p36 = scmp.eq.s32.totalorder %s16, 0
    %p37 = por %p35, %p36
    %p38 = scmp.ne.s32.totalorder %s24, %s25
    %p39 = scmp.eq.s32.totalorder %s17, 1
    %p40 = por %p38, %p39
    %p42 = scmp.ne.s32.totalorder %s25, %s41
    %p43 = scmp.eq.s32.totalorder %s17, 0
    %p44 = por %p42, %p43
    %s46 = sadd.s32 %s45, 1
    %p49 = scmp.eq.s32.totalorder %s11, 1
    %p50 = scmp.ne.s32.totalorder %s45, %s47
    %p51 = scmp.eq.s32.totalorder %s11, 0
    %p52 = por %p50, %p51
    %p53 = scmp.ne.s32.totalorder %s45, %s47
    %p54 = scmp.eq.s32.totalorder %s16, 1
    %p55 = por %p53, %p54
    %p56 = scmp.ne.s32.totalorder %s47, %s48
    %p57 = scmp.eq.s32.totalorder %s16, 0
    %p58 = por %p56, %p57
    %p59 = scmp.ne.s32.totalorder %s47, %s48
    %p60 = scmp.eq.s32.totalorder %s17, 1
    %p61 = por %p59, %p60
    %p63 = scmp.ne.s32.totalorder %s48, %s62
    %p64 = scmp.eq.s32.totalorder %s17, 0
    %p65 = por %p63, %p64
    %s67 = sadd.s32 %s66, 1
    %p70 = scmp.eq.s32.totalorder %s11, 1
    %p71 = scmp.ne.s32.totalorder %s66, %s68
    %p72 = scmp.eq.s32.totalorder %s11, 0
    %p73 = por %p71, %p72
    %p74 = scmp.ne.s32.totalorder %s66, %s68
    %p75 = scmp.eq.s32.totalorder %s16, 1
    %p76 = por %p74, %p75
    %p77 = scmp.ne.s32.totalorder %s68, %s69
    %p78 = scmp.eq.s32.totalorder %s16, 0
    %p79 = por %p77, %p78
    %p80 = scmp.ne.s32.totalorder %s68, %s69
    %p81 = scmp.eq.s32.totalorder %s17, 1
    %p82 = por %p80, %p81
    %p84 = scmp.ne.s32.totalorder %s69, %s83
    %p85 = scmp.eq.s32.totalorder %s17, 0
    %p86 = por %p84, %p85
    %s88 = sadd.s32 %s87, 1
    %p91 = scmp.eq.s32.totalorder %s11, 1
    %p92 = scmp.ne.s32.totalorder %s87, %s89
    %p93 = scmp.eq.s32.totalorder %s11, 0
    %p94 = por %p92, %p93
    %p95 = scmp.ne.s32.totalorder %s87, %s89
    %p96 = scmp.eq.s32.totalorder %s16, 1
    %p97 = por %p95, %p96
    %p98 = scmp.ne.s32.totalorder %s89, %s90
    %p99 = scmp.eq.s32.totalorder %s16, 0
    %p100 = por %p98, %p99
    %p101 = scmp.ne.s32.totalorder %s89, %s90
    %p102 = scmp.eq.s32.totalorder %s17, 1
    %p103 = por %p101, %p102
    %p105 = scmp.ne.s32.totalorder %s90, %s104
    %p106 = scmp.eq.s32.totalorder %s17, 0
    %p107 = por %p105, %p106
    %s109 = sadd.s32 %s108, 1
    %p112 = scmp.eq.s32.totalorder %s11, 1
    %p113 = scmp.ne.s32.totalorder %s108, %s110
    %p114 = scmp.eq.s32.totalorder %s11, 0
    %p115 = por %p113, %p114
    %p116 = scmp.ne.s32.totalorder %s108, %s110
    %p117 = scmp.eq.s32.totalorder %s16, 1
    %p118 = por %p116, %p117
    %p119 = scmp.ne.s32.totalorder %s110, %s111
    %p120 = scmp.eq.s32.totalorder %s16, 0
    %p121 = por %p119, %p120
    %p122 = scmp.ne.s32.totalorder %s110, %s111
    %p123 = scmp.eq.s32.totalorder %s17, 1
    %p124 = por %p122, %p123
    %p126 = scmp.ne.s32.totalorder %s111, %s125
    %p127 = scmp.eq.s32.totalorder %s17, 0
    %p128 = por %p126, %p127
    %s129 = ssub.s32 %s11, %s18
    %p130 = scmp.eq.s32.totalorder %s129, 0
    %s132 = sadd.s32 %s131, 1
    %s133 = scalar_select %p130, %s131, %s132
    %p136 = pneg %p130
    %p137 = scmp.eq.s32.totalorder %s11, 1
    %p138 = por %p136, %p137
    %p139 = scmp.ne.s32.totalorder %s131, %s134
    %p140 = scmp.eq.s32.totalorder %s11, 0
    %p141 = por %p139, %p140
    %p142 = scmp.ne.s32.totalorder %s131, %s134
    %p143 = scmp.eq.s32.totalorder %s16, 1
    %p144 = por %p142, %p143
    %p145 = scmp.ne.s32.totalorder %s134, %s135
    %p146 = scmp.eq.s32.totalorder %s16, 0
    %p147 = por %p145, %p146
    %p148 = scmp.ne.s32.totalorder %s134, %s135
    %p149 = scmp.eq.s32.totalorder %s17, 1
    %p150 = por %p148, %p149
    %p152 = scmp.ne.s32.totalorder %s135, %s151
    %p153 = scmp.eq.s32.totalorder %s17, 0
    %p154 = por %p152, %p153
    %p155 = scmp.le.s32.totalorder 1, %s11
    %p156 = scmp.lt.s32.totalorder %s11, 3
    %p157 = pnand %p155, %p156
    %p158 = pneg %p157
    // Predicated region
    $region9: #{resnet_block_forward.1} parent=5 // pred_check
      _
    $region10: #{resnet_block_forward.1} parent=5 // pred_check_branch
      %160 = sbr.rel (%p157) target = $region12
    $region11: #{resnet_block_forward.1} parent=5 // pred_region
      %s161 = ssub.s32 %s11, 1
      // Predicated region
      $region13: #{resnet_block_forward.1} parent=11 // pred_check
        %p162 = pneg %p58
      $region14: #{resnet_block_forward.1} parent=11 // pred_check_branch
        %164 = sbr.rel (%p162) target = $region16
      $region15: #{resnet_block_forward.1} parent=11 // pred_region
        _
      $region16: #{resnet_block_forward.1} parent=11 // pred_fallthru
        _
      // Predicated region
      $region17: #{resnet_block_forward.1} parent=11 // pred_check
        %p165 = pneg %p79
      $region18: #{resnet_block_forward.1} parent=11 // pred_check_branch
        %167 = sbr.rel (%p165) target = $region20
      $region19: #{resnet_block_forward.1} parent=11 // pred_region
        _
      $region20: #{resnet_block_forward.1} parent=11 // pred_fallthru
        _
      // Predicated region
      $region21: #{resnet_block_forward.1} parent=11 // pred_check
        %p168 = pneg %p100
      $region22: #{resnet_block_forward.1} parent=11 // pred_check_branch
        %170 = sbr.rel (%p168) target = $region24
      $region23: #{resnet_block_forward.1} parent=11 // pred_region
        _
      $region24: #{resnet_block_forward.1} parent=11 // pred_fallthru
        _
      // Predicated region
      $region25: #{resnet_block_forward.1} parent=11 // pred_check
        %p171 = pneg %p121
      $region26: #{resnet_block_forward.1} parent=11 // pred_check_branch
        %173 = sbr.rel (%p171) target = $region28
      $region27: #{resnet_block_forward.1} parent=11 // pred_region
        _
      $region28: #{resnet_block_forward.1} parent=11 // pred_fallthru
        _
    $region12: #{resnet_block_forward.1} parent=5 // pred_fallthru
      _
    %p174 = scmp.lt.s32.totalorder %s11, 2
    // Predicated region
    $region29: #{resnet_block_forward.1} parent=5 // pred_check
      %p175 = pneg %p174
    $region30: #{resnet_block_forward.1} parent=5 // pred_check_branch
      %177 = sbr.rel (%p175) target = $region32
    $region31: #{resnet_block_forward.1} parent=5 // pred_region
      // Predicated region
      $region33: #{resnet_block_forward.1} parent=31 // pred_check
        %p178 = pneg %p31
      $region34: #{resnet_block_forward.1} parent=31 // pred_check_branch
        %180 = sbr.rel (%p178) target = $region36
      $region35: #{resnet_block_forward.1} parent=31 // pred_region
        %p181 = scmp.lt.s32.totalorder %s11, 1
        %s182 = scalar_select %p181, %s11, 1
        %s183 = smul.addr %s182, 32
        %s184 = smul.addr %s183, 8
        %s185 = scalar_lea.vmem %s0, %s184
      $region36: #{resnet_block_forward.1} parent=31 // pred_fallthru
        _
    $region32: #{resnet_block_forward.1} parent=5 // pred_fallthru
      _
    %p186 = scmp.le.s32.totalorder 1, %s11
    %p187 = scmp.lt.s32.totalorder %s11, 3
    %p188 = pnand %p186, %p187
    %p189 = pneg %p188
    // Predicated region
    $region37: #{resnet_block_forward.1} parent=5 // pred_check
      _
    $region38: #{resnet_block_forward.1} parent=5 // pred_check_branch
      %191 = sbr.rel (%p188) target = $region40
    $region39: #{resnet_block_forward.1} parent=5 // pred_region
      %s192 = ssub.s32 %s11, 1
      %p193 = scmp.lt.s32.totalorder %s16, 1
      %s194 = scalar_select %p193, %s16, 1
      %s195 = smul.addr %s194, 32
      %s196 = smul.addr %s195, 8
      %s197 = scalar_lea.vmem %s0, %s196
      %p198 = pneg %p37
      %p199 = pneg %p34
      %p200 = pneg %p58
      %p201 = pneg %p55
      %p202 = pneg %p79
      %p203 = pneg %p76
      %p204 = pneg %p100
      %p205 = pneg %p97
      %p206 = pneg %p121
      %p207 = pneg %p118
      %p208 = pneg %p147
      %p209 = pneg %p144
      %p210 = scmp.lt.s32.totalorder %s16, 1
      %s211 = scalar_select %p210, %s16, 1
      %s212 = smul.addr %s211, 32
      %s213 = smul.addr %s212, 8
      %s214 = scalar_lea.vmem %s5, %s213
      %p215 = scmp.lt.s32.totalorder %s16, 1
      %s216 = scalar_select %p215, %s16, 1
      %s217 = smul.addr %s216, 32
      %s218 = smul.addr %s217, 8
      %s219 = scalar_lea.vmem %s0, %s218
      %p220 = scmp.lt.s32.totalorder %s16, 1
      %s221 = scalar_select %p220, %s16, 1
      %s222 = smul.addr %s221, 32
      %s223 = smul.addr %s222, 8
      %s224 = scalar_lea.vmem %s5, %s223
      %v226 = vld [vmem:[%s219] sm:$0xff]
      %v227 = vld [vmem:[%s219 + $0x8] sm:$0xff]
      %v228 = vld [vmem:[%s219 + $0x10] sm:$0xff]
      %v229 = vld [vmem:[%s219 + $0x18] sm:$0xff]
      %v230 = vld [vmem:[%s219 + $0x20] sm:$0xff]
      %v231 = vld [vmem:[%s219 + $0x28] sm:$0xff]
      %v232 = vld [vmem:[%s219 + $0x30] sm:$0xff]
      %v233 = vld [vmem:[%s219 + $0x38] sm:$0xff]
      %v234 = vld [vmem:[%s219 + $0x40] sm:$0xff]
      %v235 = vld [vmem:[%s219 + $0x48] sm:$0xff]
      %v236 = vld [vmem:[%s219 + $0x50] sm:$0xff]
      %v237 = vld [vmem:[%s219 + $0x58] sm:$0xff]
      %v238 = vld [vmem:[%s219 + $0x60] sm:$0xff]
      %v239 = vld [vmem:[%s219 + $0x68] sm:$0xff]
      %v240 = vld [vmem:[%s219 + $0x70] sm:$0xff]
      %v241 = vld [vmem:[%s219 + $0x78] sm:$0xff]
      %v242 = vld [vmem:[%s219 + $0x80] sm:$0xff]
      %v243 = vld [vmem:[%s219 + $0x88] sm:$0xff]
      %v244 = vld [vmem:[%s219 + $0x90] sm:$0xff]
      %v245 = vld [vmem:[%s219 + $0x98] sm:$0xff]
      %v246 = vld [vmem:[%s219 + $0xa0] sm:$0xff]
      %v247 = vld [vmem:[%s219 + $0xa8] sm:$0xff]
      %v248 = vld [vmem:[%s219 + $0xb0] sm:$0xff]
      %v249 = vld [vmem:[%s219 + $0xb8] sm:$0xff]
      %v250 = vld [vmem:[%s219 + $0xc0] sm:$0xff]
      %v251 = vld [vmem:[%s219 + $0xc8] sm:$0xff]
      %v252 = vld [vmem:[%s219 + $0xd0] sm:$0xff]
      %v253 = vld [vmem:[%s219 + $0xd8] sm:$0xff]
      %v254 = vld [vmem:[%s219 + $0xe0] sm:$0xff]
      %v255 = vld [vmem:[%s219 + $0xe8] sm:$0xff]
      %v256 = vld [vmem:[%s219 + $0xf0] sm:$0xff]
      %v257 = vld [vmem:[%s219 + $0xf8] sm:$0xff]
      %v258 = vpack.c.bf16 %v227, %v226
      %v259 = vpack.c.bf16 %v229, %v228
      %v260 = vpack.c.bf16 %v231, %v230
      %v261 = vpack.c.bf16 %v233, %v232
      %v262 = vpack.c.bf16 %v235, %v234
      %v263 = vpack.c.bf16 %v237, %v236
      %v264 = vpack.c.bf16 %v239, %v238
      %v265 = vpack.c.bf16 %v241, %v240
      %v266 = vpack.c.bf16 %v243, %v242
      %v267 = vpack.c.bf16 %v245, %v244
      %v268 = vpack.c.bf16 %v247, %v246
      %v269 = vpack.c.bf16 %v249, %v248
      %v270 = vpack.c.bf16 %v251, %v250
      %v271 = vpack.c.bf16 %v253, %v252
      %v272 = vpack.c.bf16 %v255, %v254
      %v273 = vpack.c.bf16 %v257, %v256
      %v290 = vunpack.c.l.b16 %v258
      %v291 = vunpack.c.h.b16 %v258
      %v292 = vunpack.c.l.b16 %v259
      %v293 = vunpack.c.h.b16 %v259
      %v294 = vunpack.c.l.b16 %v260
      %v295 = vunpack.c.h.b16 %v260
      %v296 = vunpack.c.l.b16 %v261
      %v297 = vunpack.c.h.b16 %v261
      %v298 = vunpack.c.l.b16 %v262
      %v299 = vunpack.c.h.b16 %v262
      %v300 = vunpack.c.l.b16 %v263
      %v301 = vunpack.c.h.b16 %v263
      %v302 = vunpack.c.l.b16 %v264
      %v303 = vunpack.c.h.b16 %v264
      %v304 = vunpack.c.l.b16 %v265
      %v305 = vunpack.c.h.b16 %v265
      %v306 = vunpack.c.l.b16 %v266
      %v307 = vunpack.c.h.b16 %v266
      %v308 = vunpack.c.l.b16 %v267
      %v309 = vunpack.c.h.b16 %v267
      %v310 = vunpack.c.l.b16 %v268
      %v311 = vunpack.c.h.b16 %v268
      %v312 = vunpack.c.l.b16 %v269
      %v313 = vunpack.c.h.b16 %v269
      %v314 = vunpack.c.l.b16 %v270
      %v315 = vunpack.c.h.b16 %v270
      %v316 = vunpack.c.l.b16 %v271
      %v317 = vunpack.c.h.b16 %v271
      %v318 = vunpack.c.l.b16 %v272
      %v319 = vunpack.c.h.b16 %v272
      %v320 = vunpack.c.l.b16 %v273
      %v321 = vunpack.c.h.b16 %v273
      %v322 = vpack.c.b16 %v290, %v290
      %v323 = vpack.c.b16 %v291, %v291
      %v324 = vpack.c.b16 %v292, %v292
      %v325 = vpack.c.b16 %v293, %v293
      %v326 = vpack.c.b16 %v294, %v294
      %v327 = vpack.c.b16 %v295, %v295
      %v328 = vpack.c.b16 %v296, %v296
      %v329 = vpack.c.b16 %v297, %v297
      %v330 = vpack.c.b16 %v298, %v298
      %v331 = vpack.c.b16 %v299, %v299
      %v332 = vpack.c.b16 %v300, %v300
      %v333 = vpack.c.b16 %v301, %v301
      %v334 = vpack.c.b16 %v302, %v302
      %v335 = vpack.c.b16 %v303, %v303
      %v336 = vpack.c.b16 %v304, %v304
      %v337 = vpack.c.b16 %v305, %v305
      %v338 = vpack.c.b16 %v306, %v306
      %v339 = vpack.c.b16 %v307, %v307
      %v340 = vpack.c.b16 %v308, %v308
      %v341 = vpack.c.b16 %v309, %v309
      %v342 = vpack.c.b16 %v310, %v310
      %v343 = vpack.c.b16 %v311, %v311
      %v344 = vpack.c.b16 %v312, %v312
      %v345 = vpack.c.b16 %v313, %v313
      %v346 = vpack.c.b16 %v314, %v314
      %v347 = vpack.c.b16 %v315, %v315
      %v348 = vpack.c.b16 %v316, %v316
      %v349 = vpack.c.b16 %v317, %v317
      %v350 = vpack.c.b16 %v318, %v318
      %v351 = vpack.c.b16 %v319, %v319
      %v352 = vpack.c.b16 %v320, %v320
      %v353 = vpack.c.b16 %v321, %v321
      %vm354 = vsmask.f32 256
      %vm355 = vsmask.f32 4368
      %vm356 = vmor %vm354, %vm355
      %v358 = vshrl.u32 %v322, 16
      %v360 = vrot.slane %v358, 7
      %v361 = vshll.u32 %v322, 16
      %v363 = vor.u32 %v360, %v361
      %v364 = vrot.slane %v360, 4
      %v366 = vshrl.u32 %v323, 16
      %v368 = vrot.slane %v366, 7
      %v369 = vshll.u32 %v323, 16
      %v371 = vor.u32 %v368, %v369
      %v372 = vsel %vm356, %v364, %v371
      %v373 = vrot.slane %v368, 4
      %v375 = vshrl.u32 %v324, 16
      %v377 = vrot.slane %v375, 7
      %v378 = vshll.u32 %v324, 16
      %v380 = vor.u32 %v377, %v378
      %v381 = vrot.slane %v377, 4
      %v383 = vshrl.u32 %v325, 16
      %v385 = vrot.slane %v383, 7
      %v386 = vshll.u32 %v325, 16
      %v388 = vor.u32 %v385, %v386
      %v389 = vsel %vm356, %v381, %v388
      %v390 = vrot.slane %v385, 4
      %v392 = vshrl.u32 %v326, 16
      %v394 = vrot.slane %v392, 7
      %v395 = vshll.u32 %v326, 16
      %v397 = vor.u32 %v394, %v395
      %v398 = vrot.slane %v394, 4
      %v400 = vshrl.u32 %v327, 16
      %v402 = vrot.slane %v400, 7
      %v403 = vshll.u32 %v327, 16
      %v405 = vor.u32 %v402, %v403
      %v406 = vsel %vm356, %v398, %v405
      %v407 = vrot.slane %v402, 4
      %v409 = vshrl.u32 %v328, 16
      %v411 = vrot.slane %v409, 7
      %v412 = vshll.u32 %v328, 16
      %v414 = vor.u32 %v411, %v412
      %v415 = vrot.slane %v411, 4
      %v417 = vshrl.u32 %v329, 16
      %v419 = vrot.slane %v417, 7
      %v420 = vshll.u32 %v329, 16
      %v422 = vor.u32 %v419, %v420
      %v423 = vsel %vm356, %v415, %v422
      %v424 = vrot.slane %v419, 4
      %v426 = vshrl.u32 %v330, 16
      %v428 = vrot.slane %v426, 7
      %v429 = vshll.u32 %v330, 16
      %v431 = vor.u32 %v428, %v429
      %v432 = vrot.slane %v428, 4
      %v434 = vshrl.u32 %v331, 16
      %v436 = vrot.slane %v434, 7
      %v437 = vshll.u32 %v331, 16
      %v439 = vor.u32 %v436, %v437
      %v440 = vsel %vm356, %v432, %v439
      %v441 = vrot.slane %v436, 4
      %v443 = vshrl.u32 %v332, 16
      %v445 = vrot.slane %v443, 7
      %v446 = vshll.u32 %v332, 16
      %v448 = vor.u32 %v445, %v446
      %v449 = vrot.slane %v445, 4
      %v451 = vshrl.u32 %v333, 16
      %v453 = vrot.slane %v451, 7
      %v454 = vshll.u32 %v333, 16
      %v456 = vor.u32 %v453, %v454
      %v457 = vsel %vm356, %v449, %v456
      %v458 = vrot.slane %v453, 4
      %v460 = vshrl.u32 %v334, 16
      %v462 = vrot.slane %v460, 7
      %v463 = vshll.u32 %v334, 16
      %v465 = vor.u32 %v462, %v463
      %v466 = vrot.slane %v462, 4
      %v468 = vshrl.u32 %v335, 16
      %v470 = vrot.slane %v468, 7
      %v471 = vshll.u32 %v335, 16
      %v473 = vor.u32 %v470, %v471
      %v474 = vsel %vm356, %v466, %v473
      %v475 = vrot.slane %v470, 4
      %v477 = vshrl.u32 %v336, 16
      %v479 = vrot.slane %v477, 7
      %v480 = vshll.u32 %v336, 16
      %v482 = vor.u32 %v479, %v480
      %v483 = vrot.slane %v479, 4
      %v485 = vshrl.u32 %v337, 16
      %v487 = vrot.slane %v485, 7
      %v488 = vshll.u32 %v337, 16
      %v490 = vor.u32 %v487, %v488
      %v491 = vsel %vm356, %v483, %v490
      %v492 = vrot.slane %v487, 4
      %v494 = vshrl.u32 %v338, 16
      %v496 = vrot.slane %v494, 7
      %v497 = vshll.u32 %v338, 16
      %v499 = vor.u32 %v496, %v497
      %v500 = vrot.slane %v496, 4
      %v502 = vshrl.u32 %v339, 16
      %v504 = vrot.slane %v502, 7
      %v505 = vshll.u32 %v339, 16
      %v507 = vor.u32 %v504, %v505
      %v508 = vsel %vm356, %v500, %v507
      %v509 = vrot.slane %v504, 4
      %v511 = vshrl.u32 %v340, 16
      %v513 = vrot.slane %v511, 7
      %v514 = vshll.u32 %v340, 16
      %v516 = vor.u32 %v513, %v514
      %v517 = vrot.slane %v513, 4
      %v519 = vshrl.u32 %v341, 16
      %v521 = vrot.slane %v519, 7
      %v522 = vshll.u32 %v341, 16
      %v524 = vor.u32 %v521, %v522
      %v525 = vsel %vm356, %v517, %v524
      %v526 = vrot.slane %v521, 4
      %v528 = vshrl.u32 %v342, 16
      %v530 = vrot.slane %v528, 7
      %v531 = vshll.u32 %v342, 16
      %v533 = vor.u32 %v530, %v531
      %v534 = vrot.slane %v530, 4
      %v536 = vshrl.u32 %v343, 16
      %v538 = vrot.slane %v536, 7
      %v539 = vshll.u32 %v343, 16
      %v541 = vor.u32 %v538, %v539
      %v542 = vsel %vm356, %v534, %v541
      %v543 = vrot.slane %v538, 4
      %v545 = vshrl.u32 %v344, 16
      %v547 = vrot.slane %v545, 7
      %v548 = vshll.u32 %v344, 16
      %v550 = vor.u32 %v547, %v548
      %v551 = vrot.slane %v547, 4
      %v553 = vshrl.u32 %v345, 16
      %v555 = vrot.slane %v553, 7
      %v556 = vshll.u32 %v345, 16
      %v558 = vor.u32 %v555, %v556
      %v559 = vsel %vm356, %v551, %v558
      %v560 = vrot.slane %v555, 4
      %v562 = vshrl.u32 %v346, 16
      %v564 = vrot.slane %v562, 7
      %v565 = vshll.u32 %v346, 16
      %v567 = vor.u32 %v564, %v565
      %v568 = vrot.slane %v564, 4
      %v570 = vshrl.u32 %v347, 16
      %v572 = vrot.slane %v570, 7
      %v573 = vshll.u32 %v347, 16
      %v575 = vor.u32 %v572, %v573
      %v576 = vsel %vm356, %v568, %v575
      %v577 = vrot.slane %v572, 4
      %v579 = vshrl.u32 %v348, 16
      %v581 = vrot.slane %v579, 7
      %v582 = vshll.u32 %v348, 16
      %v584 = vor.u32 %v581, %v582
      %v585 = vrot.slane %v581, 4
      %v587 = vshrl.u32 %v349, 16
      %v589 = vrot.slane %v587, 7
      %v590 = vshll.u32 %v349, 16
      %v592 = vor.u32 %v589, %v590
      %v593 = vsel %vm356, %v585, %v592
      %v594 = vrot.slane %v589, 4
      %v596 = vshrl.u32 %v350, 16
      %v598 = vrot.slane %v596, 7
      %v599 = vshll.u32 %v350, 16
      %v601 = vor.u32 %v598, %v599
      %v602 = vrot.slane %v598, 4
      %v604 = vshrl.u32 %v351, 16
      %v606 = vrot.slane %v604, 7
      %v607 = vshll.u32 %v351, 16
      %v609 = vor.u32 %v606, %v607
      %v610 = vsel %vm356, %v602, %v609
      %v611 = vrot.slane %v606, 4
      %v613 = vshrl.u32 %v352, 16
      %v615 = vrot.slane %v613, 7
      %v616 = vshll.u32 %v352, 16
      %v618 = vor.u32 %v615, %v616
      %v619 = vrot.slane %v615, 4
      %v621 = vshrl.u32 %v353, 16
      %v623 = vrot.slane %v621, 7
      %v624 = vshll.u32 %v353, 16
      %v626 = vor.u32 %v623, %v624
      %v627 = vsel %vm356, %v619, %v626
      %v628 = vrot.slane %v623, 4
      %s677 = scalar_lea.vmem [#allocation2], 12
      %vm678 = vcmask 1043456
      %vm679 = vsmask.f32 7938
      %vm680 = vmand %vm678, %vm679
      %v681 = vld [vmem:[%s677] sm:$0xf]
      %v682 = vsel %vm680, %v363, %v681
      %683 = vst [vmem:[%s677] sm:$0xf] %v682
      %684 = vst [vmem:[%s677 + $0x4] sm:$0xf] %v372
      %vm685 = vcmask 1040384
      %vm686 = vmand %vm685, %vm354
      %v687 = vld [vmem:[%s677 + $0x8] sm:$0x1]
      %v688 = vsel %vm686, %v373, %v687
      %689 = vst [vmem:[%s677 + $0x8] sm:$0x1] %v688
      %v690 = vld [vmem:[%s677 + $0xc] sm:$0xf]
      %v691 = vsel %vm680, %v380, %v690
      %692 = vst [vmem:[%s677 + $0xc] sm:$0xf] %v691
      %693 = vst [vmem:[%s677 + $0x10] sm:$0xf] %v389
      %v694 = vld [vmem:[%s677 + $0x14] sm:$0x1]
      %v695 = vsel %vm686, %v390, %v694
      %696 = vst [vmem:[%s677 + $0x14] sm:$0x1] %v695
      %v697 = vld [vmem:[%s677 + $0x18] sm:$0xf]
      %v698 = vsel %vm680, %v397, %v697
      %699 = vst [vmem:[%s677 + $0x18] sm:$0xf] %v698
      %700 = vst [vmem:[%s677 + $0x1c] sm:$0xf] %v406
      %v701 = vld [vmem:[%s677 + $0x20] sm:$0x1]
      %v702 = vsel %vm686, %v407, %v701
      %703 = vst [vmem:[%s677 + $0x20] sm:$0x1] %v702
      %v704 = vld [vmem:[%s677 + $0x24] sm:$0xf]
      %v705 = vsel %vm680, %v414, %v704
      %706 = vst [vmem:[%s677 + $0x24] sm:$0xf] %v705
      %707 = vst [vmem:[%s677 + $0x28] sm:$0xf] %v423
      %v708 = vld [vmem:[%s677 + $0x2c] sm:$0x1]
      %v709 = vsel %vm686, %v424, %v708
      %710 = vst [vmem:[%s677 + $0x2c] sm:$0x1] %v709
      %v711 = vld [vmem:[%s677 + $0x30] sm:$0xf]
      %v712 = vsel %vm680, %v431, %v711
      %713 = vst [vmem:[%s677 + $0x30] sm:$0xf] %v712
      %714 = vst [vmem:[%s677 + $0x34] sm:$0xf] %v440
      %v715 = vld [vmem:[%s677 + $0x38] sm:$0x1]
      %v716 = vsel %vm686, %v441, %v715
      %717 = vst [vmem:[%s677 + $0x38] sm:$0x1] %v716
      %v718 = vld [vmem:[%s677 + $0x3c] sm:$0xf]
      %v719 = vsel %vm680, %v448, %v718
      %720 = vst [vmem:[%s677 + $0x3c] sm:$0xf] %v719
      %721 = vst [vmem:[%s677 + $0x40] sm:$0xf] %v457
      %v722 = vld [vmem:[%s677 + $0x44] sm:$0x1]
      %v723 = vsel %vm686, %v458, %v722
      %724 = vst [vmem:[%s677 + $0x44] sm:$0x1] %v723
      %v725 = vld [vmem:[%s677 + $0x48] sm:$0xf]
      %v726 = vsel %vm680, %v465, %v725
      %727 = vst [vmem:[%s677 + $0x48] sm:$0xf] %v726
      %728 = vst [vmem:[%s677 + $0x4c] sm:$0xf] %v474
      %v729 = vld [vmem:[%s677 + $0x50] sm:$0x1]
      %v730 = vsel %vm686, %v475, %v729
      %731 = vst [vmem:[%s677 + $0x50] sm:$0x1] %v730
      %v732 = vld [vmem:[%s677 + $0x54] sm:$0xf]
      %v733 = vsel %vm680, %v482, %v732
      %734 = vst [vmem:[%s677 + $0x54] sm:$0xf] %v733
      %735 = vst [vmem:[%s677 + $0x58] sm:$0xf] %v491
      %v736 = vld [vmem:[%s677 + $0x5c] sm:$0x1]
      %v737 = vsel %vm686, %v492, %v736
      %738 = vst [vmem:[%s677 + $0x5c] sm:$0x1] %v737
      %v739 = vld [vmem:[%s677 + $0x60] sm:$0xf]
      %v740 = vsel %vm680, %v499, %v739
      %741 = vst [vmem:[%s677 + $0x60] sm:$0xf] %v740
      %742 = vst [vmem:[%s677 + $0x64] sm:$0xf] %v508
      %v743 = vld [vmem:[%s677 + $0x68] sm:$0x1]
      %v744 = vsel %vm686, %v509, %v743
      %745 = vst [vmem:[%s677 + $0x68] sm:$0x1] %v744
      %v746 = vld [vmem:[%s677 + $0x6c] sm:$0xf]
      %v747 = vsel %vm680, %v516, %v746
      %748 = vst [vmem:[%s677 + $0x6c] sm:$0xf] %v747
      %749 = vst [vmem:[%s677 + $0x70] sm:$0xf] %v525
      %v750 = vld [vmem:[%s677 + $0x74] sm:$0x1]
      %v751 = vsel %vm686, %v526, %v750
      %752 = vst [vmem:[%s677 + $0x74] sm:$0x1] %v751
      %v753 = vld [vmem:[%s677 + $0x78] sm:$0xf]
      %v754 = vsel %vm680, %v533, %v753
      %755 = vst [vmem:[%s677 + $0x78] sm:$0xf] %v754
      %756 = vst [vmem:[%s677 + $0x7c] sm:$0xf] %v542
      %v757 = vld [vmem:[%s677 + $0x80] sm:$0x1]
      %v758 = vsel %vm686, %v543, %v757
      %759 = vst [vmem:[%s677 + $0x80] sm:$0x1] %v758
      %v760 = vld [vmem:[%s677 + $0x84] sm:$0xf]
      %v761 = vsel %vm680, %v550, %v760
      %762 = vst [vmem:[%s677 + $0x84] sm:$0xf] %v761
      %763 = vst [vmem:[%s677 + $0x88] sm:$0xf] %v559
      %v764 = vld [vmem:[%s677 + $0x8c] sm:$0x1]
      %v765 = vsel %vm686, %v560, %v764
      %766 = vst [vmem:[%s677 + $0x8c] sm:$0x1] %v765
      %v767 = vld [vmem:[%s677 + $0x90] sm:$0xf]
      %v768 = vsel %vm680, %v567, %v767
      %769 = vst [vmem:[%s677 + $0x90] sm:$0xf] %v768
      %770 = vst [vmem:[%s677 + $0x94] sm:$0xf] %v576
      %v771 = vld [vmem:[%s677 + $0x98] sm:$0x1]
      %v772 = vsel %vm686, %v577, %v771
      %773 = vst [vmem:[%s677 + $0x98] sm:$0x1] %v772
      %v774 = vld [vmem:[%s677 + $0x9c] sm:$0xf]
      %v775 = vsel %vm680, %v584, %v774
      %776 = vst [vmem:[%s677 + $0x9c] sm:$0xf] %v775
      %777 = vst [vmem:[%s677 + $0xa0] sm:$0xf] %v593
      %v778 = vld [vmem:[%s677 + $0xa4] sm:$0x1]
      %v779 = vsel %vm686, %v594, %v778
      %780 = vst [vmem:[%s677 + $0xa4] sm:$0x1] %v779
      %v781 = vld [vmem:[%s677 + $0xa8] sm:$0xf]
      %v782 = vsel %vm680, %v601, %v781
      %783 = vst [vmem:[%s677 + $0xa8] sm:$0xf] %v782
      %784 = vst [vmem:[%s677 + $0xac] sm:$0xf] %v610
      %v785 = vld [vmem:[%s677 + $0xb0] sm:$0x1]
      %v786 = vsel %vm686, %v611, %v785
      %787 = vst [vmem:[%s677 + $0xb0] sm:$0x1] %v786
      %v788 = vld [vmem:[%s677 + $0xb4] sm:$0xf]
      %v789 = vsel %vm680, %v618, %v788
      %790 = vst [vmem:[%s677 + $0xb4] sm:$0xf] %v789
      %791 = vst [vmem:[%s677 + $0xb8] sm:$0xf] %v627
      %v792 = vld [vmem:[%s677 + $0xbc] sm:$0x1]
      %v793 = vsel %vm686, %v628, %v792
      %794 = vst [vmem:[%s677 + $0xbc] sm:$0x1] %v793
      %s795 = scalar_lea.vmem [#allocation2], 24
      %v796 = vld [vmem:[%s795] sm:$0xf]
      %v797 = vld [vmem:[%s795 + $0x4] sm:$0xf]
      %v798 = vld [vmem:[%s795 + $0x8] sm:$0x1]
      %v799 = vld [vmem:[#allocation2] sm:$0xf]
      %v800 = vsel %vm680, %v796, %v799
      %801 = vst [vmem:[#allocation2] sm:$0xf] %v800
      %802 = vst [vmem:[#allocation2 + $0x4] sm:$0xf] %v797
      %v803 = vld [vmem:[#allocation2 + $0x8] sm:$0x1]
      %v804 = vsel %vm686, %v798, %v803
      %805 = vst [vmem:[#allocation2 + $0x8] sm:$0x1] %v804
      %s806 = scalar_lea.vmem [#allocation2], 180
      %v807 = vld [vmem:[%s806] sm:$0xf]
      %v808 = vld [vmem:[%s806 + $0x4] sm:$0xf]
      %v809 = vld [vmem:[%s806 + $0x8] sm:$0x1]
      %s810 = scalar_lea.vmem [#allocation2], 204
      %v811 = vld [vmem:[%s810] sm:$0xf]
      %v812 = vsel %vm680, %v807, %v811
      %813 = vst [vmem:[%s810] sm:$0xf] %v812
      %814 = vst [vmem:[%s810 + $0x4] sm:$0xf] %v808
      %v815 = vld [vmem:[%s810 + $0x8] sm:$0x1]
      %v816 = vsel %vm686, %v809, %v815
      %817 = vst [vmem:[%s810 + $0x8] sm:$0x1] %v816
      %v818 = vld [vmem:[#allocation2] sm:$0x2]
      %v819 = vld [vmem:[#allocation2 + $0xc] sm:$0x2]
      %v820 = vld [vmem:[#allocation2 + $0x18] sm:$0x2]
      %v821 = vld [vmem:[#allocation2 + $0x24] sm:$0x2]
      %v822 = vld [vmem:[#allocation2 + $0x30] sm:$0x2]
      %v823 = vld [vmem:[#allocation2 + $0x3c] sm:$0x2]
      %v824 = vld [vmem:[#allocation2 + $0x48] sm:$0x2]
      %v825 = vld [vmem:[#allocation2 + $0x54] sm:$0x2]
      %v826 = vld [vmem:[#allocation2 + $0x60] sm:$0x2]
      %v827 = vld [vmem:[#allocation2 + $0x6c] sm:$0x2]
      %v828 = vld [vmem:[#allocation2 + $0x78] sm:$0x2]
      %v829 = vld [vmem:[#allocation2 + $0x84] sm:$0x2]
      %v830 = vld [vmem:[#allocation2 + $0x90] sm:$0x2]
      %v831 = vld [vmem:[#allocation2 + $0x9c] sm:$0x2]
      %v832 = vld [vmem:[#allocation2 + $0xa8] sm:$0x2]
      %v833 = vld [vmem:[#allocation2 + $0xb4] sm:$0x2]
      %v834 = vld [vmem:[#allocation2 + $0xc0] sm:$0x2]
      %v835 = vld [vmem:[#allocation2 + $0xcc] sm:$0x2]
      %v854 = vrot.slane %v818, 5
      %v855 = vrot.slane %v854, 4
      %v856 = vrot.slane %v819, 5
      %v857 = vrot.slane %v856, 4
      %v858 = vrot.slane %v820, 5
      %v859 = vrot.slane %v858, 4
      %v860 = vrot.slane %v821, 5
      %v861 = vrot.slane %v860, 4
      %v862 = vrot.slane %v822, 5
      %v863 = vrot.slane %v862, 4
      %v864 = vrot.slane %v823, 5
      %v865 = vrot.slane %v864, 4
      %v866 = vrot.slane %v824, 5
      %v867 = vrot.slane %v866, 4
      %v868 = vrot.slane %v825, 5
      %v869 = vrot.slane %v868, 4
      %v870 = vrot.slane %v826, 5
      %v871 = vrot.slane %v870, 4
      %v872 = vrot.slane %v827, 5
      %v873 = vrot.slane %v872, 4
      %v874 = vrot.slane %v828, 5
      %v875 = vrot.slane %v874, 4
      %v876 = vrot.slane %v829, 5
      %v877 = vrot.slane %v876, 4
      %v878 = vrot.slane %v830, 5
      %v879 = vrot.slane %v878, 4
      %v880 = vrot.slane %v831, 5
      %v881 = vrot.slane %v880, 4
      %v882 = vrot.slane %v832, 5
      %v883 = vrot.slane %v882, 4
      %v884 = vrot.slane %v833, 5
      %v885 = vrot.slane %v884, 4
      %v886 = vrot.slane %v834, 5
      %v887 = vrot.slane %v886, 4
      %v888 = vrot.slane %v835, 5
      %v889 = vrot.slane %v888, 4
      %v908 = vld [vmem:[#allocation2] sm:$0x1]
      %v909 = vsel %vm686, %v855, %v908
      %910 = vst [vmem:[#allocation2] sm:$0x1] %v909
      %v911 = vld [vmem:[#allocation2 + $0xc] sm:$0x1]
      %v912 = vsel %vm686, %v857, %v911
      %913 = vst [vmem:[#allocation2 + $0xc] sm:$0x1] %v912
      %v914 = vld [vmem:[#allocation2 + $0x18] sm:$0x1]
      %v915 = vsel %vm686, %v859, %v914
      %916 = vst [vmem:[#allocation2 + $0x18] sm:$0x1] %v915
      %v917 = vld [vmem:[#allocation2 + $0x24] sm:$0x1]
      %v918 = vsel %vm686, %v861, %v917
      %919 = vst [vmem:[#allocation2 + $0x24] sm:$0x1] %v918
      %v920 = vld [vmem:[#allocation2 + $0x30] sm:$0x1]
      %v921 = vsel %vm686, %v863, %v920
      %922 = vst [vmem:[#allocation2 + $0x30] sm:$0x1] %v921
      %v923 = vld [vmem:[#allocation2 + $0x3c] sm:$0x1]
      %v924 = vsel %vm686, %v865, %v923
      %925 = vst [vmem:[#allocation2 + $0x3c] sm:$0x1] %v924
      %v926 = vld [vmem:[#allocation2 + $0x48] sm:$0x1]
      %v927 = vsel %vm686, %v867, %v926
      %928 = vst [vmem:[#allocation2 + $0x48] sm:$0x1] %v927
      %v929 = vld [vmem:[#allocation2 + $0x54] sm:$0x1]
      %v930 = vsel %vm686, %v869, %v929
      %931 = vst [vmem:[#allocation2 + $0x54] sm:$0x1] %v930
      %v932 = vld [vmem:[#allocation2 + $0x60] sm:$0x1]
      %v933 = vsel %vm686, %v871, %v932
      %934 = vst [vmem:[#allocation2 + $0x60] sm:$0x1] %v933
      %v935 = vld [vmem:[#allocation2 + $0x6c] sm:$0x1]
      %v936 = vsel %vm686, %v873, %v935
      %937 = vst [vmem:[#allocation2 + $0x6c] sm:$0x1] %v936
      %v938 = vld [vmem:[#allocation2 + $0x78] sm:$0x1]
      %v939 = vsel %vm686, %v875, %v938
      %940 = vst [vmem:[#allocation2 + $0x78] sm:$0x1] %v939
      %v941 = vld [vmem:[#allocation2 + $0x84] sm:$0x1]
      %v942 = vsel %vm686, %v877, %v941
      %943 = vst [vmem:[#allocation2 + $0x84] sm:$0x1] %v942
      %v944 = vld [vmem:[#allocation2 + $0x90] sm:$0x1]
      %v945 = vsel %vm686, %v879, %v944
      %946 = vst [vmem:[#allocation2 + $0x90] sm:$0x1] %v945
      %v947 = vld [vmem:[#allocation2 + $0x9c] sm:$0x1]
      %v948 = vsel %vm686, %v881, %v947
      %949 = vst [vmem:[#allocation2 + $0x9c] sm:$0x1] %v948
      %v950 = vld [vmem:[#allocation2 + $0xa8] sm:$0x1]
      %v951 = vsel %vm686, %v883, %v950
      %952 = vst [vmem:[#allocation2 + $0xa8] sm:$0x1] %v951
      %v953 = vld [vmem:[#allocation2 + $0xb4] sm:$0x1]
      %v954 = vsel %vm686, %v885, %v953
      %955 = vst [vmem:[#allocation2 + $0xb4] sm:$0x1] %v954
      %v956 = vld [vmem:[#allocation2 + $0xc0] sm:$0x1]
      %v957 = vsel %vm686, %v887, %v956
      %958 = vst [vmem:[#allocation2 + $0xc0] sm:$0x1] %v957
      %v959 = vld [vmem:[#allocation2 + $0xcc] sm:$0x1]
      %v960 = vsel %vm686, %v889, %v959
      %961 = vst [vmem:[#allocation2 + $0xcc] sm:$0x1] %v960
      %v962 = vld [vmem:[#allocation2 + $0x4] sm:$0x8]
      %v963 = vld [vmem:[#allocation2 + $0x10] sm:$0x8]
      %v964 = vld [vmem:[#allocation2 + $0x1c] sm:$0x8]
      %v965 = vld [vmem:[#allocation2 + $0x28] sm:$0x8]
      %v966 = vld [vmem:[#allocation2 + $0x34] sm:$0x8]
      %v967 = vld [vmem:[#allocation2 + $0x40] sm:$0x8]
      %v968 = vld [vmem:[#allocation2 + $0x4c] sm:$0x8]
      %v969 = vld [vmem:[#allocation2 + $0x58] sm:$0x8]
      %v970 = vld [vmem:[#allocation2 + $0x64] sm:$0x8]
      %v971 = vld [vmem:[#allocation2 + $0x70] sm:$0x8]
      %v972 = vld [vmem:[#allocation2 + $0x7c] sm:$0x8]
      %v973 = vld [vmem:[#allocation2 + $0x88] sm:$0x8]
      %v974 = vld [vmem:[#allocation2 + $0x94] sm:$0x8]
      %v975 = vld [vmem:[#allocation2 + $0xa0] sm:$0x8]
      %v976 = vld [vmem:[#allocation2 + $0xac] sm:$0x8]
      %v977 = vld [vmem:[#allocation2 + $0xb8] sm:$0x8]
      %v978 = vld [vmem:[#allocation2 + $0xc4] sm:$0x8]
      %v979 = vld [vmem:[#allocation2 + $0xd0] sm:$0x8]
      %v998 = vrot.slane %v962, 7
      %v999 = vrot.slane %v998, 4
      %v1000 = vrot.slane %v963, 7
      %v1001 = vrot.slane %v1000, 4
      %v1002 = vrot.slane %v964, 7
      %v1003 = vrot.slane %v1002, 4
      %v1004 = vrot.slane %v965, 7
      %v1005 = vrot.slane %v1004, 4
      %v1006 = vrot.slane %v966, 7
      %v1007 = vrot.slane %v1006, 4
      %v1008 = vrot.slane %v967, 7
      %v1009 = vrot.slane %v1008, 4
      %v1010 = vrot.slane %v968, 7
      %v1011 = vrot.slane %v1010, 4
      %v1012 = vrot.slane %v969, 7
      %v1013 = vrot.slane %v1012, 4
      %v1014 = vrot.slane %v970, 7
      %v1015 = vrot.slane %v1014, 4
      %v1016 = vrot.slane %v971, 7
      %v1017 = vrot.slane %v1016, 4
      %v1018 = vrot.slane %v972, 7
      %v1019 = vrot.slane %v1018, 4
      %v1020 = vrot.slane %v973, 7
      %v1021 = vrot.slane %v1020, 4
      %v1022 = vrot.slane %v974, 7
      %v1023 = vrot.slane %v1022, 4
      %v1024 = vrot.slane %v975, 7
      %v1025 = vrot.slane %v1024, 4
      %v1026 = vrot.slane %v976, 7
      %v1027 = vrot.slane %v1026, 4
      %v1028 = vrot.slane %v977, 7
      %v1029 = vrot.slane %v1028, 4
      %v1030 = vrot.slane %v978, 7
      %v1031 = vrot.slane %v1030, 4
      %v1032 = vrot.slane %v979, 7
      %v1033 = vrot.slane %v1032, 4
      %vm1052 = vmand %vm685, %vm679
      %v1053 = vld [vmem:[#allocation2 + $0x8] sm:$0x1]
      %v1054 = vsel %vm1052, %v999, %v1053
      %1055 = vst [vmem:[#allocation2 + $0x8] sm:$0x1] %v1054
      %v1056 = vld [vmem:[#allocation2 + $0x14] sm:$0x1]
      %v1057 = vsel %vm1052, %v1001, %v1056
      %1058 = vst [vmem:[#allocation2 + $0x14] sm:$0x1] %v1057
      %v1059 = vld [vmem:[#allocation2 + $0x20] sm:$0x1]
      %v1060 = vsel %vm1052, %v1003, %v1059
      %1061 = vst [vmem:[#allocation2 + $0x20] sm:$0x1] %v1060
      %v1062 = vld [vmem:[#allocation2 + $0x2c] sm:$0x1]
      %v1063 = vsel %vm1052, %v1005, %v1062
      %1064 = vst [vmem:[#allocation2 + $0x2c] sm:$0x1] %v1063
      %v1065 = vld [vmem:[#allocation2 + $0x38] sm:$0x1]
      %v1066 = vsel %vm1052, %v1007, %v1065
      %1067 = vst [vmem:[#allocation2 + $0x38] sm:$0x1] %v1066
      %v1068 = vld [vmem:[#allocation2 + $0x44] sm:$0x1]
      %v1069 = vsel %vm1052, %v1009, %v1068
      %1070 = vst [vmem:[#allocation2 + $0x44] sm:$0x1] %v1069
      %v1071 = vld [vmem:[#allocation2 + $0x50] sm:$0x1]
      %v1072 = vsel %vm1052, %v1011, %v1071
      %1073 = vst [vmem:[#allocation2 + $0x50] sm:$0x1] %v1072
      %v1074 = vld [vmem:[#allocation2 + $0x5c] sm:$0x1]
      %v1075 = vsel %vm1052, %v1013, %v1074
      %1076 = vst [vmem:[#allocation2 + $0x5c] sm:$0x1] %v1075
      %v1077 = vld [vmem:[#allocation2 + $0x68] sm:$0x1]
      %v1078 = vsel %vm1052, %v1015, %v1077
      %1079 = vst [vmem:[#allocation2 + $0x68] sm:$0x1] %v1078
      %v1080 = vld [vmem:[#allocation2 + $0x74] sm:$0x1]
      %v1081 = vsel %vm1052, %v1017, %v1080
      %1082 = vst [vmem:[#allocation2 + $0x74] sm:$0x1] %v1081
      %v1083 = vld [vmem:[#allocation2 + $0x80] sm:$0x1]
      %v1084 = vsel %vm1052, %v1019, %v1083
      %1085 = vst [vmem:[#allocation2 + $0x80] sm:$0x1] %v1084
      %v1086 = vld [vmem:[#allocation2 + $0x8c] sm:$0x1]
      %v1087 = vsel %vm1052, %v1021, %v1086
      %1088 = vst [vmem:[#allocation2 + $0x8c] sm:$0x1] %v1087
      %v1089 = vld [vmem:[#allocation2 + $0x98] sm:$0x1]
      %v1090 = vsel %vm1052, %v1023, %v1089
      %1091 = vst [vmem:[#allocation2 + $0x98] sm:$0x1] %v1090
      %v1092 = vld [vmem:[#allocation2 + $0xa4] sm:$0x1]
      %v1093 = vsel %vm1052, %v1025, %v1092
      %1094 = vst [vmem:[#allocation2 + $0xa4] sm:$0x1] %v1093
      %v1095 = vld [vmem:[#allocation2 + $0xb0] sm:$0x1]
      %v1096 = vsel %vm1052, %v1027, %v1095
      %1097 = vst [vmem:[#allocation2 + $0xb0] sm:$0x1] %v1096
      %v1098 = vld [vmem:[#allocation2 + $0xbc] sm:$0x1]
      %v1099 = vsel %vm1052, %v1029, %v1098
      %1100 = vst [vmem:[#allocation2 + $0xbc] sm:$0x1] %v1099
      %v1101 = vld [vmem:[#allocation2 + $0xc8] sm:$0x1]
      %v1102 = vsel %vm1052, %v1031, %v1101
      %1103 = vst [vmem:[#allocation2 + $0xc8] sm:$0x1] %v1102
      %v1104 = vld [vmem:[#allocation2 + $0xd4] sm:$0x1]
      %v1105 = vsel %vm1052, %v1033, %v1104
      %1106 = vst [vmem:[#allocation2 + $0xd4] sm:$0x1] %v1105
      %v1107 = vld [vmem:[#allocation2] sm:$0xf]
      %v1108 = vld [vmem:[#allocation2 + $0x4] sm:$0xf]
      %v1109 = vld [vmem:[#allocation2 + $0xc] sm:$0xf]
      %v1110 = vld [vmem:[#allocation2 + $0x10] sm:$0xf]
      %v1111 = vld [vmem:[#allocation2 + $0x18] sm:$0xf]
      %v1112 = vld [vmem:[#allocation2 + $0x1c] sm:$0xf]
      %v1113 = vld [vmem:[#allocation2 + $0x24] sm:$0xf]
      %v1114 = vld [vmem:[#allocation2 + $0x28] sm:$0xf]
      %v1115 = vld [vmem:[#allocation2 + $0x30] sm:$0xf]
      %v1116 = vld [vmem:[#allocation2 + $0x34] sm:$0xf]
      %v1117 = vld [vmem:[#allocation2 + $0x3c] sm:$0xf]
      %v1118 = vld [vmem:[#allocation2 + $0x40] sm:$0xf]
      %v1119 = vld [vmem:[#allocation2 + $0x48] sm:$0xf]
      %v1120 = vld [vmem:[#allocation2 + $0x4c] sm:$0xf]
      %v1121 = vld [vmem:[#allocation2 + $0x54] sm:$0xf]
      %v1122 = vld [vmem:[#allocation2 + $0x58] sm:$0xf]
      %v1123 = vld [vmem:[#allocation2 + $0x60] sm:$0xf]
      %v1124 = vld [vmem:[#allocation2 + $0x64] sm:$0xf]
      %v1125 = vld [vmem:[#allocation2 + $0x6c] sm:$0xf]
      %v1126 = vld [vmem:[#allocation2 + $0x70] sm:$0xf]
      %v1127 = vld [vmem:[#allocation2 + $0x78] sm:$0xf]
      %v1128 = vld [vmem:[#allocation2 + $0x7c] sm:$0xf]
      %v1129 = vld [vmem:[#allocation2 + $0x84] sm:$0xf]
      %v1130 = vld [vmem:[#allocation2 + $0x88] sm:$0xf]
      %v1131 = vld [vmem:[#allocation2 + $0x90] sm:$0xf]
      %v1132 = vld [vmem:[#allocation2 + $0x94] sm:$0xf]
      %v1133 = vld [vmem:[#allocation2 + $0x9c] sm:$0xf]
      %v1134 = vld [vmem:[#allocation2 + $0xa0] sm:$0xf]
      %v1135 = vld [vmem:[#allocation2 + $0xa8] sm:$0xf]
      %v1136 = vld [vmem:[#allocation2 + $0xac] sm:$0xf]
      %v1137 = vld [vmem:[#allocation2 + $0xb4] sm:$0xf]
      %v1138 = vld [vmem:[#allocation2 + $0xb8] sm:$0xf]
      %v1139 = vld [vmem:[#allocation2 + $0x8] sm:$0x1]
      %v1140 = vld [vmem:[#allocation2 + $0x14] sm:$0x1]
      %v1141 = vld [vmem:[#allocation2 + $0x20] sm:$0x1]
      %v1142 = vld [vmem:[#allocation2 + $0x2c] sm:$0x1]
      %v1143 = vld [vmem:[#allocation2 + $0x38] sm:$0x1]
      %v1144 = vld [vmem:[#allocation2 + $0x44] sm:$0x1]
      %v1145 = vld [vmem:[#allocation2 + $0x50] sm:$0x1]
      %v1146 = vld [vmem:[#allocation2 + $0x5c] sm:$0x1]
      %v1147 = vld [vmem:[#allocation2 + $0x68] sm:$0x1]
      %v1148 = vld [vmem:[#allocation2 + $0x74] sm:$0x1]
      %v1149 = vld [vmem:[#allocation2 + $0x80] sm:$0x1]
      %v1150 = vld [vmem:[#allocation2 + $0x8c] sm:$0x1]
      %v1151 = vld [vmem:[#allocation2 + $0x98] sm:$0x1]
      %v1152 = vld [vmem:[#allocation2 + $0xa4] sm:$0x1]
      %v1153 = vld [vmem:[#allocation2 + $0xb0] sm:$0x1]
      %v1154 = vld [vmem:[#allocation2 + $0xbc] sm:$0x1]
      %vm1155 = vsmask.f32 3328
      %vm1156 = vsmask.f32 7440
      %vm1157 = vmor %vm1155, %vm1156
      %v1159 = vshrl.u32 %v1107, 16
      %v1161 = vrot.slane %v1159, 4
      %v1162 = vshll.u32 %v1107, 16
      %v1164 = vrot.slane %v1162, 5
      %v1165 = vor.u32 %v1161, %v1164
      %v1166 = vrot.slane %v1165, 4
      %v1168 = vshll.u32 %v1108, 16
      %v1170 = vrot.slane %v1168, 5
      %v1171 = vsel %vm1157, %v1166, %v1170
      %v1172 = vshrl.u32 %v1108, 16
      %v1174 = vrot.slane %v1172, 4
      %v1175 = vor.u32 %v1174, %v1170
      %v1176 = vrot.slane %v1175, 4
      %v1178 = vshll.u32 %v1139, 16
      %v1180 = vrot.slane %v1178, 5
      %v1181 = vsel %vm1157, %v1176, %v1180
      %v1183 = vshrl.u32 %v1109, 16
      %v1185 = vrot.slane %v1183, 4
      %v1186 = vshll.u32 %v1109, 16
      %v1188 = vrot.slane %v1186, 5
      %v1189 = vor.u32 %v1185, %v1188
      %v1190 = vrot.slane %v1189, 4
      %v1192 = vshll.u32 %v1110, 16
      %v1194 = vrot.slane %v1192, 5
      %v1195 = vsel %vm1157, %v1190, %v1194
      %v1196 = vshrl.u32 %v1110, 16
      %v1198 = vrot.slane %v1196, 4
      %v1199 = vor.u32 %v1198, %v1194
      %v1200 = vrot.slane %v1199, 4
      %v1202 = vshll.u32 %v1140, 16
      %v1204 = vrot.slane %v1202, 5
      %v1205 = vsel %vm1157, %v1200, %v1204
      %v1207 = vshrl.u32 %v1111, 16
      %v1209 = vrot.slane %v1207, 4
      %v1210 = vshll.u32 %v1111, 16
      %v1212 = vrot.slane %v1210, 5
      %v1213 = vor.u32 %v1209, %v1212
      %v1214 = vrot.slane %v1213, 4
      %v1216 = vshll.u32 %v1112, 16
      %v1218 = vrot.slane %v1216, 5
      %v1219 = vsel %vm1157, %v1214, %v1218
      %v1220 = vshrl.u32 %v1112, 16
      %v1222 = vrot.slane %v1220, 4
      %v1223 = vor.u32 %v1222, %v1218
      %v1224 = vrot.slane %v1223, 4
      %v1226 = vshll.u32 %v1141, 16
      %v1228 = vrot.slane %v1226, 5
      %v1229 = vsel %vm1157, %v1224, %v1228
      %v1231 = vshrl.u32 %v1113, 16
      %v1233 = vrot.slane %v1231, 4
      %v1234 = vshll.u32 %v1113, 16
      %v1236 = vrot.slane %v1234, 5
      %v1237 = vor.u32 %v1233, %v1236
      %v1238 = vrot.slane %v1237, 4
      %v1240 = vshll.u32 %v1114, 16
      %v1242 = vrot.slane %v1240, 5
      %v1243 = vsel %vm1157, %v1238, %v1242
      %v1244 = vshrl.u32 %v1114, 16
      %v1246 = vrot.slane %v1244, 4
      %v1247 = vor.u32 %v1246, %v1242
      %v1248 = vrot.slane %v1247, 4
      %v1250 = vshll.u32 %v1142, 16
      %v1252 = vrot.slane %v1250, 5
      %v1253 = vsel %vm1157, %v1248, %v1252
      %v1255 = vshrl.u32 %v1115, 16
      %v1257 = vrot.slane %v1255, 4
      %v1258 = vshll.u32 %v1115, 16
      %v1260 = vrot.slane %v1258, 5
      %v1261 = vor.u32 %v1257, %v1260
      %v1262 = vrot.slane %v1261, 4
      %v1264 = vshll.u32 %v1116, 16
      %v1266 = vrot.slane %v1264, 5
      %v1267 = vsel %vm1157, %v1262, %v1266
      %v1268 = vshrl.u32 %v1116, 16
      %v1270 = vrot.slane %v1268, 4
      %v1271 = vor.u32 %v1270, %v1266
      %v1272 = vrot.slane %v1271, 4
      %v1274 = vshll.u32 %v1143, 16
      %v1276 = vrot.slane %v1274, 5
      %v1277 = vsel %vm1157, %v1272, %v1276
      %v1279 = vshrl.u32 %v1117, 16
      %v1281 = vrot.slane %v1279, 4
      %v1282 = vshll.u32 %v1117, 16
      %v1284 = vrot.slane %v1282, 5
      %v1285 = vor.u32 %v1281, %v1284
      %v1286 = vrot.slane %v1285, 4
      %v1288 = vshll.u32 %v1118, 16
      %v1290 = vrot.slane %v1288, 5
      %v1291 = vsel %vm1157, %v1286, %v1290
      %v1292 = vshrl.u32 %v1118, 16
      %v1294 = vrot.slane %v1292, 4
      %v1295 = vor.u32 %v1294, %v1290
      %v1296 = vrot.slane %v1295, 4
      %v1298 = vshll.u32 %v1144, 16
      %v1300 = vrot.slane %v1298, 5
      %v1301 = vsel %vm1157, %v1296, %v1300
      %v1303 = vshrl.u32 %v1119, 16
      %v1305 = vrot.slane %v1303, 4
      %v1306 = vshll.u32 %v1119, 16
      %v1308 = vrot.slane %v1306, 5
      %v1309 = vor.u32 %v1305, %v1308
      %v1310 = vrot.slane %v1309, 4
      %v1312 = vshll.u32 %v1120, 16
      %v1314 = vrot.slane %v1312, 5
      %v1315 = vsel %vm1157, %v1310, %v1314
      %v1316 = vshrl.u32 %v1120, 16
      %v1318 = vrot.slane %v1316, 4
      %v1319 = vor.u32 %v1318, %v1314
      %v1320 = vrot.slane %v1319, 4
      %v1322 = vshll.u32 %v1145, 16
      %v1324 = vrot.slane %v1322, 5
      %v1325 = vsel %vm1157, %v1320, %v1324
      %v1327 = vshrl.u32 %v1121, 16
      %v1329 = vrot.slane %v1327, 4
      %v1330 = vshll.u32 %v1121, 16
      %v1332 = vrot.slane %v1330, 5
      %v1333 = vor.u32 %v1329, %v1332
      %v1334 = vrot.slane %v1333, 4
      %v1336 = vshll.u32 %v1122, 16
      %v1338 = vrot.slane %v1336, 5
      %v1339 = vsel %vm1157, %v1334, %v1338
      %v1340 = vshrl.u32 %v1122, 16
      %v1342 = vrot.slane %v1340, 4
      %v1343 = vor.u32 %v1342, %v1338
      %v1344 = vrot.slane %v1343, 4
      %v1346 = vshll.u32 %v1146, 16
      %v1348 = vrot.slane %v1346, 5
      %v1349 = vsel %vm1157, %v1344, %v1348
      %v1351 = vshrl.u32 %v1123, 16
      %v1353 = vrot.slane %v1351, 4
      %v1354 = vshll.u32 %v1123, 16
      %v1356 = vrot.slane %v1354, 5
      %v1357 = vor.u32 %v1353, %v1356
      %v1358 = vrot.slane %v1357, 4
      %v1360 = vshll.u32 %v1124, 16
      %v1362 = vrot.slane %v1360, 5
      %v1363 = vsel %vm1157, %v1358, %v1362
      %v1364 = vshrl.u32 %v1124, 16
      %v1366 = vrot.slane %v1364, 4
      %v1367 = vor.u32 %v1366, %v1362
      %v1368 = vrot.slane %v1367, 4
      %v1370 = vshll.u32 %v1147, 16
      %v1372 = vrot.slane %v1370, 5
      %v1373 = vsel %vm1157, %v1368, %v1372
      %v1375 = vshrl.u32 %v1125, 16
      %v1377 = vrot.slane %v1375, 4
      %v1378 = vshll.u32 %v1125, 16
      %v1380 = vrot.slane %v1378, 5
      %v1381 = vor.u32 %v1377, %v1380
      %v1382 = vrot.slane %v1381, 4
      %v1384 = vshll.u32 %v1126, 16
      %v1386 = vrot.slane %v1384, 5
      %v1387 = vsel %vm1157, %v1382, %v1386
      %v1388 = vshrl.u32 %v1126, 16
      %v1390 = vrot.slane %v1388, 4
      %v1391 = vor.u32 %v1390, %v1386
      %v1392 = vrot.slane %v1391, 4
      %v1394 = vshll.u32 %v1148, 16
      %v1396 = vrot.slane %v1394, 5
      %v1397 = vsel %vm1157, %v1392, %v1396
      %v1399 = vshrl.u32 %v1127, 16
      %v1401 = vrot.slane %v1399, 4
      %v1402 = vshll.u32 %v1127, 16
      %v1404 = vrot.slane %v1402, 5
      %v1405 = vor.u32 %v1401, %v1404
      %v1406 = vrot.slane %v1405, 4
      %v1408 = vshll.u32 %v1128, 16
      %v1410 = vrot.slane %v1408, 5
      %v1411 = vsel %vm1157, %v1406, %v1410
      %v1412 = vshrl.u32 %v1128, 16
      %v1414 = vrot.slane %v1412, 4
      %v1415 = vor.u32 %v1414, %v1410
      %v1416 = vrot.slane %v1415, 4
      %v1418 = vshll.u32 %v1149, 16
      %v1420 = vrot.slane %v1418, 5
      %v1421 = vsel %vm1157, %v1416, %v1420
      %v1423 = vshrl.u32 %v1129, 16
      %v1425 = vrot.slane %v1423, 4
      %v1426 = vshll.u32 %v1129, 16
      %v1428 = vrot.slane %v1426, 5
      %v1429 = vor.u32 %v1425, %v1428
      %v1430 = vrot.slane %v1429, 4
      %v1432 = vshll.u32 %v1130, 16
      %v1434 = vrot.slane %v1432, 5
      %v1435 = vsel %vm1157, %v1430, %v1434
      %v1436 = vshrl.u32 %v1130, 16
      %v1438 = vrot.slane %v1436, 4
      %v1439 = vor.u32 %v1438, %v1434
      %v1440 = vrot.slane %v1439, 4
      %v1442 = vshll.u32 %v1150, 16
      %v1444 = vrot.slane %v1442, 5
      %v1445 = vsel %vm1157, %v1440, %v1444
      %v1447 = vshrl.u32 %v1131, 16
      %v1449 = vrot.slane %v1447, 4
      %v1450 = vshll.u32 %v1131, 16
      %v1452 = vrot.slane %v1450, 5
      %v1453 = vor.u32 %v1449, %v1452
      %v1454 = vrot.slane %v1453, 4
      %v1456 = vshll.u32 %v1132, 16
      %v1458 = vrot.slane %v1456, 5
      %v1459 = vsel %vm1157, %v1454, %v1458
      %v1460 = vshrl.u32 %v1132, 16
      %v1462 = vrot.slane %v1460, 4
      %v1463 = vor.u32 %v1462, %v1458
      %v1464 = vrot.slane %v1463, 4
      %v1466 = vshll.u32 %v1151, 16
      %v1468 = vrot.slane %v1466, 5
      %v1469 = vsel %vm1157, %v1464, %v1468
      %v1471 = vshrl.u32 %v1133, 16
      %v1473 = vrot.slane %v1471, 4
      %v1474 = vshll.u32 %v1133, 16
      %v1476 = vrot.slane %v1474, 5
      %v1477 = vor.u32 %v1473, %v1476
      %v1478 = vrot.slane %v1477, 4
      %v1480 = vshll.u32 %v1134, 16
      %v1482 = vrot.slane %v1480, 5
      %v1483 = vsel %vm1157, %v1478, %v1482
      %v1484 = vshrl.u32 %v1134, 16
      %v1486 = vrot.slane %v1484, 4
      %v1487 = vor.u32 %v1486, %v1482
      %v1488 = vrot.slane %v1487, 4
      %v1490 = vshll.u32 %v1152, 16
      %v1492 = vrot.slane %v1490, 5
      %v1493 = vsel %vm1157, %v1488, %v1492
      %v1495 = vshrl.u32 %v1135, 16
      %v1497 = vrot.slane %v1495, 4
      %v1498 = vshll.u32 %v1135, 16
      %v1500 = vrot.slane %v1498, 5
      %v1501 = vor.u32 %v1497, %v1500
      %v1502 = vrot.slane %v1501, 4
      %v1504 = vshll.u32 %v1136, 16
      %v1506 = vrot.slane %v1504, 5
      %v1507 = vsel %vm1157, %v1502, %v1506
      %v1508 = vshrl.u32 %v1136, 16
      %v1510 = vrot.slane %v1508, 4
      %v1511 = vor.u32 %v1510, %v1506
      %v1512 = vrot.slane %v1511, 4
      %v1514 = vshll.u32 %v1153, 16
      %v1516 = vrot.slane %v1514, 5
      %v1517 = vsel %vm1157, %v1512, %v1516
      %v1519 = vshrl.u32 %v1137, 16
      %v1521 = vrot.slane %v1519, 4
      %v1522 = vshll.u32 %v1137, 16
      %v1524 = vrot.slane %v1522, 5
      %v1525 = vor.u32 %v1521, %v1524
      %v1526 = vrot.slane %v1525, 4
      %v1528 = vshll.u32 %v1138, 16
      %v1530 = vrot.slane %v1528, 5
      %v1531 = vsel %vm1157, %v1526, %v1530
      %v1532 = vshrl.u32 %v1138, 16
      %v1534 = vrot.slane %v1532, 4
      %v1535 = vor.u32 %v1534, %v1530
      %v1536 = vrot.slane %v1535, 4
      %v1538 = vshll.u32 %v1154, 16
      %v1540 = vrot.slane %v1538, 5
      %v1541 = vsel %vm1157, %v1536, %v1540
      %v1542 = vld [vmem:[#allocation2] sm:$0xe]
      %v1543 = vld [vmem:[#allocation2 + $0xc] sm:$0xe]
      %v1544 = vld [vmem:[#allocation2 + $0x18] sm:$0xe]
      %v1545 = vld [vmem:[#allocation2 + $0x24] sm:$0xe]
      %v1546 = vld [vmem:[#allocation2 + $0x30] sm:$0xe]
      %v1547 = vld [vmem:[#allocation2 + $0x3c] sm:$0xe]
      %v1548 = vld [vmem:[#allocation2 + $0x48] sm:$0xe]
      %v1549 = vld [vmem:[#allocation2 + $0x54] sm:$0xe]
      %v1550 = vld [vmem:[#allocation2 + $0x60] sm:$0xe]
      %v1551 = vld [vmem:[#allocation2 + $0x6c] sm:$0xe]
      %v1552 = vld [vmem:[#allocation2 + $0x78] sm:$0xe]
      %v1553 = vld [vmem:[#allocation2 + $0x84] sm:$0xe]
      %v1554 = vld [vmem:[#allocation2 + $0x90] sm:$0xe]
      %v1555 = vld [vmem:[#allocation2 + $0x9c] sm:$0xe]
      %v1556 = vld [vmem:[#allocation2 + $0xa8] sm:$0xe]
      %v1557 = vld [vmem:[#allocation2 + $0xb4] sm:$0xe]
      %vm1606 = vcmask 1042432
      %vm1607 = vcmask 1046532
      %vm1608 = vmor %vm1606, %vm1607
      %v1609 = vrot.slane %v1542, 5
      %v1610 = vrot.slane %v1609, 4
      %v1611 = vrot.slane %v1108, 5
      %v1612 = vsel %vm1608, %v1610, %v1611
      %v1613 = vrot.slane %v1611, 4
      %v1614 = vrot.slane %v1139, 5
      %v1615 = vsel %vm1608, %v1613, %v1614
      %v1616 = vrot.slane %v1543, 5
      %v1617 = vrot.slane %v1616, 4
      %v1618 = vrot.slane %v1110, 5
      %v1619 = vsel %vm1608, %v1617, %v1618
      %v1620 = vrot.slane %v1618, 4
      %v1621 = vrot.slane %v1140, 5
      %v1622 = vsel %vm1608, %v1620, %v1621
      %v1623 = vrot.slane %v1544, 5
      %v1624 = vrot.slane %v1623, 4
      %v1625 = vrot.slane %v1112, 5
      %v1626 = vsel %vm1608, %v1624, %v1625
      %v1627 = vrot.slane %v1625, 4
      %v1628 = vrot.slane %v1141, 5
      %v1629 = vsel %vm1608, %v1627, %v1628
      %v1630 = vrot.slane %v1545, 5
      %v1631 = vrot.slane %v1630, 4
      %v1632 = vrot.slane %v1114, 5
      %v1633 = vsel %vm1608, %v1631, %v1632
      %v1634 = vrot.slane %v1632, 4
      %v1635 = vrot.slane %v1142, 5
      %v1636 = vsel %vm1608, %v1634, %v1635
      %v1637 = vrot.slane %v1546, 5
      %v1638 = vrot.slane %v1637, 4
      %v1639 = vrot.slane %v1116, 5
      %v1640 = vsel %vm1608, %v1638, %v1639
      %v1641 = vrot.slane %v1639, 4
      %v1642 = vrot.slane %v1143, 5
      %v1643 = vsel %vm1608, %v1641, %v1642
      %v1644 = vrot.slane %v1547, 5
      %v1645 = vrot.slane %v1644, 4
      %v1646 = vrot.slane %v1118, 5
      %v1647 = vsel %vm1608, %v1645, %v1646
      %v1648 = vrot.slane %v1646, 4
      %v1649 = vrot.slane %v1144, 5
      %v1650 = vsel %vm1608, %v1648, %v1649
      %v1651 = vrot.slane %v1548, 5
      %v1652 = vrot.slane %v1651, 4
      %v1653 = vrot.slane %v1120, 5
      %v1654 = vsel %vm1608, %v1652, %v1653
      %v1655 = vrot.slane %v1653, 4
      %v1656 = vrot.slane %v1145, 5
      %v1657 = vsel %vm1608, %v1655, %v1656
      %v1658 = vrot.slane %v1549, 5
      %v1659 = vrot.slane %v1658, 4
      %v1660 = vrot.slane %v1122, 5
      %v1661 = vsel %vm1608, %v1659, %v1660
      %v1662 = vrot.slane %v1660, 4
      %v1663 = vrot.slane %v1146, 5
      %v1664 = vsel %vm1608, %v1662, %v1663
      %v1665 = vrot.slane %v1550, 5
      %v1666 = vrot.slane %v1665, 4
      %v1667 = vrot.slane %v1124, 5
      %v1668 = vsel %vm1608, %v1666, %v1667
      %v1669 = vrot.slane %v1667, 4
      %v1670 = vrot.slane %v1147, 5
      %v1671 = vsel %vm1608, %v1669, %v1670
      %v1672 = vrot.slane %v1551, 5
      %v1673 = vrot.slane %v1672, 4
      %v1674 = vrot.slane %v1126, 5
      %v1675 = vsel %vm1608, %v1673, %v1674
      %v1676 = vrot.slane %v1674, 4
      %v1677 = vrot.slane %v1148, 5
      %v1678 = vsel %vm1608, %v1676, %v1677
      %v1679 = vrot.slane %v1552, 5
      %v1680 = vrot.slane %v1679, 4
      %v1681 = vrot.slane %v1128, 5
      %v1682 = vsel %vm1608, %v1680, %v1681
      %v1683 = vrot.slane %v1681, 4
      %v1684 = vrot.slane %v1149, 5
      %v1685 = vsel %vm1608, %v1683, %v1684
      %v1686 = vrot.slane %v1553, 5
      %v1687 = vrot.slane %v1686, 4
      %v1688 = vrot.slane %v1130, 5
      %v1689 = vsel %vm1608, %v1687, %v1688
      %v1690 = vrot.slane %v1688, 4
      %v1691 = vrot.slane %v1150, 5
      %v1692 = vsel %vm1608, %v1690, %v1691
      %v1693 = vrot.slane %v1554, 5
      %v1694 = vrot.slane %v1693, 4
      %v1695 = vrot.slane %v1132, 5
      %v1696 = vsel %vm1608, %v1694, %v1695
      %v1697 = vrot.slane %v1695, 4
      %v1698 = vrot.slane %v1151, 5
      %v1699 = vsel %vm1608, %v1697, %v1698
      %v1700 = vrot.slane %v1555, 5
      %v1701 = vrot.slane %v1700, 4
      %v1702 = vrot.slane %v1134, 5
      %v1703 = vsel %vm1608, %v1701, %v1702
      %v1704 = vrot.slane %v1702, 4
      %v1705 = vrot.slane %v1152, 5
      %v1706 = vsel %vm1608, %v1704, %v1705
      %v1707 = vrot.slane %v1556, 5
      %v1708 = vrot.slane %v1707, 4
      %v1709 = vrot.slane %v1136, 5
      %v1710 = vsel %vm1608, %v1708, %v1709
      %v1711 = vrot.slane %v1709, 4
      %v1712 = vrot.slane %v1153, 5
      %v1713 = vsel %vm1608, %v1711, %v1712
      %v1714 = vrot.slane %v1557, 5
      %v1715 = vrot.slane %v1714, 4
      %v1716 = vrot.slane %v1138, 5
      %v1717 = vsel %vm1608, %v1715, %v1716
      %v1718 = vrot.slane %v1716, 4
      %v1719 = vrot.slane %v1154, 5
      %v1720 = vsel %vm1608, %v1718, %v1719
      %v1737 = vunpack.c.l.b16 %v1107
      %v1738 = vunpack.c.l.b16 %v1108
      %v1739 = vunpack.c.l.b16 %v1109
      %v1740 = vunpack.c.l.b16 %v1110
      %v1741 = vunpack.c.l.b16 %v1111
      %v1742 = vunpack.c.l.b16 %v1112
      %v1743 = vunpack.c.l.b16 %v1113
      %v1744 = vunpack.c.l.b16 %v1114
      %v1745 = vunpack.c.l.b16 %v1115
      %v1746 = vunpack.c.l.b16 %v1116
      %v1747 = vunpack.c.l.b16 %v1117
      %v1748 = vunpack.c.l.b16 %v1118
      %v1749 = vunpack.c.l.b16 %v1119
      %v1750 = vunpack.c.l.b16 %v1120
      %v1751 = vunpack.c.l.b16 %v1121
      %v1752 = vunpack.c.l.b16 %v1122
      %v1753 = vunpack.c.l.b16 %v1123
      %v1754 = vunpack.c.l.b16 %v1124
      %v1755 = vunpack.c.l.b16 %v1125
      %v1756 = vunpack.c.l.b16 %v1126
      %v1757 = vunpack.c.l.b16 %v1127
      %v1758 = vunpack.c.l.b16 %v1128
      %v1759 = vunpack.c.l.b16 %v1129
      %v1760 = vunpack.c.l.b16 %v1130
      %v1761 = vunpack.c.l.b16 %v1131
      %v1762 = vunpack.c.l.b16 %v1132
      %v1763 = vunpack.c.l.b16 %v1133
      %v1764 = vunpack.c.l.b16 %v1134
      %v1765 = vunpack.c.l.b16 %v1135
      %v1766 = vunpack.c.l.b16 %v1136
      %v1767 = vunpack.c.l.b16 %v1137
      %v1768 = vunpack.c.l.b16 %v1138
      %v1769 = vpack.c.b16 %v1738, %v1737
      %v1770 = vpack.c.b16 %v1740, %v1739
      %v1771 = vpack.c.b16 %v1742, %v1741
      %v1772 = vpack.c.b16 %v1744, %v1743
      %v1773 = vpack.c.b16 %v1746, %v1745
      %v1774 = vpack.c.b16 %v1748, %v1747
      %v1775 = vpack.c.b16 %v1750, %v1749
      %v1776 = vpack.c.b16 %v1752, %v1751
      %v1777 = vpack.c.b16 %v1754, %v1753
      %v1778 = vpack.c.b16 %v1756, %v1755
      %v1779 = vpack.c.b16 %v1758, %v1757
      %v1780 = vpack.c.b16 %v1760, %v1759
      %v1781 = vpack.c.b16 %v1762, %v1761
      %v1782 = vpack.c.b16 %v1764, %v1763
      %v1783 = vpack.c.b16 %v1766, %v1765
      %v1784 = vpack.c.b16 %v1768, %v1767
      %v1801 = vunpack.c.l.b16 %v1171
      %v1802 = vunpack.c.l.b16 %v1181
      %v1803 = vunpack.c.l.b16 %v1195
      %v1804 = vunpack.c.l.b16 %v1205
      %v1805 = vunpack.c.l.b16 %v1219
      %v1806 = vunpack.c.l.b16 %v1229
      %v1807 = vunpack.c.l.b16 %v1243
      %v1808 = vunpack.c.l.b16 %v1253
      %v1809 = vunpack.c.l.b16 %v1267
      %v1810 = vunpack.c.l.b16 %v1277
      %v1811 = vunpack.c.l.b16 %v1291
      %v1812 = vunpack.c.l.b16 %v1301
      %v1813 = vunpack.c.l.b16 %v1315
      %v1814 = vunpack.c.l.b16 %v1325
      %v1815 = vunpack.c.l.b16 %v1339
      %v1816 = vunpack.c.l.b16 %v1349
      %v1817 = vunpack.c.l.b16 %v1363
      %v1818 = vunpack.c.l.b16 %v1373
      %v1819 = vunpack.c.l.b16 %v1387
      %v1820 = vunpack.c.l.b16 %v1397
      %v1821 = vunpack.c.l.b16 %v1411
      %v1822 = vunpack.c.l.b16 %v1421
      %v1823 = vunpack.c.l.b16 %v1435
      %v1824 = vunpack.c.l.b16 %v1445
      %v1825 = vunpack.c.l.b16 %v1459
      %v1826 = vunpack.c.l.b16 %v1469
      %v1827 = vunpack.c.l.b16 %v1483
      %v1828 = vunpack.c.l.b16 %v1493
      %v1829 = vunpack.c.l.b16 %v1507
      %v1830 = vunpack.c.l.b16 %v1517
      %v1831 = vunpack.c.l.b16 %v1531
      %v1832 = vunpack.c.l.b16 %v1541
      %v1833 = vpack.c.b16 %v1802, %v1801
      %v1834 = vpack.c.b16 %v1804, %v1803
      %v1835 = vpack.c.b16 %v1806, %v1805
      %v1836 = vpack.c.b16 %v1808, %v1807
      %v1837 = vpack.c.b16 %v1810, %v1809
      %v1838 = vpack.c.b16 %v1812, %v1811
      %v1839 = vpack.c.b16 %v1814, %v1813
      %v1840 = vpack.c.b16 %v1816, %v1815
      %v1841 = vpack.c.b16 %v1818, %v1817
      %v1842 = vpack.c.b16 %v1820, %v1819
      %v1843 = vpack.c.b16 %v1822, %v1821
      %v1844 = vpack.c.b16 %v1824, %v1823
      %v1845 = vpack.c.b16 %v1826, %v1825
      %v1846 = vpack.c.b16 %v1828, %v1827
      %v1847 = vpack.c.b16 %v1830, %v1829
      %v1848 = vpack.c.b16 %v1832, %v1831
      %v1865 = vunpack.c.l.b16 %v1612
      %v1866 = vunpack.c.l.b16 %v1615
      %v1867 = vunpack.c.l.b16 %v1619
      %v1868 = vunpack.c.l.b16 %v1622
      %v1869 = vunpack.c.l.b16 %v1626
      %v1870 = vunpack.c.l.b16 %v1629
      %v1871 = vunpack.c.l.b16 %v1633
      %v1872 = vunpack.c.l.b16 %v1636
      %v1873 = vunpack.c.l.b16 %v1640
      %v1874 = vunpack.c.l.b16 %v1643
      %v1875 = vunpack.c.l.b16 %v1647
      %v1876 = vunpack.c.l.b16 %v1650
      %v1877 = vunpack.c.l.b16 %v1654
      %v1878 = vunpack.c.l.b16 %v1657
      %v1879 = vunpack.c.l.b16 %v1661
      %v1880 = vunpack.c.l.b16 %v1664
      %v1881 = vunpack.c.l.b16 %v1668
      %v1882 = vunpack.c.l.b16 %v1671
      %v1883 = vunpack.c.l.b16 %v1675
      %v1884 = vunpack.c.l.b16 %v1678
      %v1885 = vunpack.c.l.b16 %v1682
      %v1886 = vunpack.c.l.b16 %v1685
      %v1887 = vunpack.c.l.b16 %v1689
      %v1888 = vunpack.c.l.b16 %v1692
      %v1889 = vunpack.c.l.b16 %v1696
      %v1890 = vunpack.c.l.b16 %v1699
      %v1891 = vunpack.c.l.b16 %v1703
      %v1892 = vunpack.c.l.b16 %v1706
      %v1893 = vunpack.c.l.b16 %v1710
      %v1894 = vunpack.c.l.b16 %v1713
      %v1895 = vunpack.c.l.b16 %v1717
      %v1896 = vunpack.c.l.b16 %v1720
      %v1897 = vpack.c.b16 %v1866, %v1865
      %v1898 = vpack.c.b16 %v1868, %v1867
      %v1899 = vpack.c.b16 %v1870, %v1869
      %v1900 = vpack.c.b16 %v1872, %v1871
      %v1901 = vpack.c.b16 %v1874, %v1873
      %v1902 = vpack.c.b16 %v1876, %v1875
      %v1903 = vpack.c.b16 %v1878, %v1877
      %v1904 = vpack.c.b16 %v1880, %v1879
      %v1905 = vpack.c.b16 %v1882, %v1881
      %v1906 = vpack.c.b16 %v1884, %v1883
      %v1907 = vpack.c.b16 %v1886, %v1885
      %v1908 = vpack.c.b16 %v1888, %v1887
      %v1909 = vpack.c.b16 %v1890, %v1889
      %v1910 = vpack.c.b16 %v1892, %v1891
      %v1911 = vpack.c.b16 %v1894, %v1893
      %v1912 = vpack.c.b16 %v1896, %v1895
      %v1929 = vld [vmem:[%s1] sm:$0xf]
      %v1930 = vld [vmem:[%s1 + $0x4] sm:$0xf]
      %v1931 = vld [vmem:[%s1 + $0x8] sm:$0xf]
      %v1932 = vld [vmem:[%s1 + $0xc] sm:$0xf]
      %v1933 = vld [vmem:[%s1 + $0x10] sm:$0xf]
      %v1934 = vld [vmem:[%s1 + $0x14] sm:$0xf]
      %v1935 = vld [vmem:[%s1 + $0x18] sm:$0xf]
      %v1936 = vld [vmem:[%s1 + $0x1c] sm:$0xf]
      %v1937 = vld [vmem:[%s1 + $0x20] sm:$0xf]
      %v1938 = vld [vmem:[%s1 + $0x24] sm:$0xf]
      %v1939 = vld [vmem:[%s1 + $0x28] sm:$0xf]
      %v1940 = vld [vmem:[%s1 + $0x2c] sm:$0xf]
      %v1941 = vld [vmem:[%s1 + $0x30] sm:$0xf]
      %v1942 = vld [vmem:[%s1 + $0x34] sm:$0xf]
      %v1943 = vld [vmem:[%s1 + $0x38] sm:$0xf]
      %v1944 = vld [vmem:[%s1 + $0x3c] sm:$0xf]
      %v1945 = vld [vmem:[%s1 + $0x40] sm:$0xf]
      %v1946 = vld [vmem:[%s1 + $0x44] sm:$0xf]
      %v1947 = vld [vmem:[%s1 + $0x48] sm:$0xf]
      %v1948 = vld [vmem:[%s1 + $0x4c] sm:$0xf]
      %v1949 = vld [vmem:[%s1 + $0x50] sm:$0xf]
      %v1950 = vld [vmem:[%s1 + $0x54] sm:$0xf]
      %v1951 = vld [vmem:[%s1 + $0x58] sm:$0xf]
      %v1952 = vld [vmem:[%s1 + $0x5c] sm:$0xf]
      %v1953 = vld [vmem:[%s1 + $0x60] sm:$0xf]
      %v1954 = vld [vmem:[%s1 + $0x64] sm:$0xf]
      %v1955 = vld [vmem:[%s1 + $0x68] sm:$0xf]
      %v1956 = vld [vmem:[%s1 + $0x6c] sm:$0xf]
      %v1957 = vld [vmem:[%s1 + $0x70] sm:$0xf]
      %v1958 = vld [vmem:[%s1 + $0x74] sm:$0xf]
      %v1959 = vld [vmem:[%s1 + $0x78] sm:$0xf]
      %v1960 = vld [vmem:[%s1 + $0x7c] sm:$0xf]
      %v1961 = vld [vmem:[%s1 + $0x80] sm:$0xf]
      %v1962 = vld [vmem:[%s1 + $0x84] sm:$0xf]
      %v1963 = vld [vmem:[%s1 + $0x88] sm:$0xf]
      %v1964 = vld [vmem:[%s1 + $0x8c] sm:$0xf]
      %v1965 = vld [vmem:[%s1 + $0x90] sm:$0xf]
      %v1966 = vld [vmem:[%s1 + $0x94] sm:$0xf]
      %v1967 = vld [vmem:[%s1 + $0x98] sm:$0xf]
      %v1968 = vld [vmem:[%s1 + $0x9c] sm:$0xf]
      %v1969 = vld [vmem:[%s1 + $0xa0] sm:$0xf]
      %v1970 = vld [vmem:[%s1 + $0xa4] sm:$0xf]
      %v1971 = vld [vmem:[%s1 + $0xa8] sm:$0xf]
      %v1972 = vld [vmem:[%s1 + $0xac] sm:$0xf]
      %v1973 = vld [vmem:[%s1 + $0xb0] sm:$0xf]
      %v1974 = vld [vmem:[%s1 + $0xb4] sm:$0xf]
      %v1975 = vld [vmem:[%s1 + $0xb8] sm:$0xf]
      %v1976 = vld [vmem:[%s1 + $0xbc] sm:$0xf]
      %v1977 = vld [vmem:[%s677] sm:$0xf]
      %v1978 = vld [vmem:[%s677 + $0x4] sm:$0xf]
      %v1979 = vld [vmem:[%s677 + $0xc] sm:$0xf]
      %v1980 = vld [vmem:[%s677 + $0x10] sm:$0xf]
      %v1981 = vld [vmem:[%s677 + $0x18] sm:$0xf]
      %v1982 = vld [vmem:[%s677 + $0x1c] sm:$0xf]
      %v1983 = vld [vmem:[%s677 + $0x24] sm:$0xf]
      %v1984 = vld [vmem:[%s677 + $0x28] sm:$0xf]
      %v1985 = vld [vmem:[%s677 + $0x30] sm:$0xf]
      %v1986 = vld [vmem:[%s677 + $0x34] sm:$0xf]
      %v1987 = vld [vmem:[%s677 + $0x3c] sm:$0xf]
      %v1988 = vld [vmem:[%s677 + $0x40] sm:$0xf]
      %v1989 = vld [vmem:[%s677 + $0x48] sm:$0xf]
      %v1990 = vld [vmem:[%s677 + $0x4c] sm:$0xf]
      %v1991 = vld [vmem:[%s677 + $0x54] sm:$0xf]
      %v1992 = vld [vmem:[%s677 + $0x58] sm:$0xf]
      %v1993 = vld [vmem:[%s677 + $0x60] sm:$0xf]
      %v1994 = vld [vmem:[%s677 + $0x64] sm:$0xf]
      %v1995 = vld [vmem:[%s677 + $0x6c] sm:$0xf]
      %v1996 = vld [vmem:[%s677 + $0x70] sm:$0xf]
      %v1997 = vld [vmem:[%s677 + $0x78] sm:$0xf]
      %v1998 = vld [vmem:[%s677 + $0x7c] sm:$0xf]
      %v1999 = vld [vmem:[%s677 + $0x84] sm:$0xf]
      %v2000 = vld [vmem:[%s677 + $0x88] sm:$0xf]
      %v2001 = vld [vmem:[%s677 + $0x90] sm:$0xf]
      %v2002 = vld [vmem:[%s677 + $0x94] sm:$0xf]
      %v2003 = vld [vmem:[%s677 + $0x9c] sm:$0xf]
      %v2004 = vld [vmem:[%s677 + $0xa0] sm:$0xf]
      %v2005 = vld [vmem:[%s677 + $0xa8] sm:$0xf]
      %v2006 = vld [vmem:[%s677 + $0xac] sm:$0xf]
      %v2007 = vld [vmem:[%s677 + $0xb4] sm:$0xf]
      %v2008 = vld [vmem:[%s677 + $0xb8] sm:$0xf]
      %v2009 = vld [vmem:[%s677 + $0x8] sm:$0x1]
      %v2010 = vld [vmem:[%s677 + $0x14] sm:$0x1]
      %v2011 = vld [vmem:[%s677 + $0x20] sm:$0x1]
      %v2012 = vld [vmem:[%s677 + $0x2c] sm:$0x1]
      %v2013 = vld [vmem:[%s677 + $0x38] sm:$0x1]
      %v2014 = vld [vmem:[%s677 + $0x44] sm:$0x1]
      %v2015 = vld [vmem:[%s677 + $0x50] sm:$0x1]
      %v2016 = vld [vmem:[%s677 + $0x5c] sm:$0x1]
      %v2017 = vld [vmem:[%s677 + $0x68] sm:$0x1]
      %v2018 = vld [vmem:[%s677 + $0x74] sm:$0x1]
      %v2019 = vld [vmem:[%s677 + $0x80] sm:$0x1]
      %v2020 = vld [vmem:[%s677 + $0x8c] sm:$0x1]
      %v2021 = vld [vmem:[%s677 + $0x98] sm:$0x1]
      %v2022 = vld [vmem:[%s677 + $0xa4] sm:$0x1]
      %v2023 = vld [vmem:[%s677 + $0xb0] sm:$0x1]
      %v2024 = vld [vmem:[%s677 + $0xbc] sm:$0x1]
      %v2026 = vshrl.u32 %v1977, 16
      %v2028 = vrot.slane %v2026, 4
      %v2029 = vshll.u32 %v1977, 16
      %v2031 = vrot.slane %v2029, 5
      %v2032 = vor.u32 %v2028, %v2031
      %v2033 = vrot.slane %v2032, 4
      %v2035 = vshll.u32 %v1978, 16
      %v2037 = vrot.slane %v2035, 5
      %v2038 = vsel %vm1157, %v2033, %v2037
      %v2039 = vshrl.u32 %v1978, 16
      %v2041 = vrot.slane %v2039, 4
      %v2042 = vor.u32 %v2041, %v2037
      %v2043 = vrot.slane %v2042, 4
      %v2045 = vshll.u32 %v2009, 16
      %v2047 = vrot.slane %v2045, 5
      %v2048 = vsel %vm1157, %v2043, %v2047
      %v2050 = vshrl.u32 %v1979, 16
      %v2052 = vrot.slane %v2050, 4
      %v2053 = vshll.u32 %v1979, 16
      %v2055 = vrot.slane %v2053, 5
      %v2056 = vor.u32 %v2052, %v2055
      %v2057 = vrot.slane %v2056, 4
      %v2059 = vshll.u32 %v1980, 16
      %v2061 = vrot.slane %v2059, 5
      %v2062 = vsel %vm1157, %v2057, %v2061
      %v2063 = vshrl.u32 %v1980, 16
      %v2065 = vrot.slane %v2063, 4
      %v2066 = vor.u32 %v2065, %v2061
      %v2067 = vrot.slane %v2066, 4
      %v2069 = vshll.u32 %v2010, 16
      %v2071 = vrot.slane %v2069, 5
      %v2072 = vsel %vm1157, %v2067, %v2071
      %v2074 = vshrl.u32 %v1981, 16
      %v2076 = vrot.slane %v2074, 4
      %v2077 = vshll.u32 %v1981, 16
      %v2079 = vrot.slane %v2077, 5
      %v2080 = vor.u32 %v2076, %v2079
      %v2081 = vrot.slane %v2080, 4
      %v2083 = vshll.u32 %v1982, 16
      %v2085 = vrot.slane %v2083, 5
      %v2086 = vsel %vm1157, %v2081, %v2085
      %v2087 = vshrl.u32 %v1982, 16
      %v2089 = vrot.slane %v2087, 4
      %v2090 = vor.u32 %v2089, %v2085
      %v2091 = vrot.slane %v2090, 4
      %v2093 = vshll.u32 %v2011, 16
      %v2095 = vrot.slane %v2093, 5
      %v2096 = vsel %vm1157, %v2091, %v2095
      %v2098 = vshrl.u32 %v1983, 16
      %v2100 = vrot.slane %v2098, 4
      %v2101 = vshll.u32 %v1983, 16
      %v2103 = vrot.slane %v2101, 5
      %v2104 = vor.u32 %v2100, %v2103
      %v2105 = vrot.slane %v2104, 4
      %v2107 = vshll.u32 %v1984, 16
      %v2109 = vrot.slane %v2107, 5
      %v2110 = vsel %vm1157, %v2105, %v2109
      %v2111 = vshrl.u32 %v1984, 16
      %v2113 = vrot.slane %v2111, 4
      %v2114 = vor.u32 %v2113, %v2109
      %v2115 = vrot.slane %v2114, 4
      %v2117 = vshll.u32 %v2012, 16
      %v2119 = vrot.slane %v2117, 5
      %v2120 = vsel %vm1157, %v2115, %v2119
      %v2122 = vshrl.u32 %v1985, 16
      %v2124 = vrot.slane %v2122, 4
      %v2125 = vshll.u32 %v1985, 16
      %v2127 = vrot.slane %v2125, 5
      %v2128 = vor.u32 %v2124, %v2127
      %v2129 = vrot.slane %v2128, 4
      %v2131 = vshll.u32 %v1986, 16
      %v2133 = vrot.slane %v2131, 5
      %v2134 = vsel %vm1157, %v2129, %v2133
      %v2135 = vshrl.u32 %v1986, 16
      %v2137 = vrot.slane %v2135, 4
      %v2138 = vor.u32 %v2137, %v2133
      %v2139 = vrot.slane %v2138, 4
      %v2141 = vshll.u32 %v2013, 16
      %v2143 = vrot.slane %v2141, 5
      %v2144 = vsel %vm1157, %v2139, %v2143
      %v2146 = vshrl.u32 %v1987, 16
      %v2148 = vrot.slane %v2146, 4
      %v2149 = vshll.u32 %v1987, 16
      %v2151 = vrot.slane %v2149, 5
      %v2152 = vor.u32 %v2148, %v2151
      %v2153 = vrot.slane %v2152, 4
      %v2155 = vshll.u32 %v1988, 16
      %v2157 = vrot.slane %v2155, 5
      %v2158 = vsel %vm1157, %v2153, %v2157
      %v2159 = vshrl.u32 %v1988, 16
      %v2161 = vrot.slane %v2159, 4
      %v2162 = vor.u32 %v2161, %v2157
      %v2163 = vrot.slane %v2162, 4
      %v2165 = vshll.u32 %v2014, 16
      %v2167 = vrot.slane %v2165, 5
      %v2168 = vsel %vm1157, %v2163, %v2167
      %v2170 = vshrl.u32 %v1989, 16
      %v2172 = vrot.slane %v2170, 4
      %v2173 = vshll.u32 %v1989, 16
      %v2175 = vrot.slane %v2173, 5
      %v2176 = vor.u32 %v2172, %v2175
      %v2177 = vrot.slane %v2176, 4
      %v2179 = vshll.u32 %v1990, 16
      %v2181 = vrot.slane %v2179, 5
      %v2182 = vsel %vm1157, %v2177, %v2181
      %v2183 = vshrl.u32 %v1990, 16
      %v2185 = vrot.slane %v2183, 4
      %v2186 = vor.u32 %v2185, %v2181
      %v2187 = vrot.slane %v2186, 4
      %v2189 = vshll.u32 %v2015, 16
      %v2191 = vrot.slane %v2189, 5
      %v2192 = vsel %vm1157, %v2187, %v2191
      %v2194 = vshrl.u32 %v1991, 16
      %v2196 = vrot.slane %v2194, 4
      %v2197 = vshll.u32 %v1991, 16
      %v2199 = vrot.slane %v2197, 5
      %v2200 = vor.u32 %v2196, %v2199
      %v2201 = vrot.slane %v2200, 4
      %v2203 = vshll.u32 %v1992, 16
      %v2205 = vrot.slane %v2203, 5
      %v2206 = vsel %vm1157, %v2201, %v2205
      %v2207 = vshrl.u32 %v1992, 16
      %v2209 = vrot.slane %v2207, 4
      %v2210 = vor.u32 %v2209, %v2205
      %v2211 = vrot.slane %v2210, 4
      %v2213 = vshll.u32 %v2016, 16
      %v2215 = vrot.slane %v2213, 5
      %v2216 = vsel %vm1157, %v2211, %v2215
      %v2218 = vshrl.u32 %v1993, 16
      %v2220 = vrot.slane %v2218, 4
      %v2221 = vshll.u32 %v1993, 16
      %v2223 = vrot.slane %v2221, 5
      %v2224 = vor.u32 %v2220, %v2223
      %v2225 = vrot.slane %v2224, 4
      %v2227 = vshll.u32 %v1994, 16
      %v2229 = vrot.slane %v2227, 5
      %v2230 = vsel %vm1157, %v2225, %v2229
      %v2231 = vshrl.u32 %v1994, 16
      %v2233 = vrot.slane %v2231, 4
      %v2234 = vor.u32 %v2233, %v2229
      %v2235 = vrot.slane %v2234, 4
      %v2237 = vshll.u32 %v2017, 16
      %v2239 = vrot.slane %v2237, 5
      %v2240 = vsel %vm1157, %v2235, %v2239
      %v2242 = vshrl.u32 %v1995, 16
      %v2244 = vrot.slane %v2242, 4
      %v2245 = vshll.u32 %v1995, 16
      %v2247 = vrot.slane %v2245, 5
      %v2248 = vor.u32 %v2244, %v2247
      %v2249 = vrot.slane %v2248, 4
      %v2251 = vshll.u32 %v1996, 16
      %v2253 = vrot.slane %v2251, 5
      %v2254 = vsel %vm1157, %v2249, %v2253
      %v2255 = vshrl.u32 %v1996, 16
      %v2257 = vrot.slane %v2255, 4
      %v2258 = vor.u32 %v2257, %v2253
      %v2259 = vrot.slane %v2258, 4
      %v2261 = vshll.u32 %v2018, 16
      %v2263 = vrot.slane %v2261, 5
      %v2264 = vsel %vm1157, %v2259, %v2263
      %v2266 = vshrl.u32 %v1997, 16
      %v2268 = vrot.slane %v2266, 4
      %v2269 = vshll.u32 %v1997, 16
      %v2271 = vrot.slane %v2269, 5
      %v2272 = vor.u32 %v2268, %v2271
      %v2273 = vrot.slane %v2272, 4
      %v2275 = vshll.u32 %v1998, 16
      %v2277 = vrot.slane %v2275, 5
      %v2278 = vsel %vm1157, %v2273, %v2277
      %v2279 = vshrl.u32 %v1998, 16
      %v2281 = vrot.slane %v2279, 4
      %v2282 = vor.u32 %v2281, %v2277
      %v2283 = vrot.slane %v2282, 4
      %v2285 = vshll.u32 %v2019, 16
      %v2287 = vrot.slane %v2285, 5
      %v2288 = vsel %vm1157, %v2283, %v2287
      %v2290 = vshrl.u32 %v1999, 16
      %v2292 = vrot.slane %v2290, 4
      %v2293 = vshll.u32 %v1999, 16
      %v2295 = vrot.slane %v2293, 5
      %v2296 = vor.u32 %v2292, %v2295
      %v2297 = vrot.slane %v2296, 4
      %v2299 = vshll.u32 %v2000, 16
      %v2301 = vrot.slane %v2299, 5
      %v2302 = vsel %vm1157, %v2297, %v2301
      %v2303 = vshrl.u32 %v2000, 16
      %v2305 = vrot.slane %v2303, 4
      %v2306 = vor.u32 %v2305, %v2301
      %v2307 = vrot.slane %v2306, 4
      %v2309 = vshll.u32 %v2020, 16
      %v2311 = vrot.slane %v2309, 5
      %v2312 = vsel %vm1157, %v2307, %v2311
      %v2314 = vshrl.u32 %v2001, 16
      %v2316 = vrot.slane %v2314, 4
      %v2317 = vshll.u32 %v2001, 16
      %v2319 = vrot.slane %v2317, 5
      %v2320 = vor.u32 %v2316, %v2319
      %v2321 = vrot.slane %v2320, 4
      %v2323 = vshll.u32 %v2002, 16
      %v2325 = vrot.slane %v2323, 5
      %v2326 = vsel %vm1157, %v2321, %v2325
      %v2327 = vshrl.u32 %v2002, 16
      %v2329 = vrot.slane %v2327, 4
      %v2330 = vor.u32 %v2329, %v2325
      %v2331 = vrot.slane %v2330, 4
      %v2333 = vshll.u32 %v2021, 16
      %v2335 = vrot.slane %v2333, 5
      %v2336 = vsel %vm1157, %v2331, %v2335
      %v2338 = vshrl.u32 %v2003, 16
      %v2340 = vrot.slane %v2338, 4
      %v2341 = vshll.u32 %v2003, 16
      %v2343 = vrot.slane %v2341, 5
      %v2344 = vor.u32 %v2340, %v2343
      %v2345 = vrot.slane %v2344, 4
      %v2347 = vshll.u32 %v2004, 16
      %v2349 = vrot.slane %v2347, 5
      %v2350 = vsel %vm1157, %v2345, %v2349
      %v2351 = vshrl.u32 %v2004, 16
      %v2353 = vrot.slane %v2351, 4
      %v2354 = vor.u32 %v2353, %v2349
      %v2355 = vrot.slane %v2354, 4
      %v2357 = vshll.u32 %v2022, 16
      %v2359 = vrot.slane %v2357, 5
      %v2360 = vsel %vm1157, %v2355, %v2359
      %v2362 = vshrl.u32 %v2005, 16
      %v2364 = vrot.slane %v2362, 4
      %v2365 = vshll.u32 %v2005, 16
      %v2367 = vrot.slane %v2365, 5
      %v2368 = vor.u32 %v2364, %v2367
      %v2369 = vrot.slane %v2368, 4
      %v2371 = vshll.u32 %v2006, 16
      %v2373 = vrot.slane %v2371, 5
      %v2374 = vsel %vm1157, %v2369, %v2373
      %v2375 = vshrl.u32 %v2006, 16
      %v2377 = vrot.slane %v2375, 4
      %v2378 = vor.u32 %v2377, %v2373
      %v2379 = vrot.slane %v2378, 4
      %v2381 = vshll.u32 %v2023, 16
      %v2383 = vrot.slane %v2381, 5
      %v2384 = vsel %vm1157, %v2379, %v2383
      %v2386 = vshrl.u32 %v2007, 16
      %v2388 = vrot.slane %v2386, 4
      %v2389 = vshll.u32 %v2007, 16
      %v2391 = vrot.slane %v2389, 5
      %v2392 = vor.u32 %v2388, %v2391
      %v2393 = vrot.slane %v2392, 4
      %v2395 = vshll.u32 %v2008, 16
      %v2397 = vrot.slane %v2395, 5
      %v2398 = vsel %vm1157, %v2393, %v2397
      %v2399 = vshrl.u32 %v2008, 16
      %v2401 = vrot.slane %v2399, 4
      %v2402 = vor.u32 %v2401, %v2397
      %v2403 = vrot.slane %v2402, 4
      %v2405 = vshll.u32 %v2024, 16
      %v2407 = vrot.slane %v2405, 5
      %v2408 = vsel %vm1157, %v2403, %v2407
      %v2409 = vld [vmem:[%s677] sm:$0xe]
      %v2410 = vld [vmem:[%s677 + $0xc] sm:$0xe]
      %v2411 = vld [vmem:[%s677 + $0x18] sm:$0xe]
      %v2412 = vld [vmem:[%s677 + $0x24] sm:$0xe]
      %v2413 = vld [vmem:[%s677 + $0x30] sm:$0xe]
      %v2414 = vld [vmem:[%s677 + $0x3c] sm:$0xe]
      %v2415 = vld [vmem:[%s677 + $0x48] sm:$0xe]
      %v2416 = vld [vmem:[%s677 + $0x54] sm:$0xe]
      %v2417 = vld [vmem:[%s677 + $0x60] sm:$0xe]
      %v2418 = vld [vmem:[%s677 + $0x6c] sm:$0xe]
      %v2419 = vld [vmem:[%s677 + $0x78] sm:$0xe]
      %v2420 = vld [vmem:[%s677 + $0x84] sm:$0xe]
      %v2421 = vld [vmem:[%s677 + $0x90] sm:$0xe]
      %v2422 = vld [vmem:[%s677 + $0x9c] sm:$0xe]
      %v2423 = vld [vmem:[%s677 + $0xa8] sm:$0xe]
      %v2424 = vld [vmem:[%s677 + $0xb4] sm:$0xe]
      %v2473 = vrot.slane %v2409, 5
      %v2474 = vrot.slane %v2473, 4
      %v2475 = vrot.slane %v1978, 5
      %v2476 = vsel %vm1608, %v2474, %v2475
      %v2477 = vrot.slane %v2475, 4
      %v2478 = vrot.slane %v2009, 5
      %v2479 = vsel %vm1608, %v2477, %v2478
      %v2480 = vrot.slane %v2410, 5
      %v2481 = vrot.slane %v2480, 4
      %v2482 = vrot.slane %v1980, 5
      %v2483 = vsel %vm1608, %v2481, %v2482
      %v2484 = vrot.slane %v2482, 4
      %v2485 = vrot.slane %v2010, 5
      %v2486 = vsel %vm1608, %v2484, %v2485
      %v2487 = vrot.slane %v2411, 5
      %v2488 = vrot.slane %v2487, 4
      %v2489 = vrot.slane %v1982, 5
      %v2490 = vsel %vm1608, %v2488, %v2489
      %v2491 = vrot.slane %v2489, 4
      %v2492 = vrot.slane %v2011, 5
      %v2493 = vsel %vm1608, %v2491, %v2492
      %v2494 = vrot.slane %v2412, 5
      %v2495 = vrot.slane %v2494, 4
      %v2496 = vrot.slane %v1984, 5
      %v2497 = vsel %vm1608, %v2495, %v2496
      %v2498 = vrot.slane %v2496, 4
      %v2499 = vrot.slane %v2012, 5
      %v2500 = vsel %vm1608, %v2498, %v2499
      %v2501 = vrot.slane %v2413, 5
      %v2502 = vrot.slane %v2501, 4
      %v2503 = vrot.slane %v1986, 5
      %v2504 = vsel %vm1608, %v2502, %v2503
      %v2505 = vrot.slane %v2503, 4
      %v2506 = vrot.slane %v2013, 5
      %v2507 = vsel %vm1608, %v2505, %v2506
      %v2508 = vrot.slane %v2414, 5
      %v2509 = vrot.slane %v2508, 4
      %v2510 = vrot.slane %v1988, 5
      %v2511 = vsel %vm1608, %v2509, %v2510
      %v2512 = vrot.slane %v2510, 4
      %v2513 = vrot.slane %v2014, 5
      %v2514 = vsel %vm1608, %v2512, %v2513
      %v2515 = vrot.slane %v2415, 5
      %v2516 = vrot.slane %v2515, 4
      %v2517 = vrot.slane %v1990, 5
      %v2518 = vsel %vm1608, %v2516, %v2517
      %v2519 = vrot.slane %v2517, 4
      %v2520 = vrot.slane %v2015, 5
      %v2521 = vsel %vm1608, %v2519, %v2520
      %v2522 = vrot.slane %v2416, 5
      %v2523 = vrot.slane %v2522, 4
      %v2524 = vrot.slane %v1992, 5
      %v2525 = vsel %vm1608, %v2523, %v2524
      %v2526 = vrot.slane %v2524, 4
      %v2527 = vrot.slane %v2016, 5
      %v2528 = vsel %vm1608, %v2526, %v2527
      %v2529 = vrot.slane %v2417, 5
      %v2530 = vrot.slane %v2529, 4
      %v2531 = vrot.slane %v1994, 5
      %v2532 = vsel %vm1608, %v2530, %v2531
      %v2533 = vrot.slane %v2531, 4
      %v2534 = vrot.slane %v2017, 5
      %v2535 = vsel %vm1608, %v2533, %v2534
      %v2536 = vrot.slane %v2418, 5
      %v2537 = vrot.slane %v2536, 4
      %v2538 = vrot.slane %v1996, 5
      %v2539 = vsel %vm1608, %v2537, %v2538
      %v2540 = vrot.slane %v2538, 4
      %v2541 = vrot.slane %v2018, 5
      %v2542 = vsel %vm1608, %v2540, %v2541
      %v2543 = vrot.slane %v2419, 5
      %v2544 = vrot.slane %v2543, 4
      %v2545 = vrot.slane %v1998, 5
      %v2546 = vsel %vm1608, %v2544, %v2545
      %v2547 = vrot.slane %v2545, 4
      %v2548 = vrot.slane %v2019, 5
      %v2549 = vsel %vm1608, %v2547, %v2548
      %v2550 = vrot.slane %v2420, 5
      %v2551 = vrot.slane %v2550, 4
      %v2552 = vrot.slane %v2000, 5
      %v2553 = vsel %vm1608, %v2551, %v2552
      %v2554 = vrot.slane %v2552, 4
      %v2555 = vrot.slane %v2020, 5
      %v2556 = vsel %vm1608, %v2554, %v2555
      %v2557 = vrot.slane %v2421, 5
      %v2558 = vrot.slane %v2557, 4
      %v2559 = vrot.slane %v2002, 5
      %v2560 = vsel %vm1608, %v2558, %v2559
      %v2561 = vrot.slane %v2559, 4
      %v2562 = vrot.slane %v2021, 5
      %v2563 = vsel %vm1608, %v2561, %v2562
      %v2564 = vrot.slane %v2422, 5
      %v2565 = vrot.slane %v2564, 4
      %v2566 = vrot.slane %v2004, 5
      %v2567 = vsel %vm1608, %v2565, %v2566
      %v2568 = vrot.slane %v2566, 4
      %v2569 = vrot.slane %v2022, 5
      %v2570 = vsel %vm1608, %v2568, %v2569
      %v2571 = vrot.slane %v2423, 5
      %v2572 = vrot.slane %v2571, 4
      %v2573 = vrot.slane %v2006, 5
      %v2574 = vsel %vm1608, %v2572, %v2573
      %v2575 = vrot.slane %v2573, 4
      %v2576 = vrot.slane %v2023, 5
      %v2577 = vsel %vm1608, %v2575, %v2576
      %v2578 = vrot.slane %v2424, 5
      %v2579 = vrot.slane %v2578, 4
      %v2580 = vrot.slane %v2008, 5
      %v2581 = vsel %vm1608, %v2579, %v2580
      %v2582 = vrot.slane %v2580, 4
      %v2583 = vrot.slane %v2024, 5
      %v2584 = vsel %vm1608, %v2582, %v2583
      %v2601 = vunpack.c.l.b16 %v1977
      %v2602 = vunpack.c.l.b16 %v1978
      %v2603 = vunpack.c.l.b16 %v1979
      %v2604 = vunpack.c.l.b16 %v1980
      %v2605 = vunpack.c.l.b16 %v1981
      %v2606 = vunpack.c.l.b16 %v1982
      %v2607 = vunpack.c.l.b16 %v1983
      %v2608 = vunpack.c.l.b16 %v1984
      %v2609 = vunpack.c.l.b16 %v1985
      %v2610 = vunpack.c.l.b16 %v1986
      %v2611 = vunpack.c.l.b16 %v1987
      %v2612 = vunpack.c.l.b16 %v1988
      %v2613 = vunpack.c.l.b16 %v1989
      %v2614 = vunpack.c.l.b16 %v1990
      %v2615 = vunpack.c.l.b16 %v1991
      %v2616 = vunpack.c.l.b16 %v1992
      %v2617 = vunpack.c.l.b16 %v1993
      %v2618 = vunpack.c.l.b16 %v1994
      %v2619 = vunpack.c.l.b16 %v1995
      %v2620 = vunpack.c.l.b16 %v1996
      %v2621 = vunpack.c.l.b16 %v1997
      %v2622 = vunpack.c.l.b16 %v1998
      %v2623 = vunpack.c.l.b16 %v1999
      %v2624 = vunpack.c.l.b16 %v2000
      %v2625 = vunpack.c.l.b16 %v2001
      %v2626 = vunpack.c.l.b16 %v2002
      %v2627 = vunpack.c.l.b16 %v2003
      %v2628 = vunpack.c.l.b16 %v2004
      %v2629 = vunpack.c.l.b16 %v2005
      %v2630 = vunpack.c.l.b16 %v2006
      %v2631 = vunpack.c.l.b16 %v2007
      %v2632 = vunpack.c.l.b16 %v2008
      %v2633 = vpack.c.b16 %v2602, %v2601
      %v2634 = vpack.c.b16 %v2604, %v2603
      %v2635 = vpack.c.b16 %v2606, %v2605
      %v2636 = vpack.c.b16 %v2608, %v2607
      %v2637 = vpack.c.b16 %v2610, %v2609
      %v2638 = vpack.c.b16 %v2612, %v2611
      %v2639 = vpack.c.b16 %v2614, %v2613
      %v2640 = vpack.c.b16 %v2616, %v2615
      %v2641 = vpack.c.b16 %v2618, %v2617
      %v2642 = vpack.c.b16 %v2620, %v2619
      %v2643 = vpack.c.b16 %v2622, %v2621
      %v2644 = vpack.c.b16 %v2624, %v2623
      %v2645 = vpack.c.b16 %v2626, %v2625
      %v2646 = vpack.c.b16 %v2628, %v2627
      %v2647 = vpack.c.b16 %v2630, %v2629
      %v2648 = vpack.c.b16 %v2632, %v2631
      %v2665 = vunpack.c.l.b16 %v2038
      %v2666 = vunpack.c.l.b16 %v2048
      %v2667 = vunpack.c.l.b16 %v2062
      %v2668 = vunpack.c.l.b16 %v2072
      %v2669 = vunpack.c.l.b16 %v2086
      %v2670 = vunpack.c.l.b16 %v2096
      %v2671 = vunpack.c.l.b16 %v2110
      %v2672 = vunpack.c.l.b16 %v2120
      %v2673 = vunpack.c.l.b16 %v2134
      %v2674 = vunpack.c.l.b16 %v2144
      %v2675 = vunpack.c.l.b16 %v2158
      %v2676 = vunpack.c.l.b16 %v2168
      %v2677 = vunpack.c.l.b16 %v2182
      %v2678 = vunpack.c.l.b16 %v2192
      %v2679 = vunpack.c.l.b16 %v2206
      %v2680 = vunpack.c.l.b16 %v2216
      %v2681 = vunpack.c.l.b16 %v2230
      %v2682 = vunpack.c.l.b16 %v2240
      %v2683 = vunpack.c.l.b16 %v2254
      %v2684 = vunpack.c.l.b16 %v2264
      %v2685 = vunpack.c.l.b16 %v2278
      %v2686 = vunpack.c.l.b16 %v2288
      %v2687 = vunpack.c.l.b16 %v2302
      %v2688 = vunpack.c.l.b16 %v2312
      %v2689 = vunpack.c.l.b16 %v2326
      %v2690 = vunpack.c.l.b16 %v2336
      %v2691 = vunpack.c.l.b16 %v2350
      %v2692 = vunpack.c.l.b16 %v2360
      %v2693 = vunpack.c.l.b16 %v2374
      %v2694 = vunpack.c.l.b16 %v2384
      %v2695 = vunpack.c.l.b16 %v2398
      %v2696 = vunpack.c.l.b16 %v2408
      %v2697 = vpack.c.b16 %v2666, %v2665
      %v2698 = vpack.c.b16 %v2668, %v2667
      %v2699 = vpack.c.b16 %v2670, %v2669
      %v2700 = vpack.c.b16 %v2672, %v2671
      %v2701 = vpack.c.b16 %v2674, %v2673
      %v2702 = vpack.c.b16 %v2676, %v2675
      %v2703 = vpack.c.b16 %v2678, %v2677
      %v2704 = vpack.c.b16 %v2680, %v2679
      %v2705 = vpack.c.b16 %v2682, %v2681
      %v2706 = vpack.c.b16 %v2684, %v2683
      %v2707 = vpack.c.b16 %v2686, %v2685
      %v2708 = vpack.c.b16 %v2688, %v2687
      %v2709 = vpack.c.b16 %v2690, %v2689
      %v2710 = vpack.c.b16 %v2692, %v2691
      %v2711 = vpack.c.b16 %v2694, %v2693
      %v2712 = vpack.c.b16 %v2696, %v2695
      %v2729 = vunpack.c.l.b16 %v2476
      %v2730 = vunpack.c.l.b16 %v2479
      %v2731 = vunpack.c.l.b16 %v2483
      %v2732 = vunpack.c.l.b16 %v2486
      %v2733 = vunpack.c.l.b16 %v2490
      %v2734 = vunpack.c.l.b16 %v2493
      %v2735 = vunpack.c.l.b16 %v2497
      %v2736 = vunpack.c.l.b16 %v2500
      %v2737 = vunpack.c.l.b16 %v2504
      %v2738 = vunpack.c.l.b16 %v2507
      %v2739 = vunpack.c.l.b16 %v2511
      %v2740 = vunpack.c.l.b16 %v2514
      %v2741 = vunpack.c.l.b16 %v2518
      %v2742 = vunpack.c.l.b16 %v2521
      %v2743 = vunpack.c.l.b16 %v2525
      %v2744 = vunpack.c.l.b16 %v2528
      %v2745 = vunpack.c.l.b16 %v2532
      %v2746 = vunpack.c.l.b16 %v2535
      %v2747 = vunpack.c.l.b16 %v2539
      %v2748 = vunpack.c.l.b16 %v2542
      %v2749 = vunpack.c.l.b16 %v2546
      %v2750 = vunpack.c.l.b16 %v2549
      %v2751 = vunpack.c.l.b16 %v2553
      %v2752 = vunpack.c.l.b16 %v2556
      %v2753 = vunpack.c.l.b16 %v2560
      %v2754 = vunpack.c.l.b16 %v2563
      %v2755 = vunpack.c.l.b16 %v2567
      %v2756 = vunpack.c.l.b16 %v2570
      %v2757 = vunpack.c.l.b16 %v2574
      %v2758 = vunpack.c.l.b16 %v2577
      %v2759 = vunpack.c.l.b16 %v2581
      %v2760 = vunpack.c.l.b16 %v2584
      %v2761 = vpack.c.b16 %v2730, %v2729
      %v2762 = vpack.c.b16 %v2732, %v2731
      %v2763 = vpack.c.b16 %v2734, %v2733
      %v2764 = vpack.c.b16 %v2736, %v2735
      %v2765 = vpack.c.b16 %v2738, %v2737
      %v2766 = vpack.c.b16 %v2740, %v2739
      %v2767 = vpack.c.b16 %v2742, %v2741
      %v2768 = vpack.c.b16 %v2744, %v2743
      %v2769 = vpack.c.b16 %v2746, %v2745
      %v2770 = vpack.c.b16 %v2748, %v2747
      %v2771 = vpack.c.b16 %v2750, %v2749
      %v2772 = vpack.c.b16 %v2752, %v2751
      %v2773 = vpack.c.b16 %v2754, %v2753
      %v2774 = vpack.c.b16 %v2756, %v2755
      %v2775 = vpack.c.b16 %v2758, %v2757
      %v2776 = vpack.c.b16 %v2760, %v2759
      %s2793 = scalar_lea.vmem %s1, 192
      %v2794 = vld [vmem:[%s2793] sm:$0xf]
      %v2795 = vld [vmem:[%s2793 + $0x4] sm:$0xf]
      %v2796 = vld [vmem:[%s2793 + $0x8] sm:$0xf]
      %v2797 = vld [vmem:[%s2793 + $0xc] sm:$0xf]
      %v2798 = vld [vmem:[%s2793 + $0x10] sm:$0xf]
      %v2799 = vld [vmem:[%s2793 + $0x14] sm:$0xf]
      %v2800 = vld [vmem:[%s2793 + $0x18] sm:$0xf]
      %v2801 = vld [vmem:[%s2793 + $0x1c] sm:$0xf]
      %v2802 = vld [vmem:[%s2793 + $0x20] sm:$0xf]
      %v2803 = vld [vmem:[%s2793 + $0x24] sm:$0xf]
      %v2804 = vld [vmem:[%s2793 + $0x28] sm:$0xf]
      %v2805 = vld [vmem:[%s2793 + $0x2c] sm:$0xf]
      %v2806 = vld [vmem:[%s2793 + $0x30] sm:$0xf]
      %v2807 = vld [vmem:[%s2793 + $0x34] sm:$0xf]
      %v2808 = vld [vmem:[%s2793 + $0x38] sm:$0xf]
      %v2809 = vld [vmem:[%s2793 + $0x3c] sm:$0xf]
      %v2810 = vld [vmem:[%s2793 + $0x40] sm:$0xf]
      %v2811 = vld [vmem:[%s2793 + $0x44] sm:$0xf]
      %v2812 = vld [vmem:[%s2793 + $0x48] sm:$0xf]
      %v2813 = vld [vmem:[%s2793 + $0x4c] sm:$0xf]
      %v2814 = vld [vmem:[%s2793 + $0x50] sm:$0xf]
      %v2815 = vld [vmem:[%s2793 + $0x54] sm:$0xf]
      %v2816 = vld [vmem:[%s2793 + $0x58] sm:$0xf]
      %v2817 = vld [vmem:[%s2793 + $0x5c] sm:$0xf]
      %v2818 = vld [vmem:[%s2793 + $0x60] sm:$0xf]
      %v2819 = vld [vmem:[%s2793 + $0x64] sm:$0xf]
      %v2820 = vld [vmem:[%s2793 + $0x68] sm:$0xf]
      %v2821 = vld [vmem:[%s2793 + $0x6c] sm:$0xf]
      %v2822 = vld [vmem:[%s2793 + $0x70] sm:$0xf]
      %v2823 = vld [vmem:[%s2793 + $0x74] sm:$0xf]
      %v2824 = vld [vmem:[%s2793 + $0x78] sm:$0xf]
      %v2825 = vld [vmem:[%s2793 + $0x7c] sm:$0xf]
      %v2826 = vld [vmem:[%s2793 + $0x80] sm:$0xf]
      %v2827 = vld [vmem:[%s2793 + $0x84] sm:$0xf]
      %v2828 = vld [vmem:[%s2793 + $0x88] sm:$0xf]
      %v2829 = vld [vmem:[%s2793 + $0x8c] sm:$0xf]
      %v2830 = vld [vmem:[%s2793 + $0x90] sm:$0xf]
      %v2831 = vld [vmem:[%s2793 + $0x94] sm:$0xf]
      %v2832 = vld [vmem:[%s2793 + $0x98] sm:$0xf]
      %v2833 = vld [vmem:[%s2793 + $0x9c] sm:$0xf]
      %v2834 = vld [vmem:[%s2793 + $0xa0] sm:$0xf]
      %v2835 = vld [vmem:[%s2793 + $0xa4] sm:$0xf]
      %v2836 = vld [vmem:[%s2793 + $0xa8] sm:$0xf]
      %v2837 = vld [vmem:[%s2793 + $0xac] sm:$0xf]
      %v2838 = vld [vmem:[%s2793 + $0xb0] sm:$0xf]
      %v2839 = vld [vmem:[%s2793 + $0xb4] sm:$0xf]
      %v2840 = vld [vmem:[%s2793 + $0xb8] sm:$0xf]
      %v2841 = vld [vmem:[%s2793 + $0xbc] sm:$0xf]
      %v2890 = vunpack.c.l.b16 %v2794
      %v2891 = vunpack.c.l.b16 %v2795
      %v2892 = vunpack.c.l.b16 %v2796
      %v2893 = vunpack.c.l.b16 %v2797
      %v2894 = vunpack.c.l.b16 %v2798
      %v2895 = vunpack.c.l.b16 %v2799
      %v2896 = vunpack.c.l.b16 %v2800
      %v2897 = vunpack.c.l.b16 %v2801
      %v2898 = vunpack.c.l.b16 %v2802
      %v2899 = vunpack.c.l.b16 %v2803
      %v2900 = vunpack.c.l.b16 %v2804
      %v2901 = vunpack.c.l.b16 %v2805
      %v2902 = vunpack.c.l.b16 %v2806
      %v2903 = vunpack.c.l.b16 %v2807
      %v2904 = vunpack.c.l.b16 %v2808
      %v2905 = vunpack.c.l.b16 %v2809
      %v2906 = vunpack.c.l.b16 %v2810
      %v2907 = vunpack.c.l.b16 %v2811
      %v2908 = vunpack.c.l.b16 %v2812
      %v2909 = vunpack.c.l.b16 %v2813
      %v2910 = vunpack.c.l.b16 %v2814
      %v2911 = vunpack.c.l.b16 %v2815
      %v2912 = vunpack.c.l.b16 %v2816
      %v2913 = vunpack.c.l.b16 %v2817
      %v2914 = vunpack.c.l.b16 %v2818
      %v2915 = vunpack.c.l.b16 %v2819
      %v2916 = vunpack.c.l.b16 %v2820
      %v2917 = vunpack.c.l.b16 %v2821
      %v2918 = vunpack.c.l.b16 %v2822
      %v2919 = vunpack.c.l.b16 %v2823
      %v2920 = vunpack.c.l.b16 %v2824
      %v2921 = vunpack.c.l.b16 %v2825
      %v2922 = vunpack.c.l.b16 %v2826
      %v2923 = vunpack.c.l.b16 %v2827
      %v2924 = vunpack.c.l.b16 %v2828
      %v2925 = vunpack.c.l.b16 %v2829
      %v2926 = vunpack.c.l.b16 %v2830
      %v2927 = vunpack.c.l.b16 %v2831
      %v2928 = vunpack.c.l.b16 %v2832
      %v2929 = vunpack.c.l.b16 %v2833
      %v2930 = vunpack.c.l.b16 %v2834
      %v2931 = vunpack.c.l.b16 %v2835
      %v2932 = vunpack.c.l.b16 %v2836
      %v2933 = vunpack.c.l.b16 %v2837
      %v2934 = vunpack.c.l.b16 %v2838
      %v2935 = vunpack.c.l.b16 %v2839
      %v2936 = vunpack.c.l.b16 %v2840
      %v2937 = vunpack.c.l.b16 %v2841
      %v2938 = vpack.c.b16 %v2891, %v2890
      %v2939 = vpack.c.b16 %v2893, %v2892
      %v2940 = vpack.c.b16 %v2895, %v2894
      %v2941 = vpack.c.b16 %v2897, %v2896
      %v2942 = vpack.c.b16 %v2899, %v2898
      %v2943 = vpack.c.b16 %v2901, %v2900
      %v2944 = vpack.c.b16 %v2903, %v2902
      %v2945 = vpack.c.b16 %v2905, %v2904
      %v2946 = vpack.c.b16 %v2907, %v2906
      %v2947 = vpack.c.b16 %v2909, %v2908
      %v2948 = vpack.c.b16 %v2911, %v2910
      %v2949 = vpack.c.b16 %v2913, %v2912
      %v2950 = vpack.c.b16 %v2915, %v2914
      %v2951 = vpack.c.b16 %v2917, %v2916
      %v2952 = vpack.c.b16 %v2919, %v2918
      %v2953 = vpack.c.b16 %v2921, %v2920
      %v2954 = vpack.c.b16 %v2923, %v2922
      %v2955 = vpack.c.b16 %v2925, %v2924
      %v2956 = vpack.c.b16 %v2927, %v2926
      %v2957 = vpack.c.b16 %v2929, %v2928
      %v2958 = vpack.c.b16 %v2931, %v2930
      %v2959 = vpack.c.b16 %v2933, %v2932
      %v2960 = vpack.c.b16 %v2935, %v2934
      %v2961 = vpack.c.b16 %v2937, %v2936
      %2986 = vmatprep.subr.bf16.mxu0 0
      %2987 = vmatpush1.bf16.msra.mxu0 %v2938
      %2988 = vmatprep.subr.bf16.mxu0 0
      %2989 = vmatpush1.bf16.msra.mxu0 %v2939
      %2990 = vmatprep.subr.bf16.mxu0 0
      %2991 = vmatpush1.bf16.msra.mxu0 %v2940
      %2992 = vmatprep.subr.bf16.mxu0 0
      %2993 = vmatpush1.bf16.msra.mxu0 %v2941
      %2994 = vmatprep.subr.bf16.mxu0 0
      %2995 = vmatpush1.bf16.msra.mxu0 %v2942
      %2996 = vmatprep.subr.bf16.mxu0 0
      %2997 = vmatpush1.bf16.msra.mxu0 %v2943
      %2998 = vmatprep.subr.bf16.mxu0 0
      %2999 = vmatpush1.bf16.msra.mxu0 %v2944
      %3000 = vmatprep.subr.bf16.mxu0 0
      %3001 = vmatpush1.bf16.msra.mxu0 %v2945
      %3002 = vmatprep.subr.bf16.mxu0 0
      %3003 = vmatpush1.bf16.msra.mxu0 %v2946
      %3004 = vmatprep.subr.bf16.mxu0 0
      %3005 = vmatpush1.bf16.msra.mxu0 %v2947
      %3006 = vmatprep.subr.bf16.mxu0 0
      %3007 = vmatpush1.bf16.msra.mxu0 %v2948
      %3008 = vmatprep.subr.bf16.mxu0 0
      %3009 = vmatpush1.bf16.msra.mxu0 %v2949
      %3010 = vmatprep.subr.bf16.mxu0 0
      %3011 = vmatpush1.bf16.msra.mxu0 %v2950
      %3012 = vmatprep.subr.bf16.mxu0 0
      %3013 = vmatpush1.bf16.msra.mxu0 %v2951
      %3014 = vmatprep.subr.bf16.mxu0 0
      %3015 = vmatpush1.bf16.msra.mxu0 %v2952
      %3016 = vmatprep.subr.bf16.mxu0 0
      %3017 = vmatpush1.bf16.msra.mxu0 %v2953
      %3018 = vmatprep.mubr.bf16.mxu0 %v2697
      %3019 = vmatmul.mubr.bf16.gmra.mrb[0].mxu0 %v2633
      %v3020 = vpop.f32.mrb[0].mxu0
      %v3021 = vadd.f32 0.0, %v3020
      %v3022 = vpop.f32.mrb[0].mxu0
      %v3023 = vpop.f32.mrb[0].mxu0
      %v3024 = vadd.f32 0.0, %v3023
      %v3025 = vpop.f32.mrb[0].mxu0
      %3026 = vmatprep.mubr.bf16.mxu0 %v2698
      %3027 = vmatmul.mubr.bf16.gmra.mrb[0].mxu0 %v2634
      %v3028 = vpop.f32.mrb[0].mxu0
      %v3029 = vadd.f32 0.0, %v3028
      %v3030 = vpop.f32.mrb[0].mxu0
      %v3031 = vpop.f32.mrb[0].mxu0
      %v3032 = vadd.f32 0.0, %v3031
      %v3033 = vpop.f32.mrb[0].mxu0
      %3034 = vmatprep.mubr.bf16.mxu0 %v2699
      %3035 = vmatmul.mubr.bf16.gmra.mrb[0].mxu0 %v2635
      %v3036 = vpop.f32.mrb[0].mxu0
      %v3037 = vadd.f32 0.0, %v3036
      %v3038 = vpop.f32.mrb[0].mxu0
      %v3039 = vpop.f32.mrb[0].mxu0
      %v3040 = vadd.f32 0.0, %v3039
      %v3041 = vpop.f32.mrb[0].mxu0
      %3042 = vmatprep.mubr.bf16.mxu0 %v2700
      %3043 = vmatmul.mubr.bf16.gmra.mrb[0].mxu0 %v2636
      %v3044 = vpop.f32.mrb[0].mxu0
      %v3045 = vadd.f32 0.0, %v3044
      %v3046 = vpop.f32.mrb[0].mxu0
      %v3047 = vpop.f32.mrb[0].mxu0
      %v3048 = vadd.f32 0.0, %v3047
      %v3049 = vpop.f32.mrb[0].mxu0
      %3050 = vmatprep.mubr.bf16.mxu0 %v2701
      %3051 = vmatmul.mubr.bf16.gmra.mrb[0].mxu0 %v2637
      %v3052 = vpop.f32.mrb[0].mxu0
      %v3053 = vadd.f32 0.0, %v3052
      %v3054 = vpop.f32.mrb[0].mxu0
      %v3055 = vpop.f32.mrb[0].mxu0
      %v3056 = vadd.f32 0.0, %v3055
      %v3057 = vpop.f32.mrb[0].mxu0
      %3058 = vmatprep.mubr.bf16.mxu0 %v2702
      %3059 = vmatmul.mubr.bf16.gmra.mrb[0].mxu0 %v2638
      %v3060 = vpop.f32.mrb[0].mxu0
      %v3061 = vadd.f32 0.0, %v3060
      %v3062 = vpop.f32.mrb[0].mxu0
      %v3063 = vpop.f32.mrb[0].mxu0
      %v3064 = vadd.f32 0.0, %v3063
      %v3065 = vpop.f32.mrb[0].mxu0
      %3066 = vmatprep.mubr.bf16.mxu0 %v2703
      %3067 = vmatmul.mubr.bf16.gmra.mrb[0].mxu0 %v2639
      %v3068 = vpop.f32.mrb[0].mxu0
      %v3069 = vadd.f32 0.0, %v3068
      %v3070 = vpop.f32.mrb[0].mxu0
      %v3071 = vpop.f32.mrb[0].mxu0
      %v3072 = vadd.f32 0.0, %v3071
      %v3073 = vpop.f32.mrb[0].mxu0
      %3074 = vmatprep.mubr.bf16.mxu0 %v2704
      %3075 = vmatmul.mubr.bf16.gmra.mrb[0].mxu0 %v2640
      %v3076 = vpop.f32.mrb[0].mxu0
      %v3077 = vadd.f32 0.0, %v3076
      %v3078 = vpop.f32.mrb[0].mxu0
      %v3079 = vpop.f32.mrb[0].mxu0
      %v3080 = vadd.f32 0.0, %v3079
      %v3081 = vpop.f32.mrb[0].mxu0
      %3082 = vmatprep.mubr.bf16.mxu0 %v2705
      %3083 = vmatmul.mubr.bf16.gmra.mrb[0].mxu0 %v2641
      %v3084 = vpop.f32.mrb[0].mxu0
      %v3085 = vadd.f32 0.0, %v3084
      %v3086 = vpop.f32.mrb[0].mxu0
      %v3087 = vpop.f32.mrb[0].mxu0
      %v3088 = vadd.f32 0.0, %v3087
      %v3089 = vpop.f32.mrb[0].mxu0
      %3090 = vmatprep.mubr.bf16.mxu0 %v2706
      %3091 = vmatmul.mubr.bf16.gmra.mrb[0].mxu0 %v2642
      %v3092 = vpop.f32.mrb[0].mxu0
      %v3093 = vadd.f32 0.0, %v3092
      %v3094 = vpop.f32.mrb[0].mxu0
      %v3095 = vpop.f32.mrb[0].mxu0
      %v3096 = vadd.f32 0.0, %v3095
      %v3097 = vpop.f32.mrb[0].mxu0
      %3098 = vmatprep.mubr.bf16.mxu0 %v2707
      %3099 = vmatmul.mubr.bf16.gmra.mrb[0].mxu0 %v2643
      %v3100 = vpop.f32.mrb[0].mxu0
      %v3101 = vadd.f32 0.0, %v3100
      %v3102 = vpop.f32.mrb[0].mxu0
      %v3103 = vpop.f32.mrb[0].mxu0
      %v3104 = vadd.f32 0.0, %v3103
      %v3105 = vpop.f32.mrb[0].mxu0
      %3106 = vmatprep.mubr.bf16.mxu0 %v2708
      %3107 = vmatmul.mubr.bf16.gmra.mrb[0].mxu0 %v2644
      %v3108 = vpop.f32.mrb[0].mxu0
      %v3109 = vadd.f32 0.0, %v3108
      %v3110 = vpop.f32.mrb[0].mxu0
      %v3111 = vpop.f32.mrb[0].mxu0
      %v3112 = vadd.f32 0.0, %v3111
      %v3113 = vpop.f32.mrb[0].mxu0
      %3114 = vmatprep.mubr.bf16.mxu0 %v2709
      %3115 = vmatmul.mubr.bf16.gmra.mrb[0].mxu0 %v2645
      %v3116 = vpop.f32.mrb[0].mxu0
      %v3117 = vadd.f32 0.0, %v3116
      %v3118 = vpop.f32.mrb[0].mxu0
      %v3119 = vpop.f32.mrb[0].mxu0
      %v3120 = vadd.f32 0.0, %v3119
      %v3121 = vpop.f32.mrb[0].mxu0
      %3122 = vmatprep.mubr.bf16.mxu0 %v2710
      %3123 = vmatmul.mubr.bf16.gmra.mrb[0].mxu0 %v2646
      %v3124 = vpop.f32.mrb[0].mxu0
      %v3125 = vadd.f32 0.0, %v3124
      %v3126 = vpop.f32.mrb[0].mxu0
      %v3127 = vpop.f32.mrb[0].mxu0
      %v3128 = vadd.f32 0.0, %v3127
      %v3129 = vpop.f32.mrb[0].mxu0
      %3130 = vmatprep.mubr.bf16.mxu0 %v2711
      %3131 = vmatmul.mubr.bf16.gmra.mrb[0].mxu0 %v2647
      %v3132 = vpop.f32.mrb[0].mxu0
      %v3133 = vadd.f32 0.0, %v3132
      %v3134 = vpop.f32.mrb[0].mxu0
      %v3135 = vpop.f32.mrb[0].mxu0
      %v3136 = vadd.f32 0.0, %v3135
      %v3137 = vpop.f32.mrb[0].mxu0
      %3138 = vmatprep.mubr.bf16.mxu0 %v2712
      %3139 = vmatmul.mubr.bf16.gmra.mrb[0].mxu0 %v2648
      %v3140 = vpop.f32.mrb[0].mxu0
      %v3141 = vadd.f32 0.0, %v3140
      %v3142 = vpop.f32.mrb[0].mxu0
      %v3143 = vpop.f32.mrb[0].mxu0
      %v3144 = vadd.f32 0.0, %v3143
      %v3145 = vpop.f32.mrb[0].mxu0
      %3146 = vdwg.mxu0
      %3147 = vmatprep.subr.bf16.mxu0 0
      %3148 = vmatpush1.bf16.msra.mxu0 %v2954
      %3149 = vmatprep.subr.bf16.mxu0 0
      %3150 = vmatpush1.bf16.msra.mxu0 %v2955
      %3151 = vmatprep.subr.bf16.mxu0 0
      %3152 = vmatpush1.bf16.msra.mxu0 %v2956
      %3153 = vmatprep.subr.bf16.mxu0 0
      %3154 = vmatpush1.bf16.msra.mxu0 %v2957
      %3155 = vmatprep.subr.bf16.mxu0 0
      %3156 = vmatpush1.bf16.msra.mxu0 %v2958
      %3157 = vmatprep.subr.bf16.mxu0 0
      %3158 = vmatpush1.bf16.msra.mxu0 %v2959
      %3159 = vmatprep.subr.bf16.mxu0 0
      %3160 = vmatpush1.bf16.msra.mxu0 %v2960
      %3161 = vmatprep.subr.bf16.mxu0 0
      %3162 = vmatpush1.bf16.msra.mxu0 %v2961
      %3163 = vmatprep.subr.bf16.mxu0 0
      %3164 = vmatpush1.bf16.msra.mxu0 0
      %3165 = vmatprep.subr.bf16.mxu0 0
      %3166 = vmatpush1.bf16.msra.mxu0 0
      %3167 = vmatprep.subr.bf16.mxu0 0
      %3168 = vmatpush1.bf16.msra.mxu0 0
      %3169 = vmatprep.subr.bf16.mxu0 0
      %3170 = vmatpush1.bf16.msra.mxu0 0
      %3171 = vmatprep.subr.bf16.mxu0 0
      %3172 = vmatpush1.bf16.msra.mxu0 0
      %3173 = vmatprep.subr.bf16.mxu0 0
      %3174 = vmatpush1.bf16.msra.mxu0 0
      %3175 = vmatprep.subr.bf16.mxu0 0
      %3176 = vmatpush1.bf16.msra.mxu0 0
      %3177 = vmatprep.subr.bf16.mxu0 0
      %3178 = vmatpush1.bf16.msra.mxu0 0
      %3179 = vmatprep.mubr.bf16.mxu0 0
      %3180 = vmatmul.mubr.bf16.gmra.mrb[0].mxu0 %v2761
      %v3181 = vpop.f32.mrb[0].mxu0
      %v3182 = vadd.f32 %v3021, %v3181
      %v3183 = vpop.f32.mrb[0].mxu0
      %v3184 = vpop.f32.mrb[0].mxu0
      %v3185 = vadd.f32 %v3024, %v3184
      %v3186 = vpop.f32.mrb[0].mxu0
      %3187 = vmatprep.mubr.bf16.mxu0 0
      %3188 = vmatmul.mubr.bf16.gmra.mrb[0].mxu0 %v2762
      %v3189 = vpop.f32.mrb[0].mxu0
      %v3190 = vadd.f32 %v3029, %v3189
      %v3191 = vpop.f32.mrb[0].mxu0
      %v3192 = vpop.f32.mrb[0].mxu0
      %v3193 = vadd.f32 %v3032, %v3192
      %v3194 = vpop.f32.mrb[0].mxu0
      %3195 = vmatprep.mubr.bf16.mxu0 0
      %3196 = vmatmul.mubr.bf16.gmra.mrb[0].mxu0 %v2763
      %v3197 = vpop.f32.mrb[0].mxu0
      %v3198 = vadd.f32 %v3037, %v3197
      %v3199 = vpop.f32.mrb[0].mxu0
      %v3200 = vpop.f32.mrb[0].mxu0
      %v3201 = vadd.f32 %v3040, %v3200
      %v3202 = vpop.f32.mrb[0].mxu0
      %3203 = vmatprep.mubr.bf16.mxu0 0
      %3204 = vmatmul.mubr.bf16.gmra.mrb[0].mxu0 %v2764
      %v3205 = vpop.f32.mrb[0].mxu0
      %v3206 = vadd.f32 %v3045, %v3205
      %v3207 = vpop.f32.mrb[0].mxu0
      %v3208 = vpop.f32.mrb[0].mxu0
      %v3209 = vadd.f32 %v3048, %v3208
      %v3210 = vpop.f32.mrb[0].mxu0
      %3211 = vmatprep.mubr.bf16.mxu0 0
      %3212 = vmatmul.mubr.bf16.gmra.mrb[0].mxu0 %v2765
      %v3213 = vpop.f32.mrb[0].mxu0
      %v3214 = vadd.f32 %v3053, %v3213
      %v3215 = vpop.f32.mrb[0].mxu0
      %v3216 = vpop.f32.mrb[0].mxu0
      %v3217 = vadd.f32 %v3056, %v3216
      %v3218 = vpop.f32.mrb[0].mxu0
      %3219 = vmatprep.mubr.bf16.mxu0 0
      %3220 = vmatmul.mubr.bf16.gmra.mrb[0].mxu0 %v2766
      %v3221 = vpop.f32.mrb[0].mxu0
      %v3222 = vadd.f32 %v3061, %v3221
      %v3223 = vpop.f32.mrb[0].mxu0
      %v3224 = vpop.f32.mrb[0].mxu0
      %v3225 = vadd.f32 %v3064, %v3224
      %v3226 = vpop.f32.mrb[0].mxu0
      %3227 = vmatprep.mubr.bf16.mxu0 0
      %3228 = vmatmul.mubr.bf16.gmra.mrb[0].mxu0 %v2767
      %v3229 = vpop.f32.mrb[0].mxu0
      %v3230 = vadd.f32 %v3069, %v3229
      %v3231 = vpop.f32.mrb[0].mxu0
      %v3232 = vpop.f32.mrb[0].mxu0
      %v3233 = vadd.f32 %v3072, %v3232
      %v3234 = vpop.f32.mrb[0].mxu0
      %3235 = vmatprep.mubr.bf16.mxu0 0
      %3236 = vmatmul.mubr.bf16.gmra.mrb[0].mxu0 %v2768
      %v3237 = vpop.f32.mrb[0].mxu0
      %v3238 = vadd.f32 %v3077, %v3237
      %v3239 = vpop.f32.mrb[0].mxu0
      %v3240 = vpop.f32.mrb[0].mxu0
      %v3241 = vadd.f32 %v3080, %v3240
      %v3242 = vpop.f32.mrb[0].mxu0
      %3243 = vmatprep.mubr.bf16.mxu0 0
      %3244 = vmatmul.mubr.bf16.gmra.mrb[0].mxu0 %v2769
      %v3245 = vpop.f32.mrb[0].mxu0
      %v3246 = vadd.f32 %v3085, %v3245
      %v3247 = vpop.f32.mrb[0].mxu0
      %v3248 = vpop.f32.mrb[0].mxu0
      %v3249 = vadd.f32 %v3088, %v3248
      %v3250 = vpop.f32.mrb[0].mxu0
      %3251 = vmatprep.mubr.bf16.mxu0 0
      %3252 = vmatmul.mubr.bf16.gmra.mrb[0].mxu0 %v2770
      %v3253 = vpop.f32.mrb[0].mxu0
      %v3254 = vadd.f32 %v3093, %v3253
      %v3255 = vpop.f32.mrb[0].mxu0
      %v3256 = vpop.f32.mrb[0].mxu0
      %v3257 = vadd.f32 %v3096, %v3256
      %v3258 = vpop.f32.mrb[0].mxu0
      %3259 = vmatprep.mubr.bf16.mxu0 0
      %3260 = vmatmul.mubr.bf16.gmra.mrb[0].mxu0 %v2771
      %v3261 = vpop.f32.mrb[0].mxu0
      %v3262 = vadd.f32 %v3101, %v3261
      %v3263 = vpop.f32.mrb[0].mxu0
      %v3264 = vpop.f32.mrb[0].mxu0
      %v3265 = vadd.f32 %v3104, %v3264
      %v3266 = vpop.f32.mrb[0].mxu0
      %3267 = vmatprep.mubr.bf16.mxu0 0
      %3268 = vmatmul.mubr.bf16.gmra.mrb[0].mxu0 %v2772
      %v3269 = vpop.f32.mrb[0].mxu0
      %v3270 = vadd.f32 %v3109, %v3269
      %v3271 = vpop.f32.mrb[0].mxu0
      %v3272 = vpop.f32.mrb[0].mxu0
      %v3273 = vadd.f32 %v3112, %v3272
      %v3274 = vpop.f32.mrb[0].mxu0
      %3275 = vmatprep.mubr.bf16.mxu0 0
      %3276 = vmatmul.mubr.bf16.gmra.mrb[0].mxu0 %v2773
      %v3277 = vpop.f32.mrb[0].mxu0
      %v3278 = vadd.f32 %v3117, %v3277
      %v3279 = vpop.f32.mrb[0].mxu0
      %v3280 = vpop.f32.mrb[0].mxu0
      %v3281 = vadd.f32 %v3120, %v3280
      %v3282 = vpop.f32.mrb[0].mxu0
      %3283 = vmatprep.mubr.bf16.mxu0 0
      %3284 = vmatmul.mubr.bf16.gmra.mrb[0].mxu0 %v2774
      %v3285 = vpop.f32.mrb[0].mxu0
      %v3286 = vadd.f32 %v3125, %v3285
      %v3287 = vpop.f32.mrb[0].mxu0
      %v3288 = vpop.f32.mrb[0].mxu0
      %v3289 = vadd.f32 %v3128, %v3288
      %v3290 = vpop.f32.mrb[0].mxu0
      %3291 = vmatprep.mubr.bf16.mxu0 0
      %3292 = vmatmul.mubr.bf16.gmra.mrb[0].mxu0 %v2775
      %v3293 = vpop.f32.mrb[0].mxu0
      %v3294 = vadd.f32 %v3133, %v3293
      %v3295 = vpop.f32.mrb[0].mxu0
      %v3296 = vpop.f32.mrb[0].mxu0
      %v3297 = vadd.f32 %v3136, %v3296
      %v3298 = vpop.f32.mrb[0].mxu0
      %3299 = vmatprep.mubr.bf16.mxu0 0
      %3300 = vmatmul.mubr.bf16.gmra.mrb[0].mxu0 %v2776
      %v3301 = vpop.f32.mrb[0].mxu0
      %v3302 = vadd.f32 %v3141, %v3301
      %v3303 = vpop.f32.mrb[0].mxu0
      %v3304 = vpop.f32.mrb[0].mxu0
      %v3305 = vadd.f32 %v3144, %v3304
      %v3306 = vpop.f32.mrb[0].mxu0
      %3307 = vdwg.mxu0
      %v3356 = vunpack.c.l.b16 %v1929
      %v3357 = vunpack.c.l.b16 %v1930
      %v3358 = vunpack.c.l.b16 %v1931
      %v3359 = vunpack.c.l.b16 %v1932
      %v3360 = vunpack.c.l.b16 %v1933
      %v3361 = vunpack.c.l.b16 %v1934
      %v3362 = vunpack.c.l.b16 %v1935
      %v3363 = vunpack.c.l.b16 %v1936
      %v3364 = vunpack.c.l.b16 %v1937
      %v3365 = vunpack.c.l.b16 %v1938
      %v3366 = vunpack.c.l.b16 %v1939
      %v3367 = vunpack.c.l.b16 %v1940
      %v3368 = vunpack.c.l.b16 %v1941
      %v3369 = vunpack.c.l.b16 %v1942
      %v3370 = vunpack.c.l.b16 %v1943
      %v3371 = vunpack.c.l.b16 %v1944
      %v3372 = vunpack.c.l.b16 %v1945
      %v3373 = vunpack.c.l.b16 %v1946
      %v3374 = vunpack.c.l.b16 %v1947
      %v3375 = vunpack.c.l.b16 %v1948
      %v3376 = vunpack.c.l.b16 %v1949
      %v3377 = vunpack.c.l.b16 %v1950
      %v3378 = vunpack.c.l.b16 %v1951
      %v3379 = vunpack.c.l.b16 %v1952
      %v3380 = vunpack.c.l.b16 %v1953
      %v3381 = vunpack.c.l.b16 %v1954
      %v3382 = vunpack.c.l.b16 %v1955
      %v3383 = vunpack.c.l.b16 %v1956
      %v3384 = vunpack.c.l.b16 %v1957
      %v3385 = vunpack.c.l.b16 %v1958
      %v3386 = vunpack.c.l.b16 %v1959
      %v3387 = vunpack.c.l.b16 %v1960
      %v3388 = vunpack.c.l.b16 %v1961
      %v3389 = vunpack.c.l.b16 %v1962
      %v3390 = vunpack.c.l.b16 %v1963
      %v3391 = vunpack.c.l.b16 %v1964
      %v3392 = vunpack.c.l.b16 %v1965
      %v3393 = vunpack.c.l.b16 %v1966
      %v3394 = vunpack.c.l.b16 %v1967
      %v3395 = vunpack.c.l.b16 %v1968
      %v3396 = vunpack.c.l.b16 %v1969
      %v3397 = vunpack.c.l.b16 %v1970
      %v3398 = vunpack.c.l.b16 %v1971
      %v3399 = vunpack.c.l.b16 %v1972
      %v3400 = vunpack.c.l.b16 %v1973
      %v3401 = vunpack.c.l.b16 %v1974
      %v3402 = vunpack.c.l.b16 %v1975
      %v3403 = vunpack.c.l.b16 %v1976
      %v3404 = vpack.c.b16 %v3357, %v3356
      %v3405 = vpack.c.b16 %v3359, %v3358
      %v3406 = vpack.c.b16 %v3361, %v3360
      %v3407 = vpack.c.b16 %v3363, %v3362
      %v3408 = vpack.c.b16 %v3365, %v3364
      %v3409 = vpack.c.b16 %v3367, %v3366
      %v3410 = vpack.c.b16 %v3369, %v3368
      %v3411 = vpack.c.b16 %v3371, %v3370
      %v3412 = vpack.c.b16 %v3373, %v3372
      %v3413 = vpack.c.b16 %v3375, %v3374
      %v3414 = vpack.c.b16 %v3377, %v3376
      %v3415 = vpack.c.b16 %v3379, %v3378
      %v3416 = vpack.c.b16 %v3381, %v3380
      %v3417 = vpack.c.b16 %v3383, %v3382
      %v3418 = vpack.c.b16 %v3385, %v3384
      %v3419 = vpack.c.b16 %v3387, %v3386
      %v3420 = vpack.c.b16 %v3389, %v3388
      %v3421 = vpack.c.b16 %v3391, %v3390
      %v3422 = vpack.c.b16 %v3393, %v3392
      %v3423 = vpack.c.b16 %v3395, %v3394
      %v3424 = vpack.c.b16 %v3397, %v3396
      %v3425 = vpack.c.b16 %v3399, %v3398
      %v3426 = vpack.c.b16 %v3401, %v3400
      %v3427 = vpack.c.b16 %v3403, %v3402
      %3452 = vmatprep.subr.bf16.mxu0 0
      %3453 = vmatpush1.bf16.msra.mxu0 %v3404
      %3454 = vmatprep.subr.bf16.mxu0 0
      %3455 = vmatpush1.bf16.msra.mxu0 %v3405
      %3456 = vmatprep.subr.bf16.mxu0 0
      %3457 = vmatpush1.bf16.msra.mxu0 %v3406
      %3458 = vmatprep.subr.bf16.mxu0 0
      %3459 = vmatpush1.bf16.msra.mxu0 %v3407
      %3460 = vmatprep.subr.bf16.mxu0 0
      %3461 = vmatpush1.bf16.msra.mxu0 %v3408
      %3462 = vmatprep.subr.bf16.mxu0 0
      %3463 = vmatpush1.bf16.msra.mxu0 %v3409
      %3464 = vmatprep.subr.bf16.mxu0 0
      %3465 = vmatpush1.bf16.msra.mxu0 %v3410
      %3466 = vmatprep.subr.bf16.mxu0 0
      %3467 = vmatpush1.bf16.msra.mxu0 %v3411
      %3468 = vmatprep.subr.bf16.mxu0 0
      %3469 = vmatpush1.bf16.msra.mxu0 %v3412
      %3470 = vmatprep.subr.bf16.mxu0 0
      %3471 = vmatpush1.bf16.msra.mxu0 %v3413
      %3472 = vmatprep.subr.bf16.mxu0 0
      %3473 = vmatpush1.bf16.msra.mxu0 %v3414
      %3474 = vmatprep.subr.bf16.mxu0 0
      %3475 = vmatpush1.bf16.msra.mxu0 %v3415
      %3476 = vmatprep.subr.bf16.mxu0 0
      %3477 = vmatpush1.bf16.msra.mxu0 %v3416
      %3478 = vmatprep.subr.bf16.mxu0 0
      %3479 = vmatpush1.bf16.msra.mxu0 %v3417
      %3480 = vmatprep.subr.bf16.mxu0 0
      %3481 = vmatpush1.bf16.msra.mxu0 %v3418
      %3482 = vmatprep.subr.bf16.mxu0 0
      %3483 = vmatpush1.bf16.msra.mxu0 %v3419
      %3484 = vmatprep.mubr.bf16.mxu0 %v1833
      %3485 = vmatmul.mubr.bf16.gmra.mrb[0].mxu0 %v1769
      %v3486 = vpop.f32.mrb[0].mxu0
      %v3487 = vadd.f32 %v3182, %v3486
      %v3488 = vpop.f32.mrb[0].mxu0
      %v3489 = vpop.f32.mrb[0].mxu0
      %v3490 = vadd.f32 %v3185, %v3489
      %v3491 = vpop.f32.mrb[0].mxu0
      %3492 = vmatprep.mubr.bf16.mxu0 %v1834
      %3493 = vmatmul.mubr.bf16.gmra.mrb[0].mxu0 %v1770
      %v3494 = vpop.f32.mrb[0].mxu0
      %v3495 = vadd.f32 %v3190, %v3494
      %v3496 = vpop.f32.mrb[0].mxu0
      %v3497 = vpop.f32.mrb[0].mxu0
      %v3498 = vadd.f32 %v3193, %v3497
      %v3499 = vpop.f32.mrb[0].mxu0
      %3500 = vmatprep.mubr.bf16.mxu0 %v1835
      %3501 = vmatmul.mubr.bf16.gmra.mrb[0].mxu0 %v1771
      %v3502 = vpop.f32.mrb[0].mxu0
      %v3503 = vadd.f32 %v3198, %v3502
      %v3504 = vpop.f32.mrb[0].mxu0
      %v3505 = vpop.f32.mrb[0].mxu0
      %v3506 = vadd.f32 %v3201, %v3505
      %v3507 = vpop.f32.mrb[0].mxu0
      %3508 = vmatprep.mubr.bf16.mxu0 %v1836
      %3509 = vmatmul.mubr.bf16.gmra.mrb[0].mxu0 %v1772
      %v3510 = vpop.f32.mrb[0].mxu0
      %v3511 = vadd.f32 %v3206, %v3510
      %v3512 = vpop.f32.mrb[0].mxu0
      %v3513 = vpop.f32.mrb[0].mxu0
      %v3514 = vadd.f32 %v3209, %v3513
      %v3515 = vpop.f32.mrb[0].mxu0
      %3516 = vmatprep.mubr.bf16.mxu0 %v1837
      %3517 = vmatmul.mubr.bf16.gmra.mrb[0].mxu0 %v1773
      %v3518 = vpop.f32.mrb[0].mxu0
      %v3519 = vadd.f32 %v3214, %v3518
      %v3520 = vpop.f32.mrb[0].mxu0
      %v3521 = vpop.f32.mrb[0].mxu0
      %v3522 = vadd.f32 %v3217, %v3521
      %v3523 = vpop.f32.mrb[0].mxu0
      %3524 = vmatprep.mubr.bf16.mxu0 %v1838
      %3525 = vmatmul.mubr.bf16.gmra.mrb[0].mxu0 %v1774
      %v3526 = vpop.f32.mrb[0].mxu0
      %v3527 = vadd.f32 %v3222, %v3526
      %v3528 = vpop.f32.mrb[0].mxu0
      %v3529 = vpop.f32.mrb[0].mxu0
      %v3530 = vadd.f32 %v3225, %v3529
      %v3531 = vpop.f32.mrb[0].mxu0
      %3532 = vmatprep.mubr.bf16.mxu0 %v1839
      %3533 = vmatmul.mubr.bf16.gmra.mrb[0].mxu0 %v1775
      %v3534 = vpop.f32.mrb[0].mxu0
      %v3535 = vadd.f32 %v3230, %v3534
      %v3536 = vpop.f32.mrb[0].mxu0
      %v3537 = vpop.f32.mrb[0].mxu0
      %v3538 = vadd.f32 %v3233, %v3537
      %v3539 = vpop.f32.mrb[0].mxu0
      %3540 = vmatprep.mubr.bf16.mxu0 %v1840
      %3541 = vmatmul.mubr.bf16.gmra.mrb[0].mxu0 %v1776
      %v3542 = vpop.f32.mrb[0].mxu0
      %v3543 = vadd.f32 %v3238, %v3542
      %v3544 = vpop.f32.mrb[0].mxu0
      %v3545 = vpop.f32.mrb[0].mxu0
      %v3546 = vadd.f32 %v3241, %v3545
      %v3547 = vpop.f32.mrb[0].mxu0
      %3548 = vmatprep.mubr.bf16.mxu0 %v1841
      %3549 = vmatmul.mubr.bf16.gmra.mrb[0].mxu0 %v1777
      %v3550 = vpop.f32.mrb[0].mxu0
      %v3551 = vadd.f32 %v3246, %v3550
      %v3552 = vpop.f32.mrb[0].mxu0
      %v3553 = vpop.f32.mrb[0].mxu0
      %v3554 = vadd.f32 %v3249, %v3553
      %v3555 = vpop.f32.mrb[0].mxu0
      %3556 = vmatprep.mubr.bf16.mxu0 %v1842
      %3557 = vmatmul.mubr.bf16.gmra.mrb[0].mxu0 %v1778
      %v3558 = vpop.f32.mrb[0].mxu0
      %v3559 = vadd.f32 %v3254, %v3558
      %v3560 = vpop.f32.mrb[0].mxu0
      %v3561 = vpop.f32.mrb[0].mxu0
      %v3562 = vadd.f32 %v3257, %v3561
      %v3563 = vpop.f32.mrb[0].mxu0
      %3564 = vmatprep.mubr.bf16.mxu0 %v1843
      %3565 = vmatmul.mubr.bf16.gmra.mrb[0].mxu0 %v1779
      %v3566 = vpop.f32.mrb[0].mxu0
      %v3567 = vadd.f32 %v3262, %v3566
      %v3568 = vpop.f32.mrb[0].mxu0
      %v3569 = vpop.f32.mrb[0].mxu0
      %v3570 = vadd.f32 %v3265, %v3569
      %v3571 = vpop.f32.mrb[0].mxu0
      %3572 = vmatprep.mubr.bf16.mxu0 %v1844
      %3573 = vmatmul.mubr.bf16.gmra.mrb[0].mxu0 %v1780
      %v3574 = vpop.f32.mrb[0].mxu0
      %v3575 = vadd.f32 %v3270, %v3574
      %v3576 = vpop.f32.mrb[0].mxu0
      %v3577 = vpop.f32.mrb[0].mxu0
      %v3578 = vadd.f32 %v3273, %v3577
      %v3579 = vpop.f32.mrb[0].mxu0
      %3580 = vmatprep.mubr.bf16.mxu0 %v1845
      %3581 = vmatmul.mubr.bf16.gmra.mrb[0].mxu0 %v1781
      %v3582 = vpop.f32.mrb[0].mxu0
      %v3583 = vadd.f32 %v3278, %v3582
      %v3584 = vpop.f32.mrb[0].mxu0
      %v3585 = vpop.f32.mrb[0].mxu0
      %v3586 = vadd.f32 %v3281, %v3585
      %v3587 = vpop.f32.mrb[0].mxu0
      %3588 = vmatprep.mubr.bf16.mxu0 %v1846
      %3589 = vmatmul.mubr.bf16.gmra.mrb[0].mxu0 %v1782
      %v3590 = vpop.f32.mrb[0].mxu0
      %v3591 = vadd.f32 %v3286, %v3590
      %v3592 = vpop.f32.mrb[0].mxu0
      %v3593 = vpop.f32.mrb[0].mxu0
      %v3594 = vadd.f32 %v3289, %v3593
      %v3595 = vpop.f32.mrb[0].mxu0
      %3596 = vmatprep.mubr.bf16.mxu0 %v1847
      %3597 = vmatmul.mubr.bf16.gmra.mrb[0].mxu0 %v1783
      %v3598 = vpop.f32.mrb[0].mxu0
      %v3599 = vadd.f32 %v3294, %v3598
      %v3600 = vpop.f32.mrb[0].mxu0
      %v3601 = vpop.f32.mrb[0].mxu0
      %v3602 = vadd.f32 %v3297, %v3601
      %v3603 = vpop.f32.mrb[0].mxu0
      %3604 = vmatprep.mubr.bf16.mxu0 %v1848
      %3605 = vmatmul.mubr.bf16.gmra.mrb[0].mxu0 %v1784
      %v3606 = vpop.f32.mrb[0].mxu0
      %v3607 = vadd.f32 %v3302, %v3606
      %v3608 = vpop.f32.mrb[0].mxu0
      %v3609 = vpop.f32.mrb[0].mxu0
      %v3610 = vadd.f32 %v3305, %v3609
      %v3611 = vpop.f32.mrb[0].mxu0
      %3612 = vdwg.mxu0
      %3613 = vmatprep.subr.bf16.mxu0 0
      %3614 = vmatpush1.bf16.msra.mxu0 %v3420
      %3615 = vmatprep.subr.bf16.mxu0 0
      %3616 = vmatpush1.bf16.msra.mxu0 %v3421
      %3617 = vmatprep.subr.bf16.mxu0 0
      %3618 = vmatpush1.bf16.msra.mxu0 %v3422
      %3619 = vmatprep.subr.bf16.mxu0 0
      %3620 = vmatpush1.bf16.msra.mxu0 %v3423
      %3621 = vmatprep.subr.bf16.mxu0 0
      %3622 = vmatpush1.bf16.msra.mxu0 %v3424
      %3623 = vmatprep.subr.bf16.mxu0 0
      %3624 = vmatpush1.bf16.msra.mxu0 %v3425
      %3625 = vmatprep.subr.bf16.mxu0 0
      %3626 = vmatpush1.bf16.msra.mxu0 %v3426
      %3627 = vmatprep.subr.bf16.mxu0 0
      %3628 = vmatpush1.bf16.msra.mxu0 %v3427
      %3629 = vmatprep.subr.bf16.mxu0 0
      %3630 = vmatpush1.bf16.msra.mxu0 0
      %3631 = vmatprep.subr.bf16.mxu0 0
      %3632 = vmatpush1.bf16.msra.mxu0 0
      %3633 = vmatprep.subr.bf16.mxu0 0
      %3634 = vmatpush1.bf16.msra.mxu0 0
      %3635 = vmatprep.subr.bf16.mxu0 0
      %3636 = vmatpush1.bf16.msra.mxu0 0
      %3637 = vmatprep.subr.bf16.mxu0 0
      %3638 = vmatpush1.bf16.msra.mxu0 0
      %3639 = vmatprep.subr.bf16.mxu0 0
      %3640 = vmatpush1.bf16.msra.mxu0 0
      %3641 = vmatprep.subr.bf16.mxu0 0
      %3642 = vmatpush1.bf16.msra.mxu0 0
      %3643 = vmatprep.subr.bf16.mxu0 0
      %3644 = vmatpush1.bf16.msra.mxu0 0
      %3645 = vmatprep.mubr.bf16.mxu0 0
      %3646 = vmatmul.mubr.bf16.gmra.mrb[0].mxu0 %v1897
      %v3647 = vpop.f32.mrb[0].mxu0
      %v3648 = vadd.f32 %v3487, %v3647
      %v3649 = vpop.f32.mrb[0].mxu0
      %v3650 = vpop.f32.mrb[0].mxu0
      %v3651 = vadd.f32 %v3490, %v3650
      %v3652 = vpop.f32.mrb[0].mxu0
      %3653 = vmatprep.mubr.bf16.mxu0 0
      %3654 = vmatmul.mubr.bf16.gmra.mrb[0].mxu0 %v1898
      %v3655 = vpop.f32.mrb[0].mxu0
      %v3656 = vadd.f32 %v3495, %v3655
      %v3657 = vpop.f32.mrb[0].mxu0
      %v3658 = vpop.f32.mrb[0].mxu0
      %v3659 = vadd.f32 %v3498, %v3658
      %v3660 = vpop.f32.mrb[0].mxu0
      %3661 = vmatprep.mubr.bf16.mxu0 0
      %3662 = vmatmul.mubr.bf16.gmra.mrb[0].mxu0 %v1899
      %v3663 = vpop.f32.mrb[0].mxu0
      %v3664 = vadd.f32 %v3503, %v3663
      %v3665 = vpop.f32.mrb[0].mxu0
      %v3666 = vpop.f32.mrb[0].mxu0
      %v3667 = vadd.f32 %v3506, %v3666
      %v3668 = vpop.f32.mrb[0].mxu0
      %3669 = vmatprep.mubr.bf16.mxu0 0
      %3670 = vmatmul.mubr.bf16.gmra.mrb[0].mxu0 %v1900
      %v3671 = vpop.f32.mrb[0].mxu0
      %v3672 = vadd.f32 %v3511, %v3671
      %v3673 = vpop.f32.mrb[0].mxu0
      %v3674 = vpop.f32.mrb[0].mxu0
      %v3675 = vadd.f32 %v3514, %v3674
      %v3676 = vpop.f32.mrb[0].mxu0
      %3677 = vmatprep.mubr.bf16.mxu0 0
      %3678 = vmatmul.mubr.bf16.gmra.mrb[0].mxu0 %v1901
      %v3679 = vpop.f32.mrb[0].mxu0
      %v3680 = vadd.f32 %v3519, %v3679
      %v3681 = vpop.f32.mrb[0].mxu0
      %v3682 = vpop.f32.mrb[0].mxu0
      %v3683 = vadd.f32 %v3522, %v3682
      %v3684 = vpop.f32.mrb[0].mxu0
      %3685 = vmatprep.mubr.bf16.mxu0 0
      %3686 = vmatmul.mubr.bf16.gmra.mrb[0].mxu0 %v1902
      %v3687 = vpop.f32.mrb[0].mxu0
      %v3688 = vadd.f32 %v3527, %v3687
      %v3689 = vpop.f32.mrb[0].mxu0
      %v3690 = vpop.f32.mrb[0].mxu0
      %v3691 = vadd.f32 %v3530, %v3690
      %v3692 = vpop.f32.mrb[0].mxu0
      %3693 = vmatprep.mubr.bf16.mxu0 0
      %3694 = vmatmul.mubr.bf16.gmra.mrb[0].mxu0 %v1903
      %v3695 = vpop.f32.mrb[0].mxu0
      %v3696 = vadd.f32 %v3535, %v3695
      %v3697 = vpop.f32.mrb[0].mxu0
      %v3698 = vpop.f32.mrb[0].mxu0
      %v3699 = vadd.f32 %v3538, %v3698
      %v3700 = vpop.f32.mrb[0].mxu0
      %3701 = vmatprep.mubr.bf16.mxu0 0
      %3702 = vmatmul.mubr.bf16.gmra.mrb[0].mxu0 %v1904
      %v3703 = vpop.f32.mrb[0].mxu0
      %v3704 = vadd.f32 %v3543, %v3703
      %v3705 = vpop.f32.mrb[0].mxu0
      %v3706 = vpop.f32.mrb[0].mxu0
      %v3707 = vadd.f32 %v3546, %v3706
      %v3708 = vpop.f32.mrb[0].mxu0
      %3709 = vmatprep.mubr.bf16.mxu0 0
      %3710 = vmatmul.mubr.bf16.gmra.mrb[0].mxu0 %v1905
      %v3711 = vpop.f32.mrb[0].mxu0
      %v3712 = vadd.f32 %v3551, %v3711
      %v3713 = vpop.f32.mrb[0].mxu0
      %v3714 = vpop.f32.mrb[0].mxu0
      %v3715 = vadd.f32 %v3554, %v3714
      %v3716 = vpop.f32.mrb[0].mxu0
      %3717 = vmatprep.mubr.bf16.mxu0 0
      %3718 = vmatmul.mubr.bf16.gmra.mrb[0].mxu0 %v1906
      %v3719 = vpop.f32.mrb[0].mxu0
      %v3720 = vadd.f32 %v3559, %v3719
      %v3721 = vpop.f32.mrb[0].mxu0
      %v3722 = vpop.f32.mrb[0].mxu0
      %v3723 = vadd.f32 %v3562, %v3722
      %v3724 = vpop.f32.mrb[0].mxu0
      %3725 = vmatprep.mubr.bf16.mxu0 0
      %3726 = vmatmul.mubr.bf16.gmra.mrb[0].mxu0 %v1907
      %v3727 = vpop.f32.mrb[0].mxu0
      %v3728 = vadd.f32 %v3567, %v3727
      %v3729 = vpop.f32.mrb[0].mxu0
      %v3730 = vpop.f32.mrb[0].mxu0
      %v3731 = vadd.f32 %v3570, %v3730
      %v3732 = vpop.f32.mrb[0].mxu0
      %3733 = vmatprep.mubr.bf16.mxu0 0
      %3734 = vmatmul.mubr.bf16.gmra.mrb[0].mxu0 %v1908
      %v3735 = vpop.f32.mrb[0].mxu0
      %v3736 = vadd.f32 %v3575, %v3735
      %v3737 = vpop.f32.mrb[0].mxu0
      %v3738 = vpop.f32.mrb[0].mxu0
      %v3739 = vadd.f32 %v3578, %v3738
      %v3740 = vpop.f32.mrb[0].mxu0
      %3741 = vmatprep.mubr.bf16.mxu0 0
      %3742 = vmatmul.mubr.bf16.gmra.mrb[0].mxu0 %v1909
      %v3743 = vpop.f32.mrb[0].mxu0
      %v3744 = vadd.f32 %v3583, %v3743
      %v3745 = vpop.f32.mrb[0].mxu0
      %v3746 = vpop.f32.mrb[0].mxu0
      %v3747 = vadd.f32 %v3586, %v3746
      %v3748 = vpop.f32.mrb[0].mxu0
      %3749 = vmatprep.mubr.bf16.mxu0 0
      %3750 = vmatmul.mubr.bf16.gmra.mrb[0].mxu0 %v1910
      %v3751 = vpop.f32.mrb[0].mxu0
      %v3752 = vadd.f32 %v3591, %v3751
      %v3753 = vpop.f32.mrb[0].mxu0
      %v3754 = vpop.f32.mrb[0].mxu0
      %v3755 = vadd.f32 %v3594, %v3754
      %v3756 = vpop.f32.mrb[0].mxu0
      %3757 = vmatprep.mubr.bf16.mxu0 0
      %3758 = vmatmul.mubr.bf16.gmra.mrb[0].mxu0 %v1911
      %v3759 = vpop.f32.mrb[0].mxu0
      %v3760 = vadd.f32 %v3599, %v3759
      %v3761 = vpop.f32.mrb[0].mxu0
      %v3762 = vpop.f32.mrb[0].mxu0
      %v3763 = vadd.f32 %v3602, %v3762
      %v3764 = vpop.f32.mrb[0].mxu0
      %3765 = vmatprep.mubr.bf16.mxu0 0
      %3766 = vmatmul.mubr.bf16.gmra.mrb[0].mxu0 %v1912
      %v3767 = vpop.f32.mrb[0].mxu0
      %v3768 = vadd.f32 %v3607, %v3767
      %v3769 = vpop.f32.mrb[0].mxu0
      %v3770 = vpop.f32.mrb[0].mxu0
      %v3771 = vadd.f32 %v3610, %v3770
      %v3772 = vpop.f32.mrb[0].mxu0
      %3773 = vdwg.mxu0
      %v3774 = vld [vmem:[%s795] sm:$0xf]
      %v3775 = vld [vmem:[%s795 + $0x4] sm:$0xf]
      %v3776 = vld [vmem:[%s795 + $0xc] sm:$0xf]
      %v3777 = vld [vmem:[%s795 + $0x10] sm:$0xf]
      %v3778 = vld [vmem:[%s795 + $0x18] sm:$0xf]
      %v3779 = vld [vmem:[%s795 + $0x1c] sm:$0xf]
      %v3780 = vld [vmem:[%s795 + $0x24] sm:$0xf]
      %v3781 = vld [vmem:[%s795 + $0x28] sm:$0xf]
      %v3782 = vld [vmem:[%s795 + $0x30] sm:$0xf]
      %v3783 = vld [vmem:[%s795 + $0x34] sm:$0xf]
      %v3784 = vld [vmem:[%s795 + $0x3c] sm:$0xf]
      %v3785 = vld [vmem:[%s795 + $0x40] sm:$0xf]
      %v3786 = vld [vmem:[%s795 + $0x48] sm:$0xf]
      %v3787 = vld [vmem:[%s795 + $0x4c] sm:$0xf]
      %v3788 = vld [vmem:[%s795 + $0x54] sm:$0xf]
      %v3789 = vld [vmem:[%s795 + $0x58] sm:$0xf]
      %v3790 = vld [vmem:[%s795 + $0x60] sm:$0xf]
      %v3791 = vld [vmem:[%s795 + $0x64] sm:$0xf]
      %v3792 = vld [vmem:[%s795 + $0x6c] sm:$0xf]
      %v3793 = vld [vmem:[%s795 + $0x70] sm:$0xf]
      %v3794 = vld [vmem:[%s795 + $0x78] sm:$0xf]
      %v3795 = vld [vmem:[%s795 + $0x7c] sm:$0xf]
      %v3796 = vld [vmem:[%s795 + $0x84] sm:$0xf]
      %v3797 = vld [vmem:[%s795 + $0x88] sm:$0xf]
      %v3798 = vld [vmem:[%s795 + $0x90] sm:$0xf]
      %v3799 = vld [vmem:[%s795 + $0x94] sm:$0xf]
      %v3800 = vld [vmem:[%s795 + $0x9c] sm:$0xf]
      %v3801 = vld [vmem:[%s795 + $0xa0] sm:$0xf]
      %v3802 = vld [vmem:[%s795 + $0xa8] sm:$0xf]
      %v3803 = vld [vmem:[%s795 + $0xac] sm:$0xf]
      %v3804 = vld [vmem:[%s795 + $0xb4] sm:$0xf]
      %v3805 = vld [vmem:[%s795 + $0xb8] sm:$0xf]
      %v3806 = vld [vmem:[%s795 + $0x8] sm:$0x1]
      %v3807 = vld [vmem:[%s795 + $0x14] sm:$0x1]
      %v3808 = vld [vmem:[%s795 + $0x20] sm:$0x1]
      %v3809 = vld [vmem:[%s795 + $0x2c] sm:$0x1]
      %v3810 = vld [vmem:[%s795 + $0x38] sm:$0x1]
      %v3811 = vld [vmem:[%s795 + $0x44] sm:$0x1]
      %v3812 = vld [vmem:[%s795 + $0x50] sm:$0x1]
      %v3813 = vld [vmem:[%s795 + $0x5c] sm:$0x1]
      %v3814 = vld [vmem:[%s795 + $0x68] sm:$0x1]
      %v3815 = vld [vmem:[%s795 + $0x74] sm:$0x1]
      %v3816 = vld [vmem:[%s795 + $0x80] sm:$0x1]
      %v3817 = vld [vmem:[%s795 + $0x8c] sm:$0x1]
      %v3818 = vld [vmem:[%s795 + $0x98] sm:$0x1]
      %v3819 = vld [vmem:[%s795 + $0xa4] sm:$0x1]
      %v3820 = vld [vmem:[%s795 + $0xb0] sm:$0x1]
      %v3821 = vld [vmem:[%s795 + $0xbc] sm:$0x1]
      %v3823 = vshrl.u32 %v3774, 16
      %v3825 = vrot.slane %v3823, 4
      %v3826 = vshll.u32 %v3774, 16
      %v3828 = vrot.slane %v3826, 5
      %v3829 = vor.u32 %v3825, %v3828
      %v3830 = vrot.slane %v3829, 4
      %v3832 = vshll.u32 %v3775, 16
      %v3834 = vrot.slane %v3832, 5
      %v3835 = vsel %vm1157, %v3830, %v3834
      %v3836 = vshrl.u32 %v3775, 16
      %v3838 = vrot.slane %v3836, 4
      %v3839 = vor.u32 %v3838, %v3834
      %v3840 = vrot.slane %v3839, 4
      %v3842 = vshll.u32 %v3806, 16
      %v3844 = vrot.slane %v3842, 5
      %v3845 = vsel %vm1157, %v3840, %v3844
      %v3847 = vshrl.u32 %v3776, 16
      %v3849 = vrot.slane %v3847, 4
      %v3850 = vshll.u32 %v3776, 16
      %v3852 = vrot.slane %v3850, 5
      %v3853 = vor.u32 %v3849, %v3852
      %v3854 = vrot.slane %v3853, 4
      %v3856 = vshll.u32 %v3777, 16
      %v3858 = vrot.slane %v3856, 5
      %v3859 = vsel %vm1157, %v3854, %v3858
      %v3860 = vshrl.u32 %v3777, 16
      %v3862 = vrot.slane %v3860, 4
      %v3863 = vor.u32 %v3862, %v3858
      %v3864 = vrot.slane %v3863, 4
      %v3866 = vshll.u32 %v3807, 16
      %v3868 = vrot.slane %v3866, 5
      %v3869 = vsel %vm1157, %v3864, %v3868
      %v3871 = vshrl.u32 %v3778, 16
      %v3873 = vrot.slane %v3871, 4
      %v3874 = vshll.u32 %v3778, 16
      %v3876 = vrot.slane %v3874, 5
      %v3877 = vor.u32 %v3873, %v3876
      %v3878 = vrot.slane %v3877, 4
      %v3880 = vshll.u32 %v3779, 16
      %v3882 = vrot.slane %v3880, 5
      %v3883 = vsel %vm1157, %v3878, %v3882
      %v3884 = vshrl.u32 %v3779, 16
      %v3886 = vrot.slane %v3884, 4
      %v3887 = vor.u32 %v3886, %v3882
      %v3888 = vrot.slane %v3887, 4
      %v3890 = vshll.u32 %v3808, 16
      %v3892 = vrot.slane %v3890, 5
      %v3893 = vsel %vm1157, %v3888, %v3892
      %v3895 = vshrl.u32 %v3780, 16
      %v3897 = vrot.slane %v3895, 4
      %v3898 = vshll.u32 %v3780, 16
      %v3900 = vrot.slane %v3898, 5
      %v3901 = vor.u32 %v3897, %v3900
      %v3902 = vrot.slane %v3901, 4
      %v3904 = vshll.u32 %v3781, 16
      %v3906 = vrot.slane %v3904, 5
      %v3907 = vsel %vm1157, %v3902, %v3906
      %v3908 = vshrl.u32 %v3781, 16
      %v3910 = vrot.slane %v3908, 4
      %v3911 = vor.u32 %v3910, %v3906
      %v3912 = vrot.slane %v3911, 4
      %v3914 = vshll.u32 %v3809, 16
      %v3916 = vrot.slane %v3914, 5
      %v3917 = vsel %vm1157, %v3912, %v3916
      %v3919 = vshrl.u32 %v3782, 16
      %v3921 = vrot.slane %v3919, 4
      %v3922 = vshll.u32 %v3782, 16
      %v3924 = vrot.slane %v3922, 5
      %v3925 = vor.u32 %v3921, %v3924
      %v3926 = vrot.slane %v3925, 4
      %v3928 = vshll.u32 %v3783, 16
      %v3930 = vrot.slane %v3928, 5
      %v3931 = vsel %vm1157, %v3926, %v3930
      %v3932 = vshrl.u32 %v3783, 16
      %v3934 = vrot.slane %v3932, 4
      %v3935 = vor.u32 %v3934, %v3930
      %v3936 = vrot.slane %v3935, 4
      %v3938 = vshll.u32 %v3810, 16
      %v3940 = vrot.slane %v3938, 5
      %v3941 = vsel %vm1157, %v3936, %v3940
      %v3943 = vshrl.u32 %v3784, 16
      %v3945 = vrot.slane %v3943, 4
      %v3946 = vshll.u32 %v3784, 16
      %v3948 = vrot.slane %v3946, 5
      %v3949 = vor.u32 %v3945, %v3948
      %v3950 = vrot.slane %v3949, 4
      %v3952 = vshll.u32 %v3785, 16
      %v3954 = vrot.slane %v3952, 5
      %v3955 = vsel %vm1157, %v3950, %v3954
      %v3956 = vshrl.u32 %v3785, 16
      %v3958 = vrot.slane %v3956, 4
      %v3959 = vor.u32 %v3958, %v3954
      %v3960 = vrot.slane %v3959, 4
      %v3962 = vshll.u32 %v3811, 16
      %v3964 = vrot.slane %v3962, 5
      %v3965 = vsel %vm1157, %v3960, %v3964
      %v3967 = vshrl.u32 %v3786, 16
      %v3969 = vrot.slane %v3967, 4
      %v3970 = vshll.u32 %v3786, 16
      %v3972 = vrot.slane %v3970, 5
      %v3973 = vor.u32 %v3969, %v3972
      %v3974 = vrot.slane %v3973, 4
      %v3976 = vshll.u32 %v3787, 16
      %v3978 = vrot.slane %v3976, 5
      %v3979 = vsel %vm1157, %v3974, %v3978
      %v3980 = vshrl.u32 %v3787, 16
      %v3982 = vrot.slane %v3980, 4
      %v3983 = vor.u32 %v3982, %v3978
      %v3984 = vrot.slane %v3983, 4
      %v3986 = vshll.u32 %v3812, 16
      %v3988 = vrot.slane %v3986, 5
      %v3989 = vsel %vm1157, %v3984, %v3988
      %v3991 = vshrl.u32 %v3788, 16
      %v3993 = vrot.slane %v3991, 4
      %v3994 = vshll.u32 %v3788, 16
      %v3996 = vrot.slane %v3994, 5
      %v3997 = vor.u32 %v3993, %v3996
      %v3998 = vrot.slane %v3997, 4
      %v4000 = vshll.u32 %v3789, 16
      %v4002 = vrot.slane %v4000, 5
      %v4003 = vsel %vm1157, %v3998, %v4002
      %v4004 = vshrl.u32 %v3789, 16
      %v4006 = vrot.slane %v4004, 4
      %v4007 = vor.u32 %v4006, %v4002
      %v4008 = vrot.slane %v4007, 4
      %v4010 = vshll.u32 %v3813, 16
      %v4012 = vrot.slane %v4010, 5
      %v4013 = vsel %vm1157, %v4008, %v4012
      %v4015 = vshrl.u32 %v3790, 16
      %v4017 = vrot.slane %v4015, 4
      %v4018 = vshll.u32 %v3790, 16
      %v4020 = vrot.slane %v4018, 5
      %v4021 = vor.u32 %v4017, %v4020
      %v4022 = vrot.slane %v4021, 4
      %v4024 = vshll.u32 %v3791, 16
      %v4026 = vrot.slane %v4024, 5
      %v4027 = vsel %vm1157, %v4022, %v4026
      %v4028 = vshrl.u32 %v3791, 16
      %v4030 = vrot.slane %v4028, 4
      %v4031 = vor.u32 %v4030, %v4026
      %v4032 = vrot.slane %v4031, 4
      %v4034 = vshll.u32 %v3814, 16
      %v4036 = vrot.slane %v4034, 5
      %v4037 = vsel %vm1157, %v4032, %v4036
      %v4039 = vshrl.u32 %v3792, 16
      %v4041 = vrot.slane %v4039, 4
      %v4042 = vshll.u32 %v3792, 16
      %v4044 = vrot.slane %v4042, 5
      %v4045 = vor.u32 %v4041, %v4044
      %v4046 = vrot.slane %v4045, 4
      %v4048 = vshll.u32 %v3793, 16
      %v4050 = vrot.slane %v4048, 5
      %v4051 = vsel %vm1157, %v4046, %v4050
      %v4052 = vshrl.u32 %v3793, 16
      %v4054 = vrot.slane %v4052, 4
      %v4055 = vor.u32 %v4054, %v4050
      %v4056 = vrot.slane %v4055, 4
      %v4058 = vshll.u32 %v3815, 16
      %v4060 = vrot.slane %v4058, 5
      %v4061 = vsel %vm1157, %v4056, %v4060
      %v4063 = vshrl.u32 %v3794, 16
      %v4065 = vrot.slane %v4063, 4
      %v4066 = vshll.u32 %v3794, 16
      %v4068 = vrot.slane %v4066, 5
      %v4069 = vor.u32 %v4065, %v4068
      %v4070 = vrot.slane %v4069, 4
      %v4072 = vshll.u32 %v3795, 16
      %v4074 = vrot.slane %v4072, 5
      %v4075 = vsel %vm1157, %v4070, %v4074
      %v4076 = vshrl.u32 %v3795, 16
      %v4078 = vrot.slane %v4076, 4
      %v4079 = vor.u32 %v4078, %v4074
      %v4080 = vrot.slane %v4079, 4
      %v4082 = vshll.u32 %v3816, 16
      %v4084 = vrot.slane %v4082, 5
      %v4085 = vsel %vm1157, %v4080, %v4084
      %v4087 = vshrl.u32 %v3796, 16
      %v4089 = vrot.slane %v4087, 4
      %v4090 = vshll.u32 %v3796, 16
      %v4092 = vrot.slane %v4090, 5
      %v4093 = vor.u32 %v4089, %v4092
      %v4094 = vrot.slane %v4093, 4
      %v4096 = vshll.u32 %v3797, 16
      %v4098 = vrot.slane %v4096, 5
      %v4099 = vsel %vm1157, %v4094, %v4098
      %v4100 = vshrl.u32 %v3797, 16
      %v4102 = vrot.slane %v4100, 4
      %v4103 = vor.u32 %v4102, %v4098
      %v4104 = vrot.slane %v4103, 4
      %v4106 = vshll.u32 %v3817, 16
      %v4108 = vrot.slane %v4106, 5
      %v4109 = vsel %vm1157, %v4104, %v4108
      %v4111 = vshrl.u32 %v3798, 16
      %v4113 = vrot.slane %v4111, 4
      %v4114 = vshll.u32 %v3798, 16
      %v4116 = vrot.slane %v4114, 5
      %v4117 = vor.u32 %v4113, %v4116
      %v4118 = vrot.slane %v4117, 4
      %v4120 = vshll.u32 %v3799, 16
      %v4122 = vrot.slane %v4120, 5
      %v4123 = vsel %vm1157, %v4118, %v4122
      %v4124 = vshrl.u32 %v3799, 16
      %v4126 = vrot.slane %v4124, 4
      %v4127 = vor.u32 %v4126, %v4122
      %v4128 = vrot.slane %v4127, 4
      %v4130 = vshll.u32 %v3818, 16
      %v4132 = vrot.slane %v4130, 5
      %v4133 = vsel %vm1157, %v4128, %v4132
      %v4135 = vshrl.u32 %v3800, 16
      %v4137 = vrot.slane %v4135, 4
      %v4138 = vshll.u32 %v3800, 16
      %v4140 = vrot.slane %v4138, 5
      %v4141 = vor.u32 %v4137, %v4140
      %v4142 = vrot.slane %v4141, 4
      %v4144 = vshll.u32 %v3801, 16
      %v4146 = vrot.slane %v4144, 5
      %v4147 = vsel %vm1157, %v4142, %v4146
      %v4148 = vshrl.u32 %v3801, 16
      %v4150 = vrot.slane %v4148, 4
      %v4151 = vor.u32 %v4150, %v4146
      %v4152 = vrot.slane %v4151, 4
      %v4154 = vshll.u32 %v3819, 16
      %v4156 = vrot.slane %v4154, 5
      %v4157 = vsel %vm1157, %v4152, %v4156
      %v4159 = vshrl.u32 %v3802, 16
      %v4161 = vrot.slane %v4159, 4
      %v4162 = vshll.u32 %v3802, 16
      %v4164 = vrot.slane %v4162, 5
      %v4165 = vor.u32 %v4161, %v4164
      %v4166 = vrot.slane %v4165, 4
      %v4168 = vshll.u32 %v3803, 16
      %v4170 = vrot.slane %v4168, 5
      %v4171 = vsel %vm1157, %v4166, %v4170
      %v4172 = vshrl.u32 %v3803, 16
      %v4174 = vrot.slane %v4172, 4
      %v4175 = vor.u32 %v4174, %v4170
      %v4176 = vrot.slane %v4175, 4
      %v4178 = vshll.u32 %v3820, 16
      %v4180 = vrot.slane %v4178, 5
      %v4181 = vsel %vm1157, %v4176, %v4180
      %v4183 = vshrl.u32 %v3804, 16
      %v4185 = vrot.slane %v4183, 4
      %v4186 = vshll.u32 %v3804, 16
      %v4188 = vrot.slane %v4186, 5
      %v4189 = vor.u32 %v4185, %v4188
      %v4190 = vrot.slane %v4189, 4
      %v4192 = vshll.u32 %v3805, 16
      %v4194 = vrot.slane %v4192, 5
      %v4195 = vsel %vm1157, %v4190, %v4194
      %v4196 = vshrl.u32 %v3805, 16
      %v4198 = vrot.slane %v4196, 4
      %v4199 = vor.u32 %v4198, %v4194
      %v4200 = vrot.slane %v4199, 4
      %v4202 = vshll.u32 %v3821, 16
      %v4204 = vrot.slane %v4202, 5
      %v4205 = vsel %vm1157, %v4200, %v4204
      %v4206 = vld [vmem:[%s795] sm:$0xe]
      %v4207 = vld [vmem:[%s795 + $0xc] sm:$0xe]
      %v4208 = vld [vmem:[%s795 + $0x18] sm:$0xe]
      %v4209 = vld [vmem:[%s795 + $0x24] sm:$0xe]
      %v4210 = vld [vmem:[%s795 + $0x30] sm:$0xe]
      %v4211 = vld [vmem:[%s795 + $0x3c] sm:$0xe]
      %v4212 = vld [vmem:[%s795 + $0x48] sm:$0xe]
      %v4213 = vld [vmem:[%s795 + $0x54] sm:$0xe]
      %v4214 = vld [vmem:[%s795 + $0x60] sm:$0xe]
      %v4215 = vld [vmem:[%s795 + $0x6c] sm:$0xe]
      %v4216 = vld [vmem:[%s795 + $0x78] sm:$0xe]
      %v4217 = vld [vmem:[%s795 + $0x84] sm:$0xe]
      %v4218 = vld [vmem:[%s795 + $0x90] sm:$0xe]
      %v4219 = vld [vmem:[%s795 + $0x9c] sm:$0xe]
      %v4220 = vld [vmem:[%s795 + $0xa8] sm:$0xe]
      %v4221 = vld [vmem:[%s795 + $0xb4] sm:$0xe]
      %v4270 = vrot.slane %v4206, 5
      %v4271 = vrot.slane %v4270, 4
      %v4272 = vrot.slane %v3775, 5
      %v4273 = vsel %vm1608, %v4271, %v4272
      %v4274 = vrot.slane %v4272, 4
      %v4275 = vrot.slane %v3806, 5
      %v4276 = vsel %vm1608, %v4274, %v4275
      %v4277 = vrot.slane %v4207, 5
      %v4278 = vrot.slane %v4277, 4
      %v4279 = vrot.slane %v3777, 5
      %v4280 = vsel %vm1608, %v4278, %v4279
      %v4281 = vrot.slane %v4279, 4
      %v4282 = vrot.slane %v3807, 5
      %v4283 = vsel %vm1608, %v4281, %v4282
      %v4284 = vrot.slane %v4208, 5
      %v4285 = vrot.slane %v4284, 4
      %v4286 = vrot.slane %v3779, 5
      %v4287 = vsel %vm1608, %v4285, %v4286
      %v4288 = vrot.slane %v4286, 4
      %v4289 = vrot.slane %v3808, 5
      %v4290 = vsel %vm1608, %v4288, %v4289
      %v4291 = vrot.slane %v4209, 5
      %v4292 = vrot.slane %v4291, 4
      %v4293 = vrot.slane %v3781, 5
      %v4294 = vsel %vm1608, %v4292, %v4293
      %v4295 = vrot.slane %v4293, 4
      %v4296 = vrot.slane %v3809, 5
      %v4297 = vsel %vm1608, %v4295, %v4296
      %v4298 = vrot.slane %v4210, 5
      %v4299 = vrot.slane %v4298, 4
      %v4300 = vrot.slane %v3783, 5
      %v4301 = vsel %vm1608, %v4299, %v4300
      %v4302 = vrot.slane %v4300, 4
      %v4303 = vrot.slane %v3810, 5
      %v4304 = vsel %vm1608, %v4302, %v4303
      %v4305 = vrot.slane %v4211, 5
      %v4306 = vrot.slane %v4305, 4
      %v4307 = vrot.slane %v3785, 5
      %v4308 = vsel %vm1608, %v4306, %v4307
      %v4309 = vrot.slane %v4307, 4
      %v4310 = vrot.slane %v3811, 5
      %v4311 = vsel %vm1608, %v4309, %v4310
      %v4312 = vrot.slane %v4212, 5
      %v4313 = vrot.slane %v4312, 4
      %v4314 = vrot.slane %v3787, 5
      %v4315 = vsel %vm1608, %v4313, %v4314
      %v4316 = vrot.slane %v4314, 4
      %v4317 = vrot.slane %v3812, 5
      %v4318 = vsel %vm1608, %v4316, %v4317
      %v4319 = vrot.slane %v4213, 5
      %v4320 = vrot.slane %v4319, 4
      %v4321 = vrot.slane %v3789, 5
      %v4322 = vsel %vm1608, %v4320, %v4321
      %v4323 = vrot.slane %v4321, 4
      %v4324 = vrot.slane %v3813, 5
      %v4325 = vsel %vm1608, %v4323, %v4324
      %v4326 = vrot.slane %v4214, 5
      %v4327 = vrot.slane %v4326, 4
      %v4328 = vrot.slane %v3791, 5
      %v4329 = vsel %vm1608, %v4327, %v4328
      %v4330 = vrot.slane %v4328, 4
      %v4331 = vrot.slane %v3814, 5
      %v4332 = vsel %vm1608, %v4330, %v4331
      %v4333 = vrot.slane %v4215, 5
      %v4334 = vrot.slane %v4333, 4
      %v4335 = vrot.slane %v3793, 5
      %v4336 = vsel %vm1608, %v4334, %v4335
      %v4337 = vrot.slane %v4335, 4
      %v4338 = vrot.slane %v3815, 5
      %v4339 = vsel %vm1608, %v4337, %v4338
      %v4340 = vrot.slane %v4216, 5
      %v4341 = vrot.slane %v4340, 4
      %v4342 = vrot.slane %v3795, 5
      %v4343 = vsel %vm1608, %v4341, %v4342
      %v4344 = vrot.slane %v4342, 4
      %v4345 = vrot.slane %v3816, 5
      %v4346 = vsel %vm1608, %v4344, %v4345
      %v4347 = vrot.slane %v4217, 5
      %v4348 = vrot.slane %v4347, 4
      %v4349 = vrot.slane %v3797, 5
      %v4350 = vsel %vm1608, %v4348, %v4349
      %v4351 = vrot.slane %v4349, 4
      %v4352 = vrot.slane %v3817, 5
      %v4353 = vsel %vm1608, %v4351, %v4352
      %v4354 = vrot.slane %v4218, 5
      %v4355 = vrot.slane %v4354, 4
      %v4356 = vrot.slane %v3799, 5
      %v4357 = vsel %vm1608, %v4355, %v4356
      %v4358 = vrot.slane %v4356, 4
      %v4359 = vrot.slane %v3818, 5
      %v4360 = vsel %vm1608, %v4358, %v4359
      %v4361 = vrot.slane %v4219, 5
      %v4362 = vrot.slane %v4361, 4
      %v4363 = vrot.slane %v3801, 5
      %v4364 = vsel %vm1608, %v4362, %v4363
      %v4365 = vrot.slane %v4363, 4
      %v4366 = vrot.slane %v3819, 5
      %v4367 = vsel %vm1608, %v4365, %v4366
      %v4368 = vrot.slane %v4220, 5
      %v4369 = vrot.slane %v4368, 4
      %v4370 = vrot.slane %v3803, 5
      %v4371 = vsel %vm1608, %v4369, %v4370
      %v4372 = vrot.slane %v4370, 4
      %v4373 = vrot.slane %v3820, 5
      %v4374 = vsel %vm1608, %v4372, %v4373
      %v4375 = vrot.slane %v4221, 5
      %v4376 = vrot.slane %v4375, 4
      %v4377 = vrot.slane %v3805, 5
      %v4378 = vsel %vm1608, %v4376, %v4377
      %v4379 = vrot.slane %v4377, 4
      %v4380 = vrot.slane %v3821, 5
      %v4381 = vsel %vm1608, %v4379, %v4380
      %v4398 = vunpack.c.l.b16 %v3774
      %v4399 = vunpack.c.l.b16 %v3775
      %v4400 = vunpack.c.l.b16 %v3776
      %v4401 = vunpack.c.l.b16 %v3777
      %v4402 = vunpack.c.l.b16 %v3778
      %v4403 = vunpack.c.l.b16 %v3779
      %v4404 = vunpack.c.l.b16 %v3780
      %v4405 = vunpack.c.l.b16 %v3781
      %v4406 = vunpack.c.l.b16 %v3782
      %v4407 = vunpack.c.l.b16 %v3783
      %v4408 = vunpack.c.l.b16 %v3784
      %v4409 = vunpack.c.l.b16 %v3785
      %v4410 = vunpack.c.l.b16 %v3786
      %v4411 = vunpack.c.l.b16 %v3787
      %v4412 = vunpack.c.l.b16 %v3788
      %v4413 = vunpack.c.l.b16 %v3789
      %v4414 = vunpack.c.l.b16 %v3790
      %v4415 = vunpack.c.l.b16 %v3791
      %v4416 = vunpack.c.l.b16 %v3792
      %v4417 = vunpack.c.l.b16 %v3793
      %v4418 = vunpack.c.l.b16 %v3794
      %v4419 = vunpack.c.l.b16 %v3795
      %v4420 = vunpack.c.l.b16 %v3796
      %v4421 = vunpack.c.l.b16 %v3797
      %v4422 = vunpack.c.l.b16 %v3798
      %v4423 = vunpack.c.l.b16 %v3799
      %v4424 = vunpack.c.l.b16 %v3800
      %v4425 = vunpack.c.l.b16 %v3801
      %v4426 = vunpack.c.l.b16 %v3802
      %v4427 = vunpack.c.l.b16 %v3803
      %v4428 = vunpack.c.l.b16 %v3804
      %v4429 = vunpack.c.l.b16 %v3805
      %v4430 = vpack.c.b16 %v4399, %v4398
      %v4431 = vpack.c.b16 %v4401, %v4400
      %v4432 = vpack.c.b16 %v4403, %v4402
      %v4433 = vpack.c.b16 %v4405, %v4404
      %v4434 = vpack.c.b16 %v4407, %v4406
      %v4435 = vpack.c.b16 %v4409, %v4408
      %v4436 = vpack.c.b16 %v4411, %v4410
      %v4437 = vpack.c.b16 %v4413, %v4412
      %v4438 = vpack.c.b16 %v4415, %v4414
      %v4439 = vpack.c.b16 %v4417, %v4416
      %v4440 = vpack.c.b16 %v4419, %v4418
      %v4441 = vpack.c.b16 %v4421, %v4420
      %v4442 = vpack.c.b16 %v4423, %v4422
      %v4443 = vpack.c.b16 %v4425, %v4424
      %v4444 = vpack.c.b16 %v4427, %v4426
      %v4445 = vpack.c.b16 %v4429, %v4428
      %v4462 = vunpack.c.l.b16 %v3835
      %v4463 = vunpack.c.l.b16 %v3845
      %v4464 = vunpack.c.l.b16 %v3859
      %v4465 = vunpack.c.l.b16 %v3869
      %v4466 = vunpack.c.l.b16 %v3883
      %v4467 = vunpack.c.l.b16 %v3893
      %v4468 = vunpack.c.l.b16 %v3907
      %v4469 = vunpack.c.l.b16 %v3917
      %v4470 = vunpack.c.l.b16 %v3931
      %v4471 = vunpack.c.l.b16 %v3941
      %v4472 = vunpack.c.l.b16 %v3955
      %v4473 = vunpack.c.l.b16 %v3965
      %v4474 = vunpack.c.l.b16 %v3979
      %v4475 = vunpack.c.l.b16 %v3989
      %v4476 = vunpack.c.l.b16 %v4003
      %v4477 = vunpack.c.l.b16 %v4013
      %v4478 = vunpack.c.l.b16 %v4027
      %v4479 = vunpack.c.l.b16 %v4037
      %v4480 = vunpack.c.l.b16 %v4051
      %v4481 = vunpack.c.l.b16 %v4061
      %v4482 = vunpack.c.l.b16 %v4075
      %v4483 = vunpack.c.l.b16 %v4085
      %v4484 = vunpack.c.l.b16 %v4099
      %v4485 = vunpack.c.l.b16 %v4109
      %v4486 = vunpack.c.l.b16 %v4123
      %v4487 = vunpack.c.l.b16 %v4133
      %v4488 = vunpack.c.l.b16 %v4147
      %v4489 = vunpack.c.l.b16 %v4157
      %v4490 = vunpack.c.l.b16 %v4171
      %v4491 = vunpack.c.l.b16 %v4181
      %v4492 = vunpack.c.l.b16 %v4195
      %v4493 = vunpack.c.l.b16 %v4205
      %v4494 = vpack.c.b16 %v4463, %v4462
      %v4495 = vpack.c.b16 %v4465, %v4464
      %v4496 = vpack.c.b16 %v4467, %v4466
      %v4497 = vpack.c.b16 %v4469, %v4468
      %v4498 = vpack.c.b16 %v4471, %v4470
      %v4499 = vpack.c.b16 %v4473, %v4472
      %v4500 = vpack.c.b16 %v4475, %v4474
      %v4501 = vpack.c.b16 %v4477, %v4476
      %v4502 = vpack.c.b16 %v4479, %v4478
      %v4503 = vpack.c.b16 %v4481, %v4480
      %v4504 = vpack.c.b16 %v4483, %v4482
      %v4505 = vpack.c.b16 %v4485, %v4484
      %v4506 = vpack.c.b16 %v4487, %v4486
      %v4507 = vpack.c.b16 %v4489, %v4488
      %v4508 = vpack.c.b16 %v4491, %v4490
      %v4509 = vpack.c.b16 %v4493, %v4492
      %v4526 = vunpack.c.l.b16 %v4273
      %v4527 = vunpack.c.l.b16 %v4276
      %v4528 = vunpack.c.l.b16 %v4280
      %v4529 = vunpack.c.l.b16 %v4283
      %v4530 = vunpack.c.l.b16 %v4287
      %v4531 = vunpack.c.l.b16 %v4290
      %v4532 = vunpack.c.l.b16 %v4294
      %v4533 = vunpack.c.l.b16 %v4297
      %v4534 = vunpack.c.l.b16 %v4301
      %v4535 = vunpack.c.l.b16 %v4304
      %v4536 = vunpack.c.l.b16 %v4308
      %v4537 = vunpack.c.l.b16 %v4311
      %v4538 = vunpack.c.l.b16 %v4315
      %v4539 = vunpack.c.l.b16 %v4318
      %v4540 = vunpack.c.l.b16 %v4322
      %v4541 = vunpack.c.l.b16 %v4325
      %v4542 = vunpack.c.l.b16 %v4329
      %v4543 = vunpack.c.l.b16 %v4332
      %v4544 = vunpack.c.l.b16 %v4336
      %v4545 = vunpack.c.l.b16 %v4339
      %v4546 = vunpack.c.l.b16 %v4343
      %v4547 = vunpack.c.l.b16 %v4346
      %v4548 = vunpack.c.l.b16 %v4350
      %v4549 = vunpack.c.l.b16 %v4353
      %v4550 = vunpack.c.l.b16 %v4357
      %v4551 = vunpack.c.l.b16 %v4360
      %v4552 = vunpack.c.l.b16 %v4364
      %v4553 = vunpack.c.l.b16 %v4367
      %v4554 = vunpack.c.l.b16 %v4371
      %v4555 = vunpack.c.l.b16 %v4374
      %v4556 = vunpack.c.l.b16 %v4378
      %v4557 = vunpack.c.l.b16 %v4381
      %v4558 = vpack.c.b16 %v4527, %v4526
      %v4559 = vpack.c.b16 %v4529, %v4528
      %v4560 = vpack.c.b16 %v4531, %v4530
      %v4561 = vpack.c.b16 %v4533, %v4532
      %v4562 = vpack.c.b16 %v4535, %v4534
      %v4563 = vpack.c.b16 %v4537, %v4536
      %v4564 = vpack.c.b16 %v4539, %v4538
      %v4565 = vpack.c.b16 %v4541, %v4540
      %v4566 = vpack.c.b16 %v4543, %v4542
      %v4567 = vpack.c.b16 %v4545, %v4544
      %v4568 = vpack.c.b16 %v4547, %v4546
      %v4569 = vpack.c.b16 %v4549, %v4548
      %v4570 = vpack.c.b16 %v4551, %v4550
      %v4571 = vpack.c.b16 %v4553, %v4552
      %v4572 = vpack.c.b16 %v4555, %v4554
      %v4573 = vpack.c.b16 %v4557, %v4556
      %s4590 = scalar_lea.vmem %s1, 384
      %v4591 = vld [vmem:[%s4590] sm:$0xf]
      %v4592 = vld [vmem:[%s4590 + $0x4] sm:$0xf]
      %v4593 = vld [vmem:[%s4590 + $0x8] sm:$0xf]
      %v4594 = vld [vmem:[%s4590 + $0xc] sm:$0xf]
      %v4595 = vld [vmem:[%s4590 + $0x10] sm:$0xf]
      %v4596 = vld [vmem:[%s4590 + $0x14] sm:$0xf]
      %v4597 = vld [vmem:[%s4590 + $0x18] sm:$0xf]
      %v4598 = vld [vmem:[%s4590 + $0x1c] sm:$0xf]
      %v4599 = vld [vmem:[%s4590 + $0x20] sm:$0xf]
      %v4600 = vld [vmem:[%s4590 + $0x24] sm:$0xf]
      %v4601 = vld [vmem:[%s4590 + $0x28] sm:$0xf]
      %v4602 = vld [vmem:[%s4590 + $0x2c] sm:$0xf]
      %v4603 = vld [vmem:[%s4590 + $0x30] sm:$0xf]
      %v4604 = vld [vmem:[%s4590 + $0x34] sm:$0xf]
      %v4605 = vld [vmem:[%s4590 + $0x38] sm:$0xf]
      %v4606 = vld [vmem:[%s4590 + $0x3c] sm:$0xf]
      %v4607 = vld [vmem:[%s4590 + $0x40] sm:$0xf]
      %v4608 = vld [vmem:[%s4590 + $0x44] sm:$0xf]
      %v4609 = vld [vmem:[%s4590 + $0x48] sm:$0xf]
      %v4610 = vld [vmem:[%s4590 + $0x4c] sm:$0xf]
      %v4611 = vld [vmem:[%s4590 + $0x50] sm:$0xf]
      %v4612 = vld [vmem:[%s4590 + $0x54] sm:$0xf]
      %v4613 = vld [vmem:[%s4590 + $0x58] sm:$0xf]
      %v4614 = vld [vmem:[%s4590 + $0x5c] sm:$0xf]
      %v4615 = vld [vmem:[%s4590 + $0x60] sm:$0xf]
      %v4616 = vld [vmem:[%s4590 + $0x64] sm:$0xf]
      %v4617 = vld [vmem:[%s4590 + $0x68] sm:$0xf]
      %v4618 = vld [vmem:[%s4590 + $0x6c] sm:$0xf]
      %v4619 = vld [vmem:[%s4590 + $0x70] sm:$0xf]
      %v4620 = vld [vmem:[%s4590 + $0x74] sm:$0xf]
      %v4621 = vld [vmem:[%s4590 + $0x78] sm:$0xf]
      %v4622 = vld [vmem:[%s4590 + $0x7c] sm:$0xf]
      %v4623 = vld [vmem:[%s4590 + $0x80] sm:$0xf]
      %v4624 = vld [vmem:[%s4590 + $0x84] sm:$0xf]
      %v4625 = vld [vmem:[%s4590 + $0x88] sm:$0xf]
      %v4626 = vld [vmem:[%s4590 + $0x8c] sm:$0xf]
      %v4627 = vld [vmem:[%s4590 + $0x90] sm:$0xf]
      %v4628 = vld [vmem:[%s4590 + $0x94] sm:$0xf]
      %v4629 = vld [vmem:[%s4590 + $0x98] sm:$0xf]
      %v4630 = vld [vmem:[%s4590 + $0x9c] sm:$0xf]
      %v4631 = vld [vmem:[%s4590 + $0xa0] sm:$0xf]
      %v4632 = vld [vmem:[%s4590 + $0xa4] sm:$0xf]
      %v4633 = vld [vmem:[%s4590 + $0xa8] sm:$0xf]
      %v4634 = vld [vmem:[%s4590 + $0xac] sm:$0xf]
      %v4635 = vld [vmem:[%s4590 + $0xb0] sm:$0xf]
      %v4636 = vld [vmem:[%s4590 + $0xb4] sm:$0xf]
      %v4637 = vld [vmem:[%s4590 + $0xb8] sm:$0xf]
      %v4638 = vld [vmem:[%s4590 + $0xbc] sm:$0xf]
      %v4687 = vunpack.c.l.b16 %v4591
      %v4688 = vunpack.c.l.b16 %v4592
      %v4689 = vunpack.c.l.b16 %v4593
      %v4690 = vunpack.c.l.b16 %v4594
      %v4691 = vunpack.c.l.b16 %v4595
      %v4692 = vunpack.c.l.b16 %v4596
      %v4693 = vunpack.c.l.b16 %v4597
      %v4694 = vunpack.c.l.b16 %v4598
      %v4695 = vunpack.c.l.b16 %v4599
      %v4696 = vunpack.c.l.b16 %v4600
      %v4697 = vunpack.c.l.b16 %v4601
      %v4698 = vunpack.c.l.b16 %v4602
      %v4699 = vunpack.c.l.b16 %v4603
      %v4700 = vunpack.c.l.b16 %v4604
      %v4701 = vunpack.c.l.b16 %v4605
      %v4702 = vunpack.c.l.b16 %v4606
      %v4703 = vunpack.c.l.b16 %v4607
      %v4704 = vunpack.c.l.b16 %v4608
      %v4705 = vunpack.c.l.b16 %v4609
      %v4706 = vunpack.c.l.b16 %v4610
      %v4707 = vunpack.c.l.b16 %v4611
      %v4708 = vunpack.c.l.b16 %v4612
      %v4709 = vunpack.c.l.b16 %v4613
      %v4710 = vunpack.c.l.b16 %v4614
      %v4711 = vunpack.c.l.b16 %v4615
      %v4712 = vunpack.c.l.b16 %v4616
      %v4713 = vunpack.c.l.b16 %v4617
      %v4714 = vunpack.c.l.b16 %v4618
      %v4715 = vunpack.c.l.b16 %v4619
      %v4716 = vunpack.c.l.b16 %v4620
      %v4717 = vunpack.c.l.b16 %v4621
      %v4718 = vunpack.c.l.b16 %v4622
      %v4719 = vunpack.c.l.b16 %v4623
      %v4720 = vunpack.c.l.b16 %v4624
      %v4721 = vunpack.c.l.b16 %v4625
      %v4722 = vunpack.c.l.b16 %v4626
      %v4723 = vunpack.c.l.b16 %v4627
      %v4724 = vunpack.c.l.b16 %v4628
      %v4725 = vunpack.c.l.b16 %v4629
      %v4726 = vunpack.c.l.b16 %v4630
      %v4727 = vunpack.c.l.b16 %v4631
      %v4728 = vunpack.c.l.b16 %v4632
      %v4729 = vunpack.c.l.b16 %v4633
      %v4730 = vunpack.c.l.b16 %v4634
      %v4731 = vunpack.c.l.b16 %v4635
      %v4732 = vunpack.c.l.b16 %v4636
      %v4733 = vunpack.c.l.b16 %v4637
      %v4734 = vunpack.c.l.b16 %v4638
      %v4735 = vpack.c.b16 %v4688, %v4687
      %v4736 = vpack.c.b16 %v4690, %v4689
      %v4737 = vpack.c.b16 %v4692, %v4691
      %v4738 = vpack.c.b16 %v4694, %v4693
      %v4739 = vpack.c.b16 %v4696, %v4695
      %v4740 = vpack.c.b16 %v4698, %v4697
      %v4741 = vpack.c.b16 %v4700, %v4699
      %v4742 = vpack.c.b16 %v4702, %v4701
      %v4743 = vpack.c.b16 %v4704, %v4703
      %v4744 = vpack.c.b16 %v4706, %v4705
      %v4745 = vpack.c.b16 %v4708, %v4707
      %v4746 = vpack.c.b16 %v4710, %v4709
      %v4747 = vpack.c.b16 %v4712, %v4711
      %v4748 = vpack.c.b16 %v4714, %v4713
      %v4749 = vpack.c.b16 %v4716, %v4715
      %v4750 = vpack.c.b16 %v4718, %v4717
      %v4751 = vpack.c.b16 %v4720, %v4719
      %v4752 = vpack.c.b16 %v4722, %v4721
      %v4753 = vpack.c.b16 %v4724, %v4723
      %v4754 = vpack.c.b16 %v4726, %v4725
      %v4755 = vpack.c.b16 %v4728, %v4727
      %v4756 = vpack.c.b16 %v4730, %v4729
      %v4757 = vpack.c.b16 %v4732, %v4731
      %v4758 = vpack.c.b16 %v4734, %v4733
      %4783 = vmatprep.subr.bf16.mxu0 0
      %4784 = vmatpush1.bf16.msra.mxu0 %v4735
      %4785 = vmatprep.subr.bf16.mxu0 0
      %4786 = vmatpush1.bf16.msra.mxu0 %v4736
      %4787 = vmatprep.subr.bf16.mxu0 0
      %4788 = vmatpush1.bf16.msra.mxu0 %v4737
      %4789 = vmatprep.subr.bf16.mxu0 0
      %4790 = vmatpush1.bf16.msra.mxu0 %v4738
      %4791 = vmatprep.subr.bf16.mxu0 0
      %4792 = vmatpush1.bf16.msra.mxu0 %v4739
      %4793 = vmatprep.subr.bf16.mxu0 0
      %4794 = vmatpush1.bf16.msra.mxu0 %v4740
      %4795 = vmatprep.subr.bf16.mxu0 0
      %4796 = vmatpush1.bf16.msra.mxu0 %v4741
      %4797 = vmatprep.subr.bf16.mxu0 0
      %4798 = vmatpush1.bf16.msra.mxu0 %v4742
      %4799 = vmatprep.subr.bf16.mxu0 0
      %4800 = vmatpush1.bf16.msra.mxu0 %v4743
      %4801 = vmatprep.subr.bf16.mxu0 0
      %4802 = vmatpush1.bf16.msra.mxu0 %v4744
      %4803 = vmatprep.subr.bf16.mxu0 0
      %4804 = vmatpush1.bf16.msra.mxu0 %v4745
      %4805 = vmatprep.subr.bf16.mxu0 0
      %4806 = vmatpush1.bf16.msra.mxu0 %v4746
      %4807 = vmatprep.subr.bf16.mxu0 0
      %4808 = vmatpush1.bf16.msra.mxu0 %v4747
      %4809 = vmatprep.subr.bf16.mxu0 0
      %4810 = vmatpush1.bf16.msra.mxu0 %v4748
      %4811 = vmatprep.subr.bf16.mxu0 0
      %4812 = vmatpush1.bf16.msra.mxu0 %v4749
      %4813 = vmatprep.subr.bf16.mxu0 0
      %4814 = vmatpush1.bf16.msra.mxu0 %v4750
      %4815 = vmatprep.mubr.bf16.mxu0 %v4494
      %4816 = vmatmul.mubr.bf16.gmra.mrb[0].mxu0 %v4430
      %v4817 = vpop.f32.mrb[0].mxu0
      %v4818 = vadd.f32 0.0, %v4817
      %v4819 = vpop.f32.mrb[0].mxu0
      %v4820 = vpop.f32.mrb[0].mxu0
      %v4821 = vadd.f32 0.0, %v4820
      %v4822 = vpop.f32.mrb[0].mxu0
      %4823 = vmatprep.mubr.bf16.mxu0 %v4495
      %4824 = vmatmul.mubr.bf16.gmra.mrb[0].mxu0 %v4431
      %v4825 = vpop.f32.mrb[0].mxu0
      %v4826 = vadd.f32 0.0, %v4825
      %v4827 = vpop.f32.mrb[0].mxu0
      %v4828 = vpop.f32.mrb[0].mxu0
      %v4829 = vadd.f32 0.0, %v4828
      %v4830 = vpop.f32.mrb[0].mxu0
      %4831 = vmatprep.mubr.bf16.mxu0 %v4496
      %4832 = vmatmul.mubr.bf16.gmra.mrb[0].mxu0 %v4432
      %v4833 = vpop.f32.mrb[0].mxu0
      %v4834 = vadd.f32 0.0, %v4833
      %v4835 = vpop.f32.mrb[0].mxu0
      %v4836 = vpop.f32.mrb[0].mxu0
      %v4837 = vadd.f32 0.0, %v4836
      %v4838 = vpop.f32.mrb[0].mxu0
      %4839 = vmatprep.mubr.bf16.mxu0 %v4497
      %4840 = vmatmul.mubr.bf16.gmra.mrb[0].mxu0 %v4433
      %v4841 = vpop.f32.mrb[0].mxu0
      %v4842 = vadd.f32 0.0, %v4841
      %v4843 = vpop.f32.mrb[0].mxu0
      %v4844 = vpop.f32.mrb[0].mxu0
      %v4845 = vadd.f32 0.0, %v4844
      %v4846 = vpop.f32.mrb[0].mxu0
      %4847 = vmatprep.mubr.bf16.mxu0 %v4498
      %4848 = vmatmul.mubr.bf16.gmra.mrb[0].mxu0 %v4434
      %v4849 = vpop.f32.mrb[0].mxu0
      %v4850 = vadd.f32 0.0, %v4849
      %v4851 = vpop.f32.mrb[0].mxu0
      %v4852 = vpop.f32.mrb[0].mxu0
      %v4853 = vadd.f32 0.0, %v4852
      %v4854 = vpop.f32.mrb[0].mxu0
      %4855 = vmatprep.mubr.bf16.mxu0 %v4499
      %4856 = vmatmul.mubr.bf16.gmra.mrb[0].mxu0 %v4435
      %v4857 = vpop.f32.mrb[0].mxu0
      %v4858 = vadd.f32 0.0, %v4857
      %v4859 = vpop.f32.mrb[0].mxu0
      %v4860 = vpop.f32.mrb[0].mxu0
      %v4861 = vadd.f32 0.0, %v4860
      %v4862 = vpop.f32.mrb[0].mxu0
      %4863 = vmatprep.mubr.bf16.mxu0 %v4500
      %4864 = vmatmul.mubr.bf16.gmra.mrb[0].mxu0 %v4436
      %v4865 = vpop.f32.mrb[0].mxu0
      %v4866 = vadd.f32 0.0, %v4865
      %v4867 = vpop.f32.mrb[0].mxu0
      %v4868 = vpop.f32.mrb[0].mxu0
      %v4869 = vadd.f32 0.0, %v4868
      %v4870 = vpop.f32.mrb[0].mxu0
      %4871 = vmatprep.mubr.bf16.mxu0 %v4501
      %4872 = vmatmul.mubr.bf16.gmra.mrb[0].mxu0 %v4437
      %v4873 = vpop.f32.mrb[0].mxu0
      %v4874 = vadd.f32 0.0, %v4873
      %v4875 = vpop.f32.mrb[0].mxu0
      %v4876 = vpop.f32.mrb[0].mxu0
      %v4877 = vadd.f32 0.0, %v4876
      %v4878 = vpop.f32.mrb[0].mxu0
      %4879 = vmatprep.mubr.bf16.mxu0 %v4502
      %4880 = vmatmul.mubr.bf16.gmra.mrb[0].mxu0 %v4438
      %v4881 = vpop.f32.mrb[0].mxu0
      %v4882 = vadd.f32 0.0, %v4881
      %v4883 = vpop.f32.mrb[0].mxu0
      %v4884 = vpop.f32.mrb[0].mxu0
      %v4885 = vadd.f32 0.0, %v4884
      %v4886 = vpop.f32.mrb[0].mxu0
      %4887 = vmatprep.mubr.bf16.mxu0 %v4503
      %4888 = vmatmul.mubr.bf16.gmra.mrb[0].mxu0 %v4439
      %v4889 = vpop.f32.mrb[0].mxu0
      %v4890 = vadd.f32 0.0, %v4889
      %v4891 = vpop.f32.mrb[0].mxu0
      %v4892 = vpop.f32.mrb[0].mxu0
      %v4893 = vadd.f32 0.0, %v4892
      %v4894 = vpop.f32.mrb[0].mxu0
      %4895 = vmatprep.mubr.bf16.mxu0 %v4504
      %4896 = vmatmul.mubr.bf16.gmra.mrb[0].mxu0 %v4440
      %v4897 = vpop.f32.mrb[0].mxu0
      %v4898 = vadd.f32 0.0, %v4897
      %v4899 = vpop.f32.mrb[0].mxu0
      %v4900 = vpop.f32.mrb[0].mxu0
      %v4901 = vadd.f32 0.0, %v4900
      %v4902 = vpop.f32.mrb[0].mxu0
      %4903 = vmatprep.mubr.bf16.mxu0 %v4505
      %4904 = vmatmul.mubr.bf16.gmra.mrb[0].mxu0 %v4441
      %v4905 = vpop.f32.mrb[0].mxu0
      %v4906 = vadd.f32 0.0, %v4905
      %v4907 = vpop.f32.mrb[0].mxu0
      %v4908 = vpop.f32.mrb[0].mxu0
      %v4909 = vadd.f32 0.0, %v4908
      %v4910 = vpop.f32.mrb[0].mxu0
      %4911 = vmatprep.mubr.bf16.mxu0 %v4506
      %4912 = vmatmul.mubr.bf16.gmra.mrb[0].mxu0 %v4442
      %v4913 = vpop.f32.mrb[0].mxu0
      %v4914 = vadd.f32 0.0, %v4913
      %v4915 = vpop.f32.mrb[0].mxu0
      %v4916 = vpop.f32.mrb[0].mxu0
      %v4917 = vadd.f32 0.0, %v4916
      %v4918 = vpop.f32.mrb[0].mxu0
      %4919 = vmatprep.mubr.bf16.mxu0 %v4507
      %4920 = vmatmul.mubr.bf16.gmra.mrb[0].mxu0 %v4443
      %v4921 = vpop.f32.mrb[0].mxu0
      %v4922 = vadd.f32 0.0, %v4921
      %v4923 = vpop.f32.mrb[0].mxu0
      %v4924 = vpop.f32.mrb[0].mxu0
      %v4925 = vadd.f32 0.0, %v4924
      %v4926 = vpop.f32.mrb[0].mxu0
      %4927 = vmatprep.mubr.bf16.mxu0 %v4508
      %4928 = vmatmul.mubr.bf16.gmra.mrb[0].mxu0 %v4444
      %v4929 = vpop.f32.mrb[0].mxu0
      %v4930 = vadd.f32 0.0, %v4929
      %v4931 = vpop.f32.mrb[0].mxu0
      %v4932 = vpop.f32.mrb[0].mxu0
      %v4933 = vadd.f32 0.0, %v4932
      %v4934 = vpop.f32.mrb[0].mxu0
      %4935 = vmatprep.mubr.bf16.mxu0 %v4509
      %4936 = vmatmul.mubr.bf16.gmra.mrb[0].mxu0 %v4445
      %v4937 = vpop.f32.mrb[0].mxu0
      %v4938 = vadd.f32 0.0, %v4937
      %v4939 = vpop.f32.mrb[0].mxu0
      %v4940 = vpop.f32.mrb[0].mxu0
      %v4941 = vadd.f32 0.0, %v4940
      %v4942 = vpop.f32.mrb[0].mxu0
      %4943 = vdwg.mxu0
      %4944 = vmatprep.subr.bf16.mxu0 0
      %4945 = vmatpush1.bf16.msra.mxu0 %v4751
      %4946 = vmatprep.subr.bf16.mxu0 0
      %4947 = vmatpush1.bf16.msra.mxu0 %v4752
      %4948 = vmatprep.subr.bf16.mxu0 0
      %4949 = vmatpush1.bf16.msra.mxu0 %v4753
      %4950 = vmatprep.subr.bf16.mxu0 0
      %4951 = vmatpush1.bf16.msra.mxu0 %v4754
      %4952 = vmatprep.subr.bf16.mxu0 0
      %4953 = vmatpush1.bf16.msra.mxu0 %v4755
      %4954 = vmatprep.subr.bf16.mxu0 0
      %4955 = vmatpush1.bf16.msra.mxu0 %v4756
      %4956 = vmatprep.subr.bf16.mxu0 0
      %4957 = vmatpush1.bf16.msra.mxu0 %v4757
      %4958 = vmatprep.subr.bf16.mxu0 0
      %4959 = vmatpush1.bf16.msra.mxu0 %v4758
      %4960 = vmatprep.subr.bf16.mxu0 0
      %4961 = vmatpush1.bf16.msra.mxu0 0
      %4962 = vmatprep.subr.bf16.mxu0 0
      %4963 = vmatpush1.bf16.msra.mxu0 0
      %4964 = vmatprep.subr.bf16.mxu0 0
      %4965 = vmatpush1.bf16.msra.mxu0 0
      %4966 = vmatprep.subr.bf16.mxu0 0
      %4967 = vmatpush1.bf16.msra.mxu0 0
      %4968 = vmatprep.subr.bf16.mxu0 0
      %4969 = vmatpush1.bf16.msra.mxu0 0
      %4970 = vmatprep.subr.bf16.mxu0 0
      %4971 = vmatpush1.bf16.msra.mxu0 0
      %4972 = vmatprep.subr.bf16.mxu0 0
      %4973 = vmatpush1.bf16.msra.mxu0 0
      %4974 = vmatprep.subr.bf16.mxu0 0
      %4975 = vmatpush1.bf16.msra.mxu0 0
      %4976 = vmatprep.mubr.bf16.mxu0 0
      %4977 = vmatmul.mubr.bf16.gmra.mrb[0].mxu0 %v4558
      %v4978 = vpop.f32.mrb[0].mxu0
      %v4979 = vadd.f32 %v4818, %v4978
      %v4980 = vpop.f32.mrb[0].mxu0
      %v4981 = vpop.f32.mrb[0].mxu0
      %v4982 = vadd.f32 %v4821, %v4981
      %v4983 = vpop.f32.mrb[0].mxu0
      %4984 = vmatprep.mubr.bf16.mxu0 0
      %4985 = vmatmul.mubr.bf16.gmra.mrb[0].mxu0 %v4559
      %v4986 = vpop.f32.mrb[0].mxu0
      %v4987 = vadd.f32 %v4826, %v4986
      %v4988 = vpop.f32.mrb[0].mxu0
      %v4989 = vpop.f32.mrb[0].mxu0
      %v4990 = vadd.f32 %v4829, %v4989
      %v4991 = vpop.f32.mrb[0].mxu0
      %4992 = vmatprep.mubr.bf16.mxu0 0
      %4993 = vmatmul.mubr.bf16.gmra.mrb[0].mxu0 %v4560
      %v4994 = vpop.f32.mrb[0].mxu0
      %v4995 = vadd.f32 %v4834, %v4994
      %v4996 = vpop.f32.mrb[0].mxu0
      %v4997 = vpop.f32.mrb[0].mxu0
      %v4998 = vadd.f32 %v4837, %v4997
      %v4999 = vpop.f32.mrb[0].mxu0
      %5000 = vmatprep.mubr.bf16.mxu0 0
      %5001 = vmatmul.mubr.bf16.gmra.mrb[0].mxu0 %v4561
      %v5002 = vpop.f32.mrb[0].mxu0
      %v5003 = vadd.f32 %v4842, %v5002
      %v5004 = vpop.f32.mrb[0].mxu0
      %v5005 = vpop.f32.mrb[0].mxu0
      %v5006 = vadd.f32 %v4845, %v5005
      %v5007 = vpop.f32.mrb[0].mxu0
      %5008 = vmatprep.mubr.bf16.mxu0 0
      %5009 = vmatmul.mubr.bf16.gmra.mrb[0].mxu0 %v4562
      %v5010 = vpop.f32.mrb[0].mxu0
      %v5011 = vadd.f32 %v4850, %v5010
      %v5012 = vpop.f32.mrb[0].mxu0
      %v5013 = vpop.f32.mrb[0].mxu0
      %v5014 = vadd.f32 %v4853, %v5013
      %v5015 = vpop.f32.mrb[0].mxu0
      %5016 = vmatprep.mubr.bf16.mxu0 0
      %5017 = vmatmul.mubr.bf16.gmra.mrb[0].mxu0 %v4563
      %v5018 = vpop.f32.mrb[0].mxu0
      %v5019 = vadd.f32 %v4858, %v5018
      %v5020 = vpop.f32.mrb[0].mxu0
      %v5021 = vpop.f32.mrb[0].mxu0
      %v5022 = vadd.f32 %v4861, %v5021
      %v5023 = vpop.f32.mrb[0].mxu0
      %5024 = vmatprep.mubr.bf16.mxu0 0
      %5025 = vmatmul.mubr.bf16.gmra.mrb[0].mxu0 %v4564
      %v5026 = vpop.f32.mrb[0].mxu0
      %v5027 = vadd.f32 %v4866, %v5026
      %v5028 = vpop.f32.mrb[0].mxu0
      %v5029 = vpop.f32.mrb[0].mxu0
      %v5030 = vadd.f32 %v4869, %v5029
      %v5031 = vpop.f32.mrb[0].mxu0
      %5032 = vmatprep.mubr.bf16.mxu0 0
      %5033 = vmatmul.mubr.bf16.gmra.mrb[0].mxu0 %v4565
      %v5034 = vpop.f32.mrb[0].mxu0
      %v5035 = vadd.f32 %v4874, %v5034
      %v5036 = vpop.f32.mrb[0].mxu0
      %v5037 = vpop.f32.mrb[0].mxu0
      %v5038 = vadd.f32 %v4877, %v5037
      %v5039 = vpop.f32.mrb[0].mxu0
      %5040 = vmatprep.mubr.bf16.mxu0 0
      %5041 = vmatmul.mubr.bf16.gmra.mrb[0].mxu0 %v4566
      %v5042 = vpop.f32.mrb[0].mxu0
      %v5043 = vadd.f32 %v4882, %v5042
      %v5044 = vpop.f32.mrb[0].mxu0
      %v5045 = vpop.f32.mrb[0].mxu0
      %v5046 = vadd.f32 %v4885, %v5045
      %v5047 = vpop.f32.mrb[0].mxu0
      %5048 = vmatprep.mubr.bf16.mxu0 0
      %5049 = vmatmul.mubr.bf16.gmra.mrb[0].mxu0 %v4567
      %v5050 = vpop.f32.mrb[0].mxu0
      %v5051 = vadd.f32 %v4890, %v5050
      %v5052 = vpop.f32.mrb[0].mxu0
      %v5053 = vpop.f32.mrb[0].mxu0
      %v5054 = vadd.f32 %v4893, %v5053
      %v5055 = vpop.f32.mrb[0].mxu0
      %5056 = vmatprep.mubr.bf16.mxu0 0
      %5057 = vmatmul.mubr.bf16.gmra.mrb[0].mxu0 %v4568
      %v5058 = vpop.f32.mrb[0].mxu0
      %v5059 = vadd.f32 %v4898, %v5058
      %v5060 = vpop.f32.mrb[0].mxu0
      %v5061 = vpop.f32.mrb[0].mxu0
      %v5062 = vadd.f32 %v4901, %v5061
      %v5063 = vpop.f32.mrb[0].mxu0
      %5064 = vmatprep.mubr.bf16.mxu0 0
      %5065 = vmatmul.mubr.bf16.gmra.mrb[0].mxu0 %v4569
      %v5066 = vpop.f32.mrb[0].mxu0
      %v5067 = vadd.f32 %v4906, %v5066
      %v5068 = vpop.f32.mrb[0].mxu0
      %v5069 = vpop.f32.mrb[0].mxu0
      %v5070 = vadd.f32 %v4909, %v5069
      %v5071 = vpop.f32.mrb[0].mxu0
      %5072 = vmatprep.mubr.bf16.mxu0 0
      %5073 = vmatmul.mubr.bf16.gmra.mrb[0].mxu0 %v4570
      %v5074 = vpop.f32.mrb[0].mxu0
      %v5075 = vadd.f32 %v4914, %v5074
      %v5076 = vpop.f32.mrb[0].mxu0
      %v5077 = vpop.f32.mrb[0].mxu0
      %v5078 = vadd.f32 %v4917, %v5077
      %v5079 = vpop.f32.mrb[0].mxu0
      %5080 = vmatprep.mubr.bf16.mxu0 0
      %5081 = vmatmul.mubr.bf16.gmra.mrb[0].mxu0 %v4571
      %v5082 = vpop.f32.mrb[0].mxu0
      %v5083 = vadd.f32 %v4922, %v5082
      %v5084 = vpop.f32.mrb[0].mxu0
      %v5085 = vpop.f32.mrb[0].mxu0
      %v5086 = vadd.f32 %v4925, %v5085
      %v5087 = vpop.f32.mrb[0].mxu0
      %5088 = vmatprep.mubr.bf16.mxu0 0
      %5089 = vmatmul.mubr.bf16.gmra.mrb[0].mxu0 %v4572
      %v5090 = vpop.f32.mrb[0].mxu0
      %v5091 = vadd.f32 %v4930, %v5090
      %v5092 = vpop.f32.mrb[0].mxu0
      %v5093 = vpop.f32.mrb[0].mxu0
      %v5094 = vadd.f32 %v4933, %v5093
      %v5095 = vpop.f32.mrb[0].mxu0
      %5096 = vmatprep.mubr.bf16.mxu0 0
      %5097 = vmatmul.mubr.bf16.gmra.mrb[0].mxu0 %v4573
      %v5098 = vpop.f32.mrb[0].mxu0
      %v5099 = vadd.f32 %v4938, %v5098
      %v5100 = vpop.f32.mrb[0].mxu0
      %v5101 = vpop.f32.mrb[0].mxu0
      %v5102 = vadd.f32 %v4941, %v5101
      %v5103 = vpop.f32.mrb[0].mxu0
      %5104 = vdwg.mxu0
      %v5105 = vadd.f32 %v3648, %v4979
      %v5106 = vadd.f32 %v3651, %v4982
      %v5107 = vadd.f32 %v3656, %v4987
      %v5108 = vadd.f32 %v3659, %v4990
      %v5109 = vadd.f32 %v3664, %v4995
      %v5110 = vadd.f32 %v3667, %v4998
      %v5111 = vadd.f32 %v3672, %v5003
      %v5112 = vadd.f32 %v3675, %v5006
      %v5113 = vadd.f32 %v3680, %v5011
      %v5114 = vadd.f32 %v3683, %v5014
      %v5115 = vadd.f32 %v3688, %v5019
      %v5116 = vadd.f32 %v3691, %v5022
      %v5117 = vadd.f32 %v3696, %v5027
      %v5118 = vadd.f32 %v3699, %v5030
      %v5119 = vadd.f32 %v3704, %v5035
      %v5120 = vadd.f32 %v3707, %v5038
      %v5121 = vadd.f32 %v3712, %v5043
      %v5122 = vadd.f32 %v3715, %v5046
      %v5123 = vadd.f32 %v3720, %v5051
      %v5124 = vadd.f32 %v3723, %v5054
      %v5125 = vadd.f32 %v3728, %v5059
      %v5126 = vadd.f32 %v3731, %v5062
      %v5127 = vadd.f32 %v3736, %v5067
      %v5128 = vadd.f32 %v3739, %v5070
      %v5129 = vadd.f32 %v3744, %v5075
      %v5130 = vadd.f32 %v3747, %v5078
      %v5131 = vadd.f32 %v3752, %v5083
      %v5132 = vadd.f32 %v3755, %v5086
      %v5133 = vadd.f32 %v3760, %v5091
      %v5134 = vadd.f32 %v3763, %v5094
      %v5135 = vadd.f32 %v3768, %v5099
      %v5136 = vadd.f32 %v3771, %v5102
      %v5137 = vld [vmem:[%s2] sm:$0x1]
      %v5139 = vlaneseq
      %v5140 = vshrl.u32 %v5139, 7
      %v5141 = vsub.s32 0, %v5140
      %v5142 = vrot.slane %v5137, %v5141
      %v5144 = vadd.f32 %v5105, %v5142
      %v5145 = vadd.f32 %v5106, %v5142
      %v5146 = vadd.f32 %v5107, %v5142
      %v5147 = vadd.f32 %v5108, %v5142
      %v5148 = vadd.f32 %v5109, %v5142
      %v5149 = vadd.f32 %v5110, %v5142
      %v5150 = vadd.f32 %v5111, %v5142
      %v5151 = vadd.f32 %v5112, %v5142
      %v5152 = vadd.f32 %v5113, %v5142
      %v5153 = vadd.f32 %v5114, %v5142
      %v5154 = vadd.f32 %v5115, %v5142
      %v5155 = vadd.f32 %v5116, %v5142
      %v5156 = vadd.f32 %v5117, %v5142
      %v5157 = vadd.f32 %v5118, %v5142
      %v5158 = vadd.f32 %v5119, %v5142
      %v5159 = vadd.f32 %v5120, %v5142
      %v5160 = vadd.f32 %v5121, %v5142
      %v5161 = vadd.f32 %v5122, %v5142
      %v5162 = vadd.f32 %v5123, %v5142
      %v5163 = vadd.f32 %v5124, %v5142
      %v5164 = vadd.f32 %v5125, %v5142
      %v5165 = vadd.f32 %v5126, %v5142
      %v5166 = vadd.f32 %v5127, %v5142
      %v5167 = vadd.f32 %v5128, %v5142
      %v5168 = vadd.f32 %v5129, %v5142
      %v5169 = vadd.f32 %v5130, %v5142
      %v5170 = vadd.f32 %v5131, %v5142
      %v5171 = vadd.f32 %v5132, %v5142
      %v5172 = vadd.f32 %v5133, %v5142
      %v5173 = vadd.f32 %v5134, %v5142
      %v5174 = vadd.f32 %v5135, %v5142
      %v5175 = vadd.f32 %v5136, %v5142
      %v5176 = vmax.f32 %v5144, 0.0
      %v5177 = vmax.f32 %v5145, 0.0
      %v5178 = vmax.f32 %v5146, 0.0
      %v5179 = vmax.f32 %v5147, 0.0
      %v5180 = vmax.f32 %v5148, 0.0
      %v5181 = vmax.f32 %v5149, 0.0
      %v5182 = vmax.f32 %v5150, 0.0
      %v5183 = vmax.f32 %v5151, 0.0
      %v5184 = vmax.f32 %v5152, 0.0
      %v5185 = vmax.f32 %v5153, 0.0
      %v5186 = vmax.f32 %v5154, 0.0
      %v5187 = vmax.f32 %v5155, 0.0
      %v5188 = vmax.f32 %v5156, 0.0
      %v5189 = vmax.f32 %v5157, 0.0
      %v5190 = vmax.f32 %v5158, 0.0
      %v5191 = vmax.f32 %v5159, 0.0
      %v5192 = vmax.f32 %v5160, 0.0
      %v5193 = vmax.f32 %v5161, 0.0
      %v5194 = vmax.f32 %v5162, 0.0
      %v5195 = vmax.f32 %v5163, 0.0
      %v5196 = vmax.f32 %v5164, 0.0
      %v5197 = vmax.f32 %v5165, 0.0
      %v5198 = vmax.f32 %v5166, 0.0
      %v5199 = vmax.f32 %v5167, 0.0
      %v5200 = vmax.f32 %v5168, 0.0
      %v5201 = vmax.f32 %v5169, 0.0
      %v5202 = vmax.f32 %v5170, 0.0
      %v5203 = vmax.f32 %v5171, 0.0
      %v5204 = vmax.f32 %v5172, 0.0
      %v5205 = vmax.f32 %v5173, 0.0
      %v5206 = vmax.f32 %v5174, 0.0
      %v5207 = vmax.f32 %v5175, 0.0
      %v5208 = vpack.c.bf16 %v5177, %v5176
      %v5209 = vpack.c.bf16 %v5179, %v5178
      %v5210 = vpack.c.bf16 %v5181, %v5180
      %v5211 = vpack.c.bf16 %v5183, %v5182
      %v5212 = vpack.c.bf16 %v5185, %v5184
      %v5213 = vpack.c.bf16 %v5187, %v5186
      %v5214 = vpack.c.bf16 %v5189, %v5188
      %v5215 = vpack.c.bf16 %v5191, %v5190
      %v5216 = vpack.c.bf16 %v5193, %v5192
      %v5217 = vpack.c.bf16 %v5195, %v5194
      %v5218 = vpack.c.bf16 %v5197, %v5196
      %v5219 = vpack.c.bf16 %v5199, %v5198
      %v5220 = vpack.c.bf16 %v5201, %v5200
      %v5221 = vpack.c.bf16 %v5203, %v5202
      %v5222 = vpack.c.bf16 %v5205, %v5204
      %v5223 = vpack.c.bf16 %v5207, %v5206
      %v5240 = vunpack.c.l.b16 %v5208
      %v5241 = vunpack.c.h.b16 %v5208
      %v5242 = vunpack.c.l.b16 %v5209
      %v5243 = vunpack.c.h.b16 %v5209
      %v5244 = vunpack.c.l.b16 %v5210
      %v5245 = vunpack.c.h.b16 %v5210
      %v5246 = vunpack.c.l.b16 %v5211
      %v5247 = vunpack.c.h.b16 %v5211
      %v5248 = vunpack.c.l.b16 %v5212
      %v5249 = vunpack.c.h.b16 %v5212
      %v5250 = vunpack.c.l.b16 %v5213
      %v5251 = vunpack.c.h.b16 %v5213
      %v5252 = vunpack.c.l.b16 %v5214
      %v5253 = vunpack.c.h.b16 %v5214
      %v5254 = vunpack.c.l.b16 %v5215
      %v5255 = vunpack.c.h.b16 %v5215
      %v5256 = vunpack.c.l.b16 %v5216
      %v5257 = vunpack.c.h.b16 %v5216
      %v5258 = vunpack.c.l.b16 %v5217
      %v5259 = vunpack.c.h.b16 %v5217
      %v5260 = vunpack.c.l.b16 %v5218
      %v5261 = vunpack.c.h.b16 %v5218
      %v5262 = vunpack.c.l.b16 %v5219
      %v5263 = vunpack.c.h.b16 %v5219
      %v5264 = vunpack.c.l.b16 %v5220
      %v5265 = vunpack.c.h.b16 %v5220
      %v5266 = vunpack.c.l.b16 %v5221
      %v5267 = vunpack.c.h.b16 %v5221
      %v5268 = vunpack.c.l.b16 %v5222
      %v5269 = vunpack.c.h.b16 %v5222
      %v5270 = vunpack.c.l.b16 %v5223
      %v5271 = vunpack.c.h.b16 %v5223
      %v5272 = vpack.c.b16 %v5240, %v5240
      %v5273 = vpack.c.b16 %v5241, %v5241
      %v5274 = vpack.c.b16 %v5242, %v5242
      %v5275 = vpack.c.b16 %v5243, %v5243
      %v5276 = vpack.c.b16 %v5244, %v5244
      %v5277 = vpack.c.b16 %v5245, %v5245
      %v5278 = vpack.c.b16 %v5246, %v5246
      %v5279 = vpack.c.b16 %v5247, %v5247
      %v5280 = vpack.c.b16 %v5248, %v5248
      %v5281 = vpack.c.b16 %v5249, %v5249
      %v5282 = vpack.c.b16 %v5250, %v5250
      %v5283 = vpack.c.b16 %v5251, %v5251
      %v5284 = vpack.c.b16 %v5252, %v5252
      %v5285 = vpack.c.b16 %v5253, %v5253
      %v5286 = vpack.c.b16 %v5254, %v5254
      %v5287 = vpack.c.b16 %v5255, %v5255
      %v5288 = vpack.c.b16 %v5256, %v5256
      %v5289 = vpack.c.b16 %v5257, %v5257
      %v5290 = vpack.c.b16 %v5258, %v5258
      %v5291 = vpack.c.b16 %v5259, %v5259
      %v5292 = vpack.c.b16 %v5260, %v5260
      %v5293 = vpack.c.b16 %v5261, %v5261
      %v5294 = vpack.c.b16 %v5262, %v5262
      %v5295 = vpack.c.b16 %v5263, %v5263
      %v5296 = vpack.c.b16 %v5264, %v5264
      %v5297 = vpack.c.b16 %v5265, %v5265
      %v5298 = vpack.c.b16 %v5266, %v5266
      %v5299 = vpack.c.b16 %v5267, %v5267
      %v5300 = vpack.c.b16 %v5268, %v5268
      %v5301 = vpack.c.b16 %v5269, %v5269
      %v5302 = vpack.c.b16 %v5270, %v5270
      %v5303 = vpack.c.b16 %v5271, %v5271
      %v5305 = vshrl.u32 %v5272, 16
      %v5307 = vrot.slane %v5305, 7
      %v5308 = vshll.u32 %v5272, 16
      %v5310 = vor.u32 %v5307, %v5308
      %v5311 = vrot.slane %v5307, 4
      %v5313 = vshrl.u32 %v5273, 16
      %v5315 = vrot.slane %v5313, 7
      %v5316 = vshll.u32 %v5273, 16
      %v5318 = vor.u32 %v5315, %v5316
      %v5319 = vsel %vm356, %v5311, %v5318
      %v5320 = vrot.slane %v5315, 4
      %v5322 = vshrl.u32 %v5274, 16
      %v5324 = vrot.slane %v5322, 7
      %v5325 = vshll.u32 %v5274, 16
      %v5327 = vor.u32 %v5324, %v5325
      %v5328 = vrot.slane %v5324, 4
      %v5330 = vshrl.u32 %v5275, 16
      %v5332 = vrot.slane %v5330, 7
      %v5333 = vshll.u32 %v5275, 16
      %v5335 = vor.u32 %v5332, %v5333
      %v5336 = vsel %vm356, %v5328, %v5335
      %v5337 = vrot.slane %v5332, 4
      %v5339 = vshrl.u32 %v5276, 16
      %v5341 = vrot.slane %v5339, 7
      %v5342 = vshll.u32 %v5276, 16
      %v5344 = vor.u32 %v5341, %v5342
      %v5345 = vrot.slane %v5341, 4
      %v5347 = vshrl.u32 %v5277, 16
      %v5349 = vrot.slane %v5347, 7
      %v5350 = vshll.u32 %v5277, 16
      %v5352 = vor.u32 %v5349, %v5350
      %v5353 = vsel %vm356, %v5345, %v5352
      %v5354 = vrot.slane %v5349, 4
      %v5356 = vshrl.u32 %v5278, 16
      %v5358 = vrot.slane %v5356, 7
      %v5359 = vshll.u32 %v5278, 16
      %v5361 = vor.u32 %v5358, %v5359
      %v5362 = vrot.slane %v5358, 4
      %v5364 = vshrl.u32 %v5279, 16
      %v5366 = vrot.slane %v5364, 7
      %v5367 = vshll.u32 %v5279, 16
      %v5369 = vor.u32 %v5366, %v5367
      %v5370 = vsel %vm356, %v5362, %v5369
      %v5371 = vrot.slane %v5366, 4
      %v5373 = vshrl.u32 %v5280, 16
      %v5375 = vrot.slane %v5373, 7
      %v5376 = vshll.u32 %v5280, 16
      %v5378 = vor.u32 %v5375, %v5376
      %v5379 = vrot.slane %v5375, 4
      %v5381 = vshrl.u32 %v5281, 16
      %v5383 = vrot.slane %v5381, 7
      %v5384 = vshll.u32 %v5281, 16
      %v5386 = vor.u32 %v5383, %v5384
      %v5387 = vsel %vm356, %v5379, %v5386
      %v5388 = vrot.slane %v5383, 4
      %v5390 = vshrl.u32 %v5282, 16
      %v5392 = vrot.slane %v5390, 7
      %v5393 = vshll.u32 %v5282, 16
      %v5395 = vor.u32 %v5392, %v5393
      %v5396 = vrot.slane %v5392, 4
      %v5398 = vshrl.u32 %v5283, 16
      %v5400 = vrot.slane %v5398, 7
      %v5401 = vshll.u32 %v5283, 16
      %v5403 = vor.u32 %v5400, %v5401
      %v5404 = vsel %vm356, %v5396, %v5403
      %v5405 = vrot.slane %v5400, 4
      %v5407 = vshrl.u32 %v5284, 16
      %v5409 = vrot.slane %v5407, 7
      %v5410 = vshll.u32 %v5284, 16
      %v5412 = vor.u32 %v5409, %v5410
      %v5413 = vrot.slane %v5409, 4
      %v5415 = vshrl.u32 %v5285, 16
      %v5417 = vrot.slane %v5415, 7
      %v5418 = vshll.u32 %v5285, 16
      %v5420 = vor.u32 %v5417, %v5418
      %v5421 = vsel %vm356, %v5413, %v5420
      %v5422 = vrot.slane %v5417, 4
      %v5424 = vshrl.u32 %v5286, 16
      %v5426 = vrot.slane %v5424, 7
      %v5427 = vshll.u32 %v5286, 16
      %v5429 = vor.u32 %v5426, %v5427
      %v5430 = vrot.slane %v5426, 4
      %v5432 = vshrl.u32 %v5287, 16
      %v5434 = vrot.slane %v5432, 7
      %v5435 = vshll.u32 %v5287, 16
      %v5437 = vor.u32 %v5434, %v5435
      %v5438 = vsel %vm356, %v5430, %v5437
      %v5439 = vrot.slane %v5434, 4
      %v5441 = vshrl.u32 %v5288, 16
      %v5443 = vrot.slane %v5441, 7
      %v5444 = vshll.u32 %v5288, 16
      %v5446 = vor.u32 %v5443, %v5444
      %v5447 = vrot.slane %v5443, 4
      %v5449 = vshrl.u32 %v5289, 16
      %v5451 = vrot.slane %v5449, 7
      %v5452 = vshll.u32 %v5289, 16
      %v5454 = vor.u32 %v5451, %v5452
      %v5455 = vsel %vm356, %v5447, %v5454
      %v5456 = vrot.slane %v5451, 4
      %v5458 = vshrl.u32 %v5290, 16
      %v5460 = vrot.slane %v5458, 7
      %v5461 = vshll.u32 %v5290, 16
      %v5463 = vor.u32 %v5460, %v5461
      %v5464 = vrot.slane %v5460, 4
      %v5466 = vshrl.u32 %v5291, 16
      %v5468 = vrot.slane %v5466, 7
      %v5469 = vshll.u32 %v5291, 16
      %v5471 = vor.u32 %v5468, %v5469
      %v5472 = vsel %vm356, %v5464, %v5471
      %v5473 = vrot.slane %v5468, 4
      %v5475 = vshrl.u32 %v5292, 16
      %v5477 = vrot.slane %v5475, 7
      %v5478 = vshll.u32 %v5292, 16
      %v5480 = vor.u32 %v5477, %v5478
      %v5481 = vrot.slane %v5477, 4
      %v5483 = vshrl.u32 %v5293, 16
      %v5485 = vrot.slane %v5483, 7
      %v5486 = vshll.u32 %v5293, 16
      %v5488 = vor.u32 %v5485, %v5486
      %v5489 = vsel %vm356, %v5481, %v5488
      %v5490 = vrot.slane %v5485, 4
      %v5492 = vshrl.u32 %v5294, 16
      %v5494 = vrot.slane %v5492, 7
      %v5495 = vshll.u32 %v5294, 16
      %v5497 = vor.u32 %v5494, %v5495
      %v5498 = vrot.slane %v5494, 4
      %v5500 = vshrl.u32 %v5295, 16
      %v5502 = vrot.slane %v5500, 7
      %v5503 = vshll.u32 %v5295, 16
      %v5505 = vor.u32 %v5502, %v5503
      %v5506 = vsel %vm356, %v5498, %v5505
      %v5507 = vrot.slane %v5502, 4
      %v5509 = vshrl.u32 %v5296, 16
      %v5511 = vrot.slane %v5509, 7
      %v5512 = vshll.u32 %v5296, 16
      %v5514 = vor.u32 %v5511, %v5512
      %v5515 = vrot.slane %v5511, 4
      %v5517 = vshrl.u32 %v5297, 16
      %v5519 = vrot.slane %v5517, 7
      %v5520 = vshll.u32 %v5297, 16
      %v5522 = vor.u32 %v5519, %v5520
      %v5523 = vsel %vm356, %v5515, %v5522
      %v5524 = vrot.slane %v5519, 4
      %v5526 = vshrl.u32 %v5298, 16
      %v5528 = vrot.slane %v5526, 7
      %v5529 = vshll.u32 %v5298, 16
      %v5531 = vor.u32 %v5528, %v5529
      %v5532 = vrot.slane %v5528, 4
      %v5534 = vshrl.u32 %v5299, 16
      %v5536 = vrot.slane %v5534, 7
      %v5537 = vshll.u32 %v5299, 16
      %v5539 = vor.u32 %v5536, %v5537
      %v5540 = vsel %vm356, %v5532, %v5539
      %v5541 = vrot.slane %v5536, 4
      %v5543 = vshrl.u32 %v5300, 16
      %v5545 = vrot.slane %v5543, 7
      %v5546 = vshll.u32 %v5300, 16
      %v5548 = vor.u32 %v5545, %v5546
      %v5549 = vrot.slane %v5545, 4
      %v5551 = vshrl.u32 %v5301, 16
      %v5553 = vrot.slane %v5551, 7
      %v5554 = vshll.u32 %v5301, 16
      %v5556 = vor.u32 %v5553, %v5554
      %v5557 = vsel %vm356, %v5549, %v5556
      %v5558 = vrot.slane %v5553, 4
      %v5560 = vshrl.u32 %v5302, 16
      %v5562 = vrot.slane %v5560, 7
      %v5563 = vshll.u32 %v5302, 16
      %v5565 = vor.u32 %v5562, %v5563
      %v5566 = vrot.slane %v5562, 4
      %v5568 = vshrl.u32 %v5303, 16
      %v5570 = vrot.slane %v5568, 7
      %v5571 = vshll.u32 %v5303, 16
      %v5573 = vor.u32 %v5570, %v5571
      %v5574 = vsel %vm356, %v5566, %v5573
      %v5575 = vrot.slane %v5570, 4
      %s5624 = scalar_lea.vmem [#allocation3], 12
      %v5625 = vld [vmem:[%s5624] sm:$0xf]
      %v5626 = vsel %vm680, %v5310, %v5625
      %5627 = vst [vmem:[%s5624] sm:$0xf] %v5626
      %5628 = vst [vmem:[%s5624 + $0x4] sm:$0xf] %v5319
      %v5629 = vld [vmem:[%s5624 + $0x8] sm:$0x1]
      %v5630 = vsel %vm686, %v5320, %v5629
      %5631 = vst [vmem:[%s5624 + $0x8] sm:$0x1] %v5630
      %v5632 = vld [vmem:[%s5624 + $0xc] sm:$0xf]
      %v5633 = vsel %vm680, %v5327, %v5632
      %5634 = vst [vmem:[%s5624 + $0xc] sm:$0xf] %v5633
      %5635 = vst [vmem:[%s5624 + $0x10] sm:$0xf] %v5336
      %v5636 = vld [vmem:[%s5624 + $0x14] sm:$0x1]
      %v5637 = vsel %vm686, %v5337, %v5636
      %5638 = vst [vmem:[%s5624 + $0x14] sm:$0x1] %v5637
      %v5639 = vld [vmem:[%s5624 + $0x18] sm:$0xf]
      %v5640 = vsel %vm680, %v5344, %v5639
      %5641 = vst [vmem:[%s5624 + $0x18] sm:$0xf] %v5640
      %5642 = vst [vmem:[%s5624 + $0x1c] sm:$0xf] %v5353
      %v5643 = vld [vmem:[%s5624 + $0x20] sm:$0x1]
      %v5644 = vsel %vm686, %v5354, %v5643
      %5645 = vst [vmem:[%s5624 + $0x20] sm:$0x1] %v5644
      %v5646 = vld [vmem:[%s5624 + $0x24] sm:$0xf]
      %v5647 = vsel %vm680, %v5361, %v5646
      %5648 = vst [vmem:[%s5624 + $0x24] sm:$0xf] %v5647
      %5649 = vst [vmem:[%s5624 + $0x28] sm:$0xf] %v5370
      %v5650 = vld [vmem:[%s5624 + $0x2c] sm:$0x1]
      %v5651 = vsel %vm686, %v5371, %v5650
      %5652 = vst [vmem:[%s5624 + $0x2c] sm:$0x1] %v5651
      %v5653 = vld [vmem:[%s5624 + $0x30] sm:$0xf]
      %v5654 = vsel %vm680, %v5378, %v5653
      %5655 = vst [vmem:[%s5624 + $0x30] sm:$0xf] %v5654
      %5656 = vst [vmem:[%s5624 + $0x34] sm:$0xf] %v5387
      %v5657 = vld [vmem:[%s5624 + $0x38] sm:$0x1]
      %v5658 = vsel %vm686, %v5388, %v5657
      %5659 = vst [vmem:[%s5624 + $0x38] sm:$0x1] %v5658
      %v5660 = vld [vmem:[%s5624 + $0x3c] sm:$0xf]
      %v5661 = vsel %vm680, %v5395, %v5660
      %5662 = vst [vmem:[%s5624 + $0x3c] sm:$0xf] %v5661
      %5663 = vst [vmem:[%s5624 + $0x40] sm:$0xf] %v5404
      %v5664 = vld [vmem:[%s5624 + $0x44] sm:$0x1]
      %v5665 = vsel %vm686, %v5405, %v5664
      %5666 = vst [vmem:[%s5624 + $0x44] sm:$0x1] %v5665
      %v5667 = vld [vmem:[%s5624 + $0x48] sm:$0xf]
      %v5668 = vsel %vm680, %v5412, %v5667
      %5669 = vst [vmem:[%s5624 + $0x48] sm:$0xf] %v5668
      %5670 = vst [vmem:[%s5624 + $0x4c] sm:$0xf] %v5421
      %v5671 = vld [vmem:[%s5624 + $0x50] sm:$0x1]
      %v5672 = vsel %vm686, %v5422, %v5671
      %5673 = vst [vmem:[%s5624 + $0x50] sm:$0x1] %v5672
      %v5674 = vld [vmem:[%s5624 + $0x54] sm:$0xf]
      %v5675 = vsel %vm680, %v5429, %v5674
      %5676 = vst [vmem:[%s5624 + $0x54] sm:$0xf] %v5675
      %5677 = vst [vmem:[%s5624 + $0x58] sm:$0xf] %v5438
      %v5678 = vld [vmem:[%s5624 + $0x5c] sm:$0x1]
      %v5679 = vsel %vm686, %v5439, %v5678
      %5680 = vst [vmem:[%s5624 + $0x5c] sm:$0x1] %v5679
      %v5681 = vld [vmem:[%s5624 + $0x60] sm:$0xf]
      %v5682 = vsel %vm680, %v5446, %v5681
      %5683 = vst [vmem:[%s5624 + $0x60] sm:$0xf] %v5682
      %5684 = vst [vmem:[%s5624 + $0x64] sm:$0xf] %v5455
      %v5685 = vld [vmem:[%s5624 + $0x68] sm:$0x1]
      %v5686 = vsel %vm686, %v5456, %v5685
      %5687 = vst [vmem:[%s5624 + $0x68] sm:$0x1] %v5686
      %v5688 = vld [vmem:[%s5624 + $0x6c] sm:$0xf]
      %v5689 = vsel %vm680, %v5463, %v5688
      %5690 = vst [vmem:[%s5624 + $0x6c] sm:$0xf] %v5689
      %5691 = vst [vmem:[%s5624 + $0x70] sm:$0xf] %v5472
      %v5692 = vld [vmem:[%s5624 + $0x74] sm:$0x1]
      %v5693 = vsel %vm686, %v5473, %v5692
      %5694 = vst [vmem:[%s5624 + $0x74] sm:$0x1] %v5693
      %v5695 = vld [vmem:[%s5624 + $0x78] sm:$0xf]
      %v5696 = vsel %vm680, %v5480, %v5695
      %5697 = vst [vmem:[%s5624 + $0x78] sm:$0xf] %v5696
      %5698 = vst [vmem:[%s5624 + $0x7c] sm:$0xf] %v5489
      %v5699 = vld [vmem:[%s5624 + $0x80] sm:$0x1]
      %v5700 = vsel %vm686, %v5490, %v5699
      %5701 = vst [vmem:[%s5624 + $0x80] sm:$0x1] %v5700
      %v5702 = vld [vmem:[%s5624 + $0x84] sm:$0xf]
      %v5703 = vsel %vm680, %v5497, %v5702
      %5704 = vst [vmem:[%s5624 + $0x84] sm:$0xf] %v5703
      %5705 = vst [vmem:[%s5624 + $0x88] sm:$0xf] %v5506
      %v5706 = vld [vmem:[%s5624 + $0x8c] sm:$0x1]
      %v5707 = vsel %vm686, %v5507, %v5706
      %5708 = vst [vmem:[%s5624 + $0x8c] sm:$0x1] %v5707
      %v5709 = vld [vmem:[%s5624 + $0x90] sm:$0xf]
      %v5710 = vsel %vm680, %v5514, %v5709
      %5711 = vst [vmem:[%s5624 + $0x90] sm:$0xf] %v5710
      %5712 = vst [vmem:[%s5624 + $0x94] sm:$0xf] %v5523
      %v5713 = vld [vmem:[%s5624 + $0x98] sm:$0x1]
      %v5714 = vsel %vm686, %v5524, %v5713
      %5715 = vst [vmem:[%s5624 + $0x98] sm:$0x1] %v5714
      %v5716 = vld [vmem:[%s5624 + $0x9c] sm:$0xf]
      %v5717 = vsel %vm680, %v5531, %v5716
      %5718 = vst [vmem:[%s5624 + $0x9c] sm:$0xf] %v5717
      %5719 = vst [vmem:[%s5624 + $0xa0] sm:$0xf] %v5540
      %v5720 = vld [vmem:[%s5624 + $0xa4] sm:$0x1]
      %v5721 = vsel %vm686, %v5541, %v5720
      %5722 = vst [vmem:[%s5624 + $0xa4] sm:$0x1] %v5721
      %v5723 = vld [vmem:[%s5624 + $0xa8] sm:$0xf]
      %v5724 = vsel %vm680, %v5548, %v5723
      %5725 = vst [vmem:[%s5624 + $0xa8] sm:$0xf] %v5724
      %5726 = vst [vmem:[%s5624 + $0xac] sm:$0xf] %v5557
      %v5727 = vld [vmem:[%s5624 + $0xb0] sm:$0x1]
      %v5728 = vsel %vm686, %v5558, %v5727
      %5729 = vst [vmem:[%s5624 + $0xb0] sm:$0x1] %v5728
      %v5730 = vld [vmem:[%s5624 + $0xb4] sm:$0xf]
      %v5731 = vsel %vm680, %v5565, %v5730
      %5732 = vst [vmem:[%s5624 + $0xb4] sm:$0xf] %v5731
      %5733 = vst [vmem:[%s5624 + $0xb8] sm:$0xf] %v5574
      %v5734 = vld [vmem:[%s5624 + $0xbc] sm:$0x1]
      %v5735 = vsel %vm686, %v5575, %v5734
      %5736 = vst [vmem:[%s5624 + $0xbc] sm:$0x1] %v5735
      %s5737 = scalar_lea.vmem [#allocation3], 24
      %v5738 = vld [vmem:[%s5737] sm:$0xf]
      %v5739 = vld [vmem:[%s5737 + $0x4] sm:$0xf]
      %v5740 = vld [vmem:[%s5737 + $0x8] sm:$0x1]
      %v5741 = vld [vmem:[#allocation3] sm:$0xf]
      %v5742 = vsel %vm680, %v5738, %v5741
      %5743 = vst [vmem:[#allocation3] sm:$0xf] %v5742
      %5744 = vst [vmem:[#allocation3 + $0x4] sm:$0xf] %v5739
      %v5745 = vld [vmem:[#allocation3 + $0x8] sm:$0x1]
      %v5746 = vsel %vm686, %v5740, %v5745
      %5747 = vst [vmem:[#allocation3 + $0x8] sm:$0x1] %v5746
      %s5748 = scalar_lea.vmem [#allocation3], 180
      %v5749 = vld [vmem:[%s5748] sm:$0xf]
      %v5750 = vld [vmem:[%s5748 + $0x4] sm:$0xf]
      %v5751 = vld [vmem:[%s5748 + $0x8] sm:$0x1]
      %s5752 = scalar_lea.vmem [#allocation3], 204
      %v5753 = vld [vmem:[%s5752] sm:$0xf]
      %v5754 = vsel %vm680, %v5749, %v5753
      %5755 = vst [vmem:[%s5752] sm:$0xf] %v5754
      %5756 = vst [vmem:[%s5752 + $0x4] sm:$0xf] %v5750
      %v5757 = vld [vmem:[%s5752 + $0x8] sm:$0x1]
      %v5758 = vsel %vm686, %v5751, %v5757
      %5759 = vst [vmem:[%s5752 + $0x8] sm:$0x1] %v5758
      %v5760 = vld [vmem:[#allocation3] sm:$0x2]
      %v5761 = vld [vmem:[#allocation3 + $0xc] sm:$0x2]
      %v5762 = vld [vmem:[#allocation3 + $0x18] sm:$0x2]
      %v5763 = vld [vmem:[#allocation3 + $0x24] sm:$0x2]
      %v5764 = vld [vmem:[#allocation3 + $0x30] sm:$0x2]
      %v5765 = vld [vmem:[#allocation3 + $0x3c] sm:$0x2]
      %v5766 = vld [vmem:[#allocation3 + $0x48] sm:$0x2]
      %v5767 = vld [vmem:[#allocation3 + $0x54] sm:$0x2]
      %v5768 = vld [vmem:[#allocation3 + $0x60] sm:$0x2]
      %v5769 = vld [vmem:[#allocation3 + $0x6c] sm:$0x2]
      %v5770 = vld [vmem:[#allocation3 + $0x78] sm:$0x2]
      %v5771 = vld [vmem:[#allocation3 + $0x84] sm:$0x2]
      %v5772 = vld [vmem:[#allocation3 + $0x90] sm:$0x2]
      %v5773 = vld [vmem:[#allocation3 + $0x9c] sm:$0x2]
      %v5774 = vld [vmem:[#allocation3 + $0xa8] sm:$0x2]
      %v5775 = vld [vmem:[#allocation3 + $0xb4] sm:$0x2]
      %v5776 = vld [vmem:[#allocation3 + $0xc0] sm:$0x2]
      %v5777 = vld [vmem:[#allocation3 + $0xcc] sm:$0x2]
      %v5796 = vrot.slane %v5760, 5
      %v5797 = vrot.slane %v5796, 4
      %v5798 = vrot.slane %v5761, 5
      %v5799 = vrot.slane %v5798, 4
      %v5800 = vrot.slane %v5762, 5
      %v5801 = vrot.slane %v5800, 4
      %v5802 = vrot.slane %v5763, 5
      %v5803 = vrot.slane %v5802, 4
      %v5804 = vrot.slane %v5764, 5
      %v5805 = vrot.slane %v5804, 4
      %v5806 = vrot.slane %v5765, 5
      %v5807 = vrot.slane %v5806, 4
      %v5808 = vrot.slane %v5766, 5
      %v5809 = vrot.slane %v5808, 4
      %v5810 = vrot.slane %v5767, 5
      %v5811 = vrot.slane %v5810, 4
      %v5812 = vrot.slane %v5768, 5
      %v5813 = vrot.slane %v5812, 4
      %v5814 = vrot.slane %v5769, 5
      %v5815 = vrot.slane %v5814, 4
      %v5816 = vrot.slane %v5770, 5
      %v5817 = vrot.slane %v5816, 4
      %v5818 = vrot.slane %v5771, 5
      %v5819 = vrot.slane %v5818, 4
      %v5820 = vrot.slane %v5772, 5
      %v5821 = vrot.slane %v5820, 4
      %v5822 = vrot.slane %v5773, 5
      %v5823 = vrot.slane %v5822, 4
      %v5824 = vrot.slane %v5774, 5
      %v5825 = vrot.slane %v5824, 4
      %v5826 = vrot.slane %v5775, 5
      %v5827 = vrot.slane %v5826, 4
      %v5828 = vrot.slane %v5776, 5
      %v5829 = vrot.slane %v5828, 4
      %v5830 = vrot.slane %v5777, 5
      %v5831 = vrot.slane %v5830, 4
      %v5850 = vld [vmem:[#allocation3] sm:$0x1]
      %v5851 = vsel %vm686, %v5797, %v5850
      %5852 = vst [vmem:[#allocation3] sm:$0x1] %v5851
      %v5853 = vld [vmem:[#allocation3 + $0xc] sm:$0x1]
      %v5854 = vsel %vm686, %v5799, %v5853
      %5855 = vst [vmem:[#allocation3 + $0xc] sm:$0x1] %v5854
      %v5856 = vld [vmem:[#allocation3 + $0x18] sm:$0x1]
      %v5857 = vsel %vm686, %v5801, %v5856
      %5858 = vst [vmem:[#allocation3 + $0x18] sm:$0x1] %v5857
      %v5859 = vld [vmem:[#allocation3 + $0x24] sm:$0x1]
      %v5860 = vsel %vm686, %v5803, %v5859
      %5861 = vst [vmem:[#allocation3 + $0x24] sm:$0x1] %v5860
      %v5862 = vld [vmem:[#allocation3 + $0x30] sm:$0x1]
      %v5863 = vsel %vm686, %v5805, %v5862
      %5864 = vst [vmem:[#allocation3 + $0x30] sm:$0x1] %v5863
      %v5865 = vld [vmem:[#allocation3 + $0x3c] sm:$0x1]
      %v5866 = vsel %vm686, %v5807, %v5865
      %5867 = vst [vmem:[#allocation3 + $0x3c] sm:$0x1] %v5866
      %v5868 = vld [vmem:[#allocation3 + $0x48] sm:$0x1]
      %v5869 = vsel %vm686, %v5809, %v5868
      %5870 = vst [vmem:[#allocation3 + $0x48] sm:$0x1] %v5869
      %v5871 = vld [vmem:[#allocation3 + $0x54] sm:$0x1]
      %v5872 = vsel %vm686, %v5811, %v5871
      %5873 = vst [vmem:[#allocation3 + $0x54] sm:$0x1] %v5872
      %v5874 = vld [vmem:[#allocation3 + $0x60] sm:$0x1]
      %v5875 = vsel %vm686, %v5813, %v5874
      %5876 = vst [vmem:[#allocation3 + $0x60] sm:$0x1] %v5875
      %v5877 = vld [vmem:[#allocation3 + $0x6c] sm:$0x1]
      %v5878 = vsel %vm686, %v5815, %v5877
      %5879 = vst [vmem:[#allocation3 + $0x6c] sm:$0x1] %v5878
      %v5880 = vld [vmem:[#allocation3 + $0x78] sm:$0x1]
      %v5881 = vsel %vm686, %v5817, %v5880
      %5882 = vst [vmem:[#allocation3 + $0x78] sm:$0x1] %v5881
      %v5883 = vld [vmem:[#allocation3 + $0x84] sm:$0x1]
      %v5884 = vsel %vm686, %v5819, %v5883
      %5885 = vst [vmem:[#allocation3 + $0x84] sm:$0x1] %v5884
      %v5886 = vld [vmem:[#allocation3 + $0x90] sm:$0x1]
      %v5887 = vsel %vm686, %v5821, %v5886
      %5888 = vst [vmem:[#allocation3 + $0x90] sm:$0x1] %v5887
      %v5889 = vld [vmem:[#allocation3 + $0x9c] sm:$0x1]
      %v5890 = vsel %vm686, %v5823, %v5889
      %5891 = vst [vmem:[#allocation3 + $0x9c] sm:$0x1] %v5890
      %v5892 = vld [vmem:[#allocation3 + $0xa8] sm:$0x1]
      %v5893 = vsel %vm686, %v5825, %v5892
      %5894 = vst [vmem:[#allocation3 + $0xa8] sm:$0x1] %v5893
      %v5895 = vld [vmem:[#allocation3 + $0xb4] sm:$0x1]
      %v5896 = vsel %vm686, %v5827, %v5895
      %5897 = vst [vmem:[#allocation3 + $0xb4] sm:$0x1] %v5896
      %v5898 = vld [vmem:[#allocation3 + $0xc0] sm:$0x1]
      %v5899 = vsel %vm686, %v5829, %v5898
      %5900 = vst [vmem:[#allocation3 + $0xc0] sm:$0x1] %v5899
      %v5901 = vld [vmem:[#allocation3 + $0xcc] sm:$0x1]
      %v5902 = vsel %vm686, %v5831, %v5901
      %5903 = vst [vmem:[#allocation3 + $0xcc] sm:$0x1] %v5902
      %v5904 = vld [vmem:[#allocation3 + $0x4] sm:$0x8]
      %v5905 = vld [vmem:[#allocation3 + $0x10] sm:$0x8]
      %v5906 = vld [vmem:[#allocation3 + $0x1c] sm:$0x8]
      %v5907 = vld [vmem:[#allocation3 + $0x28] sm:$0x8]
      %v5908 = vld [vmem:[#allocation3 + $0x34] sm:$0x8]
      %v5909 = vld [vmem:[#allocation3 + $0x40] sm:$0x8]
      %v5910 = vld [vmem:[#allocation3 + $0x4c] sm:$0x8]
      %v5911 = vld [vmem:[#allocation3 + $0x58] sm:$0x8]
      %v5912 = vld [vmem:[#allocation3 + $0x64] sm:$0x8]
      %v5913 = vld [vmem:[#allocation3 + $0x70] sm:$0x8]
      %v5914 = vld [vmem:[#allocation3 + $0x7c] sm:$0x8]
      %v5915 = vld [vmem:[#allocation3 + $0x88] sm:$0x8]
      %v5916 = vld [vmem:[#allocation3 + $0x94] sm:$0x8]
      %v5917 = vld [vmem:[#allocation3 + $0xa0] sm:$0x8]
      %v5918 = vld [vmem:[#allocation3 + $0xac] sm:$0x8]
      %v5919 = vld [vmem:[#allocation3 + $0xb8] sm:$0x8]
      %v5920 = vld [vmem:[#allocation3 + $0xc4] sm:$0x8]
      %v5921 = vld [vmem:[#allocation3 + $0xd0] sm:$0x8]
      %v5940 = vrot.slane %v5904, 7
      %v5941 = vrot.slane %v5940, 4
      %v5942 = vrot.slane %v5905, 7
      %v5943 = vrot.slane %v5942, 4
      %v5944 = vrot.slane %v5906, 7
      %v5945 = vrot.slane %v5944, 4
      %v5946 = vrot.slane %v5907, 7
      %v5947 = vrot.slane %v5946, 4
      %v5948 = vrot.slane %v5908, 7
      %v5949 = vrot.slane %v5948, 4
      %v5950 = vrot.slane %v5909, 7
      %v5951 = vrot.slane %v5950, 4
      %v5952 = vrot.slane %v5910, 7
      %v5953 = vrot.slane %v5952, 4
      %v5954 = vrot.slane %v5911, 7
      %v5955 = vrot.slane %v5954, 4
      %v5956 = vrot.slane %v5912, 7
      %v5957 = vrot.slane %v5956, 4
      %v5958 = vrot.slane %v5913, 7
      %v5959 = vrot.slane %v5958, 4
      %v5960 = vrot.slane %v5914, 7
      %v5961 = vrot.slane %v5960, 4
      %v5962 = vrot.slane %v5915, 7
      %v5963 = vrot.slane %v5962, 4
      %v5964 = vrot.slane %v5916, 7
      %v5965 = vrot.slane %v5964, 4
      %v5966 = vrot.slane %v5917, 7
      %v5967 = vrot.slane %v5966, 4
      %v5968 = vrot.slane %v5918, 7
      %v5969 = vrot.slane %v5968, 4
      %v5970 = vrot.slane %v5919, 7
      %v5971 = vrot.slane %v5970, 4
      %v5972 = vrot.slane %v5920, 7
      %v5973 = vrot.slane %v5972, 4
      %v5974 = vrot.slane %v5921, 7
      %v5975 = vrot.slane %v5974, 4
      %v5994 = vld [vmem:[#allocation3 + $0x8] sm:$0x1]
      %v5995 = vsel %vm1052, %v5941, %v5994
      %5996 = vst [vmem:[#allocation3 + $0x8] sm:$0x1] %v5995
      %v5997 = vld [vmem:[#allocation3 + $0x14] sm:$0x1]
      %v5998 = vsel %vm1052, %v5943, %v5997
      %5999 = vst [vmem:[#allocation3 + $0x14] sm:$0x1] %v5998
      %v6000 = vld [vmem:[#allocation3 + $0x20] sm:$0x1]
      %v6001 = vsel %vm1052, %v5945, %v6000
      %6002 = vst [vmem:[#allocation3 + $0x20] sm:$0x1] %v6001
      %v6003 = vld [vmem:[#allocation3 + $0x2c] sm:$0x1]
      %v6004 = vsel %vm1052, %v5947, %v6003
      %6005 = vst [vmem:[#allocation3 + $0x2c] sm:$0x1] %v6004
      %v6006 = vld [vmem:[#allocation3 + $0x38] sm:$0x1]
      %v6007 = vsel %vm1052, %v5949, %v6006
      %6008 = vst [vmem:[#allocation3 + $0x38] sm:$0x1] %v6007
      %v6009 = vld [vmem:[#allocation3 + $0x44] sm:$0x1]
      %v6010 = vsel %vm1052, %v5951, %v6009
      %6011 = vst [vmem:[#allocation3 + $0x44] sm:$0x1] %v6010
      %v6012 = vld [vmem:[#allocation3 + $0x50] sm:$0x1]
      %v6013 = vsel %vm1052, %v5953, %v6012
      %6014 = vst [vmem:[#allocation3 + $0x50] sm:$0x1] %v6013
      %v6015 = vld [vmem:[#allocation3 + $0x5c] sm:$0x1]
      %v6016 = vsel %vm1052, %v5955, %v6015
      %6017 = vst [vmem:[#allocation3 + $0x5c] sm:$0x1] %v6016
      %v6018 = vld [vmem:[#allocation3 + $0x68] sm:$0x1]
      %v6019 = vsel %vm1052, %v5957, %v6018
      %6020 = vst [vmem:[#allocation3 + $0x68] sm:$0x1] %v6019
      %v6021 = vld [vmem:[#allocation3 + $0x74] sm:$0x1]
      %v6022 = vsel %vm1052, %v5959, %v6021
      %6023 = vst [vmem:[#allocation3 + $0x74] sm:$0x1] %v6022
      %v6024 = vld [vmem:[#allocation3 + $0x80] sm:$0x1]
      %v6025 = vsel %vm1052, %v5961, %v6024
      %6026 = vst [vmem:[#allocation3 + $0x80] sm:$0x1] %v6025
      %v6027 = vld [vmem:[#allocation3 + $0x8c] sm:$0x1]
      %v6028 = vsel %vm1052, %v5963, %v6027
      %6029 = vst [vmem:[#allocation3 + $0x8c] sm:$0x1] %v6028
      %v6030 = vld [vmem:[#allocation3 + $0x98] sm:$0x1]
      %v6031 = vsel %vm1052, %v5965, %v6030
      %6032 = vst [vmem:[#allocation3 + $0x98] sm:$0x1] %v6031
      %v6033 = vld [vmem:[#allocation3 + $0xa4] sm:$0x1]
      %v6034 = vsel %vm1052, %v5967, %v6033
      %6035 = vst [vmem:[#allocation3 + $0xa4] sm:$0x1] %v6034
      %v6036 = vld [vmem:[#allocation3 + $0xb0] sm:$0x1]
      %v6037 = vsel %vm1052, %v5969, %v6036
      %6038 = vst [vmem:[#allocation3 + $0xb0] sm:$0x1] %v6037
      %v6039 = vld [vmem:[#allocation3 + $0xbc] sm:$0x1]
      %v6040 = vsel %vm1052, %v5971, %v6039
      %6041 = vst [vmem:[#allocation3 + $0xbc] sm:$0x1] %v6040
      %v6042 = vld [vmem:[#allocation3 + $0xc8] sm:$0x1]
      %v6043 = vsel %vm1052, %v5973, %v6042
      %6044 = vst [vmem:[#allocation3 + $0xc8] sm:$0x1] %v6043
      %v6045 = vld [vmem:[#allocation3 + $0xd4] sm:$0x1]
      %v6046 = vsel %vm1052, %v5975, %v6045
      %6047 = vst [vmem:[#allocation3 + $0xd4] sm:$0x1] %v6046
      %v6048 = vld [vmem:[#allocation3] sm:$0xf]
      %v6049 = vld [vmem:[#allocation3 + $0x4] sm:$0xf]
      %v6050 = vld [vmem:[#allocation3 + $0xc] sm:$0xf]
      %v6051 = vld [vmem:[#allocation3 + $0x10] sm:$0xf]
      %v6052 = vld [vmem:[#allocation3 + $0x18] sm:$0xf]
      %v6053 = vld [vmem:[#allocation3 + $0x1c] sm:$0xf]
      %v6054 = vld [vmem:[#allocation3 + $0x24] sm:$0xf]
      %v6055 = vld [vmem:[#allocation3 + $0x28] sm:$0xf]
      %v6056 = vld [vmem:[#allocation3 + $0x30] sm:$0xf]
      %v6057 = vld [vmem:[#allocation3 + $0x34] sm:$0xf]
      %v6058 = vld [vmem:[#allocation3 + $0x3c] sm:$0xf]
      %v6059 = vld [vmem:[#allocation3 + $0x40] sm:$0xf]
      %v6060 = vld [vmem:[#allocation3 + $0x48] sm:$0xf]
      %v6061 = vld [vmem:[#allocation3 + $0x4c] sm:$0xf]
      %v6062 = vld [vmem:[#allocation3 + $0x54] sm:$0xf]
      %v6063 = vld [vmem:[#allocation3 + $0x58] sm:$0xf]
      %v6064 = vld [vmem:[#allocation3 + $0x60] sm:$0xf]
      %v6065 = vld [vmem:[#allocation3 + $0x64] sm:$0xf]
      %v6066 = vld [vmem:[#allocation3 + $0x6c] sm:$0xf]
      %v6067 = vld [vmem:[#allocation3 + $0x70] sm:$0xf]
      %v6068 = vld [vmem:[#allocation3 + $0x78] sm:$0xf]
      %v6069 = vld [vmem:[#allocation3 + $0x7c] sm:$0xf]
      %v6070 = vld [vmem:[#allocation3 + $0x84] sm:$0xf]
      %v6071 = vld [vmem:[#allocation3 + $0x88] sm:$0xf]
      %v6072 = vld [vmem:[#allocation3 + $0x90] sm:$0xf]
      %v6073 = vld [vmem:[#allocation3 + $0x94] sm:$0xf]
      %v6074 = vld [vmem:[#allocation3 + $0x9c] sm:$0xf]
      %v6075 = vld [vmem:[#allocation3 + $0xa0] sm:$0xf]
      %v6076 = vld [vmem:[#allocation3 + $0xa8] sm:$0xf]
      %v6077 = vld [vmem:[#allocation3 + $0xac] sm:$0xf]
      %v6078 = vld [vmem:[#allocation3 + $0xb4] sm:$0xf]
      %v6079 = vld [vmem:[#allocation3 + $0xb8] sm:$0xf]
      %v6080 = vld [vmem:[#allocation3 + $0x8] sm:$0x1]
      %v6081 = vld [vmem:[#allocation3 + $0x14] sm:$0x1]
      %v6082 = vld [vmem:[#allocation3 + $0x20] sm:$0x1]
      %v6083 = vld [vmem:[#allocation3 + $0x2c] sm:$0x1]
      %v6084 = vld [vmem:[#allocation3 + $0x38] sm:$0x1]
      %v6085 = vld [vmem:[#allocation3 + $0x44] sm:$0x1]
      %v6086 = vld [vmem:[#allocation3 + $0x50] sm:$0x1]
      %v6087 = vld [vmem:[#allocation3 + $0x5c] sm:$0x1]
      %v6088 = vld [vmem:[#allocation3 + $0x68] sm:$0x1]
      %v6089 = vld [vmem:[#allocation3 + $0x74] sm:$0x1]
      %v6090 = vld [vmem:[#allocation3 + $0x80] sm:$0x1]
      %v6091 = vld [vmem:[#allocation3 + $0x8c] sm:$0x1]
      %v6092 = vld [vmem:[#allocation3 + $0x98] sm:$0x1]
      %v6093 = vld [vmem:[#allocation3 + $0xa4] sm:$0x1]
      %v6094 = vld [vmem:[#allocation3 + $0xb0] sm:$0x1]
      %v6095 = vld [vmem:[#allocation3 + $0xbc] sm:$0x1]
      %v6097 = vshrl.u32 %v6048, 16
      %v6099 = vrot.slane %v6097, 4
      %v6100 = vshll.u32 %v6048, 16
      %v6102 = vrot.slane %v6100, 5
      %v6103 = vor.u32 %v6099, %v6102
      %v6104 = vrot.slane %v6103, 4
      %v6106 = vshll.u32 %v6049, 16
      %v6108 = vrot.slane %v6106, 5
      %v6109 = vsel %vm1157, %v6104, %v6108
      %v6110 = vshrl.u32 %v6049, 16
      %v6112 = vrot.slane %v6110, 4
      %v6113 = vor.u32 %v6112, %v6108
      %v6114 = vrot.slane %v6113, 4
      %v6116 = vshll.u32 %v6080, 16
      %v6118 = vrot.slane %v6116, 5
      %v6119 = vsel %vm1157, %v6114, %v6118
      %v6121 = vshrl.u32 %v6050, 16
      %v6123 = vrot.slane %v6121, 4
      %v6124 = vshll.u32 %v6050, 16
      %v6126 = vrot.slane %v6124, 5
      %v6127 = vor.u32 %v6123, %v6126
      %v6128 = vrot.slane %v6127, 4
      %v6130 = vshll.u32 %v6051, 16
      %v6132 = vrot.slane %v6130, 5
      %v6133 = vsel %vm1157, %v6128, %v6132
      %v6134 = vshrl.u32 %v6051, 16
      %v6136 = vrot.slane %v6134, 4
      %v6137 = vor.u32 %v6136, %v6132
      %v6138 = vrot.slane %v6137, 4
      %v6140 = vshll.u32 %v6081, 16
      %v6142 = vrot.slane %v6140, 5
      %v6143 = vsel %vm1157, %v6138, %v6142
      %v6145 = vshrl.u32 %v6052, 16
      %v6147 = vrot.slane %v6145, 4
      %v6148 = vshll.u32 %v6052, 16
      %v6150 = vrot.slane %v6148, 5
      %v6151 = vor.u32 %v6147, %v6150
      %v6152 = vrot.slane %v6151, 4
      %v6154 = vshll.u32 %v6053, 16
      %v6156 = vrot.slane %v6154, 5
      %v6157 = vsel %vm1157, %v6152, %v6156
      %v6158 = vshrl.u32 %v6053, 16
      %v6160 = vrot.slane %v6158, 4
      %v6161 = vor.u32 %v6160, %v6156
      %v6162 = vrot.slane %v6161, 4
      %v6164 = vshll.u32 %v6082, 16
      %v6166 = vrot.slane %v6164, 5
      %v6167 = vsel %vm1157, %v6162, %v6166
      %v6169 = vshrl.u32 %v6054, 16
      %v6171 = vrot.slane %v6169, 4
      %v6172 = vshll.u32 %v6054, 16
      %v6174 = vrot.slane %v6172, 5
      %v6175 = vor.u32 %v6171, %v6174
      %v6176 = vrot.slane %v6175, 4
      %v6178 = vshll.u32 %v6055, 16
      %v6180 = vrot.slane %v6178, 5
      %v6181 = vsel %vm1157, %v6176, %v6180
      %v6182 = vshrl.u32 %v6055, 16
      %v6184 = vrot.slane %v6182, 4
      %v6185 = vor.u32 %v6184, %v6180
      %v6186 = vrot.slane %v6185, 4
      %v6188 = vshll.u32 %v6083, 16
      %v6190 = vrot.slane %v6188, 5
      %v6191 = vsel %vm1157, %v6186, %v6190
      %v6193 = vshrl.u32 %v6056, 16
      %v6195 = vrot.slane %v6193, 4
      %v6196 = vshll.u32 %v6056, 16
      %v6198 = vrot.slane %v6196, 5
      %v6199 = vor.u32 %v6195, %v6198
      %v6200 = vrot.slane %v6199, 4
      %v6202 = vshll.u32 %v6057, 16
      %v6204 = vrot.slane %v6202, 5
      %v6205 = vsel %vm1157, %v6200, %v6204
      %v6206 = vshrl.u32 %v6057, 16
      %v6208 = vrot.slane %v6206, 4
      %v6209 = vor.u32 %v6208, %v6204
      %v6210 = vrot.slane %v6209, 4
      %v6212 = vshll.u32 %v6084, 16
      %v6214 = vrot.slane %v6212, 5
      %v6215 = vsel %vm1157, %v6210, %v6214
      %v6217 = vshrl.u32 %v6058, 16
      %v6219 = vrot.slane %v6217, 4
      %v6220 = vshll.u32 %v6058, 16
      %v6222 = vrot.slane %v6220, 5
      %v6223 = vor.u32 %v6219, %v6222
      %v6224 = vrot.slane %v6223, 4
      %v6226 = vshll.u32 %v6059, 16
      %v6228 = vrot.slane %v6226, 5
      %v6229 = vsel %vm1157, %v6224, %v6228
      %v6230 = vshrl.u32 %v6059, 16
      %v6232 = vrot.slane %v6230, 4
      %v6233 = vor.u32 %v6232, %v6228
      %v6234 = vrot.slane %v6233, 4
      %v6236 = vshll.u32 %v6085, 16
      %v6238 = vrot.slane %v6236, 5
      %v6239 = vsel %vm1157, %v6234, %v6238
      %v6241 = vshrl.u32 %v6060, 16
      %v6243 = vrot.slane %v6241, 4
      %v6244 = vshll.u32 %v6060, 16
      %v6246 = vrot.slane %v6244, 5
      %v6247 = vor.u32 %v6243, %v6246
      %v6248 = vrot.slane %v6247, 4
      %v6250 = vshll.u32 %v6061, 16
      %v6252 = vrot.slane %v6250, 5
      %v6253 = vsel %vm1157, %v6248, %v6252
      %v6254 = vshrl.u32 %v6061, 16
      %v6256 = vrot.slane %v6254, 4
      %v6257 = vor.u32 %v6256, %v6252
      %v6258 = vrot.slane %v6257, 4
      %v6260 = vshll.u32 %v6086, 16
      %v6262 = vrot.slane %v6260, 5
      %v6263 = vsel %vm1157, %v6258, %v6262
      %v6265 = vshrl.u32 %v6062, 16
      %v6267 = vrot.slane %v6265, 4
      %v6268 = vshll.u32 %v6062, 16
      %v6270 = vrot.slane %v6268, 5
      %v6271 = vor.u32 %v6267, %v6270
      %v6272 = vrot.slane %v6271, 4
      %v6274 = vshll.u32 %v6063, 16
      %v6276 = vrot.slane %v6274, 5
      %v6277 = vsel %vm1157, %v6272, %v6276
      %v6278 = vshrl.u32 %v6063, 16
      %v6280 = vrot.slane %v6278, 4
      %v6281 = vor.u32 %v6280, %v6276
      %v6282 = vrot.slane %v6281, 4
      %v6284 = vshll.u32 %v6087, 16
      %v6286 = vrot.slane %v6284, 5
      %v6287 = vsel %vm1157, %v6282, %v6286
      %v6289 = vshrl.u32 %v6064, 16
      %v6291 = vrot.slane %v6289, 4
      %v6292 = vshll.u32 %v6064, 16
      %v6294 = vrot.slane %v6292, 5
      %v6295 = vor.u32 %v6291, %v6294
      %v6296 = vrot.slane %v6295, 4
      %v6298 = vshll.u32 %v6065, 16
      %v6300 = vrot.slane %v6298, 5
      %v6301 = vsel %vm1157, %v6296, %v6300
      %v6302 = vshrl.u32 %v6065, 16
      %v6304 = vrot.slane %v6302, 4
      %v6305 = vor.u32 %v6304, %v6300
      %v6306 = vrot.slane %v6305, 4
      %v6308 = vshll.u32 %v6088, 16
      %v6310 = vrot.slane %v6308, 5
      %v6311 = vsel %vm1157, %v6306, %v6310
      %v6313 = vshrl.u32 %v6066, 16
      %v6315 = vrot.slane %v6313, 4
      %v6316 = vshll.u32 %v6066, 16
      %v6318 = vrot.slane %v6316, 5
      %v6319 = vor.u32 %v6315, %v6318
      %v6320 = vrot.slane %v6319, 4
      %v6322 = vshll.u32 %v6067, 16
      %v6324 = vrot.slane %v6322, 5
      %v6325 = vsel %vm1157, %v6320, %v6324
      %v6326 = vshrl.u32 %v6067, 16
      %v6328 = vrot.slane %v6326, 4
      %v6329 = vor.u32 %v6328, %v6324
      %v6330 = vrot.slane %v6329, 4
      %v6332 = vshll.u32 %v6089, 16
      %v6334 = vrot.slane %v6332, 5
      %v6335 = vsel %vm1157, %v6330, %v6334
      %v6337 = vshrl.u32 %v6068, 16
      %v6339 = vrot.slane %v6337, 4
      %v6340 = vshll.u32 %v6068, 16
      %v6342 = vrot.slane %v6340, 5
      %v6343 = vor.u32 %v6339, %v6342
      %v6344 = vrot.slane %v6343, 4
      %v6346 = vshll.u32 %v6069, 16
      %v6348 = vrot.slane %v6346, 5
      %v6349 = vsel %vm1157, %v6344, %v6348
      %v6350 = vshrl.u32 %v6069, 16
      %v6352 = vrot.slane %v6350, 4
      %v6353 = vor.u32 %v6352, %v6348
      %v6354 = vrot.slane %v6353, 4
      %v6356 = vshll.u32 %v6090, 16
      %v6358 = vrot.slane %v6356, 5
      %v6359 = vsel %vm1157, %v6354, %v6358
      %v6361 = vshrl.u32 %v6070, 16
      %v6363 = vrot.slane %v6361, 4
      %v6364 = vshll.u32 %v6070, 16
      %v6366 = vrot.slane %v6364, 5
      %v6367 = vor.u32 %v6363, %v6366
      %v6368 = vrot.slane %v6367, 4
      %v6370 = vshll.u32 %v6071, 16
      %v6372 = vrot.slane %v6370, 5
      %v6373 = vsel %vm1157, %v6368, %v6372
      %v6374 = vshrl.u32 %v6071, 16
      %v6376 = vrot.slane %v6374, 4
      %v6377 = vor.u32 %v6376, %v6372
      %v6378 = vrot.slane %v6377, 4
      %v6380 = vshll.u32 %v6091, 16
      %v6382 = vrot.slane %v6380, 5
      %v6383 = vsel %vm1157, %v6378, %v6382
      %v6385 = vshrl.u32 %v6072, 16
      %v6387 = vrot.slane %v6385, 4
      %v6388 = vshll.u32 %v6072, 16
      %v6390 = vrot.slane %v6388, 5
      %v6391 = vor.u32 %v6387, %v6390
      %v6392 = vrot.slane %v6391, 4
      %v6394 = vshll.u32 %v6073, 16
      %v6396 = vrot.slane %v6394, 5
      %v6397 = vsel %vm1157, %v6392, %v6396
      %v6398 = vshrl.u32 %v6073, 16
      %v6400 = vrot.slane %v6398, 4
      %v6401 = vor.u32 %v6400, %v6396
      %v6402 = vrot.slane %v6401, 4
      %v6404 = vshll.u32 %v6092, 16
      %v6406 = vrot.slane %v6404, 5
      %v6407 = vsel %vm1157, %v6402, %v6406
      %v6409 = vshrl.u32 %v6074, 16
      %v6411 = vrot.slane %v6409, 4
      %v6412 = vshll.u32 %v6074, 16
      %v6414 = vrot.slane %v6412, 5
      %v6415 = vor.u32 %v6411, %v6414
      %v6416 = vrot.slane %v6415, 4
      %v6418 = vshll.u32 %v6075, 16
      %v6420 = vrot.slane %v6418, 5
      %v6421 = vsel %vm1157, %v6416, %v6420
      %v6422 = vshrl.u32 %v6075, 16
      %v6424 = vrot.slane %v6422, 4
      %v6425 = vor.u32 %v6424, %v6420
      %v6426 = vrot.slane %v6425, 4
      %v6428 = vshll.u32 %v6093, 16
      %v6430 = vrot.slane %v6428, 5
      %v6431 = vsel %vm1157, %v6426, %v6430
      %v6433 = vshrl.u32 %v6076, 16
      %v6435 = vrot.slane %v6433, 4
      %v6436 = vshll.u32 %v6076, 16
      %v6438 = vrot.slane %v6436, 5
      %v6439 = vor.u32 %v6435, %v6438
      %v6440 = vrot.slane %v6439, 4
      %v6442 = vshll.u32 %v6077, 16
      %v6444 = vrot.slane %v6442, 5
      %v6445 = vsel %vm1157, %v6440, %v6444
      %v6446 = vshrl.u32 %v6077, 16
      %v6448 = vrot.slane %v6446, 4
      %v6449 = vor.u32 %v6448, %v6444
      %v6450 = vrot.slane %v6449, 4
      %v6452 = vshll.u32 %v6094, 16
      %v6454 = vrot.slane %v6452, 5
      %v6455 = vsel %vm1157, %v6450, %v6454
      %v6457 = vshrl.u32 %v6078, 16
      %v6459 = vrot.slane %v6457, 4
      %v6460 = vshll.u32 %v6078, 16
      %v6462 = vrot.slane %v6460, 5
      %v6463 = vor.u32 %v6459, %v6462
      %v6464 = vrot.slane %v6463, 4
      %v6466 = vshll.u32 %v6079, 16
      %v6468 = vrot.slane %v6466, 5
      %v6469 = vsel %vm1157, %v6464, %v6468
      %v6470 = vshrl.u32 %v6079, 16
      %v6472 = vrot.slane %v6470, 4
      %v6473 = vor.u32 %v6472, %v6468
      %v6474 = vrot.slane %v6473, 4
      %v6476 = vshll.u32 %v6095, 16
      %v6478 = vrot.slane %v6476, 5
      %v6479 = vsel %vm1157, %v6474, %v6478
      %v6480 = vld [vmem:[#allocation3] sm:$0xe]
      %v6481 = vld [vmem:[#allocation3 + $0xc] sm:$0xe]
      %v6482 = vld [vmem:[#allocation3 + $0x18] sm:$0xe]
      %v6483 = vld [vmem:[#allocation3 + $0x24] sm:$0xe]
      %v6484 = vld [vmem:[#allocation3 + $0x30] sm:$0xe]
      %v6485 = vld [vmem:[#allocation3 + $0x3c] sm:$0xe]
      %v6486 = vld [vmem:[#allocation3 + $0x48] sm:$0xe]
      %v6487 = vld [vmem:[#allocation3 + $0x54] sm:$0xe]
      %v6488 = vld [vmem:[#allocation3 + $0x60] sm:$0xe]
      %v6489 = vld [vmem:[#allocation3 + $0x6c] sm:$0xe]
      %v6490 = vld [vmem:[#allocation3 + $0x78] sm:$0xe]
      %v6491 = vld [vmem:[#allocation3 + $0x84] sm:$0xe]
      %v6492 = vld [vmem:[#allocation3 + $0x90] sm:$0xe]
      %v6493 = vld [vmem:[#allocation3 + $0x9c] sm:$0xe]
      %v6494 = vld [vmem:[#allocation3 + $0xa8] sm:$0xe]
      %v6495 = vld [vmem:[#allocation3 + $0xb4] sm:$0xe]
      %v6544 = vrot.slane %v6480, 5
      %v6545 = vrot.slane %v6544, 4
      %v6546 = vrot.slane %v6049, 5
      %v6547 = vsel %vm1608, %v6545, %v6546
      %v6548 = vrot.slane %v6546, 4
      %v6549 = vrot.slane %v6080, 5
      %v6550 = vsel %vm1608, %v6548, %v6549
      %v6551 = vrot.slane %v6481, 5
      %v6552 = vrot.slane %v6551, 4
      %v6553 = vrot.slane %v6051, 5
      %v6554 = vsel %vm1608, %v6552, %v6553
      %v6555 = vrot.slane %v6553, 4
      %v6556 = vrot.slane %v6081, 5
      %v6557 = vsel %vm1608, %v6555, %v6556
      %v6558 = vrot.slane %v6482, 5
      %v6559 = vrot.slane %v6558, 4
      %v6560 = vrot.slane %v6053, 5
      %v6561 = vsel %vm1608, %v6559, %v6560
      %v6562 = vrot.slane %v6560, 4
      %v6563 = vrot.slane %v6082, 5
      %v6564 = vsel %vm1608, %v6562, %v6563
      %v6565 = vrot.slane %v6483, 5
      %v6566 = vrot.slane %v6565, 4
      %v6567 = vrot.slane %v6055, 5
      %v6568 = vsel %vm1608, %v6566, %v6567
      %v6569 = vrot.slane %v6567, 4
      %v6570 = vrot.slane %v6083, 5
      %v6571 = vsel %vm1608, %v6569, %v6570
      %v6572 = vrot.slane %v6484, 5
      %v6573 = vrot.slane %v6572, 4
      %v6574 = vrot.slane %v6057, 5
      %v6575 = vsel %vm1608, %v6573, %v6574
      %v6576 = vrot.slane %v6574, 4
      %v6577 = vrot.slane %v6084, 5
      %v6578 = vsel %vm1608, %v6576, %v6577
      %v6579 = vrot.slane %v6485, 5
      %v6580 = vrot.slane %v6579, 4
      %v6581 = vrot.slane %v6059, 5
      %v6582 = vsel %vm1608, %v6580, %v6581
      %v6583 = vrot.slane %v6581, 4
      %v6584 = vrot.slane %v6085, 5
      %v6585 = vsel %vm1608, %v6583, %v6584
      %v6586 = vrot.slane %v6486, 5
      %v6587 = vrot.slane %v6586, 4
      %v6588 = vrot.slane %v6061, 5
      %v6589 = vsel %vm1608, %v6587, %v6588
      %v6590 = vrot.slane %v6588, 4
      %v6591 = vrot.slane %v6086, 5
      %v6592 = vsel %vm1608, %v6590, %v6591
      %v6593 = vrot.slane %v6487, 5
      %v6594 = vrot.slane %v6593, 4
      %v6595 = vrot.slane %v6063, 5
      %v6596 = vsel %vm1608, %v6594, %v6595
      %v6597 = vrot.slane %v6595, 4
      %v6598 = vrot.slane %v6087, 5
      %v6599 = vsel %vm1608, %v6597, %v6598
      %v6600 = vrot.slane %v6488, 5
      %v6601 = vrot.slane %v6600, 4
      %v6602 = vrot.slane %v6065, 5
      %v6603 = vsel %vm1608, %v6601, %v6602
      %v6604 = vrot.slane %v6602, 4
      %v6605 = vrot.slane %v6088, 5
      %v6606 = vsel %vm1608, %v6604, %v6605
      %v6607 = vrot.slane %v6489, 5
      %v6608 = vrot.slane %v6607, 4
      %v6609 = vrot.slane %v6067, 5
      %v6610 = vsel %vm1608, %v6608, %v6609
      %v6611 = vrot.slane %v6609, 4
      %v6612 = vrot.slane %v6089, 5
      %v6613 = vsel %vm1608, %v6611, %v6612
      %v6614 = vrot.slane %v6490, 5
      %v6615 = vrot.slane %v6614, 4
      %v6616 = vrot.slane %v6069, 5
      %v6617 = vsel %vm1608, %v6615, %v6616
      %v6618 = vrot.slane %v6616, 4
      %v6619 = vrot.slane %v6090, 5
      %v6620 = vsel %vm1608, %v6618, %v6619
      %v6621 = vrot.slane %v6491, 5
      %v6622 = vrot.slane %v6621, 4
      %v6623 = vrot.slane %v6071, 5
      %v6624 = vsel %vm1608, %v6622, %v6623
      %v6625 = vrot.slane %v6623, 4
      %v6626 = vrot.slane %v6091, 5
      %v6627 = vsel %vm1608, %v6625, %v6626
      %v6628 = vrot.slane %v6492, 5
      %v6629 = vrot.slane %v6628, 4
      %v6630 = vrot.slane %v6073, 5
      %v6631 = vsel %vm1608, %v6629, %v6630
      %v6632 = vrot.slane %v6630, 4
      %v6633 = vrot.slane %v6092, 5
      %v6634 = vsel %vm1608, %v6632, %v6633
      %v6635 = vrot.slane %v6493, 5
      %v6636 = vrot.slane %v6635, 4
      %v6637 = vrot.slane %v6075, 5
      %v6638 = vsel %vm1608, %v6636, %v6637
      %v6639 = vrot.slane %v6637, 4
      %v6640 = vrot.slane %v6093, 5
      %v6641 = vsel %vm1608, %v6639, %v6640
      %v6642 = vrot.slane %v6494, 5
      %v6643 = vrot.slane %v6642, 4
      %v6644 = vrot.slane %v6077, 5
      %v6645 = vsel %vm1608, %v6643, %v6644
      %v6646 = vrot.slane %v6644, 4
      %v6647 = vrot.slane %v6094, 5
      %v6648 = vsel %vm1608, %v6646, %v6647
      %v6649 = vrot.slane %v6495, 5
      %v6650 = vrot.slane %v6649, 4
      %v6651 = vrot.slane %v6079, 5
      %v6652 = vsel %vm1608, %v6650, %v6651
      %v6653 = vrot.slane %v6651, 4
      %v6654 = vrot.slane %v6095, 5
      %v6655 = vsel %vm1608, %v6653, %v6654
      %v6672 = vunpack.c.l.b16 %v6048
      %v6673 = vunpack.c.l.b16 %v6049
      %v6674 = vunpack.c.l.b16 %v6050
      %v6675 = vunpack.c.l.b16 %v6051
      %v6676 = vunpack.c.l.b16 %v6052
      %v6677 = vunpack.c.l.b16 %v6053
      %v6678 = vunpack.c.l.b16 %v6054
      %v6679 = vunpack.c.l.b16 %v6055
      %v6680 = vunpack.c.l.b16 %v6056
      %v6681 = vunpack.c.l.b16 %v6057
      %v6682 = vunpack.c.l.b16 %v6058
      %v6683 = vunpack.c.l.b16 %v6059
      %v6684 = vunpack.c.l.b16 %v6060
      %v6685 = vunpack.c.l.b16 %v6061
      %v6686 = vunpack.c.l.b16 %v6062
      %v6687 = vunpack.c.l.b16 %v6063
      %v6688 = vunpack.c.l.b16 %v6064
      %v6689 = vunpack.c.l.b16 %v6065
      %v6690 = vunpack.c.l.b16 %v6066
      %v6691 = vunpack.c.l.b16 %v6067
      %v6692 = vunpack.c.l.b16 %v6068
      %v6693 = vunpack.c.l.b16 %v6069
      %v6694 = vunpack.c.l.b16 %v6070
      %v6695 = vunpack.c.l.b16 %v6071
      %v6696 = vunpack.c.l.b16 %v6072
      %v6697 = vunpack.c.l.b16 %v6073
      %v6698 = vunpack.c.l.b16 %v6074
      %v6699 = vunpack.c.l.b16 %v6075
      %v6700 = vunpack.c.l.b16 %v6076
      %v6701 = vunpack.c.l.b16 %v6077
      %v6702 = vunpack.c.l.b16 %v6078
      %v6703 = vunpack.c.l.b16 %v6079
      %v6704 = vpack.c.b16 %v6673, %v6672
      %v6705 = vpack.c.b16 %v6675, %v6674
      %v6706 = vpack.c.b16 %v6677, %v6676
      %v6707 = vpack.c.b16 %v6679, %v6678
      %v6708 = vpack.c.b16 %v6681, %v6680
      %v6709 = vpack.c.b16 %v6683, %v6682
      %v6710 = vpack.c.b16 %v6685, %v6684
      %v6711 = vpack.c.b16 %v6687, %v6686
      %v6712 = vpack.c.b16 %v6689, %v6688
      %v6713 = vpack.c.b16 %v6691, %v6690
      %v6714 = vpack.c.b16 %v6693, %v6692
      %v6715 = vpack.c.b16 %v6695, %v6694
      %v6716 = vpack.c.b16 %v6697, %v6696
      %v6717 = vpack.c.b16 %v6699, %v6698
      %v6718 = vpack.c.b16 %v6701, %v6700
      %v6719 = vpack.c.b16 %v6703, %v6702
      %v6736 = vunpack.c.l.b16 %v6109
      %v6737 = vunpack.c.l.b16 %v6119
      %v6738 = vunpack.c.l.b16 %v6133
      %v6739 = vunpack.c.l.b16 %v6143
      %v6740 = vunpack.c.l.b16 %v6157
      %v6741 = vunpack.c.l.b16 %v6167
      %v6742 = vunpack.c.l.b16 %v6181
      %v6743 = vunpack.c.l.b16 %v6191
      %v6744 = vunpack.c.l.b16 %v6205
      %v6745 = vunpack.c.l.b16 %v6215
      %v6746 = vunpack.c.l.b16 %v6229
      %v6747 = vunpack.c.l.b16 %v6239
      %v6748 = vunpack.c.l.b16 %v6253
      %v6749 = vunpack.c.l.b16 %v6263
      %v6750 = vunpack.c.l.b16 %v6277
      %v6751 = vunpack.c.l.b16 %v6287
      %v6752 = vunpack.c.l.b16 %v6301
      %v6753 = vunpack.c.l.b16 %v6311
      %v6754 = vunpack.c.l.b16 %v6325
      %v6755 = vunpack.c.l.b16 %v6335
      %v6756 = vunpack.c.l.b16 %v6349
      %v6757 = vunpack.c.l.b16 %v6359
      %v6758 = vunpack.c.l.b16 %v6373
      %v6759 = vunpack.c.l.b16 %v6383
      %v6760 = vunpack.c.l.b16 %v6397
      %v6761 = vunpack.c.l.b16 %v6407
      %v6762 = vunpack.c.l.b16 %v6421
      %v6763 = vunpack.c.l.b16 %v6431
      %v6764 = vunpack.c.l.b16 %v6445
      %v6765 = vunpack.c.l.b16 %v6455
      %v6766 = vunpack.c.l.b16 %v6469
      %v6767 = vunpack.c.l.b16 %v6479
      %v6768 = vpack.c.b16 %v6737, %v6736
      %v6769 = vpack.c.b16 %v6739, %v6738
      %v6770 = vpack.c.b16 %v6741, %v6740
      %v6771 = vpack.c.b16 %v6743, %v6742
      %v6772 = vpack.c.b16 %v6745, %v6744
      %v6773 = vpack.c.b16 %v6747, %v6746
      %v6774 = vpack.c.b16 %v6749, %v6748
      %v6775 = vpack.c.b16 %v6751, %v6750
      %v6776 = vpack.c.b16 %v6753, %v6752
      %v6777 = vpack.c.b16 %v6755, %v6754
      %v6778 = vpack.c.b16 %v6757, %v6756
      %v6779 = vpack.c.b16 %v6759, %v6758
      %v6780 = vpack.c.b16 %v6761, %v6760
      %v6781 = vpack.c.b16 %v6763, %v6762
      %v6782 = vpack.c.b16 %v6765, %v6764
      %v6783 = vpack.c.b16 %v6767, %v6766
      %v6800 = vunpack.c.l.b16 %v6547
      %v6801 = vunpack.c.l.b16 %v6550
      %v6802 = vunpack.c.l.b16 %v6554
      %v6803 = vunpack.c.l.b16 %v6557
      %v6804 = vunpack.c.l.b16 %v6561
      %v6805 = vunpack.c.l.b16 %v6564
      %v6806 = vunpack.c.l.b16 %v6568
      %v6807 = vunpack.c.l.b16 %v6571
      %v6808 = vunpack.c.l.b16 %v6575
      %v6809 = vunpack.c.l.b16 %v6578
      %v6810 = vunpack.c.l.b16 %v6582
      %v6811 = vunpack.c.l.b16 %v6585
      %v6812 = vunpack.c.l.b16 %v6589
      %v6813 = vunpack.c.l.b16 %v6592
      %v6814 = vunpack.c.l.b16 %v6596
      %v6815 = vunpack.c.l.b16 %v6599
      %v6816 = vunpack.c.l.b16 %v6603
      %v6817 = vunpack.c.l.b16 %v6606
      %v6818 = vunpack.c.l.b16 %v6610
      %v6819 = vunpack.c.l.b16 %v6613
      %v6820 = vunpack.c.l.b16 %v6617
      %v6821 = vunpack.c.l.b16 %v6620
      %v6822 = vunpack.c.l.b16 %v6624
      %v6823 = vunpack.c.l.b16 %v6627
      %v6824 = vunpack.c.l.b16 %v6631
      %v6825 = vunpack.c.l.b16 %v6634
      %v6826 = vunpack.c.l.b16 %v6638
      %v6827 = vunpack.c.l.b16 %v6641
      %v6828 = vunpack.c.l.b16 %v6645
      %v6829 = vunpack.c.l.b16 %v6648
      %v6830 = vunpack.c.l.b16 %v6652
      %v6831 = vunpack.c.l.b16 %v6655
      %v6832 = vpack.c.b16 %v6801, %v6800
      %v6833 = vpack.c.b16 %v6803, %v6802
      %v6834 = vpack.c.b16 %v6805, %v6804
      %v6835 = vpack.c.b16 %v6807, %v6806
      %v6836 = vpack.c.b16 %v6809, %v6808
      %v6837 = vpack.c.b16 %v6811, %v6810
      %v6838 = vpack.c.b16 %v6813, %v6812
      %v6839 = vpack.c.b16 %v6815, %v6814
      %v6840 = vpack.c.b16 %v6817, %v6816
      %v6841 = vpack.c.b16 %v6819, %v6818
      %v6842 = vpack.c.b16 %v6821, %v6820
      %v6843 = vpack.c.b16 %v6823, %v6822
      %v6844 = vpack.c.b16 %v6825, %v6824
      %v6845 = vpack.c.b16 %v6827, %v6826
      %v6846 = vpack.c.b16 %v6829, %v6828
      %v6847 = vpack.c.b16 %v6831, %v6830
      %v6864 = vld [vmem:[%s3] sm:$0xf]
      %v6865 = vld [vmem:[%s3 + $0x4] sm:$0xf]
      %v6866 = vld [vmem:[%s3 + $0x8] sm:$0xf]
      %v6867 = vld [vmem:[%s3 + $0xc] sm:$0xf]
      %v6868 = vld [vmem:[%s3 + $0x10] sm:$0xf]
      %v6869 = vld [vmem:[%s3 + $0x14] sm:$0xf]
      %v6870 = vld [vmem:[%s3 + $0x18] sm:$0xf]
      %v6871 = vld [vmem:[%s3 + $0x1c] sm:$0xf]
      %v6872 = vld [vmem:[%s3 + $0x20] sm:$0xf]
      %v6873 = vld [vmem:[%s3 + $0x24] sm:$0xf]
      %v6874 = vld [vmem:[%s3 + $0x28] sm:$0xf]
      %v6875 = vld [vmem:[%s3 + $0x2c] sm:$0xf]
      %v6876 = vld [vmem:[%s3 + $0x30] sm:$0xf]
      %v6877 = vld [vmem:[%s3 + $0x34] sm:$0xf]
      %v6878 = vld [vmem:[%s3 + $0x38] sm:$0xf]
      %v6879 = vld [vmem:[%s3 + $0x3c] sm:$0xf]
      %v6880 = vld [vmem:[%s3 + $0x40] sm:$0xf]
      %v6881 = vld [vmem:[%s3 + $0x44] sm:$0xf]
      %v6882 = vld [vmem:[%s3 + $0x48] sm:$0xf]
      %v6883 = vld [vmem:[%s3 + $0x4c] sm:$0xf]
      %v6884 = vld [vmem:[%s3 + $0x50] sm:$0xf]
      %v6885 = vld [vmem:[%s3 + $0x54] sm:$0xf]
      %v6886 = vld [vmem:[%s3 + $0x58] sm:$0xf]
      %v6887 = vld [vmem:[%s3 + $0x5c] sm:$0xf]
      %v6888 = vld [vmem:[%s3 + $0x60] sm:$0xf]
      %v6889 = vld [vmem:[%s3 + $0x64] sm:$0xf]
      %v6890 = vld [vmem:[%s3 + $0x68] sm:$0xf]
      %v6891 = vld [vmem:[%s3 + $0x6c] sm:$0xf]
      %v6892 = vld [vmem:[%s3 + $0x70] sm:$0xf]
      %v6893 = vld [vmem:[%s3 + $0x74] sm:$0xf]
      %v6894 = vld [vmem:[%s3 + $0x78] sm:$0xf]
      %v6895 = vld [vmem:[%s3 + $0x7c] sm:$0xf]
      %v6896 = vld [vmem:[%s3 + $0x80] sm:$0xf]
      %v6897 = vld [vmem:[%s3 + $0x84] sm:$0xf]
      %v6898 = vld [vmem:[%s3 + $0x88] sm:$0xf]
      %v6899 = vld [vmem:[%s3 + $0x8c] sm:$0xf]
      %v6900 = vld [vmem:[%s3 + $0x90] sm:$0xf]
      %v6901 = vld [vmem:[%s3 + $0x94] sm:$0xf]
      %v6902 = vld [vmem:[%s3 + $0x98] sm:$0xf]
      %v6903 = vld [vmem:[%s3 + $0x9c] sm:$0xf]
      %v6904 = vld [vmem:[%s3 + $0xa0] sm:$0xf]
      %v6905 = vld [vmem:[%s3 + $0xa4] sm:$0xf]
      %v6906 = vld [vmem:[%s3 + $0xa8] sm:$0xf]
      %v6907 = vld [vmem:[%s3 + $0xac] sm:$0xf]
      %v6908 = vld [vmem:[%s3 + $0xb0] sm:$0xf]
      %v6909 = vld [vmem:[%s3 + $0xb4] sm:$0xf]
      %v6910 = vld [vmem:[%s3 + $0xb8] sm:$0xf]
      %v6911 = vld [vmem:[%s3 + $0xbc] sm:$0xf]
      %v6912 = vld [vmem:[%s5624] sm:$0xf]
      %v6913 = vld [vmem:[%s5624 + $0x4] sm:$0xf]
      %v6914 = vld [vmem:[%s5624 + $0xc] sm:$0xf]
      %v6915 = vld [vmem:[%s5624 + $0x10] sm:$0xf]
      %v6916 = vld [vmem:[%s5624 + $0x18] sm:$0xf]
      %v6917 = vld [vmem:[%s5624 + $0x1c] sm:$0xf]
      %v6918 = vld [vmem:[%s5624 + $0x24] sm:$0xf]
      %v6919 = vld [vmem:[%s5624 + $0x28] sm:$0xf]
      %v6920 = vld [vmem:[%s5624 + $0x30] sm:$0xf]
      %v6921 = vld [vmem:[%s5624 + $0x34] sm:$0xf]
      %v6922 = vld [vmem:[%s5624 + $0x3c] sm:$0xf]
      %v6923 = vld [vmem:[%s5624 + $0x40] sm:$0xf]
      %v6924 = vld [vmem:[%s5624 + $0x48] sm:$0xf]
      %v6925 = vld [vmem:[%s5624 + $0x4c] sm:$0xf]
      %v6926 = vld [vmem:[%s5624 + $0x54] sm:$0xf]
      %v6927 = vld [vmem:[%s5624 + $0x58] sm:$0xf]
      %v6928 = vld [vmem:[%s5624 + $0x60] sm:$0xf]
      %v6929 = vld [vmem:[%s5624 + $0x64] sm:$0xf]
      %v6930 = vld [vmem:[%s5624 + $0x6c] sm:$0xf]
      %v6931 = vld [vmem:[%s5624 + $0x70] sm:$0xf]
      %v6932 = vld [vmem:[%s5624 + $0x78] sm:$0xf]
      %v6933 = vld [vmem:[%s5624 + $0x7c] sm:$0xf]
      %v6934 = vld [vmem:[%s5624 + $0x84] sm:$0xf]
      %v6935 = vld [vmem:[%s5624 + $0x88] sm:$0xf]
      %v6936 = vld [vmem:[%s5624 + $0x90] sm:$0xf]
      %v6937 = vld [vmem:[%s5624 + $0x94] sm:$0xf]
      %v6938 = vld [vmem:[%s5624 + $0x9c] sm:$0xf]
      %v6939 = vld [vmem:[%s5624 + $0xa0] sm:$0xf]
      %v6940 = vld [vmem:[%s5624 + $0xa8] sm:$0xf]
      %v6941 = vld [vmem:[%s5624 + $0xac] sm:$0xf]
      %v6942 = vld [vmem:[%s5624 + $0xb4] sm:$0xf]
      %v6943 = vld [vmem:[%s5624 + $0xb8] sm:$0xf]
      %v6944 = vld [vmem:[%s5624 + $0x8] sm:$0x1]
      %v6945 = vld [vmem:[%s5624 + $0x14] sm:$0x1]
      %v6946 = vld [vmem:[%s5624 + $0x20] sm:$0x1]
      %v6947 = vld [vmem:[%s5624 + $0x2c] sm:$0x1]
      %v6948 = vld [vmem:[%s5624 + $0x38] sm:$0x1]
      %v6949 = vld [vmem:[%s5624 + $0x44] sm:$0x1]
      %v6950 = vld [vmem:[%s5624 + $0x50] sm:$0x1]
      %v6951 = vld [vmem:[%s5624 + $0x5c] sm:$0x1]
      %v6952 = vld [vmem:[%s5624 + $0x68] sm:$0x1]
      %v6953 = vld [vmem:[%s5624 + $0x74] sm:$0x1]
      %v6954 = vld [vmem:[%s5624 + $0x80] sm:$0x1]
      %v6955 = vld [vmem:[%s5624 + $0x8c] sm:$0x1]
      %v6956 = vld [vmem:[%s5624 + $0x98] sm:$0x1]
      %v6957 = vld [vmem:[%s5624 + $0xa4] sm:$0x1]
      %v6958 = vld [vmem:[%s5624 + $0xb0] sm:$0x1]
      %v6959 = vld [vmem:[%s5624 + $0xbc] sm:$0x1]
      %v6961 = vshrl.u32 %v6912, 16
      %v6963 = vrot.slane %v6961, 4
      %v6964 = vshll.u32 %v6912, 16
      %v6966 = vrot.slane %v6964, 5
      %v6967 = vor.u32 %v6963, %v6966
      %v6968 = vrot.slane %v6967, 4
      %v6970 = vshll.u32 %v6913, 16
      %v6972 = vrot.slane %v6970, 5
      %v6973 = vsel %vm1157, %v6968, %v6972
      %v6974 = vshrl.u32 %v6913, 16
      %v6976 = vrot.slane %v6974, 4
      %v6977 = vor.u32 %v6976, %v6972
      %v6978 = vrot.slane %v6977, 4
      %v6980 = vshll.u32 %v6944, 16
      %v6982 = vrot.slane %v6980, 5
      %v6983 = vsel %vm1157, %v6978, %v6982
      %v6985 = vshrl.u32 %v6914, 16
      %v6987 = vrot.slane %v6985, 4
      %v6988 = vshll.u32 %v6914, 16
      %v6990 = vrot.slane %v6988, 5
      %v6991 = vor.u32 %v6987, %v6990
      %v6992 = vrot.slane %v6991, 4
      %v6994 = vshll.u32 %v6915, 16
      %v6996 = vrot.slane %v6994, 5
      %v6997 = vsel %vm1157, %v6992, %v6996
      %v6998 = vshrl.u32 %v6915, 16
      %v7000 = vrot.slane %v6998, 4
      %v7001 = vor.u32 %v7000, %v6996
      %v7002 = vrot.slane %v7001, 4
      %v7004 = vshll.u32 %v6945, 16
      %v7006 = vrot.slane %v7004, 5
      %v7007 = vsel %vm1157, %v7002, %v7006
      %v7009 = vshrl.u32 %v6916, 16
      %v7011 = vrot.slane %v7009, 4
      %v7012 = vshll.u32 %v6916, 16
      %v7014 = vrot.slane %v7012, 5
      %v7015 = vor.u32 %v7011, %v7014
      %v7016 = vrot.slane %v7015, 4
      %v7018 = vshll.u32 %v6917, 16
      %v7020 = vrot.slane %v7018, 5
      %v7021 = vsel %vm1157, %v7016, %v7020
      %v7022 = vshrl.u32 %v6917, 16
      %v7024 = vrot.slane %v7022, 4
      %v7025 = vor.u32 %v7024, %v7020
      %v7026 = vrot.slane %v7025, 4
      %v7028 = vshll.u32 %v6946, 16
      %v7030 = vrot.slane %v7028, 5
      %v7031 = vsel %vm1157, %v7026, %v7030
      %v7033 = vshrl.u32 %v6918, 16
      %v7035 = vrot.slane %v7033, 4
      %v7036 = vshll.u32 %v6918, 16
      %v7038 = vrot.slane %v7036, 5
      %v7039 = vor.u32 %v7035, %v7038
      %v7040 = vrot.slane %v7039, 4
      %v7042 = vshll.u32 %v6919, 16
      %v7044 = vrot.slane %v7042, 5
      %v7045 = vsel %vm1157, %v7040, %v7044
      %v7046 = vshrl.u32 %v6919, 16
      %v7048 = vrot.slane %v7046, 4
      %v7049 = vor.u32 %v7048, %v7044
      %v7050 = vrot.slane %v7049, 4
      %v7052 = vshll.u32 %v6947, 16
      %v7054 = vrot.slane %v7052, 5
      %v7055 = vsel %vm1157, %v7050, %v7054
      %v7057 = vshrl.u32 %v6920, 16
      %v7059 = vrot.slane %v7057, 4
      %v7060 = vshll.u32 %v6920, 16
      %v7062 = vrot.slane %v7060, 5
      %v7063 = vor.u32 %v7059, %v7062
      %v7064 = vrot.slane %v7063, 4
      %v7066 = vshll.u32 %v6921, 16
      %v7068 = vrot.slane %v7066, 5
      %v7069 = vsel %vm1157, %v7064, %v7068
      %v7070 = vshrl.u32 %v6921, 16
      %v7072 = vrot.slane %v7070, 4
      %v7073 = vor.u32 %v7072, %v7068
      %v7074 = vrot.slane %v7073, 4
      %v7076 = vshll.u32 %v6948, 16
      %v7078 = vrot.slane %v7076, 5
      %v7079 = vsel %vm1157, %v7074, %v7078
      %v7081 = vshrl.u32 %v6922, 16
      %v7083 = vrot.slane %v7081, 4
      %v7084 = vshll.u32 %v6922, 16
      %v7086 = vrot.slane %v7084, 5
      %v7087 = vor.u32 %v7083, %v7086
      %v7088 = vrot.slane %v7087, 4
      %v7090 = vshll.u32 %v6923, 16
      %v7092 = vrot.slane %v7090, 5
      %v7093 = vsel %vm1157, %v7088, %v7092
      %v7094 = vshrl.u32 %v6923, 16
      %v7096 = vrot.slane %v7094, 4
      %v7097 = vor.u32 %v7096, %v7092
      %v7098 = vrot.slane %v7097, 4
      %v7100 = vshll.u32 %v6949, 16
      %v7102 = vrot.slane %v7100, 5
      %v7103 = vsel %vm1157, %v7098, %v7102
      %v7105 = vshrl.u32 %v6924, 16
      %v7107 = vrot.slane %v7105, 4
      %v7108 = vshll.u32 %v6924, 16
      %v7110 = vrot.slane %v7108, 5
      %v7111 = vor.u32 %v7107, %v7110
      %v7112 = vrot.slane %v7111, 4
      %v7114 = vshll.u32 %v6925, 16
      %v7116 = vrot.slane %v7114, 5
      %v7117 = vsel %vm1157, %v7112, %v7116
      %v7118 = vshrl.u32 %v6925, 16
      %v7120 = vrot.slane %v7118, 4
      %v7121 = vor.u32 %v7120, %v7116
      %v7122 = vrot.slane %v7121, 4
      %v7124 = vshll.u32 %v6950, 16
      %v7126 = vrot.slane %v7124, 5
      %v7127 = vsel %vm1157, %v7122, %v7126
      %v7129 = vshrl.u32 %v6926, 16
      %v7131 = vrot.slane %v7129, 4
      %v7132 = vshll.u32 %v6926, 16
      %v7134 = vrot.slane %v7132, 5
      %v7135 = vor.u32 %v7131, %v7134
      %v7136 = vrot.slane %v7135, 4
      %v7138 = vshll.u32 %v6927, 16
      %v7140 = vrot.slane %v7138, 5
      %v7141 = vsel %vm1157, %v7136, %v7140
      %v7142 = vshrl.u32 %v6927, 16
      %v7144 = vrot.slane %v7142, 4
      %v7145 = vor.u32 %v7144, %v7140
      %v7146 = vrot.slane %v7145, 4
      %v7148 = vshll.u32 %v6951, 16
      %v7150 = vrot.slane %v7148, 5
      %v7151 = vsel %vm1157, %v7146, %v7150
      %v7153 = vshrl.u32 %v6928, 16
      %v7155 = vrot.slane %v7153, 4
      %v7156 = vshll.u32 %v6928, 16
      %v7158 = vrot.slane %v7156, 5
      %v7159 = vor.u32 %v7155, %v7158
      %v7160 = vrot.slane %v7159, 4
      %v7162 = vshll.u32 %v6929, 16
      %v7164 = vrot.slane %v7162, 5
      %v7165 = vsel %vm1157, %v7160, %v7164
      %v7166 = vshrl.u32 %v6929, 16
      %v7168 = vrot.slane %v7166, 4
      %v7169 = vor.u32 %v7168, %v7164
      %v7170 = vrot.slane %v7169, 4
      %v7172 = vshll.u32 %v6952, 16
      %v7174 = vrot.slane %v7172, 5
      %v7175 = vsel %vm1157, %v7170, %v7174
      %v7177 = vshrl.u32 %v6930, 16
      %v7179 = vrot.slane %v7177, 4
      %v7180 = vshll.u32 %v6930, 16
      %v7182 = vrot.slane %v7180, 5
      %v7183 = vor.u32 %v7179, %v7182
      %v7184 = vrot.slane %v7183, 4
      %v7186 = vshll.u32 %v6931, 16
      %v7188 = vrot.slane %v7186, 5
      %v7189 = vsel %vm1157, %v7184, %v7188
      %v7190 = vshrl.u32 %v6931, 16
      %v7192 = vrot.slane %v7190, 4
      %v7193 = vor.u32 %v7192, %v7188
      %v7194 = vrot.slane %v7193, 4
      %v7196 = vshll.u32 %v6953, 16
      %v7198 = vrot.slane %v7196, 5
      %v7199 = vsel %vm1157, %v7194, %v7198
      %v7201 = vshrl.u32 %v6932, 16
      %v7203 = vrot.slane %v7201, 4
      %v7204 = vshll.u32 %v6932, 16
      %v7206 = vrot.slane %v7204, 5
      %v7207 = vor.u32 %v7203, %v7206
      %v7208 = vrot.slane %v7207, 4
      %v7210 = vshll.u32 %v6933, 16
      %v7212 = vrot.slane %v7210, 5
      %v7213 = vsel %vm1157, %v7208, %v7212
      %v7214 = vshrl.u32 %v6933, 16
      %v7216 = vrot.slane %v7214, 4
      %v7217 = vor.u32 %v7216, %v7212
      %v7218 = vrot.slane %v7217, 4
      %v7220 = vshll.u32 %v6954, 16
      %v7222 = vrot.slane %v7220, 5
      %v7223 = vsel %vm1157, %v7218, %v7222
      %v7225 = vshrl.u32 %v6934, 16
      %v7227 = vrot.slane %v7225, 4
      %v7228 = vshll.u32 %v6934, 16
      %v7230 = vrot.slane %v7228, 5
      %v7231 = vor.u32 %v7227, %v7230
      %v7232 = vrot.slane %v7231, 4
      %v7234 = vshll.u32 %v6935, 16
      %v7236 = vrot.slane %v7234, 5
      %v7237 = vsel %vm1157, %v7232, %v7236
      %v7238 = vshrl.u32 %v6935, 16
      %v7240 = vrot.slane %v7238, 4
      %v7241 = vor.u32 %v7240, %v7236
      %v7242 = vrot.slane %v7241, 4
      %v7244 = vshll.u32 %v6955, 16
      %v7246 = vrot.slane %v7244, 5
      %v7247 = vsel %vm1157, %v7242, %v7246
      %v7249 = vshrl.u32 %v6936, 16
      %v7251 = vrot.slane %v7249, 4
      %v7252 = vshll.u32 %v6936, 16
      %v7254 = vrot.slane %v7252, 5
      %v7255 = vor.u32 %v7251, %v7254
      %v7256 = vrot.slane %v7255, 4
      %v7258 = vshll.u32 %v6937, 16
      %v7260 = vrot.slane %v7258, 5
      %v7261 = vsel %vm1157, %v7256, %v7260
      %v7262 = vshrl.u32 %v6937, 16
      %v7264 = vrot.slane %v7262, 4
      %v7265 = vor.u32 %v7264, %v7260
      %v7266 = vrot.slane %v7265, 4
      %v7268 = vshll.u32 %v6956, 16
      %v7270 = vrot.slane %v7268, 5
      %v7271 = vsel %vm1157, %v7266, %v7270
      %v7273 = vshrl.u32 %v6938, 16
      %v7275 = vrot.slane %v7273, 4
      %v7276 = vshll.u32 %v6938, 16
      %v7278 = vrot.slane %v7276, 5
      %v7279 = vor.u32 %v7275, %v7278
      %v7280 = vrot.slane %v7279, 4
      %v7282 = vshll.u32 %v6939, 16
      %v7284 = vrot.slane %v7282, 5
      %v7285 = vsel %vm1157, %v7280, %v7284
      %v7286 = vshrl.u32 %v6939, 16
      %v7288 = vrot.slane %v7286, 4
      %v7289 = vor.u32 %v7288, %v7284
      %v7290 = vrot.slane %v7289, 4
      %v7292 = vshll.u32 %v6957, 16
      %v7294 = vrot.slane %v7292, 5
      %v7295 = vsel %vm1157, %v7290, %v7294
      %v7297 = vshrl.u32 %v6940, 16
      %v7299 = vrot.slane %v7297, 4
      %v7300 = vshll.u32 %v6940, 16
      %v7302 = vrot.slane %v7300, 5
      %v7303 = vor.u32 %v7299, %v7302
      %v7304 = vrot.slane %v7303, 4
      %v7306 = vshll.u32 %v6941, 16
      %v7308 = vrot.slane %v7306, 5
      %v7309 = vsel %vm1157, %v7304, %v7308
      %v7310 = vshrl.u32 %v6941, 16
      %v7312 = vrot.slane %v7310, 4
      %v7313 = vor.u32 %v7312, %v7308
      %v7314 = vrot.slane %v7313, 4
      %v7316 = vshll.u32 %v6958, 16
      %v7318 = vrot.slane %v7316, 5
      %v7319 = vsel %vm1157, %v7314, %v7318
      %v7321 = vshrl.u32 %v6942, 16
      %v7323 = vrot.slane %v7321, 4
      %v7324 = vshll.u32 %v6942, 16
      %v7326 = vrot.slane %v7324, 5
      %v7327 = vor.u32 %v7323, %v7326
      %v7328 = vrot.slane %v7327, 4
      %v7330 = vshll.u32 %v6943, 16
      %v7332 = vrot.slane %v7330, 5
      %v7333 = vsel %vm1157, %v7328, %v7332
      %v7334 = vshrl.u32 %v6943, 16
      %v7336 = vrot.slane %v7334, 4
      %v7337 = vor.u32 %v7336, %v7332
      %v7338 = vrot.slane %v7337, 4
      %v7340 = vshll.u32 %v6959, 16
      %v7342 = vrot.slane %v7340, 5
      %v7343 = vsel %vm1157, %v7338, %v7342
      %v7344 = vld [vmem:[%s5624] sm:$0xe]
      %v7345 = vld [vmem:[%s5624 + $0xc] sm:$0xe]
      %v7346 = vld [vmem:[%s5624 + $0x18] sm:$0xe]
      %v7347 = vld [vmem:[%s5624 + $0x24] sm:$0xe]
      %v7348 = vld [vmem:[%s5624 + $0x30] sm:$0xe]
      %v7349 = vld [vmem:[%s5624 + $0x3c] sm:$0xe]
      %v7350 = vld [vmem:[%s5624 + $0x48] sm:$0xe]
      %v7351 = vld [vmem:[%s5624 + $0x54] sm:$0xe]
      %v7352 = vld [vmem:[%s5624 + $0x60] sm:$0xe]
      %v7353 = vld [vmem:[%s5624 + $0x6c] sm:$0xe]
      %v7354 = vld [vmem:[%s5624 + $0x78] sm:$0xe]
      %v7355 = vld [vmem:[%s5624 + $0x84] sm:$0xe]
      %v7356 = vld [vmem:[%s5624 + $0x90] sm:$0xe]
      %v7357 = vld [vmem:[%s5624 + $0x9c] sm:$0xe]
      %v7358 = vld [vmem:[%s5624 + $0xa8] sm:$0xe]
      %v7359 = vld [vmem:[%s5624 + $0xb4] sm:$0xe]
      %v7408 = vrot.slane %v7344, 5
      %v7409 = vrot.slane %v7408, 4
      %v7410 = vrot.slane %v6913, 5
      %v7411 = vsel %vm1608, %v7409, %v7410
      %v7412 = vrot.slane %v7410, 4
      %v7413 = vrot.slane %v6944, 5
      %v7414 = vsel %vm1608, %v7412, %v7413
      %v7415 = vrot.slane %v7345, 5
      %v7416 = vrot.slane %v7415, 4
      %v7417 = vrot.slane %v6915, 5
      %v7418 = vsel %vm1608, %v7416, %v7417
      %v7419 = vrot.slane %v7417, 4
      %v7420 = vrot.slane %v6945, 5
      %v7421 = vsel %vm1608, %v7419, %v7420
      %v7422 = vrot.slane %v7346, 5
      %v7423 = vrot.slane %v7422, 4
      %v7424 = vrot.slane %v6917, 5
      %v7425 = vsel %vm1608, %v7423, %v7424
      %v7426 = vrot.slane %v7424, 4
      %v7427 = vrot.slane %v6946, 5
      %v7428 = vsel %vm1608, %v7426, %v7427
      %v7429 = vrot.slane %v7347, 5
      %v7430 = vrot.slane %v7429, 4
      %v7431 = vrot.slane %v6919, 5
      %v7432 = vsel %vm1608, %v7430, %v7431
      %v7433 = vrot.slane %v7431, 4
      %v7434 = vrot.slane %v6947, 5
      %v7435 = vsel %vm1608, %v7433, %v7434
      %v7436 = vrot.slane %v7348, 5
      %v7437 = vrot.slane %v7436, 4
      %v7438 = vrot.slane %v6921, 5
      %v7439 = vsel %vm1608, %v7437, %v7438
      %v7440 = vrot.slane %v7438, 4
      %v7441 = vrot.slane %v6948, 5
      %v7442 = vsel %vm1608, %v7440, %v7441
      %v7443 = vrot.slane %v7349, 5
      %v7444 = vrot.slane %v7443, 4
      %v7445 = vrot.slane %v6923, 5
      %v7446 = vsel %vm1608, %v7444, %v7445
      %v7447 = vrot.slane %v7445, 4
      %v7448 = vrot.slane %v6949, 5
      %v7449 = vsel %vm1608, %v7447, %v7448
      %v7450 = vrot.slane %v7350, 5
      %v7451 = vrot.slane %v7450, 4
      %v7452 = vrot.slane %v6925, 5
      %v7453 = vsel %vm1608, %v7451, %v7452
      %v7454 = vrot.slane %v7452, 4
      %v7455 = vrot.slane %v6950, 5
      %v7456 = vsel %vm1608, %v7454, %v7455
      %v7457 = vrot.slane %v7351, 5
      %v7458 = vrot.slane %v7457, 4
      %v7459 = vrot.slane %v6927, 5
      %v7460 = vsel %vm1608, %v7458, %v7459
      %v7461 = vrot.slane %v7459, 4
      %v7462 = vrot.slane %v6951, 5
      %v7463 = vsel %vm1608, %v7461, %v7462
      %v7464 = vrot.slane %v7352, 5
      %v7465 = vrot.slane %v7464, 4
      %v7466 = vrot.slane %v6929, 5
      %v7467 = vsel %vm1608, %v7465, %v7466
      %v7468 = vrot.slane %v7466, 4
      %v7469 = vrot.slane %v6952, 5
      %v7470 = vsel %vm1608, %v7468, %v7469
      %v7471 = vrot.slane %v7353, 5
      %v7472 = vrot.slane %v7471, 4
      %v7473 = vrot.slane %v6931, 5
      %v7474 = vsel %vm1608, %v7472, %v7473
      %v7475 = vrot.slane %v7473, 4
      %v7476 = vrot.slane %v6953, 5
      %v7477 = vsel %vm1608, %v7475, %v7476
      %v7478 = vrot.slane %v7354, 5
      %v7479 = vrot.slane %v7478, 4
      %v7480 = vrot.slane %v6933, 5
      %v7481 = vsel %vm1608, %v7479, %v7480
      %v7482 = vrot.slane %v7480, 4
      %v7483 = vrot.slane %v6954, 5
      %v7484 = vsel %vm1608, %v7482, %v7483
      %v7485 = vrot.slane %v7355, 5
      %v7486 = vrot.slane %v7485, 4
      %v7487 = vrot.slane %v6935, 5
      %v7488 = vsel %vm1608, %v7486, %v7487
      %v7489 = vrot.slane %v7487, 4
      %v7490 = vrot.slane %v6955, 5
      %v7491 = vsel %vm1608, %v7489, %v7490
      %v7492 = vrot.slane %v7356, 5
      %v7493 = vrot.slane %v7492, 4
      %v7494 = vrot.slane %v6937, 5
      %v7495 = vsel %vm1608, %v7493, %v7494
      %v7496 = vrot.slane %v7494, 4
      %v7497 = vrot.slane %v6956, 5
      %v7498 = vsel %vm1608, %v7496, %v7497
      %v7499 = vrot.slane %v7357, 5
      %v7500 = vrot.slane %v7499, 4
      %v7501 = vrot.slane %v6939, 5
      %v7502 = vsel %vm1608, %v7500, %v7501
      %v7503 = vrot.slane %v7501, 4
      %v7504 = vrot.slane %v6957, 5
      %v7505 = vsel %vm1608, %v7503, %v7504
      %v7506 = vrot.slane %v7358, 5
      %v7507 = vrot.slane %v7506, 4
      %v7508 = vrot.slane %v6941, 5
      %v7509 = vsel %vm1608, %v7507, %v7508
      %v7510 = vrot.slane %v7508, 4
      %v7511 = vrot.slane %v6958, 5
      %v7512 = vsel %vm1608, %v7510, %v7511
      %v7513 = vrot.slane %v7359, 5
      %v7514 = vrot.slane %v7513, 4
      %v7515 = vrot.slane %v6943, 5
      %v7516 = vsel %vm1608, %v7514, %v7515
      %v7517 = vrot.slane %v7515, 4
      %v7518 = vrot.slane %v6959, 5
      %v7519 = vsel %vm1608, %v7517, %v7518
      %v7536 = vunpack.c.l.b16 %v6912
      %v7537 = vunpack.c.l.b16 %v6913
      %v7538 = vunpack.c.l.b16 %v6914
      %v7539 = vunpack.c.l.b16 %v6915
      %v7540 = vunpack.c.l.b16 %v6916
      %v7541 = vunpack.c.l.b16 %v6917
      %v7542 = vunpack.c.l.b16 %v6918
      %v7543 = vunpack.c.l.b16 %v6919
      %v7544 = vunpack.c.l.b16 %v6920
      %v7545 = vunpack.c.l.b16 %v6921
      %v7546 = vunpack.c.l.b16 %v6922
      %v7547 = vunpack.c.l.b16 %v6923
      %v7548 = vunpack.c.l.b16 %v6924
      %v7549 = vunpack.c.l.b16 %v6925
      %v7550 = vunpack.c.l.b16 %v6926
      %v7551 = vunpack.c.l.b16 %v6927
      %v7552 = vunpack.c.l.b16 %v6928
      %v7553 = vunpack.c.l.b16 %v6929
      %v7554 = vunpack.c.l.b16 %v6930
      %v7555 = vunpack.c.l.b16 %v6931
      %v7556 = vunpack.c.l.b16 %v6932
      %v7557 = vunpack.c.l.b16 %v6933
      %v7558 = vunpack.c.l.b16 %v6934
      %v7559 = vunpack.c.l.b16 %v6935
      %v7560 = vunpack.c.l.b16 %v6936
      %v7561 = vunpack.c.l.b16 %v6937
      %v7562 = vunpack.c.l.b16 %v6938
      %v7563 = vunpack.c.l.b16 %v6939
      %v7564 = vunpack.c.l.b16 %v6940
      %v7565 = vunpack.c.l.b16 %v6941
      %v7566 = vunpack.c.l.b16 %v6942
      %v7567 = vunpack.c.l.b16 %v6943
      %v7568 = vpack.c.b16 %v7537, %v7536
      %v7569 = vpack.c.b16 %v7539, %v7538
      %v7570 = vpack.c.b16 %v7541, %v7540
      %v7571 = vpack.c.b16 %v7543, %v7542
      %v7572 = vpack.c.b16 %v7545, %v7544
      %v7573 = vpack.c.b16 %v7547, %v7546
      %v7574 = vpack.c.b16 %v7549, %v7548
      %v7575 = vpack.c.b16 %v7551, %v7550
      %v7576 = vpack.c.b16 %v7553, %v7552
      %v7577 = vpack.c.b16 %v7555, %v7554
      %v7578 = vpack.c.b16 %v7557, %v7556
      %v7579 = vpack.c.b16 %v7559, %v7558
      %v7580 = vpack.c.b16 %v7561, %v7560
      %v7581 = vpack.c.b16 %v7563, %v7562
      %v7582 = vpack.c.b16 %v7565, %v7564
      %v7583 = vpack.c.b16 %v7567, %v7566
      %v7600 = vunpack.c.l.b16 %v6973
      %v7601 = vunpack.c.l.b16 %v6983
      %v7602 = vunpack.c.l.b16 %v6997
      %v7603 = vunpack.c.l.b16 %v7007
      %v7604 = vunpack.c.l.b16 %v7021
      %v7605 = vunpack.c.l.b16 %v7031
      %v7606 = vunpack.c.l.b16 %v7045
      %v7607 = vunpack.c.l.b16 %v7055
      %v7608 = vunpack.c.l.b16 %v7069
      %v7609 = vunpack.c.l.b16 %v7079
      %v7610 = vunpack.c.l.b16 %v7093
      %v7611 = vunpack.c.l.b16 %v7103
      %v7612 = vunpack.c.l.b16 %v7117
      %v7613 = vunpack.c.l.b16 %v7127
      %v7614 = vunpack.c.l.b16 %v7141
      %v7615 = vunpack.c.l.b16 %v7151
      %v7616 = vunpack.c.l.b16 %v7165
      %v7617 = vunpack.c.l.b16 %v7175
      %v7618 = vunpack.c.l.b16 %v7189
      %v7619 = vunpack.c.l.b16 %v7199
      %v7620 = vunpack.c.l.b16 %v7213
      %v7621 = vunpack.c.l.b16 %v7223
      %v7622 = vunpack.c.l.b16 %v7237
      %v7623 = vunpack.c.l.b16 %v7247
      %v7624 = vunpack.c.l.b16 %v7261
      %v7625 = vunpack.c.l.b16 %v7271
      %v7626 = vunpack.c.l.b16 %v7285
      %v7627 = vunpack.c.l.b16 %v7295
      %v7628 = vunpack.c.l.b16 %v7309
      %v7629 = vunpack.c.l.b16 %v7319
      %v7630 = vunpack.c.l.b16 %v7333
      %v7631 = vunpack.c.l.b16 %v7343
      %v7632 = vpack.c.b16 %v7601, %v7600
      %v7633 = vpack.c.b16 %v7603, %v7602
      %v7634 = vpack.c.b16 %v7605, %v7604
      %v7635 = vpack.c.b16 %v7607, %v7606
      %v7636 = vpack.c.b16 %v7609, %v7608
      %v7637 = vpack.c.b16 %v7611, %v7610
      %v7638 = vpack.c.b16 %v7613, %v7612
      %v7639 = vpack.c.b16 %v7615, %v7614
      %v7640 = vpack.c.b16 %v7617, %v7616
      %v7641 = vpack.c.b16 %v7619, %v7618
      %v7642 = vpack.c.b16 %v7621, %v7620
      %v7643 = vpack.c.b16 %v7623, %v7622
      %v7644 = vpack.c.b16 %v7625, %v7624
      %v7645 = vpack.c.b16 %v7627, %v7626
      %v7646 = vpack.c.b16 %v7629, %v7628
      %v7647 = vpack.c.b16 %v7631, %v7630
      %v7664 = vunpack.c.l.b16 %v7411
      %v7665 = vunpack.c.l.b16 %v7414
      %v7666 = vunpack.c.l.b16 %v7418
      %v7667 = vunpack.c.l.b16 %v7421
      %v7668 = vunpack.c.l.b16 %v7425
      %v7669 = vunpack.c.l.b16 %v7428
      %v7670 = vunpack.c.l.b16 %v7432
      %v7671 = vunpack.c.l.b16 %v7435
      %v7672 = vunpack.c.l.b16 %v7439
      %v7673 = vunpack.c.l.b16 %v7442
      %v7674 = vunpack.c.l.b16 %v7446
      %v7675 = vunpack.c.l.b16 %v7449
      %v7676 = vunpack.c.l.b16 %v7453
      %v7677 = vunpack.c.l.b16 %v7456
      %v7678 = vunpack.c.l.b16 %v7460
      %v7679 = vunpack.c.l.b16 %v7463
      %v7680 = vunpack.c.l.b16 %v7467
      %v7681 = vunpack.c.l.b16 %v7470
      %v7682 = vunpack.c.l.b16 %v7474
      %v7683 = vunpack.c.l.b16 %v7477
      %v7684 = vunpack.c.l.b16 %v7481
      %v7685 = vunpack.c.l.b16 %v7484
      %v7686 = vunpack.c.l.b16 %v7488
      %v7687 = vunpack.c.l.b16 %v7491
      %v7688 = vunpack.c.l.b16 %v7495
      %v7689 = vunpack.c.l.b16 %v7498
      %v7690 = vunpack.c.l.b16 %v7502
      %v7691 = vunpack.c.l.b16 %v7505
      %v7692 = vunpack.c.l.b16 %v7509
      %v7693 = vunpack.c.l.b16 %v7512
      %v7694 = vunpack.c.l.b16 %v7516
      %v7695 = vunpack.c.l.b16 %v7519
      %v7696 = vpack.c.b16 %v7665, %v7664
      %v7697 = vpack.c.b16 %v7667, %v7666
      %v7698 = vpack.c.b16 %v7669, %v7668
      %v7699 = vpack.c.b16 %v7671, %v7670
      %v7700 = vpack.c.b16 %v7673, %v7672
      %v7701 = vpack.c.b16 %v7675, %v7674
      %v7702 = vpack.c.b16 %v7677, %v7676
      %v7703 = vpack.c.b16 %v7679, %v7678
      %v7704 = vpack.c.b16 %v7681, %v7680
      %v7705 = vpack.c.b16 %v7683, %v7682
      %v7706 = vpack.c.b16 %v7685, %v7684
      %v7707 = vpack.c.b16 %v7687, %v7686
      %v7708 = vpack.c.b16 %v7689, %v7688
      %v7709 = vpack.c.b16 %v7691, %v7690
      %v7710 = vpack.c.b16 %v7693, %v7692
      %v7711 = vpack.c.b16 %v7695, %v7694
      %s7728 = scalar_lea.vmem %s3, 192
      %v7729 = vld [vmem:[%s7728] sm:$0xf]
      %v7730 = vld [vmem:[%s7728 + $0x4] sm:$0xf]
      %v7731 = vld [vmem:[%s7728 + $0x8] sm:$0xf]
      %v7732 = vld [vmem:[%s7728 + $0xc] sm:$0xf]
      %v7733 = vld [vmem:[%s7728 + $0x10] sm:$0xf]
      %v7734 = vld [vmem:[%s7728 + $0x14] sm:$0xf]
      %v7735 = vld [vmem:[%s7728 + $0x18] sm:$0xf]
      %v7736 = vld [vmem:[%s7728 + $0x1c] sm:$0xf]
      %v7737 = vld [vmem:[%s7728 + $0x20] sm:$0xf]
      %v7738 = vld [vmem:[%s7728 + $0x24] sm:$0xf]
      %v7739 = vld [vmem:[%s7728 + $0x28] sm:$0xf]
      %v7740 = vld [vmem:[%s7728 + $0x2c] sm:$0xf]
      %v7741 = vld [vmem:[%s7728 + $0x30] sm:$0xf]
      %v7742 = vld [vmem:[%s7728 + $0x34] sm:$0xf]
      %v7743 = vld [vmem:[%s7728 + $0x38] sm:$0xf]
      %v7744 = vld [vmem:[%s7728 + $0x3c] sm:$0xf]
      %v7745 = vld [vmem:[%s7728 + $0x40] sm:$0xf]
      %v7746 = vld [vmem:[%s7728 + $0x44] sm:$0xf]
      %v7747 = vld [vmem:[%s7728 + $0x48] sm:$0xf]
      %v7748 = vld [vmem:[%s7728 + $0x4c] sm:$0xf]
      %v7749 = vld [vmem:[%s7728 + $0x50] sm:$0xf]
      %v7750 = vld [vmem:[%s7728 + $0x54] sm:$0xf]
      %v7751 = vld [vmem:[%s7728 + $0x58] sm:$0xf]
      %v7752 = vld [vmem:[%s7728 + $0x5c] sm:$0xf]
      %v7753 = vld [vmem:[%s7728 + $0x60] sm:$0xf]
      %v7754 = vld [vmem:[%s7728 + $0x64] sm:$0xf]
      %v7755 = vld [vmem:[%s7728 + $0x68] sm:$0xf]
      %v7756 = vld [vmem:[%s7728 + $0x6c] sm:$0xf]
      %v7757 = vld [vmem:[%s7728 + $0x70] sm:$0xf]
      %v7758 = vld [vmem:[%s7728 + $0x74] sm:$0xf]
      %v7759 = vld [vmem:[%s7728 + $0x78] sm:$0xf]
      %v7760 = vld [vmem:[%s7728 + $0x7c] sm:$0xf]
      %v7761 = vld [vmem:[%s7728 + $0x80] sm:$0xf]
      %v7762 = vld [vmem:[%s7728 + $0x84] sm:$0xf]
      %v7763 = vld [vmem:[%s7728 + $0x88] sm:$0xf]
      %v7764 = vld [vmem:[%s7728 + $0x8c] sm:$0xf]
      %v7765 = vld [vmem:[%s7728 + $0x90] sm:$0xf]
      %v7766 = vld [vmem:[%s7728 + $0x94] sm:$0xf]
      %v7767 = vld [vmem:[%s7728 + $0x98] sm:$0xf]
      %v7768 = vld [vmem:[%s7728 + $0x9c] sm:$0xf]
      %v7769 = vld [vmem:[%s7728 + $0xa0] sm:$0xf]
      %v7770 = vld [vmem:[%s7728 + $0xa4] sm:$0xf]
      %v7771 = vld [vmem:[%s7728 + $0xa8] sm:$0xf]
      %v7772 = vld [vmem:[%s7728 + $0xac] sm:$0xf]
      %v7773 = vld [vmem:[%s7728 + $0xb0] sm:$0xf]
      %v7774 = vld [vmem:[%s7728 + $0xb4] sm:$0xf]
      %v7775 = vld [vmem:[%s7728 + $0xb8] sm:$0xf]
      %v7776 = vld [vmem:[%s7728 + $0xbc] sm:$0xf]
      %v7825 = vunpack.c.l.b16 %v7729
      %v7826 = vunpack.c.l.b16 %v7730
      %v7827 = vunpack.c.l.b16 %v7731
      %v7828 = vunpack.c.l.b16 %v7732
      %v7829 = vunpack.c.l.b16 %v7733
      %v7830 = vunpack.c.l.b16 %v7734
      %v7831 = vunpack.c.l.b16 %v7735
      %v7832 = vunpack.c.l.b16 %v7736
      %v7833 = vunpack.c.l.b16 %v7737
      %v7834 = vunpack.c.l.b16 %v7738
      %v7835 = vunpack.c.l.b16 %v7739
      %v7836 = vunpack.c.l.b16 %v7740
      %v7837 = vunpack.c.l.b16 %v7741
      %v7838 = vunpack.c.l.b16 %v7742
      %v7839 = vunpack.c.l.b16 %v7743
      %v7840 = vunpack.c.l.b16 %v7744
      %v7841 = vunpack.c.l.b16 %v7745
      %v7842 = vunpack.c.l.b16 %v7746
      %v7843 = vunpack.c.l.b16 %v7747
      %v7844 = vunpack.c.l.b16 %v7748
      %v7845 = vunpack.c.l.b16 %v7749
      %v7846 = vunpack.c.l.b16 %v7750
      %v7847 = vunpack.c.l.b16 %v7751
      %v7848 = vunpack.c.l.b16 %v7752
      %v7849 = vunpack.c.l.b16 %v7753
      %v7850 = vunpack.c.l.b16 %v7754
      %v7851 = vunpack.c.l.b16 %v7755
      %v7852 = vunpack.c.l.b16 %v7756
      %v7853 = vunpack.c.l.b16 %v7757
      %v7854 = vunpack.c.l.b16 %v7758
      %v7855 = vunpack.c.l.b16 %v7759
      %v7856 = vunpack.c.l.b16 %v7760
      %v7857 = vunpack.c.l.b16 %v7761
      %v7858 = vunpack.c.l.b16 %v7762
      %v7859 = vunpack.c.l.b16 %v7763
      %v7860 = vunpack.c.l.b16 %v7764
      %v7861 = vunpack.c.l.b16 %v7765
      %v7862 = vunpack.c.l.b16 %v7766
      %v7863 = vunpack.c.l.b16 %v7767
      %v7864 = vunpack.c.l.b16 %v7768
      %v7865 = vunpack.c.l.b16 %v7769
      %v7866 = vunpack.c.l.b16 %v7770
      %v7867 = vunpack.c.l.b16 %v7771
      %v7868 = vunpack.c.l.b16 %v7772
      %v7869 = vunpack.c.l.b16 %v7773
      %v7870 = vunpack.c.l.b16 %v7774
      %v7871 = vunpack.c.l.b16 %v7775
      %v7872 = vunpack.c.l.b16 %v7776
      %v7873 = vpack.c.b16 %v7826, %v7825
      %v7874 = vpack.c.b16 %v7828, %v7827
      %v7875 = vpack.c.b16 %v7830, %v7829
      %v7876 = vpack.c.b16 %v7832, %v7831
      %v7877 = vpack.c.b16 %v7834, %v7833
      %v7878 = vpack.c.b16 %v7836, %v7835
      %v7879 = vpack.c.b16 %v7838, %v7837
      %v7880 = vpack.c.b16 %v7840, %v7839
      %v7881 = vpack.c.b16 %v7842, %v7841
      %v7882 = vpack.c.b16 %v7844, %v7843
      %v7883 = vpack.c.b16 %v7846, %v7845
      %v7884 = vpack.c.b16 %v7848, %v7847
      %v7885 = vpack.c.b16 %v7850, %v7849
      %v7886 = vpack.c.b16 %v7852, %v7851
      %v7887 = vpack.c.b16 %v7854, %v7853
      %v7888 = vpack.c.b16 %v7856, %v7855
      %v7889 = vpack.c.b16 %v7858, %v7857
      %v7890 = vpack.c.b16 %v7860, %v7859
      %v7891 = vpack.c.b16 %v7862, %v7861
      %v7892 = vpack.c.b16 %v7864, %v7863
      %v7893 = vpack.c.b16 %v7866, %v7865
      %v7894 = vpack.c.b16 %v7868, %v7867
      %v7895 = vpack.c.b16 %v7870, %v7869
      %v7896 = vpack.c.b16 %v7872, %v7871
      %7921 = vmatprep.subr.bf16.mxu0 0
      %7922 = vmatpush1.bf16.msra.mxu0 %v7873
      %7923 = vmatprep.subr.bf16.mxu0 0
      %7924 = vmatpush1.bf16.msra.mxu0 %v7874
      %7925 = vmatprep.subr.bf16.mxu0 0
      %7926 = vmatpush1.bf16.msra.mxu0 %v7875
      %7927 = vmatprep.subr.bf16.mxu0 0
      %7928 = vmatpush1.bf16.msra.mxu0 %v7876
      %7929 = vmatprep.subr.bf16.mxu0 0
      %7930 = vmatpush1.bf16.msra.mxu0 %v7877
      %7931 = vmatprep.subr.bf16.mxu0 0
      %7932 = vmatpush1.bf16.msra.mxu0 %v7878
      %7933 = vmatprep.subr.bf16.mxu0 0
      %7934 = vmatpush1.bf16.msra.mxu0 %v7879
      %7935 = vmatprep.subr.bf16.mxu0 0
      %7936 = vmatpush1.bf16.msra.mxu0 %v7880
      %7937 = vmatprep.subr.bf16.mxu0 0
      %7938 = vmatpush1.bf16.msra.mxu0 %v7881
      %7939 = vmatprep.subr.bf16.mxu0 0
      %7940 = vmatpush1.bf16.msra.mxu0 %v7882
      %7941 = vmatprep.subr.bf16.mxu0 0
      %7942 = vmatpush1.bf16.msra.mxu0 %v7883
      %7943 = vmatprep.subr.bf16.mxu0 0
      %7944 = vmatpush1.bf16.msra.mxu0 %v7884
      %7945 = vmatprep.subr.bf16.mxu0 0
      %7946 = vmatpush1.bf16.msra.mxu0 %v7885
      %7947 = vmatprep.subr.bf16.mxu0 0
      %7948 = vmatpush1.bf16.msra.mxu0 %v7886
      %7949 = vmatprep.subr.bf16.mxu0 0
      %7950 = vmatpush1.bf16.msra.mxu0 %v7887
      %7951 = vmatprep.subr.bf16.mxu0 0
      %7952 = vmatpush1.bf16.msra.mxu0 %v7888
      %7953 = vmatprep.mubr.bf16.mxu0 %v7632
      %7954 = vmatmul.mubr.bf16.gmra.mrb[0].mxu0 %v7568
      %v7955 = vpop.f32.mrb[0].mxu0
      %v7956 = vadd.f32 0.0, %v7955
      %v7957 = vpop.f32.mrb[0].mxu0
      %v7958 = vpop.f32.mrb[0].mxu0
      %v7959 = vadd.f32 0.0, %v7958
      %v7960 = vpop.f32.mrb[0].mxu0
      %7961 = vmatprep.mubr.bf16.mxu0 %v7633
      %7962 = vmatmul.mubr.bf16.gmra.mrb[0].mxu0 %v7569
      %v7963 = vpop.f32.mrb[0].mxu0
      %v7964 = vadd.f32 0.0, %v7963
      %v7965 = vpop.f32.mrb[0].mxu0
      %v7966 = vpop.f32.mrb[0].mxu0
      %v7967 = vadd.f32 0.0, %v7966
      %v7968 = vpop.f32.mrb[0].mxu0
      %7969 = vmatprep.mubr.bf16.mxu0 %v7634
      %7970 = vmatmul.mubr.bf16.gmra.mrb[0].mxu0 %v7570
      %v7971 = vpop.f32.mrb[0].mxu0
      %v7972 = vadd.f32 0.0, %v7971
      %v7973 = vpop.f32.mrb[0].mxu0
      %v7974 = vpop.f32.mrb[0].mxu0
      %v7975 = vadd.f32 0.0, %v7974
      %v7976 = vpop.f32.mrb[0].mxu0
      %7977 = vmatprep.mubr.bf16.mxu0 %v7635
      %7978 = vmatmul.mubr.bf16.gmra.mrb[0].mxu0 %v7571
      %v7979 = vpop.f32.mrb[0].mxu0
      %v7980 = vadd.f32 0.0, %v7979
      %v7981 = vpop.f32.mrb[0].mxu0
      %v7982 = vpop.f32.mrb[0].mxu0
      %v7983 = vadd.f32 0.0, %v7982
      %v7984 = vpop.f32.mrb[0].mxu0
      %7985 = vmatprep.mubr.bf16.mxu0 %v7636
      %7986 = vmatmul.mubr.bf16.gmra.mrb[0].mxu0 %v7572
      %v7987 = vpop.f32.mrb[0].mxu0
      %v7988 = vadd.f32 0.0, %v7987
      %v7989 = vpop.f32.mrb[0].mxu0
      %v7990 = vpop.f32.mrb[0].mxu0
      %v7991 = vadd.f32 0.0, %v7990
      %v7992 = vpop.f32.mrb[0].mxu0
      %7993 = vmatprep.mubr.bf16.mxu0 %v7637
      %7994 = vmatmul.mubr.bf16.gmra.mrb[0].mxu0 %v7573
      %v7995 = vpop.f32.mrb[0].mxu0
      %v7996 = vadd.f32 0.0, %v7995
      %v7997 = vpop.f32.mrb[0].mxu0
      %v7998 = vpop.f32.mrb[0].mxu0
      %v7999 = vadd.f32 0.0, %v7998
      %v8000 = vpop.f32.mrb[0].mxu0
      %8001 = vmatprep.mubr.bf16.mxu0 %v7638
      %8002 = vmatmul.mubr.bf16.gmra.mrb[0].mxu0 %v7574
      %v8003 = vpop.f32.mrb[0].mxu0
      %v8004 = vadd.f32 0.0, %v8003
      %v8005 = vpop.f32.mrb[0].mxu0
      %v8006 = vpop.f32.mrb[0].mxu0
      %v8007 = vadd.f32 0.0, %v8006
      %v8008 = vpop.f32.mrb[0].mxu0
      %8009 = vmatprep.mubr.bf16.mxu0 %v7639
      %8010 = vmatmul.mubr.bf16.gmra.mrb[0].mxu0 %v7575
      %v8011 = vpop.f32.mrb[0].mxu0
      %v8012 = vadd.f32 0.0, %v8011
      %v8013 = vpop.f32.mrb[0].mxu0
      %v8014 = vpop.f32.mrb[0].mxu0
      %v8015 = vadd.f32 0.0, %v8014
      %v8016 = vpop.f32.mrb[0].mxu0
      %8017 = vmatprep.mubr.bf16.mxu0 %v7640
      %8018 = vmatmul.mubr.bf16.gmra.mrb[0].mxu0 %v7576
      %v8019 = vpop.f32.mrb[0].mxu0
      %v8020 = vadd.f32 0.0, %v8019
      %v8021 = vpop.f32.mrb[0].mxu0
      %v8022 = vpop.f32.mrb[0].mxu0
      %v8023 = vadd.f32 0.0, %v8022
      %v8024 = vpop.f32.mrb[0].mxu0
      %8025 = vmatprep.mubr.bf16.mxu0 %v7641
      %8026 = vmatmul.mubr.bf16.gmra.mrb[0].mxu0 %v7577
      %v8027 = vpop.f32.mrb[0].mxu0
      %v8028 = vadd.f32 0.0, %v8027
      %v8029 = vpop.f32.mrb[0].mxu0
      %v8030 = vpop.f32.mrb[0].mxu0
      %v8031 = vadd.f32 0.0, %v8030
      %v8032 = vpop.f32.mrb[0].mxu0
      %8033 = vmatprep.mubr.bf16.mxu0 %v7642
      %8034 = vmatmul.mubr.bf16.gmra.mrb[0].mxu0 %v7578
      %v8035 = vpop.f32.mrb[0].mxu0
      %v8036 = vadd.f32 0.0, %v8035
      %v8037 = vpop.f32.mrb[0].mxu0
      %v8038 = vpop.f32.mrb[0].mxu0
      %v8039 = vadd.f32 0.0, %v8038
      %v8040 = vpop.f32.mrb[0].mxu0
      %8041 = vmatprep.mubr.bf16.mxu0 %v7643
      %8042 = vmatmul.mubr.bf16.gmra.mrb[0].mxu0 %v7579
      %v8043 = vpop.f32.mrb[0].mxu0
      %v8044 = vadd.f32 0.0, %v8043
      %v8045 = vpop.f32.mrb[0].mxu0
      %v8046 = vpop.f32.mrb[0].mxu0
      %v8047 = vadd.f32 0.0, %v8046
      %v8048 = vpop.f32.mrb[0].mxu0
      %8049 = vmatprep.mubr.bf16.mxu0 %v7644
      %8050 = vmatmul.mubr.bf16.gmra.mrb[0].mxu0 %v7580
      %v8051 = vpop.f32.mrb[0].mxu0
      %v8052 = vadd.f32 0.0, %v8051
      %v8053 = vpop.f32.mrb[0].mxu0
      %v8054 = vpop.f32.mrb[0].mxu0
      %v8055 = vadd.f32 0.0, %v8054
      %v8056 = vpop.f32.mrb[0].mxu0
      %8057 = vmatprep.mubr.bf16.mxu0 %v7645
      %8058 = vmatmul.mubr.bf16.gmra.mrb[0].mxu0 %v7581
      %v8059 = vpop.f32.mrb[0].mxu0
      %v8060 = vadd.f32 0.0, %v8059
      %v8061 = vpop.f32.mrb[0].mxu0
      %v8062 = vpop.f32.mrb[0].mxu0
      %v8063 = vadd.f32 0.0, %v8062
      %v8064 = vpop.f32.mrb[0].mxu0
      %8065 = vmatprep.mubr.bf16.mxu0 %v7646
      %8066 = vmatmul.mubr.bf16.gmra.mrb[0].mxu0 %v7582
      %v8067 = vpop.f32.mrb[0].mxu0
      %v8068 = vadd.f32 0.0, %v8067
      %v8069 = vpop.f32.mrb[0].mxu0
      %v8070 = vpop.f32.mrb[0].mxu0
      %v8071 = vadd.f32 0.0, %v8070
      %v8072 = vpop.f32.mrb[0].mxu0
      %8073 = vmatprep.mubr.bf16.mxu0 %v7647
      %8074 = vmatmul.mubr.bf16.gmra.mrb[0].mxu0 %v7583
      %v8075 = vpop.f32.mrb[0].mxu0
      %v8076 = vadd.f32 0.0, %v8075
      %v8077 = vpop.f32.mrb[0].mxu0
      %v8078 = vpop.f32.mrb[0].mxu0
      %v8079 = vadd.f32 0.0, %v8078
      %v8080 = vpop.f32.mrb[0].mxu0
      %8081 = vdwg.mxu0
      %8082 = vmatprep.subr.bf16.mxu0 0
      %8083 = vmatpush1.bf16.msra.mxu0 %v7889
      %8084 = vmatprep.subr.bf16.mxu0 0
      %8085 = vmatpush1.bf16.msra.mxu0 %v7890
      %8086 = vmatprep.subr.bf16.mxu0 0
      %8087 = vmatpush1.bf16.msra.mxu0 %v7891
      %8088 = vmatprep.subr.bf16.mxu0 0
      %8089 = vmatpush1.bf16.msra.mxu0 %v7892
      %8090 = vmatprep.subr.bf16.mxu0 0
      %8091 = vmatpush1.bf16.msra.mxu0 %v7893
      %8092 = vmatprep.subr.bf16.mxu0 0
      %8093 = vmatpush1.bf16.msra.mxu0 %v7894
      %8094 = vmatprep.subr.bf16.mxu0 0
      %8095 = vmatpush1.bf16.msra.mxu0 %v7895
      %8096 = vmatprep.subr.bf16.mxu0 0
      %8097 = vmatpush1.bf16.msra.mxu0 %v7896
      %8098 = vmatprep.subr.bf16.mxu0 0
      %8099 = vmatpush1.bf16.msra.mxu0 0
      %8100 = vmatprep.subr.bf16.mxu0 0
      %8101 = vmatpush1.bf16.msra.mxu0 0
      %8102 = vmatprep.subr.bf16.mxu0 0
      %8103 = vmatpush1.bf16.msra.mxu0 0
      %8104 = vmatprep.subr.bf16.mxu0 0
      %8105 = vmatpush1.bf16.msra.mxu0 0
      %8106 = vmatprep.subr.bf16.mxu0 0
      %8107 = vmatpush1.bf16.msra.mxu0 0
      %8108 = vmatprep.subr.bf16.mxu0 0
      %8109 = vmatpush1.bf16.msra.mxu0 0
      %8110 = vmatprep.subr.bf16.mxu0 0
      %8111 = vmatpush1.bf16.msra.mxu0 0
      %8112 = vmatprep.subr.bf16.mxu0 0
      %8113 = vmatpush1.bf16.msra.mxu0 0
      %8114 = vmatprep.mubr.bf16.mxu0 0
      %8115 = vmatmul.mubr.bf16.gmra.mrb[0].mxu0 %v7696
      %v8116 = vpop.f32.mrb[0].mxu0
      %v8117 = vadd.f32 %v7956, %v8116
      %v8118 = vpop.f32.mrb[0].mxu0
      %v8119 = vpop.f32.mrb[0].mxu0
      %v8120 = vadd.f32 %v7959, %v8119
      %v8121 = vpop.f32.mrb[0].mxu0
      %8122 = vmatprep.mubr.bf16.mxu0 0
      %8123 = vmatmul.mubr.bf16.gmra.mrb[0].mxu0 %v7697
      %v8124 = vpop.f32.mrb[0].mxu0
      %v8125 = vadd.f32 %v7964, %v8124
      %v8126 = vpop.f32.mrb[0].mxu0
      %v8127 = vpop.f32.mrb[0].mxu0
      %v8128 = vadd.f32 %v7967, %v8127
      %v8129 = vpop.f32.mrb[0].mxu0
      %8130 = vmatprep.mubr.bf16.mxu0 0
      %8131 = vmatmul.mubr.bf16.gmra.mrb[0].mxu0 %v7698
      %v8132 = vpop.f32.mrb[0].mxu0
      %v8133 = vadd.f32 %v7972, %v8132
      %v8134 = vpop.f32.mrb[0].mxu0
      %v8135 = vpop.f32.mrb[0].mxu0
      %v8136 = vadd.f32 %v7975, %v8135
      %v8137 = vpop.f32.mrb[0].mxu0
      %8138 = vmatprep.mubr.bf16.mxu0 0
      %8139 = vmatmul.mubr.bf16.gmra.mrb[0].mxu0 %v7699
      %v8140 = vpop.f32.mrb[0].mxu0
      %v8141 = vadd.f32 %v7980, %v8140
      %v8142 = vpop.f32.mrb[0].mxu0
      %v8143 = vpop.f32.mrb[0].mxu0
      %v8144 = vadd.f32 %v7983, %v8143
      %v8145 = vpop.f32.mrb[0].mxu0
      %8146 = vmatprep.mubr.bf16.mxu0 0
      %8147 = vmatmul.mubr.bf16.gmra.mrb[0].mxu0 %v7700
      %v8148 = vpop.f32.mrb[0].mxu0
      %v8149 = vadd.f32 %v7988, %v8148
      %v8150 = vpop.f32.mrb[0].mxu0
      %v8151 = vpop.f32.mrb[0].mxu0
      %v8152 = vadd.f32 %v7991, %v8151
      %v8153 = vpop.f32.mrb[0].mxu0
      %8154 = vmatprep.mubr.bf16.mxu0 0
      %8155 = vmatmul.mubr.bf16.gmra.mrb[0].mxu0 %v7701
      %v8156 = vpop.f32.mrb[0].mxu0
      %v8157 = vadd.f32 %v7996, %v8156
      %v8158 = vpop.f32.mrb[0].mxu0
      %v8159 = vpop.f32.mrb[0].mxu0
      %v8160 = vadd.f32 %v7999, %v8159
      %v8161 = vpop.f32.mrb[0].mxu0
      %8162 = vmatprep.mubr.bf16.mxu0 0
      %8163 = vmatmul.mubr.bf16.gmra.mrb[0].mxu0 %v7702
      %v8164 = vpop.f32.mrb[0].mxu0
      %v8165 = vadd.f32 %v8004, %v8164
      %v8166 = vpop.f32.mrb[0].mxu0
      %v8167 = vpop.f32.mrb[0].mxu0
      %v8168 = vadd.f32 %v8007, %v8167
      %v8169 = vpop.f32.mrb[0].mxu0
      %8170 = vmatprep.mubr.bf16.mxu0 0
      %8171 = vmatmul.mubr.bf16.gmra.mrb[0].mxu0 %v7703
      %v8172 = vpop.f32.mrb[0].mxu0
      %v8173 = vadd.f32 %v8012, %v8172
      %v8174 = vpop.f32.mrb[0].mxu0
      %v8175 = vpop.f32.mrb[0].mxu0
      %v8176 = vadd.f32 %v8015, %v8175
      %v8177 = vpop.f32.mrb[0].mxu0
      %8178 = vmatprep.mubr.bf16.mxu0 0
      %8179 = vmatmul.mubr.bf16.gmra.mrb[0].mxu0 %v7704
      %v8180 = vpop.f32.mrb[0].mxu0
      %v8181 = vadd.f32 %v8020, %v8180
      %v8182 = vpop.f32.mrb[0].mxu0
      %v8183 = vpop.f32.mrb[0].mxu0
      %v8184 = vadd.f32 %v8023, %v8183
      %v8185 = vpop.f32.mrb[0].mxu0
      %8186 = vmatprep.mubr.bf16.mxu0 0
      %8187 = vmatmul.mubr.bf16.gmra.mrb[0].mxu0 %v7705
      %v8188 = vpop.f32.mrb[0].mxu0
      %v8189 = vadd.f32 %v8028, %v8188
      %v8190 = vpop.f32.mrb[0].mxu0
      %v8191 = vpop.f32.mrb[0].mxu0
      %v8192 = vadd.f32 %v8031, %v8191
      %v8193 = vpop.f32.mrb[0].mxu0
      %8194 = vmatprep.mubr.bf16.mxu0 0
      %8195 = vmatmul.mubr.bf16.gmra.mrb[0].mxu0 %v7706
      %v8196 = vpop.f32.mrb[0].mxu0
      %v8197 = vadd.f32 %v8036, %v8196
      %v8198 = vpop.f32.mrb[0].mxu0
      %v8199 = vpop.f32.mrb[0].mxu0
      %v8200 = vadd.f32 %v8039, %v8199
      %v8201 = vpop.f32.mrb[0].mxu0
      %8202 = vmatprep.mubr.bf16.mxu0 0
      %8203 = vmatmul.mubr.bf16.gmra.mrb[0].mxu0 %v7707
      %v8204 = vpop.f32.mrb[0].mxu0
      %v8205 = vadd.f32 %v8044, %v8204
      %v8206 = vpop.f32.mrb[0].mxu0
      %v8207 = vpop.f32.mrb[0].mxu0
      %v8208 = vadd.f32 %v8047, %v8207
      %v8209 = vpop.f32.mrb[0].mxu0
      %8210 = vmatprep.mubr.bf16.mxu0 0
      %8211 = vmatmul.mubr.bf16.gmra.mrb[0].mxu0 %v7708
      %v8212 = vpop.f32.mrb[0].mxu0
      %v8213 = vadd.f32 %v8052, %v8212
      %v8214 = vpop.f32.mrb[0].mxu0
      %v8215 = vpop.f32.mrb[0].mxu0
      %v8216 = vadd.f32 %v8055, %v8215
      %v8217 = vpop.f32.mrb[0].mxu0
      %8218 = vmatprep.mubr.bf16.mxu0 0
      %8219 = vmatmul.mubr.bf16.gmra.mrb[0].mxu0 %v7709
      %v8220 = vpop.f32.mrb[0].mxu0
      %v8221 = vadd.f32 %v8060, %v8220
      %v8222 = vpop.f32.mrb[0].mxu0
      %v8223 = vpop.f32.mrb[0].mxu0
      %v8224 = vadd.f32 %v8063, %v8223
      %v8225 = vpop.f32.mrb[0].mxu0
      %8226 = vmatprep.mubr.bf16.mxu0 0
      %8227 = vmatmul.mubr.bf16.gmra.mrb[0].mxu0 %v7710
      %v8228 = vpop.f32.mrb[0].mxu0
      %v8229 = vadd.f32 %v8068, %v8228
      %v8230 = vpop.f32.mrb[0].mxu0
      %v8231 = vpop.f32.mrb[0].mxu0
      %v8232 = vadd.f32 %v8071, %v8231
      %v8233 = vpop.f32.mrb[0].mxu0
      %8234 = vmatprep.mubr.bf16.mxu0 0
      %8235 = vmatmul.mubr.bf16.gmra.mrb[0].mxu0 %v7711
      %v8236 = vpop.f32.mrb[0].mxu0
      %v8237 = vadd.f32 %v8076, %v8236
      %v8238 = vpop.f32.mrb[0].mxu0
      %v8239 = vpop.f32.mrb[0].mxu0
      %v8240 = vadd.f32 %v8079, %v8239
      %v8241 = vpop.f32.mrb[0].mxu0
      %8242 = vdwg.mxu0
      %v8291 = vunpack.c.l.b16 %v6864
      %v8292 = vunpack.c.l.b16 %v6865
      %v8293 = vunpack.c.l.b16 %v6866
      %v8294 = vunpack.c.l.b16 %v6867
      %v8295 = vunpack.c.l.b16 %v6868
      %v8296 = vunpack.c.l.b16 %v6869
      %v8297 = vunpack.c.l.b16 %v6870
      %v8298 = vunpack.c.l.b16 %v6871
      %v8299 = vunpack.c.l.b16 %v6872
      %v8300 = vunpack.c.l.b16 %v6873
      %v8301 = vunpack.c.l.b16 %v6874
      %v8302 = vunpack.c.l.b16 %v6875
      %v8303 = vunpack.c.l.b16 %v6876
      %v8304 = vunpack.c.l.b16 %v6877
      %v8305 = vunpack.c.l.b16 %v6878
      %v8306 = vunpack.c.l.b16 %v6879
      %v8307 = vunpack.c.l.b16 %v6880
      %v8308 = vunpack.c.l.b16 %v6881
      %v8309 = vunpack.c.l.b16 %v6882
      %v8310 = vunpack.c.l.b16 %v6883
      %v8311 = vunpack.c.l.b16 %v6884
      %v8312 = vunpack.c.l.b16 %v6885
      %v8313 = vunpack.c.l.b16 %v6886
      %v8314 = vunpack.c.l.b16 %v6887
      %v8315 = vunpack.c.l.b16 %v6888
      %v8316 = vunpack.c.l.b16 %v6889
      %v8317 = vunpack.c.l.b16 %v6890
      %v8318 = vunpack.c.l.b16 %v6891
      %v8319 = vunpack.c.l.b16 %v6892
      %v8320 = vunpack.c.l.b16 %v6893
      %v8321 = vunpack.c.l.b16 %v6894
      %v8322 = vunpack.c.l.b16 %v6895
      %v8323 = vunpack.c.l.b16 %v6896
      %v8324 = vunpack.c.l.b16 %v6897
      %v8325 = vunpack.c.l.b16 %v6898
      %v8326 = vunpack.c.l.b16 %v6899
      %v8327 = vunpack.c.l.b16 %v6900
      %v8328 = vunpack.c.l.b16 %v6901
      %v8329 = vunpack.c.l.b16 %v6902
      %v8330 = vunpack.c.l.b16 %v6903
      %v8331 = vunpack.c.l.b16 %v6904
      %v8332 = vunpack.c.l.b16 %v6905
      %v8333 = vunpack.c.l.b16 %v6906
      %v8334 = vunpack.c.l.b16 %v6907
      %v8335 = vunpack.c.l.b16 %v6908
      %v8336 = vunpack.c.l.b16 %v6909
      %v8337 = vunpack.c.l.b16 %v6910
      %v8338 = vunpack.c.l.b16 %v6911
      %v8339 = vpack.c.b16 %v8292, %v8291
      %v8340 = vpack.c.b16 %v8294, %v8293
      %v8341 = vpack.c.b16 %v8296, %v8295
      %v8342 = vpack.c.b16 %v8298, %v8297
      %v8343 = vpack.c.b16 %v8300, %v8299
      %v8344 = vpack.c.b16 %v8302, %v8301
      %v8345 = vpack.c.b16 %v8304, %v8303
      %v8346 = vpack.c.b16 %v8306, %v8305
      %v8347 = vpack.c.b16 %v8308, %v8307
      %v8348 = vpack.c.b16 %v8310, %v8309
      %v8349 = vpack.c.b16 %v8312, %v8311
      %v8350 = vpack.c.b16 %v8314, %v8313
      %v8351 = vpack.c.b16 %v8316, %v8315
      %v8352 = vpack.c.b16 %v8318, %v8317
      %v8353 = vpack.c.b16 %v8320, %v8319
      %v8354 = vpack.c.b16 %v8322, %v8321
      %v8355 = vpack.c.b16 %v8324, %v8323
      %v8356 = vpack.c.b16 %v8326, %v8325
      %v8357 = vpack.c.b16 %v8328, %v8327
      %v8358 = vpack.c.b16 %v8330, %v8329
      %v8359 = vpack.c.b16 %v8332, %v8331
      %v8360 = vpack.c.b16 %v8334, %v8333
      %v8361 = vpack.c.b16 %v8336, %v8335
      %v8362 = vpack.c.b16 %v8338, %v8337
      %8387 = vmatprep.subr.bf16.mxu0 0
      %8388 = vmatpush1.bf16.msra.mxu0 %v8339
      %8389 = vmatprep.subr.bf16.mxu0 0
      %8390 = vmatpush1.bf16.msra.mxu0 %v8340
      %8391 = vmatprep.subr.bf16.mxu0 0
      %8392 = vmatpush1.bf16.msra.mxu0 %v8341
      %8393 = vmatprep.subr.bf16.mxu0 0
      %8394 = vmatpush1.bf16.msra.mxu0 %v8342
      %8395 = vmatprep.subr.bf16.mxu0 0
      %8396 = vmatpush1.bf16.msra.mxu0 %v8343
      %8397 = vmatprep.subr.bf16.mxu0 0
      %8398 = vmatpush1.bf16.msra.mxu0 %v8344
      %8399 = vmatprep.subr.bf16.mxu0 0
      %8400 = vmatpush1.bf16.msra.mxu0 %v8345
      %8401 = vmatprep.subr.bf16.mxu0 0
      %8402 = vmatpush1.bf16.msra.mxu0 %v8346
      %8403 = vmatprep.subr.bf16.mxu0 0
      %8404 = vmatpush1.bf16.msra.mxu0 %v8347
      %8405 = vmatprep.subr.bf16.mxu0 0
      %8406 = vmatpush1.bf16.msra.mxu0 %v8348
      %8407 = vmatprep.subr.bf16.mxu0 0
      %8408 = vmatpush1.bf16.msra.mxu0 %v8349
      %8409 = vmatprep.subr.bf16.mxu0 0
      %8410 = vmatpush1.bf16.msra.mxu0 %v8350
      %8411 = vmatprep.subr.bf16.mxu0 0
      %8412 = vmatpush1.bf16.msra.mxu0 %v8351
      %8413 = vmatprep.subr.bf16.mxu0 0
      %8414 = vmatpush1.bf16.msra.mxu0 %v8352
      %8415 = vmatprep.subr.bf16.mxu0 0
      %8416 = vmatpush1.bf16.msra.mxu0 %v8353
      %8417 = vmatprep.subr.bf16.mxu0 0
      %8418 = vmatpush1.bf16.msra.mxu0 %v8354
      %8419 = vmatprep.mubr.bf16.mxu0 %v6768
      %8420 = vmatmul.mubr.bf16.gmra.mrb[0].mxu0 %v6704
      %v8421 = vpop.f32.mrb[0].mxu0
      %v8422 = vadd.f32 %v8117, %v8421
      %v8423 = vpop.f32.mrb[0].mxu0
      %v8424 = vpop.f32.mrb[0].mxu0
      %v8425 = vadd.f32 %v8120, %v8424
      %v8426 = vpop.f32.mrb[0].mxu0
      %8427 = vmatprep.mubr.bf16.mxu0 %v6769
      %8428 = vmatmul.mubr.bf16.gmra.mrb[0].mxu0 %v6705
      %v8429 = vpop.f32.mrb[0].mxu0
      %v8430 = vadd.f32 %v8125, %v8429
      %v8431 = vpop.f32.mrb[0].mxu0
      %v8432 = vpop.f32.mrb[0].mxu0
      %v8433 = vadd.f32 %v8128, %v8432
      %v8434 = vpop.f32.mrb[0].mxu0
      %8435 = vmatprep.mubr.bf16.mxu0 %v6770
      %8436 = vmatmul.mubr.bf16.gmra.mrb[0].mxu0 %v6706
      %v8437 = vpop.f32.mrb[0].mxu0
      %v8438 = vadd.f32 %v8133, %v8437
      %v8439 = vpop.f32.mrb[0].mxu0
      %v8440 = vpop.f32.mrb[0].mxu0
      %v8441 = vadd.f32 %v8136, %v8440
      %v8442 = vpop.f32.mrb[0].mxu0
      %8443 = vmatprep.mubr.bf16.mxu0 %v6771
      %8444 = vmatmul.mubr.bf16.gmra.mrb[0].mxu0 %v6707
      %v8445 = vpop.f32.mrb[0].mxu0
      %v8446 = vadd.f32 %v8141, %v8445
      %v8447 = vpop.f32.mrb[0].mxu0
      %v8448 = vpop.f32.mrb[0].mxu0
      %v8449 = vadd.f32 %v8144, %v8448
      %v8450 = vpop.f32.mrb[0].mxu0
      %8451 = vmatprep.mubr.bf16.mxu0 %v6772
      %8452 = vmatmul.mubr.bf16.gmra.mrb[0].mxu0 %v6708
      %v8453 = vpop.f32.mrb[0].mxu0
      %v8454 = vadd.f32 %v8149, %v8453
      %v8455 = vpop.f32.mrb[0].mxu0
      %v8456 = vpop.f32.mrb[0].mxu0
      %v8457 = vadd.f32 %v8152, %v8456
      %v8458 = vpop.f32.mrb[0].mxu0
      %8459 = vmatprep.mubr.bf16.mxu0 %v6773
      %8460 = vmatmul.mubr.bf16.gmra.mrb[0].mxu0 %v6709
      %v8461 = vpop.f32.mrb[0].mxu0
      %v8462 = vadd.f32 %v8157, %v8461
      %v8463 = vpop.f32.mrb[0].mxu0
      %v8464 = vpop.f32.mrb[0].mxu0
      %v8465 = vadd.f32 %v8160, %v8464
      %v8466 = vpop.f32.mrb[0].mxu0
      %8467 = vmatprep.mubr.bf16.mxu0 %v6774
      %8468 = vmatmul.mubr.bf16.gmra.mrb[0].mxu0 %v6710
      %v8469 = vpop.f32.mrb[0].mxu0
      %v8470 = vadd.f32 %v8165, %v8469
      %v8471 = vpop.f32.mrb[0].mxu0
      %v8472 = vpop.f32.mrb[0].mxu0
      %v8473 = vadd.f32 %v8168, %v8472
      %v8474 = vpop.f32.mrb[0].mxu0
      %8475 = vmatprep.mubr.bf16.mxu0 %v6775
      %8476 = vmatmul.mubr.bf16.gmra.mrb[0].mxu0 %v6711
      %v8477 = vpop.f32.mrb[0].mxu0
      %v8478 = vadd.f32 %v8173, %v8477
      %v8479 = vpop.f32.mrb[0].mxu0
      %v8480 = vpop.f32.mrb[0].mxu0
      %v8481 = vadd.f32 %v8176, %v8480
      %v8482 = vpop.f32.mrb[0].mxu0
      %8483 = vmatprep.mubr.bf16.mxu0 %v6776
      %8484 = vmatmul.mubr.bf16.gmra.mrb[0].mxu0 %v6712
      %v8485 = vpop.f32.mrb[0].mxu0
      %v8486 = vadd.f32 %v8181, %v8485
      %v8487 = vpop.f32.mrb[0].mxu0
      %v8488 = vpop.f32.mrb[0].mxu0
      %v8489 = vadd.f32 %v8184, %v8488
      %v8490 = vpop.f32.mrb[0].mxu0
      %8491 = vmatprep.mubr.bf16.mxu0 %v6777
      %8492 = vmatmul.mubr.bf16.gmra.mrb[0].mxu0 %v6713
      %v8493 = vpop.f32.mrb[0].mxu0
      %v8494 = vadd.f32 %v8189, %v8493
      %v8495 = vpop.f32.mrb[0].mxu0
      %v8496 = vpop.f32.mrb[0].mxu0
      %v8497 = vadd.f32 %v8192, %v8496
      %v8498 = vpop.f32.mrb[0].mxu0
      %8499 = vmatprep.mubr.bf16.mxu0 %v6778
      %8500 = vmatmul.mubr.bf16.gmra.mrb[0].mxu0 %v6714
      %v8501 = vpop.f32.mrb[0].mxu0
      %v8502 = vadd.f32 %v8197, %v8501
      %v8503 = vpop.f32.mrb[0].mxu0
      %v8504 = vpop.f32.mrb[0].mxu0
      %v8505 = vadd.f32 %v8200, %v8504
      %v8506 = vpop.f32.mrb[0].mxu0
      %8507 = vmatprep.mubr.bf16.mxu0 %v6779
      %8508 = vmatmul.mubr.bf16.gmra.mrb[0].mxu0 %v6715
      %v8509 = vpop.f32.mrb[0].mxu0
      %v8510 = vadd.f32 %v8205, %v8509
      %v8511 = vpop.f32.mrb[0].mxu0
      %v8512 = vpop.f32.mrb[0].mxu0
      %v8513 = vadd.f32 %v8208, %v8512
      %v8514 = vpop.f32.mrb[0].mxu0
      %8515 = vmatprep.mubr.bf16.mxu0 %v6780
      %8516 = vmatmul.mubr.bf16.gmra.mrb[0].mxu0 %v6716
      %v8517 = vpop.f32.mrb[0].mxu0
      %v8518 = vadd.f32 %v8213, %v8517
      %v8519 = vpop.f32.mrb[0].mxu0
      %v8520 = vpop.f32.mrb[0].mxu0
      %v8521 = vadd.f32 %v8216, %v8520
      %v8522 = vpop.f32.mrb[0].mxu0
      %8523 = vmatprep.mubr.bf16.mxu0 %v6781
      %8524 = vmatmul.mubr.bf16.gmra.mrb[0].mxu0 %v6717
      %v8525 = vpop.f32.mrb[0].mxu0
      %v8526 = vadd.f32 %v8221, %v8525
      %v8527 = vpop.f32.mrb[0].mxu0
      %v8528 = vpop.f32.mrb[0].mxu0
      %v8529 = vadd.f32 %v8224, %v8528
      %v8530 = vpop.f32.mrb[0].mxu0
      %8531 = vmatprep.mubr.bf16.mxu0 %v6782
      %8532 = vmatmul.mubr.bf16.gmra.mrb[0].mxu0 %v6718
      %v8533 = vpop.f32.mrb[0].mxu0
      %v8534 = vadd.f32 %v8229, %v8533
      %v8535 = vpop.f32.mrb[0].mxu0
      %v8536 = vpop.f32.mrb[0].mxu0
      %v8537 = vadd.f32 %v8232, %v8536
      %v8538 = vpop.f32.mrb[0].mxu0
      %8539 = vmatprep.mubr.bf16.mxu0 %v6783
      %8540 = vmatmul.mubr.bf16.gmra.mrb[0].mxu0 %v6719
      %v8541 = vpop.f32.mrb[0].mxu0
      %v8542 = vadd.f32 %v8237, %v8541
      %v8543 = vpop.f32.mrb[0].mxu0
      %v8544 = vpop.f32.mrb[0].mxu0
      %v8545 = vadd.f32 %v8240, %v8544
      %v8546 = vpop.f32.mrb[0].mxu0
      %8547 = vdwg.mxu0
      %8548 = vmatprep.subr.bf16.mxu0 0
      %8549 = vmatpush1.bf16.msra.mxu0 %v8355
      %8550 = vmatprep.subr.bf16.mxu0 0
      %8551 = vmatpush1.bf16.msra.mxu0 %v8356
      %8552 = vmatprep.subr.bf16.mxu0 0
      %8553 = vmatpush1.bf16.msra.mxu0 %v8357
      %8554 = vmatprep.subr.bf16.mxu0 0
      %8555 = vmatpush1.bf16.msra.mxu0 %v8358
      %8556 = vmatprep.subr.bf16.mxu0 0
      %8557 = vmatpush1.bf16.msra.mxu0 %v8359
      %8558 = vmatprep.subr.bf16.mxu0 0
      %8559 = vmatpush1.bf16.msra.mxu0 %v8360
      %8560 = vmatprep.subr.bf16.mxu0 0
      %8561 = vmatpush1.bf16.msra.mxu0 %v8361
      %8562 = vmatprep.subr.bf16.mxu0 0
      %8563 = vmatpush1.bf16.msra.mxu0 %v8362
      %8564 = vmatprep.subr.bf16.mxu0 0
      %8565 = vmatpush1.bf16.msra.mxu0 0
      %8566 = vmatprep.subr.bf16.mxu0 0
      %8567 = vmatpush1.bf16.msra.mxu0 0
      %8568 = vmatprep.subr.bf16.mxu0 0
      %8569 = vmatpush1.bf16.msra.mxu0 0
      %8570 = vmatprep.subr.bf16.mxu0 0
      %8571 = vmatpush1.bf16.msra.mxu0 0
      %8572 = vmatprep.subr.bf16.mxu0 0
      %8573 = vmatpush1.bf16.msra.mxu0 0
      %8574 = vmatprep.subr.bf16.mxu0 0
      %8575 = vmatpush1.bf16.msra.mxu0 0
      %8576 = vmatprep.subr.bf16.mxu0 0
      %8577 = vmatpush1.bf16.msra.mxu0 0
      %8578 = vmatprep.subr.bf16.mxu0 0
      %8579 = vmatpush1.bf16.msra.mxu0 0
      %8580 = vmatprep.mubr.bf16.mxu0 0
      %8581 = vmatmul.mubr.bf16.gmra.mrb[0].mxu0 %v6832
      %v8582 = vpop.f32.mrb[0].mxu0
      %v8583 = vadd.f32 %v8422, %v8582
      %v8584 = vpop.f32.mrb[0].mxu0
      %v8585 = vpop.f32.mrb[0].mxu0
      %v8586 = vadd.f32 %v8425, %v8585
      %v8587 = vpop.f32.mrb[0].mxu0
      %8588 = vmatprep.mubr.bf16.mxu0 0
      %8589 = vmatmul.mubr.bf16.gmra.mrb[0].mxu0 %v6833
      %v8590 = vpop.f32.mrb[0].mxu0
      %v8591 = vadd.f32 %v8430, %v8590
      %v8592 = vpop.f32.mrb[0].mxu0
      %v8593 = vpop.f32.mrb[0].mxu0
      %v8594 = vadd.f32 %v8433, %v8593
      %v8595 = vpop.f32.mrb[0].mxu0
      %8596 = vmatprep.mubr.bf16.mxu0 0
      %8597 = vmatmul.mubr.bf16.gmra.mrb[0].mxu0 %v6834
      %v8598 = vpop.f32.mrb[0].mxu0
      %v8599 = vadd.f32 %v8438, %v8598
      %v8600 = vpop.f32.mrb[0].mxu0
      %v8601 = vpop.f32.mrb[0].mxu0
      %v8602 = vadd.f32 %v8441, %v8601
      %v8603 = vpop.f32.mrb[0].mxu0
      %8604 = vmatprep.mubr.bf16.mxu0 0
      %8605 = vmatmul.mubr.bf16.gmra.mrb[0].mxu0 %v6835
      %v8606 = vpop.f32.mrb[0].mxu0
      %v8607 = vadd.f32 %v8446, %v8606
      %v8608 = vpop.f32.mrb[0].mxu0
      %v8609 = vpop.f32.mrb[0].mxu0
      %v8610 = vadd.f32 %v8449, %v8609
      %v8611 = vpop.f32.mrb[0].mxu0
      %8612 = vmatprep.mubr.bf16.mxu0 0
      %8613 = vmatmul.mubr.bf16.gmra.mrb[0].mxu0 %v6836
      %v8614 = vpop.f32.mrb[0].mxu0
      %v8615 = vadd.f32 %v8454, %v8614
      %v8616 = vpop.f32.mrb[0].mxu0
      %v8617 = vpop.f32.mrb[0].mxu0
      %v8618 = vadd.f32 %v8457, %v8617
      %v8619 = vpop.f32.mrb[0].mxu0
      %8620 = vmatprep.mubr.bf16.mxu0 0
      %8621 = vmatmul.mubr.bf16.gmra.mrb[0].mxu0 %v6837
      %v8622 = vpop.f32.mrb[0].mxu0
      %v8623 = vadd.f32 %v8462, %v8622
      %v8624 = vpop.f32.mrb[0].mxu0
      %v8625 = vpop.f32.mrb[0].mxu0
      %v8626 = vadd.f32 %v8465, %v8625
      %v8627 = vpop.f32.mrb[0].mxu0
      %8628 = vmatprep.mubr.bf16.mxu0 0
      %8629 = vmatmul.mubr.bf16.gmra.mrb[0].mxu0 %v6838
      %v8630 = vpop.f32.mrb[0].mxu0
      %v8631 = vadd.f32 %v8470, %v8630
      %v8632 = vpop.f32.mrb[0].mxu0
      %v8633 = vpop.f32.mrb[0].mxu0
      %v8634 = vadd.f32 %v8473, %v8633
      %v8635 = vpop.f32.mrb[0].mxu0
      %8636 = vmatprep.mubr.bf16.mxu0 0
      %8637 = vmatmul.mubr.bf16.gmra.mrb[0].mxu0 %v6839
      %v8638 = vpop.f32.mrb[0].mxu0
      %v8639 = vadd.f32 %v8478, %v8638
      %v8640 = vpop.f32.mrb[0].mxu0
      %v8641 = vpop.f32.mrb[0].mxu0
      %v8642 = vadd.f32 %v8481, %v8641
      %v8643 = vpop.f32.mrb[0].mxu0
      %8644 = vmatprep.mubr.bf16.mxu0 0
      %8645 = vmatmul.mubr.bf16.gmra.mrb[0].mxu0 %v6840
      %v8646 = vpop.f32.mrb[0].mxu0
      %v8647 = vadd.f32 %v8486, %v8646
      %v8648 = vpop.f32.mrb[0].mxu0
      %v8649 = vpop.f32.mrb[0].mxu0
      %v8650 = vadd.f32 %v8489, %v8649
      %v8651 = vpop.f32.mrb[0].mxu0
      %8652 = vmatprep.mubr.bf16.mxu0 0
      %8653 = vmatmul.mubr.bf16.gmra.mrb[0].mxu0 %v6841
      %v8654 = vpop.f32.mrb[0].mxu0
      %v8655 = vadd.f32 %v8494, %v8654
      %v8656 = vpop.f32.mrb[0].mxu0
      %v8657 = vpop.f32.mrb[0].mxu0
      %v8658 = vadd.f32 %v8497, %v8657
      %v8659 = vpop.f32.mrb[0].mxu0
      %8660 = vmatprep.mubr.bf16.mxu0 0
      %8661 = vmatmul.mubr.bf16.gmra.mrb[0].mxu0 %v6842
      %v8662 = vpop.f32.mrb[0].mxu0
      %v8663 = vadd.f32 %v8502, %v8662
      %v8664 = vpop.f32.mrb[0].mxu0
      %v8665 = vpop.f32.mrb[0].mxu0
      %v8666 = vadd.f32 %v8505, %v8665
      %v8667 = vpop.f32.mrb[0].mxu0
      %8668 = vmatprep.mubr.bf16.mxu0 0
      %8669 = vmatmul.mubr.bf16.gmra.mrb[0].mxu0 %v6843
      %v8670 = vpop.f32.mrb[0].mxu0
      %v8671 = vadd.f32 %v8510, %v8670
      %v8672 = vpop.f32.mrb[0].mxu0
      %v8673 = vpop.f32.mrb[0].mxu0
      %v8674 = vadd.f32 %v8513, %v8673
      %v8675 = vpop.f32.mrb[0].mxu0
      %8676 = vmatprep.mubr.bf16.mxu0 0
      %8677 = vmatmul.mubr.bf16.gmra.mrb[0].mxu0 %v6844
      %v8678 = vpop.f32.mrb[0].mxu0
      %v8679 = vadd.f32 %v8518, %v8678
      %v8680 = vpop.f32.mrb[0].mxu0
      %v8681 = vpop.f32.mrb[0].mxu0
      %v8682 = vadd.f32 %v8521, %v8681
      %v8683 = vpop.f32.mrb[0].mxu0
      %8684 = vmatprep.mubr.bf16.mxu0 0
      %8685 = vmatmul.mubr.bf16.gmra.mrb[0].mxu0 %v6845
      %v8686 = vpop.f32.mrb[0].mxu0
      %v8687 = vadd.f32 %v8526, %v8686
      %v8688 = vpop.f32.mrb[0].mxu0
      %v8689 = vpop.f32.mrb[0].mxu0
      %v8690 = vadd.f32 %v8529, %v8689
      %v8691 = vpop.f32.mrb[0].mxu0
      %8692 = vmatprep.mubr.bf16.mxu0 0
      %8693 = vmatmul.mubr.bf16.gmra.mrb[0].mxu0 %v6846
      %v8694 = vpop.f32.mrb[0].mxu0
      %v8695 = vadd.f32 %v8534, %v8694
      %v8696 = vpop.f32.mrb[0].mxu0
      %v8697 = vpop.f32.mrb[0].mxu0
      %v8698 = vadd.f32 %v8537, %v8697
      %v8699 = vpop.f32.mrb[0].mxu0
      %8700 = vmatprep.mubr.bf16.mxu0 0
      %8701 = vmatmul.mubr.bf16.gmra.mrb[0].mxu0 %v6847
      %v8702 = vpop.f32.mrb[0].mxu0
      %v8703 = vadd.f32 %v8542, %v8702
      %v8704 = vpop.f32.mrb[0].mxu0
      %v8705 = vpop.f32.mrb[0].mxu0
      %v8706 = vadd.f32 %v8545, %v8705
      %v8707 = vpop.f32.mrb[0].mxu0
      %8708 = vdwg.mxu0
      %v8709 = vld [vmem:[%s5737] sm:$0xf]
      %v8710 = vld [vmem:[%s5737 + $0x4] sm:$0xf]
      %v8711 = vld [vmem:[%s5737 + $0xc] sm:$0xf]
      %v8712 = vld [vmem:[%s5737 + $0x10] sm:$0xf]
      %v8713 = vld [vmem:[%s5737 + $0x18] sm:$0xf]
      %v8714 = vld [vmem:[%s5737 + $0x1c] sm:$0xf]
      %v8715 = vld [vmem:[%s5737 + $0x24] sm:$0xf]
      %v8716 = vld [vmem:[%s5737 + $0x28] sm:$0xf]
      %v8717 = vld [vmem:[%s5737 + $0x30] sm:$0xf]
      %v8718 = vld [vmem:[%s5737 + $0x34] sm:$0xf]
      %v8719 = vld [vmem:[%s5737 + $0x3c] sm:$0xf]
      %v8720 = vld [vmem:[%s5737 + $0x40] sm:$0xf]
      %v8721 = vld [vmem:[%s5737 + $0x48] sm:$0xf]
      %v8722 = vld [vmem:[%s5737 + $0x4c] sm:$0xf]
      %v8723 = vld [vmem:[%s5737 + $0x54] sm:$0xf]
      %v8724 = vld [vmem:[%s5737 + $0x58] sm:$0xf]
      %v8725 = vld [vmem:[%s5737 + $0x60] sm:$0xf]
      %v8726 = vld [vmem:[%s5737 + $0x64] sm:$0xf]
      %v8727 = vld [vmem:[%s5737 + $0x6c] sm:$0xf]
      %v8728 = vld [vmem:[%s5737 + $0x70] sm:$0xf]
      %v8729 = vld [vmem:[%s5737 + $0x78] sm:$0xf]
      %v8730 = vld [vmem:[%s5737 + $0x7c] sm:$0xf]
      %v8731 = vld [vmem:[%s5737 + $0x84] sm:$0xf]
      %v8732 = vld [vmem:[%s5737 + $0x88] sm:$0xf]
      %v8733 = vld [vmem:[%s5737 + $0x90] sm:$0xf]
      %v8734 = vld [vmem:[%s5737 + $0x94] sm:$0xf]
      %v8735 = vld [vmem:[%s5737 + $0x9c] sm:$0xf]
      %v8736 = vld [vmem:[%s5737 + $0xa0] sm:$0xf]
      %v8737 = vld [vmem:[%s5737 + $0xa8] sm:$0xf]
      %v8738 = vld [vmem:[%s5737 + $0xac] sm:$0xf]
      %v8739 = vld [vmem:[%s5737 + $0xb4] sm:$0xf]
      %v8740 = vld [vmem:[%s5737 + $0xb8] sm:$0xf]
      %v8741 = vld [vmem:[%s5737 + $0x8] sm:$0x1]
      %v8742 = vld [vmem:[%s5737 + $0x14] sm:$0x1]
      %v8743 = vld [vmem:[%s5737 + $0x20] sm:$0x1]
      %v8744 = vld [vmem:[%s5737 + $0x2c] sm:$0x1]
      %v8745 = vld [vmem:[%s5737 + $0x38] sm:$0x1]
      %v8746 = vld [vmem:[%s5737 + $0x44] sm:$0x1]
      %v8747 = vld [vmem:[%s5737 + $0x50] sm:$0x1]
      %v8748 = vld [vmem:[%s5737 + $0x5c] sm:$0x1]
      %v8749 = vld [vmem:[%s5737 + $0x68] sm:$0x1]
      %v8750 = vld [vmem:[%s5737 + $0x74] sm:$0x1]
      %v8751 = vld [vmem:[%s5737 + $0x80] sm:$0x1]
      %v8752 = vld [vmem:[%s5737 + $0x8c] sm:$0x1]
      %v8753 = vld [vmem:[%s5737 + $0x98] sm:$0x1]
      %v8754 = vld [vmem:[%s5737 + $0xa4] sm:$0x1]
      %v8755 = vld [vmem:[%s5737 + $0xb0] sm:$0x1]
      %v8756 = vld [vmem:[%s5737 + $0xbc] sm:$0x1]
      %v8758 = vshrl.u32 %v8709, 16
      %v8760 = vrot.slane %v8758, 4
      %v8761 = vshll.u32 %v8709, 16
      %v8763 = vrot.slane %v8761, 5
      %v8764 = vor.u32 %v8760, %v8763
      %v8765 = vrot.slane %v8764, 4
      %v8767 = vshll.u32 %v8710, 16
      %v8769 = vrot.slane %v8767, 5
      %v8770 = vsel %vm1157, %v8765, %v8769
      %v8771 = vshrl.u32 %v8710, 16
      %v8773 = vrot.slane %v8771, 4
      %v8774 = vor.u32 %v8773, %v8769
      %v8775 = vrot.slane %v8774, 4
      %v8777 = vshll.u32 %v8741, 16
      %v8779 = vrot.slane %v8777, 5
      %v8780 = vsel %vm1157, %v8775, %v8779
      %v8782 = vshrl.u32 %v8711, 16
      %v8784 = vrot.slane %v8782, 4
      %v8785 = vshll.u32 %v8711, 16
      %v8787 = vrot.slane %v8785, 5
      %v8788 = vor.u32 %v8784, %v8787
      %v8789 = vrot.slane %v8788, 4
      %v8791 = vshll.u32 %v8712, 16
      %v8793 = vrot.slane %v8791, 5
      %v8794 = vsel %vm1157, %v8789, %v8793
      %v8795 = vshrl.u32 %v8712, 16
      %v8797 = vrot.slane %v8795, 4
      %v8798 = vor.u32 %v8797, %v8793
      %v8799 = vrot.slane %v8798, 4
      %v8801 = vshll.u32 %v8742, 16
      %v8803 = vrot.slane %v8801, 5
      %v8804 = vsel %vm1157, %v8799, %v8803
      %v8806 = vshrl.u32 %v8713, 16
      %v8808 = vrot.slane %v8806, 4
      %v8809 = vshll.u32 %v8713, 16
      %v8811 = vrot.slane %v8809, 5
      %v8812 = vor.u32 %v8808, %v8811
      %v8813 = vrot.slane %v8812, 4
      %v8815 = vshll.u32 %v8714, 16
      %v8817 = vrot.slane %v8815, 5
      %v8818 = vsel %vm1157, %v8813, %v8817
      %v8819 = vshrl.u32 %v8714, 16
      %v8821 = vrot.slane %v8819, 4
      %v8822 = vor.u32 %v8821, %v8817
      %v8823 = vrot.slane %v8822, 4
      %v8825 = vshll.u32 %v8743, 16
      %v8827 = vrot.slane %v8825, 5
      %v8828 = vsel %vm1157, %v8823, %v8827
      %v8830 = vshrl.u32 %v8715, 16
      %v8832 = vrot.slane %v8830, 4
      %v8833 = vshll.u32 %v8715, 16
      %v8835 = vrot.slane %v8833, 5
      %v8836 = vor.u32 %v8832, %v8835
      %v8837 = vrot.slane %v8836, 4
      %v8839 = vshll.u32 %v8716, 16
      %v8841 = vrot.slane %v8839, 5
      %v8842 = vsel %vm1157, %v8837, %v8841
      %v8843 = vshrl.u32 %v8716, 16
      %v8845 = vrot.slane %v8843, 4
      %v8846 = vor.u32 %v8845, %v8841
      %v8847 = vrot.slane %v8846, 4
      %v8849 = vshll.u32 %v8744, 16
      %v8851 = vrot.slane %v8849, 5
      %v8852 = vsel %vm1157, %v8847, %v8851
      %v8854 = vshrl.u32 %v8717, 16
      %v8856 = vrot.slane %v8854, 4
      %v8857 = vshll.u32 %v8717, 16
      %v8859 = vrot.slane %v8857, 5
      %v8860 = vor.u32 %v8856, %v8859
      %v8861 = vrot.slane %v8860, 4
      %v8863 = vshll.u32 %v8718, 16
      %v8865 = vrot.slane %v8863, 5
      %v8866 = vsel %vm1157, %v8861, %v8865
      %v8867 = vshrl.u32 %v8718, 16
      %v8869 = vrot.slane %v8867, 4
      %v8870 = vor.u32 %v8869, %v8865
      %v8871 = vrot.slane %v8870, 4
      %v8873 = vshll.u32 %v8745, 16
      %v8875 = vrot.slane %v8873, 5
      %v8876 = vsel %vm1157, %v8871, %v8875
      %v8878 = vshrl.u32 %v8719, 16
      %v8880 = vrot.slane %v8878, 4
      %v8881 = vshll.u32 %v8719, 16
      %v8883 = vrot.slane %v8881, 5
      %v8884 = vor.u32 %v8880, %v8883
      %v8885 = vrot.slane %v8884, 4
      %v8887 = vshll.u32 %v8720, 16
      %v8889 = vrot.slane %v8887, 5
      %v8890 = vsel %vm1157, %v8885, %v8889
      %v8891 = vshrl.u32 %v8720, 16
      %v8893 = vrot.slane %v8891, 4
      %v8894 = vor.u32 %v8893, %v8889
      %v8895 = vrot.slane %v8894, 4
      %v8897 = vshll.u32 %v8746, 16
      %v8899 = vrot.slane %v8897, 5
      %v8900 = vsel %vm1157, %v8895, %v8899
      %v8902 = vshrl.u32 %v8721, 16
      %v8904 = vrot.slane %v8902, 4
      %v8905 = vshll.u32 %v8721, 16
      %v8907 = vrot.slane %v8905, 5
      %v8908 = vor.u32 %v8904, %v8907
      %v8909 = vrot.slane %v8908, 4
      %v8911 = vshll.u32 %v8722, 16
      %v8913 = vrot.slane %v8911, 5
      %v8914 = vsel %vm1157, %v8909, %v8913
      %v8915 = vshrl.u32 %v8722, 16
      %v8917 = vrot.slane %v8915, 4
      %v8918 = vor.u32 %v8917, %v8913
      %v8919 = vrot.slane %v8918, 4
      %v8921 = vshll.u32 %v8747, 16
      %v8923 = vrot.slane %v8921, 5
      %v8924 = vsel %vm1157, %v8919, %v8923
      %v8926 = vshrl.u32 %v8723, 16
      %v8928 = vrot.slane %v8926, 4
      %v8929 = vshll.u32 %v8723, 16
      %v8931 = vrot.slane %v8929, 5
      %v8932 = vor.u32 %v8928, %v8931
      %v8933 = vrot.slane %v8932, 4
      %v8935 = vshll.u32 %v8724, 16
      %v8937 = vrot.slane %v8935, 5
      %v8938 = vsel %vm1157, %v8933, %v8937
      %v8939 = vshrl.u32 %v8724, 16
      %v8941 = vrot.slane %v8939, 4
      %v8942 = vor.u32 %v8941, %v8937
      %v8943 = vrot.slane %v8942, 4
      %v8945 = vshll.u32 %v8748, 16
      %v8947 = vrot.slane %v8945, 5
      %v8948 = vsel %vm1157, %v8943, %v8947
      %v8950 = vshrl.u32 %v8725, 16
      %v8952 = vrot.slane %v8950, 4
      %v8953 = vshll.u32 %v8725, 16
      %v8955 = vrot.slane %v8953, 5
      %v8956 = vor.u32 %v8952, %v8955
      %v8957 = vrot.slane %v8956, 4
      %v8959 = vshll.u32 %v8726, 16
      %v8961 = vrot.slane %v8959, 5
      %v8962 = vsel %vm1157, %v8957, %v8961
      %v8963 = vshrl.u32 %v8726, 16
      %v8965 = vrot.slane %v8963, 4
      %v8966 = vor.u32 %v8965, %v8961
      %v8967 = vrot.slane %v8966, 4
      %v8969 = vshll.u32 %v8749, 16
      %v8971 = vrot.slane %v8969, 5
      %v8972 = vsel %vm1157, %v8967, %v8971
      %v8974 = vshrl.u32 %v8727, 16
      %v8976 = vrot.slane %v8974, 4
      %v8977 = vshll.u32 %v8727, 16
      %v8979 = vrot.slane %v8977, 5
      %v8980 = vor.u32 %v8976, %v8979
      %v8981 = vrot.slane %v8980, 4
      %v8983 = vshll.u32 %v8728, 16
      %v8985 = vrot.slane %v8983, 5
      %v8986 = vsel %vm1157, %v8981, %v8985
      %v8987 = vshrl.u32 %v8728, 16
      %v8989 = vrot.slane %v8987, 4
      %v8990 = vor.u32 %v8989, %v8985
      %v8991 = vrot.slane %v8990, 4
      %v8993 = vshll.u32 %v8750, 16
      %v8995 = vrot.slane %v8993, 5
      %v8996 = vsel %vm1157, %v8991, %v8995
      %v8998 = vshrl.u32 %v8729, 16
      %v9000 = vrot.slane %v8998, 4
      %v9001 = vshll.u32 %v8729, 16
      %v9003 = vrot.slane %v9001, 5
      %v9004 = vor.u32 %v9000, %v9003
      %v9005 = vrot.slane %v9004, 4
      %v9007 = vshll.u32 %v8730, 16
      %v9009 = vrot.slane %v9007, 5
      %v9010 = vsel %vm1157, %v9005, %v9009
      %v9011 = vshrl.u32 %v8730, 16
      %v9013 = vrot.slane %v9011, 4
      %v9014 = vor.u32 %v9013, %v9009
      %v9015 = vrot.slane %v9014, 4
      %v9017 = vshll.u32 %v8751, 16
      %v9019 = vrot.slane %v9017, 5
      %v9020 = vsel %vm1157, %v9015, %v9019
      %v9022 = vshrl.u32 %v8731, 16
      %v9024 = vrot.slane %v9022, 4
      %v9025 = vshll.u32 %v8731, 16
      %v9027 = vrot.slane %v9025, 5
      %v9028 = vor.u32 %v9024, %v9027
      %v9029 = vrot.slane %v9028, 4
      %v9031 = vshll.u32 %v8732, 16
      %v9033 = vrot.slane %v9031, 5
      %v9034 = vsel %vm1157, %v9029, %v9033
      %v9035 = vshrl.u32 %v8732, 16
      %v9037 = vrot.slane %v9035, 4
      %v9038 = vor.u32 %v9037, %v9033
      %v9039 = vrot.slane %v9038, 4
      %v9041 = vshll.u32 %v8752, 16
      %v9043 = vrot.slane %v9041, 5
      %v9044 = vsel %vm1157, %v9039, %v9043
      %v9046 = vshrl.u32 %v8733, 16
      %v9048 = vrot.slane %v9046, 4
      %v9049 = vshll.u32 %v8733, 16
      %v9051 = vrot.slane %v9049, 5
      %v9052 = vor.u32 %v9048, %v9051
      %v9053 = vrot.slane %v9052, 4
      %v9055 = vshll.u32 %v8734, 16
      %v9057 = vrot.slane %v9055, 5
      %v9058 = vsel %vm1157, %v9053, %v9057
      %v9059 = vshrl.u32 %v8734, 16
      %v9061 = vrot.slane %v9059, 4
      %v9062 = vor.u32 %v9061, %v9057
      %v9063 = vrot.slane %v9062, 4
      %v9065 = vshll.u32 %v8753, 16
      %v9067 = vrot.slane %v9065, 5
      %v9068 = vsel %vm1157, %v9063, %v9067
      %v9070 = vshrl.u32 %v8735, 16
      %v9072 = vrot.slane %v9070, 4
      %v9073 = vshll.u32 %v8735, 16
      %v9075 = vrot.slane %v9073, 5
      %v9076 = vor.u32 %v9072, %v9075
      %v9077 = vrot.slane %v9076, 4
      %v9079 = vshll.u32 %v8736, 16
      %v9081 = vrot.slane %v9079, 5
      %v9082 = vsel %vm1157, %v9077, %v9081
      %v9083 = vshrl.u32 %v8736, 16
      %v9085 = vrot.slane %v9083, 4
      %v9086 = vor.u32 %v9085, %v9081
      %v9087 = vrot.slane %v9086, 4
      %v9089 = vshll.u32 %v8754, 16
      %v9091 = vrot.slane %v9089, 5
      %v9092 = vsel %vm1157, %v9087, %v9091
      %v9094 = vshrl.u32 %v8737, 16
      %v9096 = vrot.slane %v9094, 4
      %v9097 = vshll.u32 %v8737, 16
      %v9099 = vrot.slane %v9097, 5
      %v9100 = vor.u32 %v9096, %v9099
      %v9101 = vrot.slane %v9100, 4
      %v9103 = vshll.u32 %v8738, 16
      %v9105 = vrot.slane %v9103, 5
      %v9106 = vsel %vm1157, %v9101, %v9105
      %v9107 = vshrl.u32 %v8738, 16
      %v9109 = vrot.slane %v9107, 4
      %v9110 = vor.u32 %v9109, %v9105
      %v9111 = vrot.slane %v9110, 4
      %v9113 = vshll.u32 %v8755, 16
      %v9115 = vrot.slane %v9113, 5
      %v9116 = vsel %vm1157, %v9111, %v9115
      %v9118 = vshrl.u32 %v8739, 16
      %v9120 = vrot.slane %v9118, 4
      %v9121 = vshll.u32 %v8739, 16
      %v9123 = vrot.slane %v9121, 5
      %v9124 = vor.u32 %v9120, %v9123
      %v9125 = vrot.slane %v9124, 4
      %v9127 = vshll.u32 %v8740, 16
      %v9129 = vrot.slane %v9127, 5
      %v9130 = vsel %vm1157, %v9125, %v9129
      %v9131 = vshrl.u32 %v8740, 16
      %v9133 = vrot.slane %v9131, 4
      %v9134 = vor.u32 %v9133, %v9129
      %v9135 = vrot.slane %v9134, 4
      %v9137 = vshll.u32 %v8756, 16
      %v9139 = vrot.slane %v9137, 5
      %v9140 = vsel %vm1157, %v9135, %v9139
      %v9141 = vld [vmem:[%s5737] sm:$0xe]
      %v9142 = vld [vmem:[%s5737 + $0xc] sm:$0xe]
      %v9143 = vld [vmem:[%s5737 + $0x18] sm:$0xe]
      %v9144 = vld [vmem:[%s5737 + $0x24] sm:$0xe]
      %v9145 = vld [vmem:[%s5737 + $0x30] sm:$0xe]
      %v9146 = vld [vmem:[%s5737 + $0x3c] sm:$0xe]
      %v9147 = vld [vmem:[%s5737 + $0x48] sm:$0xe]
      %v9148 = vld [vmem:[%s5737 + $0x54] sm:$0xe]
      %v9149 = vld [vmem:[%s5737 + $0x60] sm:$0xe]
      %v9150 = vld [vmem:[%s5737 + $0x6c] sm:$0xe]
      %v9151 = vld [vmem:[%s5737 + $0x78] sm:$0xe]
      %v9152 = vld [vmem:[%s5737 + $0x84] sm:$0xe]
      %v9153 = vld [vmem:[%s5737 + $0x90] sm:$0xe]
      %v9154 = vld [vmem:[%s5737 + $0x9c] sm:$0xe]
      %v9155 = vld [vmem:[%s5737 + $0xa8] sm:$0xe]
      %v9156 = vld [vmem:[%s5737 + $0xb4] sm:$0xe]
      %v9205 = vrot.slane %v9141, 5
      %v9206 = vrot.slane %v9205, 4
      %v9207 = vrot.slane %v8710, 5
      %v9208 = vsel %vm1608, %v9206, %v9207
      %v9209 = vrot.slane %v9207, 4
      %v9210 = vrot.slane %v8741, 5
      %v9211 = vsel %vm1608, %v9209, %v9210
      %v9212 = vrot.slane %v9142, 5
      %v9213 = vrot.slane %v9212, 4
      %v9214 = vrot.slane %v8712, 5
      %v9215 = vsel %vm1608, %v9213, %v9214
      %v9216 = vrot.slane %v9214, 4
      %v9217 = vrot.slane %v8742, 5
      %v9218 = vsel %vm1608, %v9216, %v9217
      %v9219 = vrot.slane %v9143, 5
      %v9220 = vrot.slane %v9219, 4
      %v9221 = vrot.slane %v8714, 5
      %v9222 = vsel %vm1608, %v9220, %v9221
      %v9223 = vrot.slane %v9221, 4
      %v9224 = vrot.slane %v8743, 5
      %v9225 = vsel %vm1608, %v9223, %v9224
      %v9226 = vrot.slane %v9144, 5
      %v9227 = vrot.slane %v9226, 4
      %v9228 = vrot.slane %v8716, 5
      %v9229 = vsel %vm1608, %v9227, %v9228
      %v9230 = vrot.slane %v9228, 4
      %v9231 = vrot.slane %v8744, 5
      %v9232 = vsel %vm1608, %v9230, %v9231
      %v9233 = vrot.slane %v9145, 5
      %v9234 = vrot.slane %v9233, 4
      %v9235 = vrot.slane %v8718, 5
      %v9236 = vsel %vm1608, %v9234, %v9235
      %v9237 = vrot.slane %v9235, 4
      %v9238 = vrot.slane %v8745, 5
      %v9239 = vsel %vm1608, %v9237, %v9238
      %v9240 = vrot.slane %v9146, 5
      %v9241 = vrot.slane %v9240, 4
      %v9242 = vrot.slane %v8720, 5
      %v9243 = vsel %vm1608, %v9241, %v9242
      %v9244 = vrot.slane %v9242, 4
      %v9245 = vrot.slane %v8746, 5
      %v9246 = vsel %vm1608, %v9244, %v9245
      %v9247 = vrot.slane %v9147, 5
      %v9248 = vrot.slane %v9247, 4
      %v9249 = vrot.slane %v8722, 5
      %v9250 = vsel %vm1608, %v9248, %v9249
      %v9251 = vrot.slane %v9249, 4
      %v9252 = vrot.slane %v8747, 5
      %v9253 = vsel %vm1608, %v9251, %v9252
      %v9254 = vrot.slane %v9148, 5
      %v9255 = vrot.slane %v9254, 4
      %v9256 = vrot.slane %v8724, 5
      %v9257 = vsel %vm1608, %v9255, %v9256
      %v9258 = vrot.slane %v9256, 4
      %v9259 = vrot.slane %v8748, 5
      %v9260 = vsel %vm1608, %v9258, %v9259
      %v9261 = vrot.slane %v9149, 5
      %v9262 = vrot.slane %v9261, 4
      %v9263 = vrot.slane %v8726, 5
      %v9264 = vsel %vm1608, %v9262, %v9263
      %v9265 = vrot.slane %v9263, 4
      %v9266 = vrot.slane %v8749, 5
      %v9267 = vsel %vm1608, %v9265, %v9266
      %v9268 = vrot.slane %v9150, 5
      %v9269 = vrot.slane %v9268, 4
      %v9270 = vrot.slane %v8728, 5
      %v9271 = vsel %vm1608, %v9269, %v9270
      %v9272 = vrot.slane %v9270, 4
      %v9273 = vrot.slane %v8750, 5
      %v9274 = vsel %vm1608, %v9272, %v9273
      %v9275 = vrot.slane %v9151, 5
      %v9276 = vrot.slane %v9275, 4
      %v9277 = vrot.slane %v8730, 5
      %v9278 = vsel %vm1608, %v9276, %v9277
      %v9279 = vrot.slane %v9277, 4
      %v9280 = vrot.slane %v8751, 5
      %v9281 = vsel %vm1608, %v9279, %v9280
      %v9282 = vrot.slane %v9152, 5
      %v9283 = vrot.slane %v9282, 4
      %v9284 = vrot.slane %v8732, 5
      %v9285 = vsel %vm1608, %v9283, %v9284
      %v9286 = vrot.slane %v9284, 4
      %v9287 = vrot.slane %v8752, 5
      %v9288 = vsel %vm1608, %v9286, %v9287
      %v9289 = vrot.slane %v9153, 5
      %v9290 = vrot.slane %v9289, 4
      %v9291 = vrot.slane %v8734, 5
      %v9292 = vsel %vm1608, %v9290, %v9291
      %v9293 = vrot.slane %v9291, 4
      %v9294 = vrot.slane %v8753, 5
      %v9295 = vsel %vm1608, %v9293, %v9294
      %v9296 = vrot.slane %v9154, 5
      %v9297 = vrot.slane %v9296, 4
      %v9298 = vrot.slane %v8736, 5
      %v9299 = vsel %vm1608, %v9297, %v9298
      %v9300 = vrot.slane %v9298, 4
      %v9301 = vrot.slane %v8754, 5
      %v9302 = vsel %vm1608, %v9300, %v9301
      %v9303 = vrot.slane %v9155, 5
      %v9304 = vrot.slane %v9303, 4
      %v9305 = vrot.slane %v8738, 5
      %v9306 = vsel %vm1608, %v9304, %v9305
      %v9307 = vrot.slane %v9305, 4
      %v9308 = vrot.slane %v8755, 5
      %v9309 = vsel %vm1608, %v9307, %v9308
      %v9310 = vrot.slane %v9156, 5
      %v9311 = vrot.slane %v9310, 4
      %v9312 = vrot.slane %v8740, 5
      %v9313 = vsel %vm1608, %v9311, %v9312
      %v9314 = vrot.slane %v9312, 4
      %v9315 = vrot.slane %v8756, 5
      %v9316 = vsel %vm1608, %v9314, %v9315
      %v9333 = vunpack.c.l.b16 %v8709
      %v9334 = vunpack.c.l.b16 %v8710
      %v9335 = vunpack.c.l.b16 %v8711
      %v9336 = vunpack.c.l.b16 %v8712
      %v9337 = vunpack.c.l.b16 %v8713
      %v9338 = vunpack.c.l.b16 %v8714
      %v9339 = vunpack.c.l.b16 %v8715
      %v9340 = vunpack.c.l.b16 %v8716
      %v9341 = vunpack.c.l.b16 %v8717
      %v9342 = vunpack.c.l.b16 %v8718
      %v9343 = vunpack.c.l.b16 %v8719
      %v9344 = vunpack.c.l.b16 %v8720
      %v9345 = vunpack.c.l.b16 %v8721
      %v9346 = vunpack.c.l.b16 %v8722
      %v9347 = vunpack.c.l.b16 %v8723
      %v9348 = vunpack.c.l.b16 %v8724
      %v9349 = vunpack.c.l.b16 %v8725
      %v9350 = vunpack.c.l.b16 %v8726
      %v9351 = vunpack.c.l.b16 %v8727
      %v9352 = vunpack.c.l.b16 %v8728
      %v9353 = vunpack.c.l.b16 %v8729
      %v9354 = vunpack.c.l.b16 %v8730
      %v9355 = vunpack.c.l.b16 %v8731
      %v9356 = vunpack.c.l.b16 %v8732
      %v9357 = vunpack.c.l.b16 %v8733
      %v9358 = vunpack.c.l.b16 %v8734
      %v9359 = vunpack.c.l.b16 %v8735
      %v9360 = vunpack.c.l.b16 %v8736
      %v9361 = vunpack.c.l.b16 %v8737
      %v9362 = vunpack.c.l.b16 %v8738
      %v9363 = vunpack.c.l.b16 %v8739
      %v9364 = vunpack.c.l.b16 %v8740
      %v9365 = vpack.c.b16 %v9334, %v9333
      %v9366 = vpack.c.b16 %v9336, %v9335
      %v9367 = vpack.c.b16 %v9338, %v9337
      %v9368 = vpack.c.b16 %v9340, %v9339
      %v9369 = vpack.c.b16 %v9342, %v9341
      %v9370 = vpack.c.b16 %v9344, %v9343
      %v9371 = vpack.c.b16 %v9346, %v9345
      %v9372 = vpack.c.b16 %v9348, %v9347
      %v9373 = vpack.c.b16 %v9350, %v9349
      %v9374 = vpack.c.b16 %v9352, %v9351
      %v9375 = vpack.c.b16 %v9354, %v9353
      %v9376 = vpack.c.b16 %v9356, %v9355
      %v9377 = vpack.c.b16 %v9358, %v9357
      %v9378 = vpack.c.b16 %v9360, %v9359
      %v9379 = vpack.c.b16 %v9362, %v9361
      %v9380 = vpack.c.b16 %v9364, %v9363
      %v9397 = vunpack.c.l.b16 %v8770
      %v9398 = vunpack.c.l.b16 %v8780
      %v9399 = vunpack.c.l.b16 %v8794
      %v9400 = vunpack.c.l.b16 %v8804
      %v9401 = vunpack.c.l.b16 %v8818
      %v9402 = vunpack.c.l.b16 %v8828
      %v9403 = vunpack.c.l.b16 %v8842
      %v9404 = vunpack.c.l.b16 %v8852
      %v9405 = vunpack.c.l.b16 %v8866
      %v9406 = vunpack.c.l.b16 %v8876
      %v9407 = vunpack.c.l.b16 %v8890
      %v9408 = vunpack.c.l.b16 %v8900
      %v9409 = vunpack.c.l.b16 %v8914
      %v9410 = vunpack.c.l.b16 %v8924
      %v9411 = vunpack.c.l.b16 %v8938
      %v9412 = vunpack.c.l.b16 %v8948
      %v9413 = vunpack.c.l.b16 %v8962
      %v9414 = vunpack.c.l.b16 %v8972
      %v9415 = vunpack.c.l.b16 %v8986
      %v9416 = vunpack.c.l.b16 %v8996
      %v9417 = vunpack.c.l.b16 %v9010
      %v9418 = vunpack.c.l.b16 %v9020
      %v9419 = vunpack.c.l.b16 %v9034
      %v9420 = vunpack.c.l.b16 %v9044
      %v9421 = vunpack.c.l.b16 %v9058
      %v9422 = vunpack.c.l.b16 %v9068
      %v9423 = vunpack.c.l.b16 %v9082
      %v9424 = vunpack.c.l.b16 %v9092
      %v9425 = vunpack.c.l.b16 %v9106
      %v9426 = vunpack.c.l.b16 %v9116
      %v9427 = vunpack.c.l.b16 %v9130
      %v9428 = vunpack.c.l.b16 %v9140
      %v9429 = vpack.c.b16 %v9398, %v9397
      %v9430 = vpack.c.b16 %v9400, %v9399
      %v9431 = vpack.c.b16 %v9402, %v9401
      %v9432 = vpack.c.b16 %v9404, %v9403
      %v9433 = vpack.c.b16 %v9406, %v9405
      %v9434 = vpack.c.b16 %v9408, %v9407
      %v9435 = vpack.c.b16 %v9410, %v9409
      %v9436 = vpack.c.b16 %v9412, %v9411
      %v9437 = vpack.c.b16 %v9414, %v9413
      %v9438 = vpack.c.b16 %v9416, %v9415
      %v9439 = vpack.c.b16 %v9418, %v9417
      %v9440 = vpack.c.b16 %v9420, %v9419
      %v9441 = vpack.c.b16 %v9422, %v9421
      %v9442 = vpack.c.b16 %v9424, %v9423
      %v9443 = vpack.c.b16 %v9426, %v9425
      %v9444 = vpack.c.b16 %v9428, %v9427
      %v9461 = vunpack.c.l.b16 %v9208
      %v9462 = vunpack.c.l.b16 %v9211
      %v9463 = vunpack.c.l.b16 %v9215
      %v9464 = vunpack.c.l.b16 %v9218
      %v9465 = vunpack.c.l.b16 %v9222
      %v9466 = vunpack.c.l.b16 %v9225
      %v9467 = vunpack.c.l.b16 %v9229
      %v9468 = vunpack.c.l.b16 %v9232
      %v9469 = vunpack.c.l.b16 %v9236
      %v9470 = vunpack.c.l.b16 %v9239
      %v9471 = vunpack.c.l.b16 %v9243
      %v9472 = vunpack.c.l.b16 %v9246
      %v9473 = vunpack.c.l.b16 %v9250
      %v9474 = vunpack.c.l.b16 %v9253
      %v9475 = vunpack.c.l.b16 %v9257
      %v9476 = vunpack.c.l.b16 %v9260
      %v9477 = vunpack.c.l.b16 %v9264
      %v9478 = vunpack.c.l.b16 %v9267
      %v9479 = vunpack.c.l.b16 %v9271
      %v9480 = vunpack.c.l.b16 %v9274
      %v9481 = vunpack.c.l.b16 %v9278
      %v9482 = vunpack.c.l.b16 %v9281
      %v9483 = vunpack.c.l.b16 %v9285
      %v9484 = vunpack.c.l.b16 %v9288
      %v9485 = vunpack.c.l.b16 %v9292
      %v9486 = vunpack.c.l.b16 %v9295
      %v9487 = vunpack.c.l.b16 %v9299
      %v9488 = vunpack.c.l.b16 %v9302
      %v9489 = vunpack.c.l.b16 %v9306
      %v9490 = vunpack.c.l.b16 %v9309
      %v9491 = vunpack.c.l.b16 %v9313
      %v9492 = vunpack.c.l.b16 %v9316
      %v9493 = vpack.c.b16 %v9462, %v9461
      %v9494 = vpack.c.b16 %v9464, %v9463
      %v9495 = vpack.c.b16 %v9466, %v9465
      %v9496 = vpack.c.b16 %v9468, %v9467
      %v9497 = vpack.c.b16 %v9470, %v9469
      %v9498 = vpack.c.b16 %v9472, %v9471
      %v9499 = vpack.c.b16 %v9474, %v9473
      %v9500 = vpack.c.b16 %v9476, %v9475
      %v9501 = vpack.c.b16 %v9478, %v9477
      %v9502 = vpack.c.b16 %v9480, %v9479
      %v9503 = vpack.c.b16 %v9482, %v9481
      %v9504 = vpack.c.b16 %v9484, %v9483
      %v9505 = vpack.c.b16 %v9486, %v9485
      %v9506 = vpack.c.b16 %v9488, %v9487
      %v9507 = vpack.c.b16 %v9490, %v9489
      %v9508 = vpack.c.b16 %v9492, %v9491
      %s9525 = scalar_lea.vmem %s3, 384
      %v9526 = vld [vmem:[%s9525] sm:$0xf]
      %v9527 = vld [vmem:[%s9525 + $0x4] sm:$0xf]
      %v9528 = vld [vmem:[%s9525 + $0x8] sm:$0xf]
      %v9529 = vld [vmem:[%s9525 + $0xc] sm:$0xf]
      %v9530 = vld [vmem:[%s9525 + $0x10] sm:$0xf]
      %v9531 = vld [vmem:[%s9525 + $0x14] sm:$0xf]
      %v9532 = vld [vmem:[%s9525 + $0x18] sm:$0xf]
      %v9533 = vld [vmem:[%s9525 + $0x1c] sm:$0xf]
      %v9534 = vld [vmem:[%s9525 + $0x20] sm:$0xf]
      %v9535 = vld [vmem:[%s9525 + $0x24] sm:$0xf]
      %v9536 = vld [vmem:[%s9525 + $0x28] sm:$0xf]
      %v9537 = vld [vmem:[%s9525 + $0x2c] sm:$0xf]
      %v9538 = vld [vmem:[%s9525 + $0x30] sm:$0xf]
      %v9539 = vld [vmem:[%s9525 + $0x34] sm:$0xf]
      %v9540 = vld [vmem:[%s9525 + $0x38] sm:$0xf]
      %v9541 = vld [vmem:[%s9525 + $0x3c] sm:$0xf]
      %v9542 = vld [vmem:[%s9525 + $0x40] sm:$0xf]
      %v9543 = vld [vmem:[%s9525 + $0x44] sm:$0xf]
      %v9544 = vld [vmem:[%s9525 + $0x48] sm:$0xf]
      %v9545 = vld [vmem:[%s9525 + $0x4c] sm:$0xf]
      %v9546 = vld [vmem:[%s9525 + $0x50] sm:$0xf]
      %v9547 = vld [vmem:[%s9525 + $0x54] sm:$0xf]
      %v9548 = vld [vmem:[%s9525 + $0x58] sm:$0xf]
      %v9549 = vld [vmem:[%s9525 + $0x5c] sm:$0xf]
      %v9550 = vld [vmem:[%s9525 + $0x60] sm:$0xf]
      %v9551 = vld [vmem:[%s9525 + $0x64] sm:$0xf]
      %v9552 = vld [vmem:[%s9525 + $0x68] sm:$0xf]
      %v9553 = vld [vmem:[%s9525 + $0x6c] sm:$0xf]
      %v9554 = vld [vmem:[%s9525 + $0x70] sm:$0xf]
      %v9555 = vld [vmem:[%s9525 + $0x74] sm:$0xf]
      %v9556 = vld [vmem:[%s9525 + $0x78] sm:$0xf]
      %v9557 = vld [vmem:[%s9525 + $0x7c] sm:$0xf]
      %v9558 = vld [vmem:[%s9525 + $0x80] sm:$0xf]
      %v9559 = vld [vmem:[%s9525 + $0x84] sm:$0xf]
      %v9560 = vld [vmem:[%s9525 + $0x88] sm:$0xf]
      %v9561 = vld [vmem:[%s9525 + $0x8c] sm:$0xf]
      %v9562 = vld [vmem:[%s9525 + $0x90] sm:$0xf]
      %v9563 = vld [vmem:[%s9525 + $0x94] sm:$0xf]
      %v9564 = vld [vmem:[%s9525 + $0x98] sm:$0xf]
      %v9565 = vld [vmem:[%s9525 + $0x9c] sm:$0xf]
      %v9566 = vld [vmem:[%s9525 + $0xa0] sm:$0xf]
      %v9567 = vld [vmem:[%s9525 + $0xa4] sm:$0xf]
      %v9568 = vld [vmem:[%s9525 + $0xa8] sm:$0xf]
      %v9569 = vld [vmem:[%s9525 + $0xac] sm:$0xf]
      %v9570 = vld [vmem:[%s9525 + $0xb0] sm:$0xf]
      %v9571 = vld [vmem:[%s9525 + $0xb4] sm:$0xf]
      %v9572 = vld [vmem:[%s9525 + $0xb8] sm:$0xf]
      %v9573 = vld [vmem:[%s9525 + $0xbc] sm:$0xf]
      %v9622 = vunpack.c.l.b16 %v9526
      %v9623 = vunpack.c.l.b16 %v9527
      %v9624 = vunpack.c.l.b16 %v9528
      %v9625 = vunpack.c.l.b16 %v9529
      %v9626 = vunpack.c.l.b16 %v9530
      %v9627 = vunpack.c.l.b16 %v9531
      %v9628 = vunpack.c.l.b16 %v9532
      %v9629 = vunpack.c.l.b16 %v9533
      %v9630 = vunpack.c.l.b16 %v9534
      %v9631 = vunpack.c.l.b16 %v9535
      %v9632 = vunpack.c.l.b16 %v9536
      %v9633 = vunpack.c.l.b16 %v9537
      %v9634 = vunpack.c.l.b16 %v9538
      %v9635 = vunpack.c.l.b16 %v9539
      %v9636 = vunpack.c.l.b16 %v9540
      %v9637 = vunpack.c.l.b16 %v9541
      %v9638 = vunpack.c.l.b16 %v9542
      %v9639 = vunpack.c.l.b16 %v9543
      %v9640 = vunpack.c.l.b16 %v9544
      %v9641 = vunpack.c.l.b16 %v9545
      %v9642 = vunpack.c.l.b16 %v9546
      %v9643 = vunpack.c.l.b16 %v9547
      %v9644 = vunpack.c.l.b16 %v9548
      %v9645 = vunpack.c.l.b16 %v9549
      %v9646 = vunpack.c.l.b16 %v9550
      %v9647 = vunpack.c.l.b16 %v9551
      %v9648 = vunpack.c.l.b16 %v9552
      %v9649 = vunpack.c.l.b16 %v9553
      %v9650 = vunpack.c.l.b16 %v9554
      %v9651 = vunpack.c.l.b16 %v9555
      %v9652 = vunpack.c.l.b16 %v9556
      %v9653 = vunpack.c.l.b16 %v9557
      %v9654 = vunpack.c.l.b16 %v9558
      %v9655 = vunpack.c.l.b16 %v9559
      %v9656 = vunpack.c.l.b16 %v9560
      %v9657 = vunpack.c.l.b16 %v9561
      %v9658 = vunpack.c.l.b16 %v9562
      %v9659 = vunpack.c.l.b16 %v9563
      %v9660 = vunpack.c.l.b16 %v9564
      %v9661 = vunpack.c.l.b16 %v9565
      %v9662 = vunpack.c.l.b16 %v9566
      %v9663 = vunpack.c.l.b16 %v9567
      %v9664 = vunpack.c.l.b16 %v9568
      %v9665 = vunpack.c.l.b16 %v9569
      %v9666 = vunpack.c.l.b16 %v9570
      %v9667 = vunpack.c.l.b16 %v9571
      %v9668 = vunpack.c.l.b16 %v9572
      %v9669 = vunpack.c.l.b16 %v9573
      %v9670 = vpack.c.b16 %v9623, %v9622
      %v9671 = vpack.c.b16 %v9625, %v9624
      %v9672 = vpack.c.b16 %v9627, %v9626
      %v9673 = vpack.c.b16 %v9629, %v9628
      %v9674 = vpack.c.b16 %v9631, %v9630
      %v9675 = vpack.c.b16 %v9633, %v9632
      %v9676 = vpack.c.b16 %v9635, %v9634
      %v9677 = vpack.c.b16 %v9637, %v9636
      %v9678 = vpack.c.b16 %v9639, %v9638
      %v9679 = vpack.c.b16 %v9641, %v9640
      %v9680 = vpack.c.b16 %v9643, %v9642
      %v9681 = vpack.c.b16 %v9645, %v9644
      %v9682 = vpack.c.b16 %v9647, %v9646
      %v9683 = vpack.c.b16 %v9649, %v9648
      %v9684 = vpack.c.b16 %v9651, %v9650
      %v9685 = vpack.c.b16 %v9653, %v9652
      %v9686 = vpack.c.b16 %v9655, %v9654
      %v9687 = vpack.c.b16 %v9657, %v9656
      %v9688 = vpack.c.b16 %v9659, %v9658
      %v9689 = vpack.c.b16 %v9661, %v9660
      %v9690 = vpack.c.b16 %v9663, %v9662
      %v9691 = vpack.c.b16 %v9665, %v9664
      %v9692 = vpack.c.b16 %v9667, %v9666
      %v9693 = vpack.c.b16 %v9669, %v9668
      %9718 = vmatprep.subr.bf16.mxu0 0
      %9719 = vmatpush1.bf16.msra.mxu0 %v9670
      %9720 = vmatprep.subr.bf16.mxu0 0
      %9721 = vmatpush1.bf16.msra.mxu0 %v9671
      %9722 = vmatprep.subr.bf16.mxu0 0
      %9723 = vmatpush1.bf16.msra.mxu0 %v9672
      %9724 = vmatprep.subr.bf16.mxu0 0
      %9725 = vmatpush1.bf16.msra.mxu0 %v9673
      %9726 = vmatprep.subr.bf16.mxu0 0
      %9727 = vmatpush1.bf16.msra.mxu0 %v9674
      %9728 = vmatprep.subr.bf16.mxu0 0
      %9729 = vmatpush1.bf16.msra.mxu0 %v9675
      %9730 = vmatprep.subr.bf16.mxu0 0
      %9731 = vmatpush1.bf16.msra.mxu0 %v9676
      %9732 = vmatprep.subr.bf16.mxu0 0
      %9733 = vmatpush1.bf16.msra.mxu0 %v9677
      %9734 = vmatprep.subr.bf16.mxu0 0
      %9735 = vmatpush1.bf16.msra.mxu0 %v9678
      %9736 = vmatprep.subr.bf16.mxu0 0
      %9737 = vmatpush1.bf16.msra.mxu0 %v9679
      %9738 = vmatprep.subr.bf16.mxu0 0
      %9739 = vmatpush1.bf16.msra.mxu0 %v9680
      %9740 = vmatprep.subr.bf16.mxu0 0
      %9741 = vmatpush1.bf16.msra.mxu0 %v9681
      %9742 = vmatprep.subr.bf16.mxu0 0
      %9743 = vmatpush1.bf16.msra.mxu0 %v9682
      %9744 = vmatprep.subr.bf16.mxu0 0
      %9745 = vmatpush1.bf16.msra.mxu0 %v9683
      %9746 = vmatprep.subr.bf16.mxu0 0
      %9747 = vmatpush1.bf16.msra.mxu0 %v9684
      %9748 = vmatprep.subr.bf16.mxu0 0
      %9749 = vmatpush1.bf16.msra.mxu0 %v9685
      %9750 = vmatprep.mubr.bf16.mxu0 %v9429
      %9751 = vmatmul.mubr.bf16.gmra.mrb[0].mxu0 %v9365
      %v9752 = vpop.f32.mrb[0].mxu0
      %v9753 = vadd.f32 0.0, %v9752
      %v9754 = vpop.f32.mrb[0].mxu0
      %v9755 = vpop.f32.mrb[0].mxu0
      %v9756 = vadd.f32 0.0, %v9755
      %v9757 = vpop.f32.mrb[0].mxu0
      %9758 = vmatprep.mubr.bf16.mxu0 %v9430
      %9759 = vmatmul.mubr.bf16.gmra.mrb[0].mxu0 %v9366
      %v9760 = vpop.f32.mrb[0].mxu0
      %v9761 = vadd.f32 0.0, %v9760
      %v9762 = vpop.f32.mrb[0].mxu0
      %v9763 = vpop.f32.mrb[0].mxu0
      %v9764 = vadd.f32 0.0, %v9763
      %v9765 = vpop.f32.mrb[0].mxu0
      %9766 = vmatprep.mubr.bf16.mxu0 %v9431
      %9767 = vmatmul.mubr.bf16.gmra.mrb[0].mxu0 %v9367
      %v9768 = vpop.f32.mrb[0].mxu0
      %v9769 = vadd.f32 0.0, %v9768
      %v9770 = vpop.f32.mrb[0].mxu0
      %v9771 = vpop.f32.mrb[0].mxu0
      %v9772 = vadd.f32 0.0, %v9771
      %v9773 = vpop.f32.mrb[0].mxu0
      %9774 = vmatprep.mubr.bf16.mxu0 %v9432
      %9775 = vmatmul.mubr.bf16.gmra.mrb[0].mxu0 %v9368
      %v9776 = vpop.f32.mrb[0].mxu0
      %v9777 = vadd.f32 0.0, %v9776
      %v9778 = vpop.f32.mrb[0].mxu0
      %v9779 = vpop.f32.mrb[0].mxu0
      %v9780 = vadd.f32 0.0, %v9779
      %v9781 = vpop.f32.mrb[0].mxu0
      %9782 = vmatprep.mubr.bf16.mxu0 %v9433
      %9783 = vmatmul.mubr.bf16.gmra.mrb[0].mxu0 %v9369
      %v9784 = vpop.f32.mrb[0].mxu0
      %v9785 = vadd.f32 0.0, %v9784
      %v9786 = vpop.f32.mrb[0].mxu0
      %v9787 = vpop.f32.mrb[0].mxu0
      %v9788 = vadd.f32 0.0, %v9787
      %v9789 = vpop.f32.mrb[0].mxu0
      %9790 = vmatprep.mubr.bf16.mxu0 %v9434
      %9791 = vmatmul.mubr.bf16.gmra.mrb[0].mxu0 %v9370
      %v9792 = vpop.f32.mrb[0].mxu0
      %v9793 = vadd.f32 0.0, %v9792
      %v9794 = vpop.f32.mrb[0].mxu0
      %v9795 = vpop.f32.mrb[0].mxu0
      %v9796 = vadd.f32 0.0, %v9795
      %v9797 = vpop.f32.mrb[0].mxu0
      %9798 = vmatprep.mubr.bf16.mxu0 %v9435
      %9799 = vmatmul.mubr.bf16.gmra.mrb[0].mxu0 %v9371
      %v9800 = vpop.f32.mrb[0].mxu0
      %v9801 = vadd.f32 0.0, %v9800
      %v9802 = vpop.f32.mrb[0].mxu0
      %v9803 = vpop.f32.mrb[0].mxu0
      %v9804 = vadd.f32 0.0, %v9803
      %v9805 = vpop.f32.mrb[0].mxu0
      %9806 = vmatprep.mubr.bf16.mxu0 %v9436
      %9807 = vmatmul.mubr.bf16.gmra.mrb[0].mxu0 %v9372
      %v9808 = vpop.f32.mrb[0].mxu0
      %v9809 = vadd.f32 0.0, %v9808
      %v9810 = vpop.f32.mrb[0].mxu0
      %v9811 = vpop.f32.mrb[0].mxu0
      %v9812 = vadd.f32 0.0, %v9811
      %v9813 = vpop.f32.mrb[0].mxu0
      %9814 = vmatprep.mubr.bf16.mxu0 %v9437
      %9815 = vmatmul.mubr.bf16.gmra.mrb[0].mxu0 %v9373
      %v9816 = vpop.f32.mrb[0].mxu0
      %v9817 = vadd.f32 0.0, %v9816
      %v9818 = vpop.f32.mrb[0].mxu0
      %v9819 = vpop.f32.mrb[0].mxu0
      %v9820 = vadd.f32 0.0, %v9819
      %v9821 = vpop.f32.mrb[0].mxu0
      %9822 = vmatprep.mubr.bf16.mxu0 %v9438
      %9823 = vmatmul.mubr.bf16.gmra.mrb[0].mxu0 %v9374
      %v9824 = vpop.f32.mrb[0].mxu0
      %v9825 = vadd.f32 0.0, %v9824
      %v9826 = vpop.f32.mrb[0].mxu0
      %v9827 = vpop.f32.mrb[0].mxu0
      %v9828 = vadd.f32 0.0, %v9827
      %v9829 = vpop.f32.mrb[0].mxu0
      %9830 = vmatprep.mubr.bf16.mxu0 %v9439
      %9831 = vmatmul.mubr.bf16.gmra.mrb[0].mxu0 %v9375
      %v9832 = vpop.f32.mrb[0].mxu0
      %v9833 = vadd.f32 0.0, %v9832
      %v9834 = vpop.f32.mrb[0].mxu0
      %v9835 = vpop.f32.mrb[0].mxu0
      %v9836 = vadd.f32 0.0, %v9835
      %v9837 = vpop.f32.mrb[0].mxu0
      %9838 = vmatprep.mubr.bf16.mxu0 %v9440
      %9839 = vmatmul.mubr.bf16.gmra.mrb[0].mxu0 %v9376
      %v9840 = vpop.f32.mrb[0].mxu0
      %v9841 = vadd.f32 0.0, %v9840
      %v9842 = vpop.f32.mrb[0].mxu0
      %v9843 = vpop.f32.mrb[0].mxu0
      %v9844 = vadd.f32 0.0, %v9843
      %v9845 = vpop.f32.mrb[0].mxu0
      %9846 = vmatprep.mubr.bf16.mxu0 %v9441
      %9847 = vmatmul.mubr.bf16.gmra.mrb[0].mxu0 %v9377
      %v9848 = vpop.f32.mrb[0].mxu0
      %v9849 = vadd.f32 0.0, %v9848
      %v9850 = vpop.f32.mrb[0].mxu0
      %v9851 = vpop.f32.mrb[0].mxu0
      %v9852 = vadd.f32 0.0, %v9851
      %v9853 = vpop.f32.mrb[0].mxu0
      %9854 = vmatprep.mubr.bf16.mxu0 %v9442
      %9855 = vmatmul.mubr.bf16.gmra.mrb[0].mxu0 %v9378
      %v9856 = vpop.f32.mrb[0].mxu0
      %v9857 = vadd.f32 0.0, %v9856
      %v9858 = vpop.f32.mrb[0].mxu0
      %v9859 = vpop.f32.mrb[0].mxu0
      %v9860 = vadd.f32 0.0, %v9859
      %v9861 = vpop.f32.mrb[0].mxu0
      %9862 = vmatprep.mubr.bf16.mxu0 %v9443
      %9863 = vmatmul.mubr.bf16.gmra.mrb[0].mxu0 %v9379
      %v9864 = vpop.f32.mrb[0].mxu0
      %v9865 = vadd.f32 0.0, %v9864
      %v9866 = vpop.f32.mrb[0].mxu0
      %v9867 = vpop.f32.mrb[0].mxu0
      %v9868 = vadd.f32 0.0, %v9867
      %v9869 = vpop.f32.mrb[0].mxu0
      %9870 = vmatprep.mubr.bf16.mxu0 %v9444
      %9871 = vmatmul.mubr.bf16.gmra.mrb[0].mxu0 %v9380
      %v9872 = vpop.f32.mrb[0].mxu0
      %v9873 = vadd.f32 0.0, %v9872
      %v9874 = vpop.f32.mrb[0].mxu0
      %v9875 = vpop.f32.mrb[0].mxu0
      %v9876 = vadd.f32 0.0, %v9875
      %v9877 = vpop.f32.mrb[0].mxu0
      %9878 = vdwg.mxu0
      %9879 = vmatprep.subr.bf16.mxu0 0
      %9880 = vmatpush1.bf16.msra.mxu0 %v9686
      %9881 = vmatprep.subr.bf16.mxu0 0
      %9882 = vmatpush1.bf16.msra.mxu0 %v9687
      %9883 = vmatprep.subr.bf16.mxu0 0
      %9884 = vmatpush1.bf16.msra.mxu0 %v9688
      %9885 = vmatprep.subr.bf16.mxu0 0
      %9886 = vmatpush1.bf16.msra.mxu0 %v9689
      %9887 = vmatprep.subr.bf16.mxu0 0
      %9888 = vmatpush1.bf16.msra.mxu0 %v9690
      %9889 = vmatprep.subr.bf16.mxu0 0
      %9890 = vmatpush1.bf16.msra.mxu0 %v9691
      %9891 = vmatprep.subr.bf16.mxu0 0
      %9892 = vmatpush1.bf16.msra.mxu0 %v9692
      %9893 = vmatprep.subr.bf16.mxu0 0
      %9894 = vmatpush1.bf16.msra.mxu0 %v9693
      %9895 = vmatprep.subr.bf16.mxu0 0
      %9896 = vmatpush1.bf16.msra.mxu0 0
      %9897 = vmatprep.subr.bf16.mxu0 0
      %9898 = vmatpush1.bf16.msra.mxu0 0
      %9899 = vmatprep.subr.bf16.mxu0 0
      %9900 = vmatpush1.bf16.msra.mxu0 0
      %9901 = vmatprep.subr.bf16.mxu0 0
      %9902 = vmatpush1.bf16.msra.mxu0 0
      %9903 = vmatprep.subr.bf16.mxu0 0
      %9904 = vmatpush1.bf16.msra.mxu0 0
      %9905 = vmatprep.subr.bf16.mxu0 0
      %9906 = vmatpush1.bf16.msra.mxu0 0
      %9907 = vmatprep.subr.bf16.mxu0 0
      %9908 = vmatpush1.bf16.msra.mxu0 0
      %9909 = vmatprep.subr.bf16.mxu0 0
      %9910 = vmatpush1.bf16.msra.mxu0 0
      %9911 = vmatprep.mubr.bf16.mxu0 0
      %9912 = vmatmul.mubr.bf16.gmra.mrb[0].mxu0 %v9493
      %v9913 = vpop.f32.mrb[0].mxu0
      %v9914 = vadd.f32 %v9753, %v9913
      %v9915 = vpop.f32.mrb[0].mxu0
      %v9916 = vpop.f32.mrb[0].mxu0
      %v9917 = vadd.f32 %v9756, %v9916
      %v9918 = vpop.f32.mrb[0].mxu0
      %9919 = vmatprep.mubr.bf16.mxu0 0
      %9920 = vmatmul.mubr.bf16.gmra.mrb[0].mxu0 %v9494
      %v9921 = vpop.f32.mrb[0].mxu0
      %v9922 = vadd.f32 %v9761, %v9921
      %v9923 = vpop.f32.mrb[0].mxu0
      %v9924 = vpop.f32.mrb[0].mxu0
      %v9925 = vadd.f32 %v9764, %v9924
      %v9926 = vpop.f32.mrb[0].mxu0
      %9927 = vmatprep.mubr.bf16.mxu0 0
      %9928 = vmatmul.mubr.bf16.gmra.mrb[0].mxu0 %v9495
      %v9929 = vpop.f32.mrb[0].mxu0
      %v9930 = vadd.f32 %v9769, %v9929
      %v9931 = vpop.f32.mrb[0].mxu0
      %v9932 = vpop.f32.mrb[0].mxu0
      %v9933 = vadd.f32 %v9772, %v9932
      %v9934 = vpop.f32.mrb[0].mxu0
      %9935 = vmatprep.mubr.bf16.mxu0 0
      %9936 = vmatmul.mubr.bf16.gmra.mrb[0].mxu0 %v9496
      %v9937 = vpop.f32.mrb[0].mxu0
      %v9938 = vadd.f32 %v9777, %v9937
      %v9939 = vpop.f32.mrb[0].mxu0
      %v9940 = vpop.f32.mrb[0].mxu0
      %v9941 = vadd.f32 %v9780, %v9940
      %v9942 = vpop.f32.mrb[0].mxu0
      %9943 = vmatprep.mubr.bf16.mxu0 0
      %9944 = vmatmul.mubr.bf16.gmra.mrb[0].mxu0 %v9497
      %v9945 = vpop.f32.mrb[0].mxu0
      %v9946 = vadd.f32 %v9785, %v9945
      %v9947 = vpop.f32.mrb[0].mxu0
      %v9948 = vpop.f32.mrb[0].mxu0
      %v9949 = vadd.f32 %v9788, %v9948
      %v9950 = vpop.f32.mrb[0].mxu0
      %9951 = vmatprep.mubr.bf16.mxu0 0
      %9952 = vmatmul.mubr.bf16.gmra.mrb[0].mxu0 %v9498
      %v9953 = vpop.f32.mrb[0].mxu0
      %v9954 = vadd.f32 %v9793, %v9953
      %v9955 = vpop.f32.mrb[0].mxu0
      %v9956 = vpop.f32.mrb[0].mxu0
      %v9957 = vadd.f32 %v9796, %v9956
      %v9958 = vpop.f32.mrb[0].mxu0
      %9959 = vmatprep.mubr.bf16.mxu0 0
      %9960 = vmatmul.mubr.bf16.gmra.mrb[0].mxu0 %v9499
      %v9961 = vpop.f32.mrb[0].mxu0
      %v9962 = vadd.f32 %v9801, %v9961
      %v9963 = vpop.f32.mrb[0].mxu0
      %v9964 = vpop.f32.mrb[0].mxu0
      %v9965 = vadd.f32 %v9804, %v9964
      %v9966 = vpop.f32.mrb[0].mxu0
      %9967 = vmatprep.mubr.bf16.mxu0 0
      %9968 = vmatmul.mubr.bf16.gmra.mrb[0].mxu0 %v9500
      %v9969 = vpop.f32.mrb[0].mxu0
      %v9970 = vadd.f32 %v9809, %v9969
      %v9971 = vpop.f32.mrb[0].mxu0
      %v9972 = vpop.f32.mrb[0].mxu0
      %v9973 = vadd.f32 %v9812, %v9972
      %v9974 = vpop.f32.mrb[0].mxu0
      %9975 = vmatprep.mubr.bf16.mxu0 0
      %9976 = vmatmul.mubr.bf16.gmra.mrb[0].mxu0 %v9501
      %v9977 = vpop.f32.mrb[0].mxu0
      %v9978 = vadd.f32 %v9817, %v9977
      %v9979 = vpop.f32.mrb[0].mxu0
      %v9980 = vpop.f32.mrb[0].mxu0
      %v9981 = vadd.f32 %v9820, %v9980
      %v9982 = vpop.f32.mrb[0].mxu0
      %9983 = vmatprep.mubr.bf16.mxu0 0
      %9984 = vmatmul.mubr.bf16.gmra.mrb[0].mxu0 %v9502
      %v9985 = vpop.f32.mrb[0].mxu0
      %v9986 = vadd.f32 %v9825, %v9985
      %v9987 = vpop.f32.mrb[0].mxu0
      %v9988 = vpop.f32.mrb[0].mxu0
      %v9989 = vadd.f32 %v9828, %v9988
      %v9990 = vpop.f32.mrb[0].mxu0
      %9991 = vmatprep.mubr.bf16.mxu0 0
      %9992 = vmatmul.mubr.bf16.gmra.mrb[0].mxu0 %v9503
      %v9993 = vpop.f32.mrb[0].mxu0
      %v9994 = vadd.f32 %v9833, %v9993
      %v9995 = vpop.f32.mrb[0].mxu0
      %v9996 = vpop.f32.mrb[0].mxu0
      %v9997 = vadd.f32 %v9836, %v9996
      %v9998 = vpop.f32.mrb[0].mxu0
      %9999 = vmatprep.mubr.bf16.mxu0 0
      %10000 = vmatmul.mubr.bf16.gmra.mrb[0].mxu0 %v9504
      %v10001 = vpop.f32.mrb[0].mxu0
      %v10002 = vadd.f32 %v9841, %v10001
      %v10003 = vpop.f32.mrb[0].mxu0
      %v10004 = vpop.f32.mrb[0].mxu0
      %v10005 = vadd.f32 %v9844, %v10004
      %v10006 = vpop.f32.mrb[0].mxu0
      %10007 = vmatprep.mubr.bf16.mxu0 0
      %10008 = vmatmul.mubr.bf16.gmra.mrb[0].mxu0 %v9505
      %v10009 = vpop.f32.mrb[0].mxu0
      %v10010 = vadd.f32 %v9849, %v10009
      %v10011 = vpop.f32.mrb[0].mxu0
      %v10012 = vpop.f32.mrb[0].mxu0
      %v10013 = vadd.f32 %v9852, %v10012
      %v10014 = vpop.f32.mrb[0].mxu0
      %10015 = vmatprep.mubr.bf16.mxu0 0
      %10016 = vmatmul.mubr.bf16.gmra.mrb[0].mxu0 %v9506
      %v10017 = vpop.f32.mrb[0].mxu0
      %v10018 = vadd.f32 %v9857, %v10017
      %v10019 = vpop.f32.mrb[0].mxu0
      %v10020 = vpop.f32.mrb[0].mxu0
      %v10021 = vadd.f32 %v9860, %v10020
      %v10022 = vpop.f32.mrb[0].mxu0
      %10023 = vmatprep.mubr.bf16.mxu0 0
      %10024 = vmatmul.mubr.bf16.gmra.mrb[0].mxu0 %v9507
      %v10025 = vpop.f32.mrb[0].mxu0
      %v10026 = vadd.f32 %v9865, %v10025
      %v10027 = vpop.f32.mrb[0].mxu0
      %v10028 = vpop.f32.mrb[0].mxu0
      %v10029 = vadd.f32 %v9868, %v10028
      %v10030 = vpop.f32.mrb[0].mxu0
      %10031 = vmatprep.mubr.bf16.mxu0 0
      %10032 = vmatmul.mubr.bf16.gmra.mrb[0].mxu0 %v9508
      %v10033 = vpop.f32.mrb[0].mxu0
      %v10034 = vadd.f32 %v9873, %v10033
      %v10035 = vpop.f32.mrb[0].mxu0
      %v10036 = vpop.f32.mrb[0].mxu0
      %v10037 = vadd.f32 %v9876, %v10036
      %v10038 = vpop.f32.mrb[0].mxu0
      %10039 = vdwg.mxu0
      %v10040 = vadd.f32 %v8583, %v9914
      %v10041 = vadd.f32 %v8586, %v9917
      %v10042 = vadd.f32 %v8591, %v9922
      %v10043 = vadd.f32 %v8594, %v9925
      %v10044 = vadd.f32 %v8599, %v9930
      %v10045 = vadd.f32 %v8602, %v9933
      %v10046 = vadd.f32 %v8607, %v9938
      %v10047 = vadd.f32 %v8610, %v9941
      %v10048 = vadd.f32 %v8615, %v9946
      %v10049 = vadd.f32 %v8618, %v9949
      %v10050 = vadd.f32 %v8623, %v9954
      %v10051 = vadd.f32 %v8626, %v9957
      %v10052 = vadd.f32 %v8631, %v9962
      %v10053 = vadd.f32 %v8634, %v9965
      %v10054 = vadd.f32 %v8639, %v9970
      %v10055 = vadd.f32 %v8642, %v9973
      %v10056 = vadd.f32 %v8647, %v9978
      %v10057 = vadd.f32 %v8650, %v9981
      %v10058 = vadd.f32 %v8655, %v9986
      %v10059 = vadd.f32 %v8658, %v9989
      %v10060 = vadd.f32 %v8663, %v9994
      %v10061 = vadd.f32 %v8666, %v9997
      %v10062 = vadd.f32 %v8671, %v10002
      %v10063 = vadd.f32 %v8674, %v10005
      %v10064 = vadd.f32 %v8679, %v10010
      %v10065 = vadd.f32 %v8682, %v10013
      %v10066 = vadd.f32 %v8687, %v10018
      %v10067 = vadd.f32 %v8690, %v10021
      %v10068 = vadd.f32 %v8695, %v10026
      %v10069 = vadd.f32 %v8698, %v10029
      %v10070 = vadd.f32 %v8703, %v10034
      %v10071 = vadd.f32 %v8706, %v10037
      %v10072 = vld [vmem:[%s4] sm:$0x1]
      %v10074 = vlaneseq
      %v10075 = vshrl.u32 %v10074, 7
      %v10076 = vsub.s32 0, %v10075
      %v10077 = vrot.slane %v10072, %v10076
      %v10079 = vadd.f32 %v10040, %v10077
      %v10080 = vadd.f32 %v10041, %v10077
      %v10081 = vadd.f32 %v10042, %v10077
      %v10082 = vadd.f32 %v10043, %v10077
      %v10083 = vadd.f32 %v10044, %v10077
      %v10084 = vadd.f32 %v10045, %v10077
      %v10085 = vadd.f32 %v10046, %v10077
      %v10086 = vadd.f32 %v10047, %v10077
      %v10087 = vadd.f32 %v10048, %v10077
      %v10088 = vadd.f32 %v10049, %v10077
      %v10089 = vadd.f32 %v10050, %v10077
      %v10090 = vadd.f32 %v10051, %v10077
      %v10091 = vadd.f32 %v10052, %v10077
      %v10092 = vadd.f32 %v10053, %v10077
      %v10093 = vadd.f32 %v10054, %v10077
      %v10094 = vadd.f32 %v10055, %v10077
      %v10095 = vadd.f32 %v10056, %v10077
      %v10096 = vadd.f32 %v10057, %v10077
      %v10097 = vadd.f32 %v10058, %v10077
      %v10098 = vadd.f32 %v10059, %v10077
      %v10099 = vadd.f32 %v10060, %v10077
      %v10100 = vadd.f32 %v10061, %v10077
      %v10101 = vadd.f32 %v10062, %v10077
      %v10102 = vadd.f32 %v10063, %v10077
      %v10103 = vadd.f32 %v10064, %v10077
      %v10104 = vadd.f32 %v10065, %v10077
      %v10105 = vadd.f32 %v10066, %v10077
      %v10106 = vadd.f32 %v10067, %v10077
      %v10107 = vadd.f32 %v10068, %v10077
      %v10108 = vadd.f32 %v10069, %v10077
      %v10109 = vadd.f32 %v10070, %v10077
      %v10110 = vadd.f32 %v10071, %v10077
      %v10111 = vld [vmem:[%s219] sm:$0xff]
      %v10112 = vld [vmem:[%s219 + $0x8] sm:$0xff]
      %v10113 = vld [vmem:[%s219 + $0x10] sm:$0xff]
      %v10114 = vld [vmem:[%s219 + $0x18] sm:$0xff]
      %v10115 = vld [vmem:[%s219 + $0x20] sm:$0xff]
      %v10116 = vld [vmem:[%s219 + $0x28] sm:$0xff]
      %v10117 = vld [vmem:[%s219 + $0x30] sm:$0xff]
      %v10118 = vld [vmem:[%s219 + $0x38] sm:$0xff]
      %v10119 = vld [vmem:[%s219 + $0x40] sm:$0xff]
      %v10120 = vld [vmem:[%s219 + $0x48] sm:$0xff]
      %v10121 = vld [vmem:[%s219 + $0x50] sm:$0xff]
      %v10122 = vld [vmem:[%s219 + $0x58] sm:$0xff]
      %v10123 = vld [vmem:[%s219 + $0x60] sm:$0xff]
      %v10124 = vld [vmem:[%s219 + $0x68] sm:$0xff]
      %v10125 = vld [vmem:[%s219 + $0x70] sm:$0xff]
      %v10126 = vld [vmem:[%s219 + $0x78] sm:$0xff]
      %v10127 = vld [vmem:[%s219 + $0x80] sm:$0xff]
      %v10128 = vld [vmem:[%s219 + $0x88] sm:$0xff]
      %v10129 = vld [vmem:[%s219 + $0x90] sm:$0xff]
      %v10130 = vld [vmem:[%s219 + $0x98] sm:$0xff]
      %v10131 = vld [vmem:[%s219 + $0xa0] sm:$0xff]
      %v10132 = vld [vmem:[%s219 + $0xa8] sm:$0xff]
      %v10133 = vld [vmem:[%s219 + $0xb0] sm:$0xff]
      %v10134 = vld [vmem:[%s219 + $0xb8] sm:$0xff]
      %v10135 = vld [vmem:[%s219 + $0xc0] sm:$0xff]
      %v10136 = vld [vmem:[%s219 + $0xc8] sm:$0xff]
      %v10137 = vld [vmem:[%s219 + $0xd0] sm:$0xff]
      %v10138 = vld [vmem:[%s219 + $0xd8] sm:$0xff]
      %v10139 = vld [vmem:[%s219 + $0xe0] sm:$0xff]
      %v10140 = vld [vmem:[%s219 + $0xe8] sm:$0xff]
      %v10141 = vld [vmem:[%s219 + $0xf0] sm:$0xff]
      %v10142 = vld [vmem:[%s219 + $0xf8] sm:$0xff]
      %v10143 = vadd.f32 %v10111, %v10079
      %v10144 = vadd.f32 %v10112, %v10080
      %v10145 = vadd.f32 %v10113, %v10081
      %v10146 = vadd.f32 %v10114, %v10082
      %v10147 = vadd.f32 %v10115, %v10083
      %v10148 = vadd.f32 %v10116, %v10084
      %v10149 = vadd.f32 %v10117, %v10085
      %v10150 = vadd.f32 %v10118, %v10086
      %v10151 = vadd.f32 %v10119, %v10087
      %v10152 = vadd.f32 %v10120, %v10088
      %v10153 = vadd.f32 %v10121, %v10089
      %v10154 = vadd.f32 %v10122, %v10090
      %v10155 = vadd.f32 %v10123, %v10091
      %v10156 = vadd.f32 %v10124, %v10092
      %v10157 = vadd.f32 %v10125, %v10093
      %v10158 = vadd.f32 %v10126, %v10094
      %v10159 = vadd.f32 %v10127, %v10095
      %v10160 = vadd.f32 %v10128, %v10096
      %v10161 = vadd.f32 %v10129, %v10097
      %v10162 = vadd.f32 %v10130, %v10098
      %v10163 = vadd.f32 %v10131, %v10099
      %v10164 = vadd.f32 %v10132, %v10100
      %v10165 = vadd.f32 %v10133, %v10101
      %v10166 = vadd.f32 %v10134, %v10102
      %v10167 = vadd.f32 %v10135, %v10103
      %v10168 = vadd.f32 %v10136, %v10104
      %v10169 = vadd.f32 %v10137, %v10105
      %v10170 = vadd.f32 %v10138, %v10106
      %v10171 = vadd.f32 %v10139, %v10107
      %v10172 = vadd.f32 %v10140, %v10108
      %v10173 = vadd.f32 %v10141, %v10109
      %v10174 = vadd.f32 %v10142, %v10110
      %10175 = vst [vmem:[%s224] sm:$0xff] %v10143
      %10176 = vst [vmem:[%s224 + $0x8] sm:$0xff] %v10144
      %10177 = vst [vmem:[%s224 + $0x10] sm:$0xff] %v10145
      %10178 = vst [vmem:[%s224 + $0x18] sm:$0xff] %v10146
      %10179 = vst [vmem:[%s224 + $0x20] sm:$0xff] %v10147
      %10180 = vst [vmem:[%s224 + $0x28] sm:$0xff] %v10148
      %10181 = vst [vmem:[%s224 + $0x30] sm:$0xff] %v10149
      %10182 = vst [vmem:[%s224 + $0x38] sm:$0xff] %v10150
      %10183 = vst [vmem:[%s224 + $0x40] sm:$0xff] %v10151
      %10184 = vst [vmem:[%s224 + $0x48] sm:$0xff] %v10152
      %10185 = vst [vmem:[%s224 + $0x50] sm:$0xff] %v10153
      %10186 = vst [vmem:[%s224 + $0x58] sm:$0xff] %v10154
      %10187 = vst [vmem:[%s224 + $0x60] sm:$0xff] %v10155
      %10188 = vst [vmem:[%s224 + $0x68] sm:$0xff] %v10156
      %10189 = vst [vmem:[%s224 + $0x70] sm:$0xff] %v10157
      %10190 = vst [vmem:[%s224 + $0x78] sm:$0xff] %v10158
      %10191 = vst [vmem:[%s224 + $0x80] sm:$0xff] %v10159
      %10192 = vst [vmem:[%s224 + $0x88] sm:$0xff] %v10160
      %10193 = vst [vmem:[%s224 + $0x90] sm:$0xff] %v10161
      %10194 = vst [vmem:[%s224 + $0x98] sm:$0xff] %v10162
      %10195 = vst [vmem:[%s224 + $0xa0] sm:$0xff] %v10163
      %10196 = vst [vmem:[%s224 + $0xa8] sm:$0xff] %v10164
      %10197 = vst [vmem:[%s224 + $0xb0] sm:$0xff] %v10165
      %10198 = vst [vmem:[%s224 + $0xb8] sm:$0xff] %v10166
      %10199 = vst [vmem:[%s224 + $0xc0] sm:$0xff] %v10167
      %10200 = vst [vmem:[%s224 + $0xc8] sm:$0xff] %v10168
      %10201 = vst [vmem:[%s224 + $0xd0] sm:$0xff] %v10169
      %10202 = vst [vmem:[%s224 + $0xd8] sm:$0xff] %v10170
      %10203 = vst [vmem:[%s224 + $0xe0] sm:$0xff] %v10171
      %10204 = vst [vmem:[%s224 + $0xe8] sm:$0xff] %v10172
      %10205 = vst [vmem:[%s224 + $0xf0] sm:$0xff] %v10173
      %10206 = vst [vmem:[%s224 + $0xf8] sm:$0xff] %v10174
      %p10207 = scmp.lt.s32.totalorder %s16, 1
      %s10208 = scalar_select %p10207, %s16, 1
      %s10209 = smul.addr %s10208, 32
      %s10210 = smul.addr %s10209, 8
      %s10211 = scalar_lea.vmem %s5, %s10210
      // Predicated region
      $region41: #{resnet_block_forward.1} parent=39 // pred_check
        %p10212 = pneg %p144
      $region42: #{resnet_block_forward.1} parent=39 // pred_check_branch
        %10214 = sbr.rel (%p10212) target = $region44
      $region43: #{resnet_block_forward.1} parent=39 // pred_region
        _
      $region44: #{resnet_block_forward.1} parent=39 // pred_fallthru
        _
    $region40: #{resnet_block_forward.1} parent=5 // pred_fallthru
      _
    %p10215 = scmp.le.s32.totalorder 2, %s11
    // Predicated region
    $region45: #{resnet_block_forward.1} parent=5 // pred_check
      %p10216 = pneg %p10215
    $region46: #{resnet_block_forward.1} parent=5 // pred_check_branch
      %10218 = sbr.rel (%p10216) target = $region48
    $region47: #{resnet_block_forward.1} parent=5 // pred_region
      %s10219 = ssub.s32 %s11, 2
      // Predicated region
      $region49: #{resnet_block_forward.1} parent=47 // pred_check
        %p10220 = pneg %p150
      $region50: #{resnet_block_forward.1} parent=47 // pred_check_branch
        %10222 = sbr.rel (%p10220) target = $region52
      $region51: #{resnet_block_forward.1} parent=47 // pred_region
        %p10223 = scmp.lt.s32.totalorder %s17, 1
        %s10224 = scalar_select %p10223, %s17, 1
        %s10225 = smul.addr %s10224, 32
        %s10226 = smul.addr %s10225, 8
        %s10227 = scalar_lea.vmem %s5, %s10226
      $region52: #{resnet_block_forward.1} parent=47 // pred_fallthru
        _
    $region48: #{resnet_block_forward.1} parent=5 // pred_fallthru
      _
  $region6: #{resnet_block_forward.1} parent=0 // loop_footer
    %s15 = sadd.s32 1, %s11
  $region7: #{resnet_block_forward.1} parent=0 // loop_footer_branch
    %10 = sbr.rel target = $region3
  $region8: #{resnet_block_forward.1} parent=0 // loop_exit
    _

</llo_original>
